<compile_context>
chip_gen: v7x
topology: tpu7x:2x2x1
jax: 0.10.0
libtpu: 0.0.40
codegen_flags: <defaults>
</compile_context>

<pallas_src>
import functools

import jax
import jax.numpy as jnp
from jax.experimental import pallas as pl
from jax.experimental.pallas import tpu as pltpu


def _round_up(x, m):
    return ((x + m - 1) // m) * m


def _cdiv(a, b):
    return (a + b - 1) // b


def _choose_tb(batch, seq, target_rows=512):
    """Batch tile: ~target_rows activation rows per step, multiple of 8,
    and (when the batch allows it) at least 2 grid steps for v7x's 2 TCs."""
    tb = max(8, _round_up(_cdiv(target_rows, seq), 8))
    half = max(8, _round_up(_cdiv(batch, 2), 8))
    return max(8, min(tb, half))


def _vmem_limit_bytes():
    """Generation-aware VMEM limit: ~3/4 of physical, capped at 100 MiB."""
    cap = 64 * 1024 * 1024
    try:
        info = pltpu.get_tpu_info()
        cap = int(getattr(info, "vmem_capacity_bytes", cap))
    except Exception:
        pass
    return max(32 * 1024 * 1024, min((cap * 3) // 4, 100 * 1024 * 1024))


def _doc_encoder_kernel(x_ref, wq_ref, wk_ref, wv_ref, bq_ref, bk_ref, bv_ref,
                        wo_ref, bo_ref, wp_ref, bp_ref, wa_ref, ba_ref,
                        va_ref, o_ref, *, num_heads):
    tb, S, D = x_ref.shape
    H = num_heads
    hd = D // H
    A_pad = wa_ref.shape[1]

    # Flatten the batch tile: all projection matmuls run on (tb*S, D).
    x = x_ref[...].reshape(tb * S, D)                       # bf16

    # --- nn.MultiheadAttention in_proj (Q = K = V = x) ------------------------
    # 1/sqrt(hd) is pre-folded into wq/bq host-side.  bf16 operands, f32 acc,
    # results cast back to bf16 for the attention matmuls.
    q = (jnp.dot(x, wq_ref[...], preferred_element_type=jnp.float32)
         + bq_ref[...]).astype(jnp.bfloat16)
    k = (jnp.dot(x, wk_ref[...], preferred_element_type=jnp.float32)
         + bk_ref[...]).astype(jnp.bfloat16)
    v = (jnp.dot(x, wv_ref[...], preferred_element_type=jnp.float32)
         + bv_ref[...]).astype(jnp.bfloat16)

    # --- scaled dot-product attention, batched over all (doc, head) pairs ----
    def to_heads(t):                                        # (tb*S,D) -> (tb*H,S,hd)
        return jnp.swapaxes(t.reshape(tb, S, H, hd), 1, 2).reshape(tb * H, S, hd)

    qh, kh, vh = to_heads(q), to_heads(k), to_heads(v)

    s = jnp.einsum("bqd,bkd->bqk", qh, kh,
                   preferred_element_type=jnp.float32)      # (tb*H, S, S) f32
    s = s - jnp.max(s, axis=-1, keepdims=True)
    p = jnp.exp(s)
    attn = (p * pl.reciprocal(jnp.sum(p, axis=-1, keepdims=True), approx=True)
            ).astype(jnp.bfloat16)
    ctx_h = jnp.einsum("bqk,bkd->bqd", attn, vh,
                       preferred_element_type=jnp.float32)  # (tb*H, S, hd) f32
    # back to (tb*S, D) with heads concatenated along lanes
    ctx = jnp.swapaxes(ctx_h.reshape(tb, H, S, hd), 1, 2).reshape(tb * S, D)

    # --- MHA out_proj ---------------------------------------------------------
    mha = jnp.dot(ctx.astype(jnp.bfloat16), wo_ref[...],
                  preferred_element_type=jnp.float32) + bo_ref[...]

    # --- F.dropout / MHA attention dropout: identity at inference ------------

    # --- self.proj = nn.Linear(D, D) ------------------------------------------
    y = jnp.dot(mha.astype(jnp.bfloat16), wp_ref[...],
                preferred_element_type=jnp.float32) + bp_ref[...]

    # --- AdditiveAttention: score = v^T tanh(W y + b), softmax over seq ------
    # A is zero-padded to A_pad lanes host-side; padded lanes contribute 0.
    t = jnp.tanh(jnp.dot(y.astype(jnp.bfloat16), wa_ref[...],
                         preferred_element_type=jnp.float32) + ba_ref[...])
    t3 = t.reshape(tb, S, A_pad)
    y3 = y.reshape(tb, S, D)
    # elementwise mul + lane reduce instead of a 1-lane-wide matmul.
    # (the query bias `ca` is omitted: softmax over seq is shift-invariant)
    sc = jnp.sum(t3 * va_ref[...], axis=-1, keepdims=True)  # (tb, S, 1)
    sc = sc - jnp.max(sc, axis=1, keepdims=True)
    e = jnp.exp(sc)
    alpha = e * pl.reciprocal(jnp.sum(e, axis=1, keepdims=True), approx=True)
    o_ref[...] = jnp.sum(alpha * y3, axis=1).astype(o_ref.dtype)   # (tb, D)


def doc_encoder(x, params, num_heads, *, tb=None):
    """x: (B, S, D) float32 BERT embeddings -> (B, D) document vectors."""
    B, S, D = x.shape
    A = params["wa"].shape[0]
    hd = D // num_heads
    scale = 1.0 / (hd ** 0.5)

    if tb is None:
        tb = _choose_tb(B, S)
    n_blocks = _cdiv(B, tb)
    B_pad = n_blocks * tb

    # bf16 activations at the kernel boundary; pad batch to the tile.
    x_in = x.astype(jnp.bfloat16)
    if B_pad != B:
        x_in = jnp.pad(x_in, ((0, B_pad - B), (0, 0), (0, 0)))

    # Pad additive-attention hidden dim to a lane-dense multiple of 128.
    A_pad = _round_up(A, 128)

    # Pre-split packed QKV, pre-transpose all weights, fold softmax scale into
    # Wq/bq; matmul operands in bf16, biases in f32.
    wqkv = params["wqkv"]                                   # (3D, D) PyTorch layout
    bqkv = params["bqkv"]                                   # (1, 3D)
    wq_t = (wqkv[:D].T * scale).astype(jnp.bfloat16)        # (D, D)
    wk_t = wqkv[D:2 * D].T.astype(jnp.bfloat16)
    wv_t = wqkv[2 * D:].T.astype(jnp.bfloat16)
    bq = (bqkv[:, :D] * scale).astype(jnp.float32)          # (1, D)
    bk = bqkv[:, D:2 * D].astype(jnp.float32)
    bv = bqkv[:, 2 * D:].astype(jnp.float32)
    wo_t = params["wo"].T.astype(jnp.bfloat16)              # (D, D)
    bo = params["bo"].astype(jnp.float32)                   # (1, D)
    wp_t = params["wp"].T.astype(jnp.bfloat16)              # (D, D)
    bp = params["bp"].astype(jnp.float32)                   # (1, D)
    wa_t = jnp.pad(params["wa"].T.astype(jnp.bfloat16),
                   ((0, 0), (0, A_pad - A)))                # (D, A_pad)
    ba = jnp.pad(params["ba"].astype(jnp.float32),
                 ((0, 0), (0, A_pad - A)))                  # (1, A_pad)
    va_row = jnp.pad(params["va"].T.astype(jnp.float32),
                     ((0, 0), (0, A_pad - A)))              # (1, A_pad)
    # params["ca"] (additive query bias) is dropped: seq softmax is shift-invariant.

    kernel = functools.partial(_doc_encoder_kernel, num_heads=num_heads)

    def const(shape):
        n = len(shape)
        return pl.BlockSpec(shape, lambda b, _n=n: (0,) * _n)

    out = pl.pallas_call(
        kernel,
        out_shape=jax.ShapeDtypeStruct((B_pad, D), jnp.float32),
        grid=(n_blocks,),
        in_specs=[
            pl.BlockSpec((tb, S, D), lambda b: (b, 0, 0)),  # x: tb docs per step
            const((D, D)), const((D, D)), const((D, D)),    # wq_t, wk_t, wv_t
            const((1, D)), const((1, D)), const((1, D)),    # bq, bk, bv
            const((D, D)), const((1, D)),                   # wo_t, bo
            const((D, D)), const((1, D)),                   # wp_t, bp
            const((D, A_pad)), const((1, A_pad)),           # wa_t, ba
            const((1, A_pad)),                              # va (row)
        ],
        out_specs=pl.BlockSpec((tb, D), lambda b: (b, 0)),  # lane-dense slab
        compiler_params=pltpu.CompilerParams(
            dimension_semantics=("parallel",),
            vmem_limit_bytes=_vmem_limit_bytes(),
        ),
    )(x_in, wq_t, wk_t, wv_t, bq, bk, bv, wo_t, bo, wp_t, bp, wa_t, ba, va_row)
    return out[:B]


def _reference(x, p, H):
    """Pure-JAX f32 reference of the same math (for verification)."""
    B, S, D = x.shape
    hd = D // H
    qkv = x @ p["wqkv"].T + p["bqkv"][0]
    q, k, v = qkv[..., :D], qkv[..., D:2 * D], qkv[..., 2 * D:]

    def split(t):
        return t.reshape(B, S, H, hd).transpose(0, 2, 1, 3)

    qh, kh, vh = split(q), split(k), split(v)
    scores = jnp.einsum("bhqd,bhkd->bhqk", qh, kh) / jnp.sqrt(hd)
    attn = jax.nn.softmax(scores, axis=-1)
    ctx = jnp.einsum("bhqk,bhkd->bhqd", attn, vh).transpose(0, 2, 1, 3).reshape(B, S, D)
    mha = ctx @ p["wo"].T + p["bo"][0]
    y = mha @ p["wp"].T + p["bp"][0]
    t = jnp.tanh(y @ p["wa"].T + p["ba"][0])
    s = t @ p["va"][:, 0] + p["ca"][0, 0]
    alpha = jax.nn.softmax(s, axis=-1)
    return jnp.einsum("bs,bsd->bd", alpha, y)


if __name__ == "__main__":
    # Small shapes consistent with the module: hparams.word_emb_dim=D,
    # hparams.head_num=H, hparams.attention_hidden_dim=A, hparams.title_size=S.
    B, S, D, H, A = 2, 8, 64, 4, 32

    key = jax.random.PRNGKey(0)
    ks = jax.random.split(key, 12)
    sc = 0.05  # deterministic small-scale init

    params = {
        "wqkv": jax.random.normal(ks[0], (3 * D, D), jnp.float32) * sc,
        "bqkv": jax.random.normal(ks[1], (1, 3 * D), jnp.float32) * sc,
        "wo":   jax.random.normal(ks[2], (D, D), jnp.float32) * sc,
        "bo":   jax.random.normal(ks[3], (1, D), jnp.float32) * sc,
        "wp":   jax.random.normal(ks[4], (D, D), jnp.float32) * sc,
        "bp":   jax.random.normal(ks[5], (1, D), jnp.float32) * sc,
        "wa":   jax.random.normal(ks[6], (A, D), jnp.float32) * sc,
        "ba":   jax.random.normal(ks[7], (1, A), jnp.float32) * sc,
        "va":   jax.random.normal(ks[8], (A, 1), jnp.float32) * sc,
        "ca":   jax.random.normal(ks[9], (1, 1), jnp.float32) * sc,
    }
    # Stand-in for BERT last_hidden_state (batch, seq, dim).
    x = jax.random.normal(ks[11], (B, S, D), jnp.float32)

    out = doc_encoder(x, params, H)
    out = jax.block_until_ready(out)

    ref = _reference(x, params, H)
    assert out.shape == (B, D)
    # bf16 matmul operands + approx reciprocal -> compare with relaxed tolerance.
    assert jnp.allclose(out, ref, atol=3e-2, rtol=3e-2), "mismatch vs reference"

    print("KERNEL_OK")
</pallas_src>

<mosaic_0001>
module attributes {stable_mosaic.version = 11 : i64} {
  func.func @_doc_encoder_kernel(%arg0: i32, %arg1: memref<8x8x64xbf16, #tpu.memory_space<vmem>>, %arg2: memref<64x64xbf16, #tpu.memory_space<vmem>>, %arg3: memref<64x64xbf16, #tpu.memory_space<vmem>>, %arg4: memref<64x64xbf16, #tpu.memory_space<vmem>>, %arg5: memref<1x64xf32, #tpu.memory_space<vmem>>, %arg6: memref<1x64xf32, #tpu.memory_space<vmem>>, %arg7: memref<1x64xf32, #tpu.memory_space<vmem>>, %arg8: memref<64x64xbf16, #tpu.memory_space<vmem>>, %arg9: memref<1x64xf32, #tpu.memory_space<vmem>>, %arg10: memref<64x64xbf16, #tpu.memory_space<vmem>>, %arg11: memref<1x64xf32, #tpu.memory_space<vmem>>, %arg12: memref<64x128xbf16, #tpu.memory_space<vmem>>, %arg13: memref<1x128xf32, #tpu.memory_space<vmem>>, %arg14: memref<1x128xf32, #tpu.memory_space<vmem>>, %arg15: memref<8x64xf32, #tpu.memory_space<vmem>>) attributes {dimension_semantics = [#tpu.dimension_semantics<parallel>], iteration_bounds = array<i64: 1>, scalar_prefetch = 0 : i64, scratch_operands = 0 : i64, tpu.core_type = #tpu.core_type<tc>, window_params = [{transform_indices = @transform_0, window_bounds = array<i64: 8, 8, 64>}, {pipeline_mode = #tpu.pipeline_mode<synchronous>, transform_indices = @transform_1, window_bounds = array<i64: 64, 64>}, {pipeline_mode = #tpu.pipeline_mode<synchronous>, transform_indices = @transform_2, window_bounds = array<i64: 64, 64>}, {pipeline_mode = #tpu.pipeline_mode<synchronous>, transform_indices = @transform_3, window_bounds = array<i64: 64, 64>}, {pipeline_mode = #tpu.pipeline_mode<synchronous>, transform_indices = @transform_4, window_bounds = array<i64: 1, 64>}, {pipeline_mode = #tpu.pipeline_mode<synchronous>, transform_indices = @transform_5, window_bounds = array<i64: 1, 64>}, {pipeline_mode = #tpu.pipeline_mode<synchronous>, transform_indices = @transform_6, window_bounds = array<i64: 1, 64>}, {pipeline_mode = #tpu.pipeline_mode<synchronous>, transform_indices = @transform_7, window_bounds = array<i64: 64, 64>}, {pipeline_mode = #tpu.pipeline_mode<synchronous>, transform_indices = @transform_8, window_bounds = array<i64: 1, 64>}, {pipeline_mode = #tpu.pipeline_mode<synchronous>, transform_indices = @transform_9, window_bounds = array<i64: 64, 64>}, {pipeline_mode = #tpu.pipeline_mode<synchronous>, transform_indices = @transform_10, window_bounds = array<i64: 1, 64>}, {pipeline_mode = #tpu.pipeline_mode<synchronous>, transform_indices = @transform_11, window_bounds = array<i64: 64, 128>}, {pipeline_mode = #tpu.pipeline_mode<synchronous>, transform_indices = @transform_12, window_bounds = array<i64: 1, 128>}, {pipeline_mode = #tpu.pipeline_mode<synchronous>, transform_indices = @transform_13, window_bounds = array<i64: 1, 128>}, {transform_indices = @transform_14, window_bounds = array<i64: 8, 64>}]} {
    %c0 = arith.constant 0 : index
    %c0_0 = arith.constant 0 : index
    %c0_1 = arith.constant 0 : index
    %0 = vector.load %arg1[%c0, %c0_0, %c0_1] : memref<8x8x64xbf16, #tpu.memory_space<vmem>>, vector<8x8x64xbf16>
    %1 = vector.shape_cast %0 : vector<8x8x64xbf16> to vector<64x64xbf16>
    %c0_2 = arith.constant 0 : index
    %c0_3 = arith.constant 0 : index
    %2 = vector.load %arg2[%c0_2, %c0_3] : memref<64x64xbf16, #tpu.memory_space<vmem>>, vector<64x64xbf16>
    %cst = arith.constant dense<0.000000e+00> : vector<64x64xf32>
    %3 = tpu.matmul %1, %2, %cst {dimension_numbers = #tpu.dot_dimension_numbers<[1], [0], [0], [1], [0, 0, 1, 1], [], []>} : vector<64x64xbf16>, vector<64x64xbf16>, vector<64x64xf32> -> vector<64x64xf32>
    %c0_4 = arith.constant 0 : index
    %c0_5 = arith.constant 0 : index
    %4 = vector.load %arg5[%c0_4, %c0_5] : memref<1x64xf32, #tpu.memory_space<vmem>>, vector<1x64xf32>
    %5 = vector.broadcast %4 : vector<1x64xf32> to vector<64x64xf32>
    %6 = arith.addf %3, %5 : vector<64x64xf32>
    %7 = arith.truncf %6 : vector<64x64xf32> to vector<64x64xbf16>
    %c0_6 = arith.constant 0 : index
    %c0_7 = arith.constant 0 : index
    %8 = vector.load %arg3[%c0_6, %c0_7] : memref<64x64xbf16, #tpu.memory_space<vmem>>, vector<64x64xbf16>
    %cst_8 = arith.constant dense<0.000000e+00> : vector<64x64xf32>
    %9 = tpu.matmul %1, %8, %cst_8 {dimension_numbers = #tpu.dot_dimension_numbers<[1], [0], [0], [1], [0, 0, 1, 1], [], []>} : vector<64x64xbf16>, vector<64x64xbf16>, vector<64x64xf32> -> vector<64x64xf32>
    %c0_9 = arith.constant 0 : index
    %c0_10 = arith.constant 0 : index
    %10 = vector.load %arg6[%c0_9, %c0_10] : memref<1x64xf32, #tpu.memory_space<vmem>>, vector<1x64xf32>
    %11 = vector.broadcast %10 : vector<1x64xf32> to vector<64x64xf32>
    %12 = arith.addf %9, %11 : vector<64x64xf32>
    %13 = arith.truncf %12 : vector<64x64xf32> to vector<64x64xbf16>
    %c0_11 = arith.constant 0 : index
    %c0_12 = arith.constant 0 : index
    %14 = vector.load %arg4[%c0_11, %c0_12] : memref<64x64xbf16, #tpu.memory_space<vmem>>, vector<64x64xbf16>
    %cst_13 = arith.constant dense<0.000000e+00> : vector<64x64xf32>
    %15 = tpu.matmul %1, %14, %cst_13 {dimension_numbers = #tpu.dot_dimension_numbers<[1], [0], [0], [1], [0, 0, 1, 1], [], []>} : vector<64x64xbf16>, vector<64x64xbf16>, vector<64x64xf32> -> vector<64x64xf32>
    %c0_14 = arith.constant 0 : index
    %c0_15 = arith.constant 0 : index
    %16 = vector.load %arg7[%c0_14, %c0_15] : memref<1x64xf32, #tpu.memory_space<vmem>>, vector<1x64xf32>
    %17 = vector.broadcast %16 : vector<1x64xf32> to vector<64x64xf32>
    %18 = arith.addf %15, %17 : vector<64x64xf32>
    %19 = arith.truncf %18 : vector<64x64xf32> to vector<64x64xbf16>
    %20 = vector.shape_cast %7 : vector<64x64xbf16> to vector<8x8x4x16xbf16>
    %21 = tpu.transpose %20, [0, 2, 1, 3] : vector<8x8x4x16xbf16> -> vector<8x4x8x16xbf16>
    %22 = vector.shape_cast %21 : vector<8x4x8x16xbf16> to vector<32x8x16xbf16>
    %23 = vector.shape_cast %13 : vector<64x64xbf16> to vector<8x8x4x16xbf16>
    %24 = tpu.transpose %23, [0, 2, 1, 3] : vector<8x8x4x16xbf16> -> vector<8x4x8x16xbf16>
    %25 = vector.shape_cast %24 : vector<8x4x8x16xbf16> to vector<32x8x16xbf16>
    %26 = vector.shape_cast %19 : vector<64x64xbf16> to vector<8x8x4x16xbf16>
    %27 = tpu.transpose %26, [0, 2, 1, 3] : vector<8x8x4x16xbf16> -> vector<8x4x8x16xbf16>
    %28 = vector.shape_cast %27 : vector<8x4x8x16xbf16> to vector<32x8x16xbf16>
    "tpu.trace_start"() <{level = 10 : i32, message = "bqd,bkd->bqk"}> : () -> ()
    %cst_16 = arith.constant dense<0.000000e+00> : vector<32x8x8xf32>
    %29 = tpu.matmul %22, %25, %cst_16 {dimension_numbers = #tpu.dot_dimension_numbers<[2], [2], [1], [1], [0, 0, 0, 1, 1, 1], [0], [0]>} : vector<32x8x16xbf16>, vector<32x8x16xbf16>, vector<32x8x8xf32> -> vector<32x8x8xf32>
    "tpu.trace_stop"() : () -> ()
    %cst_17 = arith.constant dense<0xFF800000> : vector<32x8xf32>
    %30 = vector.multi_reduction <maximumf>, %29, %cst_17 [2] : vector<32x8x8xf32> to vector<32x8xf32>
    %31 = vector.shape_cast %30 : vector<32x8xf32> to vector<32x8x1xf32>
    %32 = vector.broadcast %31 : vector<32x8x1xf32> to vector<32x8x8xf32>
    %33 = arith.subf %29, %32 : vector<32x8x8xf32>
    %34 = math.exp %33 : vector<32x8x8xf32>
    %cst_18 = arith.constant dense<0.000000e+00> : vector<32x8xf32>
    %35 = vector.multi_reduction <add>, %34, %cst_18 [2] : vector<32x8x8xf32> to vector<32x8xf32>
    %36 = vector.shape_cast %35 : vector<32x8xf32> to vector<32x8x1xf32>
    %37 = tpu.reciprocal %36 {approx = true} : vector<32x8x1xf32> -> vector<32x8x1xf32>
    %38 = vector.broadcast %37 : vector<32x8x1xf32> to vector<32x8x8xf32>
    %39 = arith.mulf %34, %38 : vector<32x8x8xf32>
    %40 = arith.truncf %39 : vector<32x8x8xf32> to vector<32x8x8xbf16>
    "tpu.trace_start"() <{level = 10 : i32, message = "bqk,bkd->bqd"}> : () -> ()
    %cst_19 = arith.constant dense<0.000000e+00> : vector<32x8x16xf32>
    %41 = tpu.matmul %40, %28, %cst_19 {dimension_numbers = #tpu.dot_dimension_numbers<[2], [1], [1], [2], [0, 0, 0, 1, 1, 2], [0], [0]>} : vector<32x8x8xbf16>, vector<32x8x16xbf16>, vector<32x8x16xf32> -> vector<32x8x16xf32>
    "tpu.trace_stop"() : () -> ()
    %42 = vector.shape_cast %41 : vector<32x8x16xf32> to vector<8x4x8x16xf32>
    %43 = tpu.transpose %42, [0, 2, 1, 3] : vector<8x4x8x16xf32> -> vector<8x8x4x16xf32>
    %44 = vector.shape_cast %43 : vector<8x8x4x16xf32> to vector<64x64xf32>
    %45 = arith.truncf %44 : vector<64x64xf32> to vector<64x64xbf16>
    %c0_20 = arith.constant 0 : index
    %c0_21 = arith.constant 0 : index
    %46 = vector.load %arg8[%c0_20, %c0_21] : memref<64x64xbf16, #tpu.memory_space<vmem>>, vector<64x64xbf16>
    %cst_22 = arith.constant dense<0.000000e+00> : vector<64x64xf32>
    %47 = tpu.matmul %45, %46, %cst_22 {dimension_numbers = #tpu.dot_dimension_numbers<[1], [0], [0], [1], [0, 0, 1, 1], [], []>} : vector<64x64xbf16>, vector<64x64xbf16>, vector<64x64xf32> -> vector<64x64xf32>
    %c0_23 = arith.constant 0 : index
    %c0_24 = arith.constant 0 : index
    %48 = vector.load %arg9[%c0_23, %c0_24] : memref<1x64xf32, #tpu.memory_space<vmem>>, vector<1x64xf32>
    %49 = vector.broadcast %48 : vector<1x64xf32> to vector<64x64xf32>
    %50 = arith.addf %47, %49 : vector<64x64xf32>
    %51 = arith.truncf %50 : vector<64x64xf32> to vector<64x64xbf16>
    %c0_25 = arith.constant 0 : index
    %c0_26 = arith.constant 0 : index
    %52 = vector.load %arg10[%c0_25, %c0_26] : memref<64x64xbf16, #tpu.memory_space<vmem>>, vector<64x64xbf16>
    %cst_27 = arith.constant dense<0.000000e+00> : vector<64x64xf32>
    %53 = tpu.matmul %51, %52, %cst_27 {dimension_numbers = #tpu.dot_dimension_numbers<[1], [0], [0], [1], [0, 0, 1, 1], [], []>} : vector<64x64xbf16>, vector<64x64xbf16>, vector<64x64xf32> -> vector<64x64xf32>
    %c0_28 = arith.constant 0 : index
    %c0_29 = arith.constant 0 : index
    %54 = vector.load %arg11[%c0_28, %c0_29] : memref<1x64xf32, #tpu.memory_space<vmem>>, vector<1x64xf32>
    %55 = vector.broadcast %54 : vector<1x64xf32> to vector<64x64xf32>
    %56 = arith.addf %53, %55 : vector<64x64xf32>
    %57 = arith.truncf %56 : vector<64x64xf32> to vector<64x64xbf16>
    %c0_30 = arith.constant 0 : index
    %c0_31 = arith.constant 0 : index
    %58 = vector.load %arg12[%c0_30, %c0_31] : memref<64x128xbf16, #tpu.memory_space<vmem>>, vector<64x128xbf16>
    %cst_32 = arith.constant dense<0.000000e+00> : vector<64x128xf32>
    %59 = tpu.matmul %57, %58, %cst_32 {dimension_numbers = #tpu.dot_dimension_numbers<[1], [0], [0], [1], [0, 0, 1, 1], [], []>} : vector<64x64xbf16>, vector<64x128xbf16>, vector<64x128xf32> -> vector<64x128xf32>
    %c0_33 = arith.constant 0 : index
    %c0_34 = arith.constant 0 : index
    %60 = vector.load %arg13[%c0_33, %c0_34] : memref<1x128xf32, #tpu.memory_space<vmem>>, vector<1x128xf32>
    %61 = vector.broadcast %60 : vector<1x128xf32> to vector<64x128xf32>
    %62 = arith.addf %59, %61 : vector<64x128xf32>
    %63 = math.tanh %62 : vector<64x128xf32>
    %64 = vector.shape_cast %63 : vector<64x128xf32> to vector<8x8x128xf32>
    %65 = vector.shape_cast %56 : vector<64x64xf32> to vector<8x8x64xf32>
    %c0_35 = arith.constant 0 : index
    %c0_36 = arith.constant 0 : index
    %66 = vector.load %arg14[%c0_35, %c0_36] : memref<1x128xf32, #tpu.memory_space<vmem>>, vector<1x128xf32>
    %67 = vector.shape_cast %66 : vector<1x128xf32> to vector<1x1x128xf32>
    %68 = vector.broadcast %67 : vector<1x1x128xf32> to vector<8x8x128xf32>
    %69 = arith.mulf %64, %68 : vector<8x8x128xf32>
    %cst_37 = arith.constant dense<0.000000e+00> : vector<8x8xf32>
    %70 = vector.multi_reduction <add>, %69, %cst_37 [2] : vector<8x8x128xf32> to vector<8x8xf32>
    %71 = vector.shape_cast %70 : vector<8x8xf32> to vector<8x8x1xf32>
    %cst_38 = arith.constant dense<0xFF800000> : vector<8x1xf32>
    %72 = vector.multi_reduction <maximumf>, %71, %cst_38 [1] : vector<8x8x1xf32> to vector<8x1xf32>
    %73 = vector.shape_cast %72 : vector<8x1xf32> to vector<8x1x1xf32>
    %74 = vector.broadcast %73 : vector<8x1x1xf32> to vector<8x8x1xf32>
    %75 = arith.subf %71, %74 : vector<8x8x1xf32>
    %76 = math.exp %75 : vector<8x8x1xf32>
    %cst_39 = arith.constant dense<0.000000e+00> : vector<8x1xf32>
    %77 = vector.multi_reduction <add>, %76, %cst_39 [1] : vector<8x8x1xf32> to vector<8x1xf32>
    %78 = vector.shape_cast %77 : vector<8x1xf32> to vector<8x1x1xf32>
    %79 = tpu.reciprocal %78 {approx = true} : vector<8x1x1xf32> -> vector<8x1x1xf32>
    %80 = vector.broadcast %79 : vector<8x1x1xf32> to vector<8x8x1xf32>
    %81 = arith.mulf %76, %80 : vector<8x8x1xf32>
    %82 = vector.broadcast %81 : vector<8x8x1xf32> to vector<8x8x64xf32>
    %83 = arith.mulf %82, %65 : vector<8x8x64xf32>
    %cst_40 = arith.constant dense<0.000000e+00> : vector<8x64xf32>
    %84 = vector.multi_reduction <add>, %83, %cst_40 [1] : vector<8x8x64xf32> to vector<8x64xf32>
    %c0_41 = arith.constant 0 : index
    %c0_42 = arith.constant 0 : index
    %85 = vector.load %arg15[%c0_41, %c0_42] : memref<8x64xf32, #tpu.memory_space<vmem>>, vector<8x64xf32>
    tpu.vector_store %arg15[%c0_41, %c0_42], %84 {strides = array<i32>} : memref<8x64xf32, #tpu.memory_space<vmem>>, vector<8x64xf32>,
    return
  }
  func.func @transform_0(%arg0: i32) -> (i32, i32, i32) {
    %c0_i32 = arith.constant 0 : i32
    %c0_i32_0 = arith.constant 0 : i32
    %c0_i32_1 = arith.constant 0 : i32
    return %arg0, %c0_i32, %c0_i32_0 : i32, i32, i32
  }
  func.func @transform_1(%arg0: i32) -> (i32, i32) {
    %c0_i32 = arith.constant 0 : i32
    %c0_i32_0 = arith.constant 0 : i32
    %c0_i32_1 = arith.constant 0 : i32
    return %c0_i32, %c0_i32_0 : i32, i32
  }
  func.func @transform_2(%arg0: i32) -> (i32, i32) {
    %c0_i32 = arith.constant 0 : i32
    %c0_i32_0 = arith.constant 0 : i32
    %c0_i32_1 = arith.constant 0 : i32
    return %c0_i32, %c0_i32_0 : i32, i32
  }
  func.func @transform_3(%arg0: i32) -> (i32, i32) {
    %c0_i32 = arith.constant 0 : i32
    %c0_i32_0 = arith.constant 0 : i32
    %c0_i32_1 = arith.constant 0 : i32
    return %c0_i32, %c0_i32_0 : i32, i32
  }
  func.func @transform_4(%arg0: i32) -> (i32, i32) {
    %c0_i32 = arith.constant 0 : i32
    %c0_i32_0 = arith.constant 0 : i32
    %c0_i32_1 = arith.constant 0 : i32
    return %c0_i32, %c0_i32_0 : i32, i32
  }
  func.func @transform_5(%arg0: i32) -> (i32, i32) {
    %c0_i32 = arith.constant 0 : i32
    %c0_i32_0 = arith.constant 0 : i32
    %c0_i32_1 = arith.constant 0 : i32
    return %c0_i32, %c0_i32_0 : i32, i32
  }
  func.func @transform_6(%arg0: i32) -> (i32, i32) {
    %c0_i32 = arith.constant 0 : i32
    %c0_i32_0 = arith.constant 0 : i32
    %c0_i32_1 = arith.constant 0 : i32
    return %c0_i32, %c0_i32_0 : i32, i32
  }
  func.func @transform_7(%arg0: i32) -> (i32, i32) {
    %c0_i32 = arith.constant 0 : i32
    %c0_i32_0 = arith.constant 0 : i32
    %c0_i32_1 = arith.constant 0 : i32
    return %c0_i32, %c0_i32_0 : i32, i32
  }
  func.func @transform_8(%arg0: i32) -> (i32, i32) {
    %c0_i32 = arith.constant 0 : i32
    %c0_i32_0 = arith.constant 0 : i32
    %c0_i32_1 = arith.constant 0 : i32
    return %c0_i32, %c0_i32_0 : i32, i32
  }
  func.func @transform_9(%arg0: i32) -> (i32, i32) {
    %c0_i32 = arith.constant 0 : i32
    %c0_i32_0 = arith.constant 0 : i32
    %c0_i32_1 = arith.constant 0 : i32
    return %c0_i32, %c0_i32_0 : i32, i32
  }
  func.func @transform_10(%arg0: i32) -> (i32, i32) {
    %c0_i32 = arith.constant 0 : i32
    %c0_i32_0 = arith.constant 0 : i32
    %c0_i32_1 = arith.constant 0 : i32
    return %c0_i32, %c0_i32_0 : i32, i32
  }
  func.func @transform_11(%arg0: i32) -> (i32, i32) {
    %c0_i32 = arith.constant 0 : i32
    %c0_i32_0 = arith.constant 0 : i32
    %c0_i32_1 = arith.constant 0 : i32
    return %c0_i32, %c0_i32_0 : i32, i32
  }
  func.func @transform_12(%arg0: i32) -> (i32, i32) {
    %c0_i32 = arith.constant 0 : i32
    %c0_i32_0 = arith.constant 0 : i32
    %c0_i32_1 = arith.constant 0 : i32
    return %c0_i32, %c0_i32_0 : i32, i32
  }
  func.func @transform_13(%arg0: i32) -> (i32, i32) {
    %c0_i32 = arith.constant 0 : i32
    %c0_i32_0 = arith.constant 0 : i32
    %c0_i32_1 = arith.constant 0 : i32
    return %c0_i32, %c0_i32_0 : i32, i32
  }
  func.func @transform_14(%arg0: i32) -> (i32, i32) {
    %c0_i32 = arith.constant 0 : i32
    %c0_i32_0 = arith.constant 0 : i32
    return %arg0, %c0_i32 : i32, i32
  }
}

</mosaic_0001>

<llo_original>
// kernel: tpu_custom_call.1
$region0: #{tpu_custom_call.1}
  #allocation0 [shape = 'u32[]', space=smem, size = 0x4, offset = 0x4, fixed_abs, tag = 'smem constant byte address 0x4 - core index']
  #allocation1 [shape = 'u32[144,128]{1,0:T(1,128)}', space=vmem, size = 0x12000, scoped, tag = 'internal scratch']
  %s0 = inlined_call_operand.hbm [shape: bf16[8,8,64], index: 0, kind: input, shape index: {}]
  %s1 = inlined_call_operand.hbm [shape: bf16[64,64], index: 1, kind: input, shape index: {}]
  %s2 = inlined_call_operand.hbm [shape: bf16[64,64], index: 2, kind: input, shape index: {}]
  %s3 = inlined_call_operand.hbm [shape: bf16[64,64], index: 3, kind: input, shape index: {}]
  %s4 = inlined_call_operand.vmem [shape: f32[1,64], index: 4, kind: input, shape index: {}]
  %s5 = inlined_call_operand.vmem [shape: f32[1,64], index: 5, kind: input, shape index: {}]
  %s6 = inlined_call_operand.hbm [shape: f32[1,64], index: 6, kind: input, shape index: {}]
  %s7 = inlined_call_operand.hbm [shape: bf16[64,64], index: 7, kind: input, shape index: {}]
  %s8 = inlined_call_operand.hbm [shape: f32[1,64], index: 8, kind: input, shape index: {}]
  %s9 = inlined_call_operand.vmem [shape: bf16[64,64], index: 9, kind: input, shape index: {}]
  %s10 = inlined_call_operand.vmem [shape: f32[1,64], index: 10, kind: input, shape index: {}]
  %s11 = inlined_call_operand.hbm [shape: bf16[64,128], index: 11, kind: input, shape index: {}]
  %s12 = inlined_call_operand.vmem [shape: f32[1,128], index: 12, kind: input, shape index: {}]
  %s13 = inlined_call_operand.vmem [shape: f32[1,128], index: 13, kind: input, shape index: {}]
  %s14 = inlined_call_operand.hbm [shape: f32[8,64], index: 14, kind: output, shape index: {}]
  %s15 = sld [smem:[#allocation0]]
  $region98: #{tpu_custom_call.1} parent=0
    _
  %s17 = ssub.s32 1, %s15
  %s18 = scalar_select 0, %s17, %s15
  $region1: #{tpu_custom_call.1} parent=0
    #allocation2 [shape = 'u8[16384]{0}', space=vmem, size = 0x4000, scoped, tag = 'input window, operand 0, single buffered']
    #allocation3 [shape = 's32[1]{0}', space=sflag, size = 0x4, scoped, tag = 'scoped memory for tpu_custom_call.1']
    #allocation4 [shape = 's32[1]{0}', space=sflag, size = 0x4, scoped, tag = 'scoped memory for tpu_custom_call.1']
    #allocation5 [shape = 'u8[16384]{0}', space=vmem, size = 0x4000, scoped, tag = 'input window, operand 1, single buffered']
    #allocation6 [shape = 's32[1]{0}', space=sflag, size = 0x4, scoped, tag = 'scoped memory for tpu_custom_call.1']
    #allocation7 [shape = 'u8[16384]{0}', space=vmem, size = 0x4000, scoped, tag = 'input window, operand 2, single buffered']
    #allocation8 [shape = 'u8[16384]{0}', space=vmem, size = 0x4000, scoped, tag = 'input window, operand 3, single buffered']
    #allocation9 [shape = 's32[1]{0}', space=sflag, size = 0x4, scoped, tag = 'scoped memory for tpu_custom_call.1']
    #allocation10 [shape = 'u8[512]{0}', space=vmem, size = 0x400, scoped, tag = 'input window, operand 6, single buffered']
    #allocation11 [shape = 'u8[16384]{0}', space=vmem, size = 0x4000, scoped, tag = 'input window, operand 7, single buffered']
    #allocation12 [shape = 's32[1]{0}', space=sflag, size = 0x4, scoped, tag = 'scoped memory for tpu_custom_call.1']
    #allocation13 [shape = 'u8[512]{0}', space=vmem, size = 0x400, scoped, tag = 'input window, operand 8, single buffered']
    #allocation14 [shape = 'u8[16384]{0}', space=vmem, size = 0x4000, scoped, tag = 'input window, operand 11, single buffered']
    #allocation15 [shape = 's32[1]{0}', space=sflag, size = 0x4, scoped, tag = 'scoped memory for tpu_custom_call.1']
    #allocation16 [shape = 'u8[4096]{0}', space=vmem, size = 0x1000, scoped, tag = 'output window, operand 0, single buffered']
    %19 = vsyncpa [#allocation3], 0
    %20 = vsyncpa [#allocation6], 0
    %21 = vsyncpa [#allocation9], 0
    %22 = vsyncpa [#allocation12], 0
    %23 = vsyncpa [#allocation15], 0
    %24 = vsyncpa [#allocation4], 0
    // Predicated region
    $region2: #{tpu_custom_call.1} parent=1 // pred_check
      _
    $region3: #{tpu_custom_call.1} parent=1 // pred_check_branch
      %26 = sbr.rel (0) target = $region5
    $region4: #{tpu_custom_call.1} parent=1 // pred_region
      %s28 = ssub.s32 512, 512
      %29 = vsyncadd [#allocation3], %s28
      %s30 = sshll.u32 [#allocation2], 4
      %s31 = int_to_ptr.vmem [resolvable:$true] %s30
      %36 = dma.hbm_to_vmem [thread:$0]  %s0, 512, %s31, [#allocation3], 64, 64, 4
    $region5: #{tpu_custom_call.1} parent=1 // pred_fallthru
      _
    // Predicated region
    $region6: #{tpu_custom_call.1} parent=1 // pred_check
      _
    $region7: #{tpu_custom_call.1} parent=1 // pred_check_branch
      %38 = sbr.rel (0) target = $region9
    $region8: #{tpu_custom_call.1} parent=1 // pred_region
      %s40 = ssub.s32 512, 512
      %41 = vsyncadd [#allocation6], %s40
      %s42 = sshll.u32 [#allocation5], 4
      %s43 = int_to_ptr.vmem [resolvable:$true] %s42
      %48 = dma.hbm_to_vmem [thread:$0]  %s1, 512, %s43, [#allocation6], 64, 64, 4
    $region9: #{tpu_custom_call.1} parent=1 // pred_fallthru
      _
    // Predicated region
    $region10: #{tpu_custom_call.1} parent=1 // pred_check
      _
    $region11: #{tpu_custom_call.1} parent=1 // pred_check_branch
      %50 = sbr.rel (0) target = $region13
    $region12: #{tpu_custom_call.1} parent=1 // pred_region
      %s52 = ssub.s32 512, 512
      %53 = vsyncadd [#allocation6], %s52
      %s54 = sshll.u32 [#allocation7], 4
      %s55 = int_to_ptr.vmem [resolvable:$true] %s54
      %60 = dma.hbm_to_vmem [thread:$0]  %s2, 512, %s55, [#allocation6], 64, 64, 4
    $region13: #{tpu_custom_call.1} parent=1 // pred_fallthru
      _
    // Predicated region
    $region14: #{tpu_custom_call.1} parent=1 // pred_check
      _
    $region15: #{tpu_custom_call.1} parent=1 // pred_check_branch
      %62 = sbr.rel (0) target = $region17
    $region16: #{tpu_custom_call.1} parent=1 // pred_region
      %s64 = ssub.s32 512, 512
      %65 = vsyncadd [#allocation9], %s64
      %s66 = sshll.u32 [#allocation8], 4
      %s67 = int_to_ptr.vmem [resolvable:$true] %s66
      %72 = dma.hbm_to_vmem [thread:$0]  %s3, 512, %s67, [#allocation9], 64, 64, 4
    $region17: #{tpu_custom_call.1} parent=1 // pred_fallthru
      _
    // Predicated region
    $region18: #{tpu_custom_call.1} parent=1 // pred_check
      _
    $region19: #{tpu_custom_call.1} parent=1 // pred_check_branch
      %74 = sbr.rel (0) target = $region21
    $region20: #{tpu_custom_call.1} parent=1 // pred_region
      _
    $region21: #{tpu_custom_call.1} parent=1 // pred_fallthru
      _
    // Predicated region
    $region22: #{tpu_custom_call.1} parent=1 // pred_check
      _
    $region23: #{tpu_custom_call.1} parent=1 // pred_check_branch
      %76 = sbr.rel (0) target = $region25
    $region24: #{tpu_custom_call.1} parent=1 // pred_region
      _
    $region25: #{tpu_custom_call.1} parent=1 // pred_fallthru
      _
    // Predicated region
    $region26: #{tpu_custom_call.1} parent=1 // pred_check
      _
    $region27: #{tpu_custom_call.1} parent=1 // pred_check_branch
      %78 = sbr.rel (0) target = $region29
    $region28: #{tpu_custom_call.1} parent=1 // pred_region
      %s80 = ssub.s32 16, 16
      %81 = vsyncadd [#allocation9], %s80
      %s83 = sshll.u32 [#allocation10], 4
      %s84 = int_to_ptr.vmem [resolvable:$true] %s83
      %86 = dma.hbm_to_vmem [thread:$0]  %s6, 16, %s84, [#allocation9]
    $region29: #{tpu_custom_call.1} parent=1 // pred_fallthru
      _
    // Predicated region
    $region30: #{tpu_custom_call.1} parent=1 // pred_check
      _
    $region31: #{tpu_custom_call.1} parent=1 // pred_check_branch
      %88 = sbr.rel (0) target = $region33
    $region32: #{tpu_custom_call.1} parent=1 // pred_region
      %s90 = ssub.s32 512, 512
      %91 = vsyncadd [#allocation12], %s90
      %s92 = sshll.u32 [#allocation11], 4
      %s93 = int_to_ptr.vmem [resolvable:$true] %s92
      %98 = dma.hbm_to_vmem [thread:$0]  %s7, 512, %s93, [#allocation12], 64, 64, 4
    $region33: #{tpu_custom_call.1} parent=1 // pred_fallthru
      _
    // Predicated region
    $region34: #{tpu_custom_call.1} parent=1 // pred_check
      _
    $region35: #{tpu_custom_call.1} parent=1 // pred_check_branch
      %100 = sbr.rel (0) target = $region37
    $region36: #{tpu_custom_call.1} parent=1 // pred_region
      %s102 = ssub.s32 16, 16
      %103 = vsyncadd [#allocation12], %s102
      %s105 = sshll.u32 [#allocation13], 4
      %s106 = int_to_ptr.vmem [resolvable:$true] %s105
      %108 = dma.hbm_to_vmem [thread:$0]  %s8, 16, %s106, [#allocation12]
    $region37: #{tpu_custom_call.1} parent=1 // pred_fallthru
      _
    // Predicated region
    $region38: #{tpu_custom_call.1} parent=1 // pred_check
      _
    $region39: #{tpu_custom_call.1} parent=1 // pred_check_branch
      %110 = sbr.rel (0) target = $region41
    $region40: #{tpu_custom_call.1} parent=1 // pred_region
      _
    $region41: #{tpu_custom_call.1} parent=1 // pred_fallthru
      _
    // Predicated region
    $region42: #{tpu_custom_call.1} parent=1 // pred_check
      _
    $region43: #{tpu_custom_call.1} parent=1 // pred_check_branch
      %112 = sbr.rel (0) target = $region45
    $region44: #{tpu_custom_call.1} parent=1 // pred_region
      _
    $region45: #{tpu_custom_call.1} parent=1 // pred_fallthru
      _
    // Predicated region
    $region46: #{tpu_custom_call.1} parent=1 // pred_check
      _
    $region47: #{tpu_custom_call.1} parent=1 // pred_check_branch
      %114 = sbr.rel (0) target = $region49
    $region48: #{tpu_custom_call.1} parent=1 // pred_region
      %s116 = ssub.s32 512, 512
      %117 = vsyncadd [#allocation15], %s116
      %s118 = sshll.u32 [#allocation14], 4
      %s119 = int_to_ptr.vmem [resolvable:$true] %s118
      %124 = dma.hbm_to_vmem [thread:$0]  %s11, 512, %s119, [#allocation15], 64, 64, 4
    $region49: #{tpu_custom_call.1} parent=1 // pred_fallthru
      _
    // Predicated region
    $region50: #{tpu_custom_call.1} parent=1 // pred_check
      _
    $region51: #{tpu_custom_call.1} parent=1 // pred_check_branch
      %126 = sbr.rel (0) target = $region53
    $region52: #{tpu_custom_call.1} parent=1 // pred_region
      _
    $region53: #{tpu_custom_call.1} parent=1 // pred_fallthru
      _
    // Predicated region
    $region54: #{tpu_custom_call.1} parent=1 // pred_check
      _
    $region55: #{tpu_custom_call.1} parent=1 // pred_check_branch
      %128 = sbr.rel (0) target = $region57
    $region56: #{tpu_custom_call.1} parent=1 // pred_region
      _
    $region57: #{tpu_custom_call.1} parent=1 // pred_fallthru
      _
    // Predicated region
    $region58: #{tpu_custom_call.1} parent=1 // pred_check
      _
    $region59: #{tpu_custom_call.1} parent=1 // pred_check_branch
      %130 = sbr.rel (0) target = $region61
    $region60: #{tpu_custom_call.1} parent=1 // pred_region
      %131 = dma.done [#allocation3], 512
    $region61: #{tpu_custom_call.1} parent=1 // pred_fallthru
      _
    // Predicated region
    $region62: #{tpu_custom_call.1} parent=1 // pred_check
      _
    $region63: #{tpu_custom_call.1} parent=1 // pred_check_branch
      %133 = sbr.rel (0) target = $region65
    $region64: #{tpu_custom_call.1} parent=1 // pred_region
      %134 = dma.done [#allocation6], 512
    $region65: #{tpu_custom_call.1} parent=1 // pred_fallthru
      _
    // Predicated region
    $region66: #{tpu_custom_call.1} parent=1 // pred_check
      _
    $region67: #{tpu_custom_call.1} parent=1 // pred_check_branch
      %136 = sbr.rel (0) target = $region69
    $region68: #{tpu_custom_call.1} parent=1 // pred_region
      %137 = dma.done [#allocation6], 512
    $region69: #{tpu_custom_call.1} parent=1 // pred_fallthru
      _
    // Predicated region
    $region70: #{tpu_custom_call.1} parent=1 // pred_check
      _
    $region71: #{tpu_custom_call.1} parent=1 // pred_check_branch
      %139 = sbr.rel (0) target = $region73
    $region72: #{tpu_custom_call.1} parent=1 // pred_region
      %140 = dma.done [#allocation9], 512
    $region73: #{tpu_custom_call.1} parent=1 // pred_fallthru
      _
    // Predicated region
    $region74: #{tpu_custom_call.1} parent=1 // pred_check
      _
    $region75: #{tpu_custom_call.1} parent=1 // pred_check_branch
      %142 = sbr.rel (0) target = $region77
    $region76: #{tpu_custom_call.1} parent=1 // pred_region
      %143 = dma.done [#allocation9], 16
    $region77: #{tpu_custom_call.1} parent=1 // pred_fallthru
      _
    // Predicated region
    $region78: #{tpu_custom_call.1} parent=1 // pred_check
      _
    $region79: #{tpu_custom_call.1} parent=1 // pred_check_branch
      %145 = sbr.rel (0) target = $region81
    $region80: #{tpu_custom_call.1} parent=1 // pred_region
      %146 = dma.done [#allocation12], 512
    $region81: #{tpu_custom_call.1} parent=1 // pred_fallthru
      _
    // Predicated region
    $region82: #{tpu_custom_call.1} parent=1 // pred_check
      _
    $region83: #{tpu_custom_call.1} parent=1 // pred_check_branch
      %148 = sbr.rel (0) target = $region85
    $region84: #{tpu_custom_call.1} parent=1 // pred_region
      %149 = dma.done [#allocation12], 16
    $region85: #{tpu_custom_call.1} parent=1 // pred_fallthru
      _
    // Predicated region
    $region86: #{tpu_custom_call.1} parent=1 // pred_check
      _
    $region87: #{tpu_custom_call.1} parent=1 // pred_check_branch
      %151 = sbr.rel (0) target = $region89
    $region88: #{tpu_custom_call.1} parent=1 // pred_region
      %152 = dma.done [#allocation15], 512
    $region89: #{tpu_custom_call.1} parent=1 // pred_fallthru
      _
    %v154 = vld [vmem:[#allocation2] sm:$0xf]
    %v155 = vld [vmem:[#allocation2 + $0x4] sm:$0xf]
    %v156 = vld [vmem:[#allocation2 + $0x8] sm:$0xf]
    %v157 = vld [vmem:[#allocation2 + $0xc] sm:$0xf]
    %v158 = vld [vmem:[#allocation2 + $0x10] sm:$0xf]
    %v159 = vld [vmem:[#allocation2 + $0x14] sm:$0xf]
    %v160 = vld [vmem:[#allocation2 + $0x18] sm:$0xf]
    %v161 = vld [vmem:[#allocation2 + $0x1c] sm:$0xf]
    %v162 = vld [vmem:[#allocation5] sm:$0xf]
    %v163 = vld [vmem:[#allocation5 + $0x4] sm:$0xf]
    %v164 = vld [vmem:[#allocation5 + $0x8] sm:$0xf]
    %v165 = vld [vmem:[#allocation5 + $0xc] sm:$0xf]
    %v166 = vld [vmem:[#allocation5 + $0x10] sm:$0xf]
    %v167 = vld [vmem:[#allocation5 + $0x14] sm:$0xf]
    %v168 = vld [vmem:[#allocation5 + $0x18] sm:$0xf]
    %v169 = vld [vmem:[#allocation5 + $0x1c] sm:$0xf]
    %v170 = vld [vmem:[%s4] sm:$0x1]
    %v172 = vlaneseq
    %v173 = vshrl.u32 %v172, 7
    %v174 = vsub.s32 0, %v173
    %v175 = vrot.slane %v170, %v174
    %v185 = vunpack.c.l.b16 %v154
    %v186 = vunpack.c.l.b16 %v155
    %v187 = vunpack.c.l.b16 %v156
    %v188 = vunpack.c.l.b16 %v157
    %v189 = vunpack.c.l.b16 %v158
    %v190 = vunpack.c.l.b16 %v159
    %v191 = vunpack.c.l.b16 %v160
    %v192 = vunpack.c.l.b16 %v161
    %v193 = vpack.c.b16 %v186, %v185
    %v194 = vpack.c.b16 %v188, %v187
    %v195 = vpack.c.b16 %v190, %v189
    %v196 = vpack.c.b16 %v192, %v191
    %v205 = vunpack.c.l.b16 %v162
    %v206 = vunpack.c.l.b16 %v163
    %v207 = vunpack.c.l.b16 %v164
    %v208 = vunpack.c.l.b16 %v165
    %v209 = vunpack.c.l.b16 %v166
    %v210 = vunpack.c.l.b16 %v167
    %v211 = vunpack.c.l.b16 %v168
    %v212 = vunpack.c.l.b16 %v169
    %v213 = vpack.c.b16 %v206, %v205
    %v214 = vpack.c.b16 %v208, %v207
    %v215 = vpack.c.b16 %v210, %v209
    %v216 = vpack.c.b16 %v212, %v211
    %vm221 = vcmask 523264
    %v223 = vsel %vm221, %v193, 0
    %v226 = vsel %vm221, %v194, 0
    %v229 = vsel %vm221, %v195, 0
    %v232 = vsel %vm221, %v196, 0
    %234 = vmatprep.subr.bf16.mxu0 0
    %235 = vmatpush1.bf16.msra.mxu0 %v213
    %236 = vmatprep.subr.bf16.mxu0 0
    %237 = vmatpush1.bf16.msra.mxu0 %v214
    %238 = vmatprep.subr.bf16.mxu0 0
    %239 = vmatpush1.bf16.msra.mxu0 %v215
    %240 = vmatprep.subr.bf16.mxu0 0
    %241 = vmatpush1.bf16.msra.mxu0 %v216
    %242 = vmatprep.subr.bf16.mxu0 0
    %243 = vmatpush1.bf16.msra.mxu0 0
    %244 = vmatprep.subr.bf16.mxu0 0
    %245 = vmatpush1.bf16.msra.mxu0 0
    %246 = vmatprep.subr.bf16.mxu0 0
    %247 = vmatpush1.bf16.msra.mxu0 0
    %248 = vmatprep.subr.bf16.mxu0 0
    %249 = vmatpush1.bf16.msra.mxu0 0
    %250 = vmatprep.subr.bf16.mxu0 0
    %251 = vmatpush1.bf16.msra.mxu0 0
    %252 = vmatprep.subr.bf16.mxu0 0
    %253 = vmatpush1.bf16.msra.mxu0 0
    %254 = vmatprep.subr.bf16.mxu0 0
    %255 = vmatpush1.bf16.msra.mxu0 0
    %256 = vmatprep.subr.bf16.mxu0 0
    %257 = vmatpush1.bf16.msra.mxu0 0
    %258 = vmatprep.subr.bf16.mxu0 0
    %259 = vmatpush1.bf16.msra.mxu0 0
    %260 = vmatprep.subr.bf16.mxu0 0
    %261 = vmatpush1.bf16.msra.mxu0 0
    %262 = vmatprep.subr.bf16.mxu0 0
    %263 = vmatpush1.bf16.msra.mxu0 0
    %264 = vmatprep.subr.bf16.mxu0 0
    %265 = vmatpush1.bf16.msra.mxu0 0
    %266 = vmatprep.mubr.bf16.mxu0 0
    %267 = vmatmul.mubr.bf16.gmra.mrb[0].mxu0 %v223
    %v268 = vpop.f32.mrb[0].mxu0
    %v269 = vadd.f32 %v175, %v268
    %v270 = vpop.f32.mrb[0].mxu0
    %v271 = vpop.f32.mrb[0].mxu0
    %v272 = vadd.f32 %v175, %v271
    %v273 = vpop.f32.mrb[0].mxu0
    %274 = vmatprep.mubr.bf16.mxu0 0
    %275 = vmatmul.mubr.bf16.gmra.mrb[0].mxu0 %v226
    %v276 = vpop.f32.mrb[0].mxu0
    %v277 = vadd.f32 %v175, %v276
    %v278 = vpop.f32.mrb[0].mxu0
    %v279 = vpop.f32.mrb[0].mxu0
    %v280 = vadd.f32 %v175, %v279
    %v281 = vpop.f32.mrb[0].mxu0
    %282 = vmatprep.mubr.bf16.mxu0 0
    %283 = vmatmul.mubr.bf16.gmra.mrb[0].mxu0 %v229
    %v284 = vpop.f32.mrb[0].mxu0
    %v285 = vadd.f32 %v175, %v284
    %v286 = vpop.f32.mrb[0].mxu0
    %v287 = vpop.f32.mrb[0].mxu0
    %v288 = vadd.f32 %v175, %v287
    %v289 = vpop.f32.mrb[0].mxu0
    %290 = vmatprep.mubr.bf16.mxu0 0
    %291 = vmatmul.mubr.bf16.gmra.mrb[0].mxu0 %v232
    %v292 = vpop.f32.mrb[0].mxu0
    %v293 = vadd.f32 %v175, %v292
    %v294 = vpop.f32.mrb[0].mxu0
    %v295 = vpop.f32.mrb[0].mxu0
    %v296 = vadd.f32 %v175, %v295
    %v297 = vpop.f32.mrb[0].mxu0
    %298 = vdwg.mxu0
    %v299 = vpack.c.bf16 %v272, %v269
    %v300 = vpack.c.bf16 %v280, %v277
    %v301 = vpack.c.bf16 %v288, %v285
    %v302 = vpack.c.bf16 %v296, %v293
    %v303 = vld [vmem:[#allocation7] sm:$0xf]
    %v304 = vld [vmem:[#allocation7 + $0x4] sm:$0xf]
    %v305 = vld [vmem:[#allocation7 + $0x8] sm:$0xf]
    %v306 = vld [vmem:[#allocation7 + $0xc] sm:$0xf]
    %v307 = vld [vmem:[#allocation7 + $0x10] sm:$0xf]
    %v308 = vld [vmem:[#allocation7 + $0x14] sm:$0xf]
    %v309 = vld [vmem:[#allocation7 + $0x18] sm:$0xf]
    %v310 = vld [vmem:[#allocation7 + $0x1c] sm:$0xf]
    %v311 = vld [vmem:[%s5] sm:$0x1]
    %v313 = vlaneseq
    %v314 = vshrl.u32 %v313, 7
    %v315 = vsub.s32 0, %v314
    %v316 = vrot.slane %v311, %v315
    %v326 = vunpack.c.l.b16 %v303
    %v327 = vunpack.c.l.b16 %v304
    %v328 = vunpack.c.l.b16 %v305
    %v329 = vunpack.c.l.b16 %v306
    %v330 = vunpack.c.l.b16 %v307
    %v331 = vunpack.c.l.b16 %v308
    %v332 = vunpack.c.l.b16 %v309
    %v333 = vunpack.c.l.b16 %v310
    %v334 = vpack.c.b16 %v327, %v326
    %v335 = vpack.c.b16 %v329, %v328
    %v336 = vpack.c.b16 %v331, %v330
    %v337 = vpack.c.b16 %v333, %v332
    %342 = vmatprep.subr.bf16.mxu0 0
    %343 = vmatpush1.bf16.msra.mxu0 %v334
    %344 = vmatprep.subr.bf16.mxu0 0
    %345 = vmatpush1.bf16.msra.mxu0 %v335
    %346 = vmatprep.subr.bf16.mxu0 0
    %347 = vmatpush1.bf16.msra.mxu0 %v336
    %348 = vmatprep.subr.bf16.mxu0 0
    %349 = vmatpush1.bf16.msra.mxu0 %v337
    %350 = vmatprep.subr.bf16.mxu0 0
    %351 = vmatpush1.bf16.msra.mxu0 0
    %352 = vmatprep.subr.bf16.mxu0 0
    %353 = vmatpush1.bf16.msra.mxu0 0
    %354 = vmatprep.subr.bf16.mxu0 0
    %355 = vmatpush1.bf16.msra.mxu0 0
    %356 = vmatprep.subr.bf16.mxu0 0
    %357 = vmatpush1.bf16.msra.mxu0 0
    %358 = vmatprep.subr.bf16.mxu0 0
    %359 = vmatpush1.bf16.msra.mxu0 0
    %360 = vmatprep.subr.bf16.mxu0 0
    %361 = vmatpush1.bf16.msra.mxu0 0
    %362 = vmatprep.subr.bf16.mxu0 0
    %363 = vmatpush1.bf16.msra.mxu0 0
    %364 = vmatprep.subr.bf16.mxu0 0
    %365 = vmatpush1.bf16.msra.mxu0 0
    %366 = vmatprep.subr.bf16.mxu0 0
    %367 = vmatpush1.bf16.msra.mxu0 0
    %368 = vmatprep.subr.bf16.mxu0 0
    %369 = vmatpush1.bf16.msra.mxu0 0
    %370 = vmatprep.subr.bf16.mxu0 0
    %371 = vmatpush1.bf16.msra.mxu0 0
    %372 = vmatprep.subr.bf16.mxu0 0
    %373 = vmatpush1.bf16.msra.mxu0 0
    %374 = vmatprep.mubr.bf16.mxu0 0
    %375 = vmatmul.mubr.bf16.gmra.mrb[0].mxu0 %v223
    %v376 = vpop.f32.mrb[0].mxu0
    %v377 = vadd.f32 %v316, %v376
    %v378 = vpop.f32.mrb[0].mxu0
    %v379 = vpop.f32.mrb[0].mxu0
    %v380 = vadd.f32 %v316, %v379
    %v381 = vpop.f32.mrb[0].mxu0
    %382 = vmatprep.mubr.bf16.mxu0 0
    %383 = vmatmul.mubr.bf16.gmra.mrb[0].mxu0 %v226
    %v384 = vpop.f32.mrb[0].mxu0
    %v385 = vadd.f32 %v316, %v384
    %v386 = vpop.f32.mrb[0].mxu0
    %v387 = vpop.f32.mrb[0].mxu0
    %v388 = vadd.f32 %v316, %v387
    %v389 = vpop.f32.mrb[0].mxu0
    %390 = vmatprep.mubr.bf16.mxu0 0
    %391 = vmatmul.mubr.bf16.gmra.mrb[0].mxu0 %v229
    %v392 = vpop.f32.mrb[0].mxu0
    %v393 = vadd.f32 %v316, %v392
    %v394 = vpop.f32.mrb[0].mxu0
    %v395 = vpop.f32.mrb[0].mxu0
    %v396 = vadd.f32 %v316, %v395
    %v397 = vpop.f32.mrb[0].mxu0
    %398 = vmatprep.mubr.bf16.mxu0 0
    %399 = vmatmul.mubr.bf16.gmra.mrb[0].mxu0 %v232
    %v400 = vpop.f32.mrb[0].mxu0
    %v401 = vadd.f32 %v316, %v400
    %v402 = vpop.f32.mrb[0].mxu0
    %v403 = vpop.f32.mrb[0].mxu0
    %v404 = vadd.f32 %v316, %v403
    %v405 = vpop.f32.mrb[0].mxu0
    %406 = vdwg.mxu0
    %v407 = vpack.c.bf16 %v380, %v377
    %v408 = vpack.c.bf16 %v388, %v385
    %v409 = vpack.c.bf16 %v396, %v393
    %v410 = vpack.c.bf16 %v404, %v401
    %v411 = vld [vmem:[#allocation8] sm:$0xf]
    %v412 = vld [vmem:[#allocation8 + $0x4] sm:$0xf]
    %v413 = vld [vmem:[#allocation8 + $0x8] sm:$0xf]
    %v414 = vld [vmem:[#allocation8 + $0xc] sm:$0xf]
    %v415 = vld [vmem:[#allocation8 + $0x10] sm:$0xf]
    %v416 = vld [vmem:[#allocation8 + $0x14] sm:$0xf]
    %v417 = vld [vmem:[#allocation8 + $0x18] sm:$0xf]
    %v418 = vld [vmem:[#allocation8 + $0x1c] sm:$0xf]
    %v419 = vld [vmem:[#allocation10] sm:$0x1]
    %v421 = vlaneseq
    %v422 = vshrl.u32 %v421, 7
    %v423 = vsub.s32 0, %v422
    %v424 = vrot.slane %v419, %v423
    %v434 = vunpack.c.l.b16 %v411
    %v435 = vunpack.c.l.b16 %v412
    %v436 = vunpack.c.l.b16 %v413
    %v437 = vunpack.c.l.b16 %v414
    %v438 = vunpack.c.l.b16 %v415
    %v439 = vunpack.c.l.b16 %v416
    %v440 = vunpack.c.l.b16 %v417
    %v441 = vunpack.c.l.b16 %v418
    %v442 = vpack.c.b16 %v435, %v434
    %v443 = vpack.c.b16 %v437, %v436
    %v444 = vpack.c.b16 %v439, %v438
    %v445 = vpack.c.b16 %v441, %v440
    %450 = vmatprep.subr.bf16.mxu0 0
    %451 = vmatpush1.bf16.msra.mxu0 %v442
    %452 = vmatprep.subr.bf16.mxu0 0
    %453 = vmatpush1.bf16.msra.mxu0 %v443
    %454 = vmatprep.subr.bf16.mxu0 0
    %455 = vmatpush1.bf16.msra.mxu0 %v444
    %456 = vmatprep.subr.bf16.mxu0 0
    %457 = vmatpush1.bf16.msra.mxu0 %v445
    %458 = vmatprep.subr.bf16.mxu0 0
    %459 = vmatpush1.bf16.msra.mxu0 0
    %460 = vmatprep.subr.bf16.mxu0 0
    %461 = vmatpush1.bf16.msra.mxu0 0
    %462 = vmatprep.subr.bf16.mxu0 0
    %463 = vmatpush1.bf16.msra.mxu0 0
    %464 = vmatprep.subr.bf16.mxu0 0
    %465 = vmatpush1.bf16.msra.mxu0 0
    %466 = vmatprep.subr.bf16.mxu0 0
    %467 = vmatpush1.bf16.msra.mxu0 0
    %468 = vmatprep.subr.bf16.mxu0 0
    %469 = vmatpush1.bf16.msra.mxu0 0
    %470 = vmatprep.subr.bf16.mxu0 0
    %471 = vmatpush1.bf16.msra.mxu0 0
    %472 = vmatprep.subr.bf16.mxu0 0
    %473 = vmatpush1.bf16.msra.mxu0 0
    %474 = vmatprep.subr.bf16.mxu0 0
    %475 = vmatpush1.bf16.msra.mxu0 0
    %476 = vmatprep.subr.bf16.mxu0 0
    %477 = vmatpush1.bf16.msra.mxu0 0
    %478 = vmatprep.subr.bf16.mxu0 0
    %479 = vmatpush1.bf16.msra.mxu0 0
    %480 = vmatprep.subr.bf16.mxu0 0
    %481 = vmatpush1.bf16.msra.mxu0 0
    %482 = vmatprep.mubr.bf16.mxu0 0
    %483 = vmatmul.mubr.bf16.gmra.mrb[0].mxu0 %v223
    %v484 = vpop.f32.mrb[0].mxu0
    %v485 = vadd.f32 %v424, %v484
    %v486 = vpop.f32.mrb[0].mxu0
    %v487 = vpop.f32.mrb[0].mxu0
    %v488 = vadd.f32 %v424, %v487
    %v489 = vpop.f32.mrb[0].mxu0
    %490 = vmatprep.mubr.bf16.mxu0 0
    %491 = vmatmul.mubr.bf16.gmra.mrb[0].mxu0 %v226
    %v492 = vpop.f32.mrb[0].mxu0
    %v493 = vadd.f32 %v424, %v492
    %v494 = vpop.f32.mrb[0].mxu0
    %v495 = vpop.f32.mrb[0].mxu0
    %v496 = vadd.f32 %v424, %v495
    %v497 = vpop.f32.mrb[0].mxu0
    %498 = vmatprep.mubr.bf16.mxu0 0
    %499 = vmatmul.mubr.bf16.gmra.mrb[0].mxu0 %v229
    %v500 = vpop.f32.mrb[0].mxu0
    %v501 = vadd.f32 %v424, %v500
    %v502 = vpop.f32.mrb[0].mxu0
    %v503 = vpop.f32.mrb[0].mxu0
    %v504 = vadd.f32 %v424, %v503
    %v505 = vpop.f32.mrb[0].mxu0
    %506 = vmatprep.mubr.bf16.mxu0 0
    %507 = vmatmul.mubr.bf16.gmra.mrb[0].mxu0 %v232
    %v508 = vpop.f32.mrb[0].mxu0
    %v509 = vadd.f32 %v424, %v508
    %v510 = vpop.f32.mrb[0].mxu0
    %v511 = vpop.f32.mrb[0].mxu0
    %v512 = vadd.f32 %v424, %v511
    %v513 = vpop.f32.mrb[0].mxu0
    %514 = vdwg.mxu0
    %v515 = vpack.c.bf16 %v488, %v485
    %v516 = vpack.c.bf16 %v496, %v493
    %v517 = vpack.c.bf16 %v504, %v501
    %v518 = vpack.c.bf16 %v512, %v509
    %523 = vrot.lane.b32.xlu0 %v299, 112
    %v524 = vpop.permute.xlu0 %523
    %525 = vrot.lane.b32.xlu0 %v300, 112
    %v526 = vpop.permute.xlu0 %525
    %527 = vrot.lane.b32.xlu0 %v301, 112
    %v528 = vpop.permute.xlu0 %527
    %529 = vrot.lane.b32.xlu0 %v302, 112
    %v530 = vpop.permute.xlu0 %529
    %531 = vrot.lane.b32.xlu0 %v299, 96
    %v532 = vpop.permute.xlu0 %531
    %533 = vrot.lane.b32.xlu0 %v300, 96
    %v534 = vpop.permute.xlu0 %533
    %535 = vrot.lane.b32.xlu0 %v301, 96
    %v536 = vpop.permute.xlu0 %535
    %537 = vrot.lane.b32.xlu0 %v302, 96
    %v538 = vpop.permute.xlu0 %537
    %539 = vrot.lane.b32.xlu0 %v299, 80
    %v540 = vpop.permute.xlu0 %539
    %541 = vrot.lane.b32.xlu0 %v300, 80
    %v542 = vpop.permute.xlu0 %541
    %543 = vrot.lane.b32.xlu0 %v301, 80
    %v544 = vpop.permute.xlu0 %543
    %545 = vrot.lane.b32.xlu0 %v302, 80
    %v546 = vpop.permute.xlu0 %545
    %v549 = vpack.i.b16 %v524, %v299
    %v551 = vshrl.u32 %v299, 16
    %v552 = vshrl.u32 %v524, 16
    %v553 = vpack.i.b16 %v552, %v551
    %v557 = vpack.i.b16 %v540, %v532
    %v559 = vshrl.u32 %v532, 16
    %v560 = vshrl.u32 %v540, 16
    %v561 = vpack.i.b16 %v560, %v559
    %v564 = vpack.i.b16 0, 0
    %v566 = vshrl.u32 0, 16
    %v567 = vpack.i.b16 %v566, %v566
    %v571 = vpack.i.b16 %v526, %v300
    %v573 = vshrl.u32 %v300, 16
    %v574 = vshrl.u32 %v526, 16
    %v575 = vpack.i.b16 %v574, %v573
    %v579 = vpack.i.b16 %v542, %v534
    %v581 = vshrl.u32 %v534, 16
    %v582 = vshrl.u32 %v542, 16
    %v583 = vpack.i.b16 %v582, %v581
    %v587 = vpack.i.b16 %v528, %v301
    %v589 = vshrl.u32 %v301, 16
    %v590 = vshrl.u32 %v528, 16
    %v591 = vpack.i.b16 %v590, %v589
    %v595 = vpack.i.b16 %v544, %v536
    %v597 = vshrl.u32 %v536, 16
    %v598 = vshrl.u32 %v544, 16
    %v599 = vpack.i.b16 %v598, %v597
    %v603 = vpack.i.b16 %v530, %v302
    %v605 = vshrl.u32 %v302, 16
    %v606 = vshrl.u32 %v530, 16
    %v607 = vpack.i.b16 %v606, %v605
    %v611 = vpack.i.b16 %v546, %v538
    %v613 = vshrl.u32 %v538, 16
    %v614 = vshrl.u32 %v546, 16
    %v615 = vpack.i.b16 %v614, %v613
    %v617 = vcombine.high %v549, %v564
    %v619 = vunpack.c.l.s4 1983009808
    %v620 = vunpack.c.0.s8 %v619
    %v621 = vlaneseq
    %v622 = vshrl.u32 %v621, 7
    %v623 = vsub.s32 %v620, %v622
    %v624 = vrot.slane %v549, %v623
    %v626 = vunpack.c.l.s4 1983009808
    %v627 = vunpack.c.0.s8 %v626
    %v628 = vlaneseq
    %v629 = vshrl.u32 %v628, 7
    %v630 = vsub.s32 %v627, %v629
    %v631 = vrot.slane %v617, %v630
    %v632 = vcombine.high %v557, %v564
    %v634 = vunpack.c.l.s4 1983009808
    %v635 = vunpack.c.0.s8 %v634
    %v636 = vlaneseq
    %v637 = vshrl.u32 %v636, 7
    %v638 = vsub.s32 %v635, %v637
    %v639 = vrot.slane %v557, %v638
    %v641 = vunpack.c.l.s4 1983009808
    %v642 = vunpack.c.0.s8 %v641
    %v643 = vlaneseq
    %v644 = vshrl.u32 %v643, 7
    %v645 = vsub.s32 %v642, %v644
    %v646 = vrot.slane %v632, %v645
    %v647 = vcombine.low %v624, %v639
    %v648 = vcombine.high %v624, %v639
    %v650 = vunpack.c.l.s4 1934713408
    %v651 = vunpack.c.0.s8 %v650
    %v652 = vlaneseq
    %v653 = vshrl.u32 %v652, 7
    %v654 = vsub.s32 %v651, %v653
    %v655 = vrot.slane %v647, %v654
    %v657 = vunpack.c.l.s4 1934713408
    %v658 = vunpack.c.0.s8 %v657
    %v659 = vlaneseq
    %v660 = vshrl.u32 %v659, 7
    %v661 = vsub.s32 %v658, %v660
    %v662 = vrot.slane %v648, %v661
    %v663 = vcombine.low %v631, %v646
    %v664 = vcombine.high %v631, %v646
    %v666 = vunpack.c.l.s4 1934713408
    %v667 = vunpack.c.0.s8 %v666
    %v668 = vlaneseq
    %v669 = vshrl.u32 %v668, 7
    %v670 = vsub.s32 %v667, %v669
    %v671 = vrot.slane %v663, %v670
    %v673 = vunpack.c.l.s4 1934713408
    %v674 = vunpack.c.0.s8 %v673
    %v675 = vlaneseq
    %v676 = vshrl.u32 %v675, 7
    %v677 = vsub.s32 %v674, %v676
    %v678 = vrot.slane %v664, %v677
    %v679 = vcombine.high %v655, 0
    %v680 = vcombine.high %v662, 0
    %v681 = vcombine.high %v671, 0
    %v682 = vcombine.high %v678, 0
    %v683 = vcombine.high %v553, %v567
    %v685 = vunpack.c.l.s4 1983009808
    %v686 = vunpack.c.0.s8 %v685
    %v687 = vlaneseq
    %v688 = vshrl.u32 %v687, 7
    %v689 = vsub.s32 %v686, %v688
    %v690 = vrot.slane %v553, %v689
    %v692 = vunpack.c.l.s4 1983009808
    %v693 = vunpack.c.0.s8 %v692
    %v694 = vlaneseq
    %v695 = vshrl.u32 %v694, 7
    %v696 = vsub.s32 %v693, %v695
    %v697 = vrot.slane %v683, %v696
    %v698 = vcombine.high %v561, %v567
    %v700 = vunpack.c.l.s4 1983009808
    %v701 = vunpack.c.0.s8 %v700
    %v702 = vlaneseq
    %v703 = vshrl.u32 %v702, 7
    %v704 = vsub.s32 %v701, %v703
    %v705 = vrot.slane %v561, %v704
    %v707 = vunpack.c.l.s4 1983009808
    %v708 = vunpack.c.0.s8 %v707
    %v709 = vlaneseq
    %v710 = vshrl.u32 %v709, 7
    %v711 = vsub.s32 %v708, %v710
    %v712 = vrot.slane %v698, %v711
    %v713 = vcombine.low %v690, %v705
    %v714 = vcombine.high %v690, %v705
    %v716 = vunpack.c.l.s4 1934713408
    %v717 = vunpack.c.0.s8 %v716
    %v718 = vlaneseq
    %v719 = vshrl.u32 %v718, 7
    %v720 = vsub.s32 %v717, %v719
    %v721 = vrot.slane %v713, %v720
    %v723 = vunpack.c.l.s4 1934713408
    %v724 = vunpack.c.0.s8 %v723
    %v725 = vlaneseq
    %v726 = vshrl.u32 %v725, 7
    %v727 = vsub.s32 %v724, %v726
    %v728 = vrot.slane %v714, %v727
    %v729 = vcombine.low %v697, %v712
    %v730 = vcombine.high %v697, %v712
    %v732 = vunpack.c.l.s4 1934713408
    %v733 = vunpack.c.0.s8 %v732
    %v734 = vlaneseq
    %v735 = vshrl.u32 %v734, 7
    %v736 = vsub.s32 %v733, %v735
    %v737 = vrot.slane %v729, %v736
    %v739 = vunpack.c.l.s4 1934713408
    %v740 = vunpack.c.0.s8 %v739
    %v741 = vlaneseq
    %v742 = vshrl.u32 %v741, 7
    %v743 = vsub.s32 %v740, %v742
    %v744 = vrot.slane %v730, %v743
    %v745 = vcombine.high %v721, 0
    %v746 = vcombine.high %v728, 0
    %v747 = vcombine.high %v737, 0
    %v748 = vcombine.high %v744, 0
    %v749 = vcombine.high %v571, %v564
    %v751 = vunpack.c.l.s4 1983009808
    %v752 = vunpack.c.0.s8 %v751
    %v753 = vlaneseq
    %v754 = vshrl.u32 %v753, 7
    %v755 = vsub.s32 %v752, %v754
    %v756 = vrot.slane %v571, %v755
    %v758 = vunpack.c.l.s4 1983009808
    %v759 = vunpack.c.0.s8 %v758
    %v760 = vlaneseq
    %v761 = vshrl.u32 %v760, 7
    %v762 = vsub.s32 %v759, %v761
    %v763 = vrot.slane %v749, %v762
    %v764 = vcombine.high %v579, %v564
    %v766 = vunpack.c.l.s4 1983009808
    %v767 = vunpack.c.0.s8 %v766
    %v768 = vlaneseq
    %v769 = vshrl.u32 %v768, 7
    %v770 = vsub.s32 %v767, %v769
    %v771 = vrot.slane %v579, %v770
    %v773 = vunpack.c.l.s4 1983009808
    %v774 = vunpack.c.0.s8 %v773
    %v775 = vlaneseq
    %v776 = vshrl.u32 %v775, 7
    %v777 = vsub.s32 %v774, %v776
    %v778 = vrot.slane %v764, %v777
    %v779 = vcombine.low %v756, %v771
    %v780 = vcombine.high %v756, %v771
    %v782 = vunpack.c.l.s4 1934713408
    %v783 = vunpack.c.0.s8 %v782
    %v784 = vlaneseq
    %v785 = vshrl.u32 %v784, 7
    %v786 = vsub.s32 %v783, %v785
    %v787 = vrot.slane %v779, %v786
    %v789 = vunpack.c.l.s4 1934713408
    %v790 = vunpack.c.0.s8 %v789
    %v791 = vlaneseq
    %v792 = vshrl.u32 %v791, 7
    %v793 = vsub.s32 %v790, %v792
    %v794 = vrot.slane %v780, %v793
    %v795 = vcombine.low %v763, %v778
    %v796 = vcombine.high %v763, %v778
    %v798 = vunpack.c.l.s4 1934713408
    %v799 = vunpack.c.0.s8 %v798
    %v800 = vlaneseq
    %v801 = vshrl.u32 %v800, 7
    %v802 = vsub.s32 %v799, %v801
    %v803 = vrot.slane %v795, %v802
    %v805 = vunpack.c.l.s4 1934713408
    %v806 = vunpack.c.0.s8 %v805
    %v807 = vlaneseq
    %v808 = vshrl.u32 %v807, 7
    %v809 = vsub.s32 %v806, %v808
    %v810 = vrot.slane %v796, %v809
    %v811 = vcombine.high %v787, 0
    %v812 = vcombine.high %v794, 0
    %v813 = vcombine.high %v803, 0
    %v814 = vcombine.high %v810, 0
    %v815 = vcombine.high %v575, %v567
    %v817 = vunpack.c.l.s4 1983009808
    %v818 = vunpack.c.0.s8 %v817
    %v819 = vlaneseq
    %v820 = vshrl.u32 %v819, 7
    %v821 = vsub.s32 %v818, %v820
    %v822 = vrot.slane %v575, %v821
    %v824 = vunpack.c.l.s4 1983009808
    %v825 = vunpack.c.0.s8 %v824
    %v826 = vlaneseq
    %v827 = vshrl.u32 %v826, 7
    %v828 = vsub.s32 %v825, %v827
    %v829 = vrot.slane %v815, %v828
    %v830 = vcombine.high %v583, %v567
    %v832 = vunpack.c.l.s4 1983009808
    %v833 = vunpack.c.0.s8 %v832
    %v834 = vlaneseq
    %v835 = vshrl.u32 %v834, 7
    %v836 = vsub.s32 %v833, %v835
    %v837 = vrot.slane %v583, %v836
    %v839 = vunpack.c.l.s4 1983009808
    %v840 = vunpack.c.0.s8 %v839
    %v841 = vlaneseq
    %v842 = vshrl.u32 %v841, 7
    %v843 = vsub.s32 %v840, %v842
    %v844 = vrot.slane %v830, %v843
    %v845 = vcombine.low %v822, %v837
    %v846 = vcombine.high %v822, %v837
    %v848 = vunpack.c.l.s4 1934713408
    %v849 = vunpack.c.0.s8 %v848
    %v850 = vlaneseq
    %v851 = vshrl.u32 %v850, 7
    %v852 = vsub.s32 %v849, %v851
    %v853 = vrot.slane %v845, %v852
    %v855 = vunpack.c.l.s4 1934713408
    %v856 = vunpack.c.0.s8 %v855
    %v857 = vlaneseq
    %v858 = vshrl.u32 %v857, 7
    %v859 = vsub.s32 %v856, %v858
    %v860 = vrot.slane %v846, %v859
    %v861 = vcombine.low %v829, %v844
    %v862 = vcombine.high %v829, %v844
    %v864 = vunpack.c.l.s4 1934713408
    %v865 = vunpack.c.0.s8 %v864
    %v866 = vlaneseq
    %v867 = vshrl.u32 %v866, 7
    %v868 = vsub.s32 %v865, %v867
    %v869 = vrot.slane %v861, %v868
    %v871 = vunpack.c.l.s4 1934713408
    %v872 = vunpack.c.0.s8 %v871
    %v873 = vlaneseq
    %v874 = vshrl.u32 %v873, 7
    %v875 = vsub.s32 %v872, %v874
    %v876 = vrot.slane %v862, %v875
    %v877 = vcombine.high %v853, 0
    %v878 = vcombine.high %v860, 0
    %v879 = vcombine.high %v869, 0
    %v880 = vcombine.high %v876, 0
    %v881 = vcombine.high %v587, %v564
    %v883 = vunpack.c.l.s4 1983009808
    %v884 = vunpack.c.0.s8 %v883
    %v885 = vlaneseq
    %v886 = vshrl.u32 %v885, 7
    %v887 = vsub.s32 %v884, %v886
    %v888 = vrot.slane %v587, %v887
    %v890 = vunpack.c.l.s4 1983009808
    %v891 = vunpack.c.0.s8 %v890
    %v892 = vlaneseq
    %v893 = vshrl.u32 %v892, 7
    %v894 = vsub.s32 %v891, %v893
    %v895 = vrot.slane %v881, %v894
    %v896 = vcombine.high %v595, %v564
    %v898 = vunpack.c.l.s4 1983009808
    %v899 = vunpack.c.0.s8 %v898
    %v900 = vlaneseq
    %v901 = vshrl.u32 %v900, 7
    %v902 = vsub.s32 %v899, %v901
    %v903 = vrot.slane %v595, %v902
    %v905 = vunpack.c.l.s4 1983009808
    %v906 = vunpack.c.0.s8 %v905
    %v907 = vlaneseq
    %v908 = vshrl.u32 %v907, 7
    %v909 = vsub.s32 %v906, %v908
    %v910 = vrot.slane %v896, %v909
    %v911 = vcombine.low %v888, %v903
    %v912 = vcombine.high %v888, %v903
    %v914 = vunpack.c.l.s4 1934713408
    %v915 = vunpack.c.0.s8 %v914
    %v916 = vlaneseq
    %v917 = vshrl.u32 %v916, 7
    %v918 = vsub.s32 %v915, %v917
    %v919 = vrot.slane %v911, %v918
    %v921 = vunpack.c.l.s4 1934713408
    %v922 = vunpack.c.0.s8 %v921
    %v923 = vlaneseq
    %v924 = vshrl.u32 %v923, 7
    %v925 = vsub.s32 %v922, %v924
    %v926 = vrot.slane %v912, %v925
    %v927 = vcombine.low %v895, %v910
    %v928 = vcombine.high %v895, %v910
    %v930 = vunpack.c.l.s4 1934713408
    %v931 = vunpack.c.0.s8 %v930
    %v932 = vlaneseq
    %v933 = vshrl.u32 %v932, 7
    %v934 = vsub.s32 %v931, %v933
    %v935 = vrot.slane %v927, %v934
    %v937 = vunpack.c.l.s4 1934713408
    %v938 = vunpack.c.0.s8 %v937
    %v939 = vlaneseq
    %v940 = vshrl.u32 %v939, 7
    %v941 = vsub.s32 %v938, %v940
    %v942 = vrot.slane %v928, %v941
    %v943 = vcombine.high %v919, 0
    %v944 = vcombine.high %v926, 0
    %v945 = vcombine.high %v935, 0
    %v946 = vcombine.high %v942, 0
    %v947 = vcombine.high %v591, %v567
    %v949 = vunpack.c.l.s4 1983009808
    %v950 = vunpack.c.0.s8 %v949
    %v951 = vlaneseq
    %v952 = vshrl.u32 %v951, 7
    %v953 = vsub.s32 %v950, %v952
    %v954 = vrot.slane %v591, %v953
    %v956 = vunpack.c.l.s4 1983009808
    %v957 = vunpack.c.0.s8 %v956
    %v958 = vlaneseq
    %v959 = vshrl.u32 %v958, 7
    %v960 = vsub.s32 %v957, %v959
    %v961 = vrot.slane %v947, %v960
    %v962 = vcombine.high %v599, %v567
    %v964 = vunpack.c.l.s4 1983009808
    %v965 = vunpack.c.0.s8 %v964
    %v966 = vlaneseq
    %v967 = vshrl.u32 %v966, 7
    %v968 = vsub.s32 %v965, %v967
    %v969 = vrot.slane %v599, %v968
    %v971 = vunpack.c.l.s4 1983009808
    %v972 = vunpack.c.0.s8 %v971
    %v973 = vlaneseq
    %v974 = vshrl.u32 %v973, 7
    %v975 = vsub.s32 %v972, %v974
    %v976 = vrot.slane %v962, %v975
    %v977 = vcombine.low %v954, %v969
    %v978 = vcombine.high %v954, %v969
    %v980 = vunpack.c.l.s4 1934713408
    %v981 = vunpack.c.0.s8 %v980
    %v982 = vlaneseq
    %v983 = vshrl.u32 %v982, 7
    %v984 = vsub.s32 %v981, %v983
    %v985 = vrot.slane %v977, %v984
    %v987 = vunpack.c.l.s4 1934713408
    %v988 = vunpack.c.0.s8 %v987
    %v989 = vlaneseq
    %v990 = vshrl.u32 %v989, 7
    %v991 = vsub.s32 %v988, %v990
    %v992 = vrot.slane %v978, %v991
    %v993 = vcombine.low %v961, %v976
    %v994 = vcombine.high %v961, %v976
    %v996 = vunpack.c.l.s4 1934713408
    %v997 = vunpack.c.0.s8 %v996
    %v998 = vlaneseq
    %v999 = vshrl.u32 %v998, 7
    %v1000 = vsub.s32 %v997, %v999
    %v1001 = vrot.slane %v993, %v1000
    %v1003 = vunpack.c.l.s4 1934713408
    %v1004 = vunpack.c.0.s8 %v1003
    %v1005 = vlaneseq
    %v1006 = vshrl.u32 %v1005, 7
    %v1007 = vsub.s32 %v1004, %v1006
    %v1008 = vrot.slane %v994, %v1007
    %v1009 = vcombine.high %v985, 0
    %v1010 = vcombine.high %v992, 0
    %v1011 = vcombine.high %v1001, 0
    %v1012 = vcombine.high %v1008, 0
    %v1013 = vcombine.high %v603, %v564
    %v1015 = vunpack.c.l.s4 1983009808
    %v1016 = vunpack.c.0.s8 %v1015
    %v1017 = vlaneseq
    %v1018 = vshrl.u32 %v1017, 7
    %v1019 = vsub.s32 %v1016, %v1018
    %v1020 = vrot.slane %v603, %v1019
    %v1022 = vunpack.c.l.s4 1983009808
    %v1023 = vunpack.c.0.s8 %v1022
    %v1024 = vlaneseq
    %v1025 = vshrl.u32 %v1024, 7
    %v1026 = vsub.s32 %v1023, %v1025
    %v1027 = vrot.slane %v1013, %v1026
    %v1028 = vcombine.high %v611, %v564
    %v1030 = vunpack.c.l.s4 1983009808
    %v1031 = vunpack.c.0.s8 %v1030
    %v1032 = vlaneseq
    %v1033 = vshrl.u32 %v1032, 7
    %v1034 = vsub.s32 %v1031, %v1033
    %v1035 = vrot.slane %v611, %v1034
    %v1037 = vunpack.c.l.s4 1983009808
    %v1038 = vunpack.c.0.s8 %v1037
    %v1039 = vlaneseq
    %v1040 = vshrl.u32 %v1039, 7
    %v1041 = vsub.s32 %v1038, %v1040
    %v1042 = vrot.slane %v1028, %v1041
    %v1043 = vcombine.low %v1020, %v1035
    %v1044 = vcombine.high %v1020, %v1035
    %v1046 = vunpack.c.l.s4 1934713408
    %v1047 = vunpack.c.0.s8 %v1046
    %v1048 = vlaneseq
    %v1049 = vshrl.u32 %v1048, 7
    %v1050 = vsub.s32 %v1047, %v1049
    %v1051 = vrot.slane %v1043, %v1050
    %v1053 = vunpack.c.l.s4 1934713408
    %v1054 = vunpack.c.0.s8 %v1053
    %v1055 = vlaneseq
    %v1056 = vshrl.u32 %v1055, 7
    %v1057 = vsub.s32 %v1054, %v1056
    %v1058 = vrot.slane %v1044, %v1057
    %v1059 = vcombine.low %v1027, %v1042
    %v1060 = vcombine.high %v1027, %v1042
    %v1062 = vunpack.c.l.s4 1934713408
    %v1063 = vunpack.c.0.s8 %v1062
    %v1064 = vlaneseq
    %v1065 = vshrl.u32 %v1064, 7
    %v1066 = vsub.s32 %v1063, %v1065
    %v1067 = vrot.slane %v1059, %v1066
    %v1069 = vunpack.c.l.s4 1934713408
    %v1070 = vunpack.c.0.s8 %v1069
    %v1071 = vlaneseq
    %v1072 = vshrl.u32 %v1071, 7
    %v1073 = vsub.s32 %v1070, %v1072
    %v1074 = vrot.slane %v1060, %v1073
    %v1075 = vcombine.high %v1051, 0
    %v1076 = vcombine.high %v1058, 0
    %v1077 = vcombine.high %v1067, 0
    %v1078 = vcombine.high %v1074, 0
    %v1079 = vcombine.high %v607, %v567
    %v1081 = vunpack.c.l.s4 1983009808
    %v1082 = vunpack.c.0.s8 %v1081
    %v1083 = vlaneseq
    %v1084 = vshrl.u32 %v1083, 7
    %v1085 = vsub.s32 %v1082, %v1084
    %v1086 = vrot.slane %v607, %v1085
    %v1088 = vunpack.c.l.s4 1983009808
    %v1089 = vunpack.c.0.s8 %v1088
    %v1090 = vlaneseq
    %v1091 = vshrl.u32 %v1090, 7
    %v1092 = vsub.s32 %v1089, %v1091
    %v1093 = vrot.slane %v1079, %v1092
    %v1094 = vcombine.high %v615, %v567
    %v1096 = vunpack.c.l.s4 1983009808
    %v1097 = vunpack.c.0.s8 %v1096
    %v1098 = vlaneseq
    %v1099 = vshrl.u32 %v1098, 7
    %v1100 = vsub.s32 %v1097, %v1099
    %v1101 = vrot.slane %v615, %v1100
    %v1103 = vunpack.c.l.s4 1983009808
    %v1104 = vunpack.c.0.s8 %v1103
    %v1105 = vlaneseq
    %v1106 = vshrl.u32 %v1105, 7
    %v1107 = vsub.s32 %v1104, %v1106
    %v1108 = vrot.slane %v1094, %v1107
    %v1109 = vcombine.low %v1086, %v1101
    %v1110 = vcombine.high %v1086, %v1101
    %v1112 = vunpack.c.l.s4 1934713408
    %v1113 = vunpack.c.0.s8 %v1112
    %v1114 = vlaneseq
    %v1115 = vshrl.u32 %v1114, 7
    %v1116 = vsub.s32 %v1113, %v1115
    %v1117 = vrot.slane %v1109, %v1116
    %v1119 = vunpack.c.l.s4 1934713408
    %v1120 = vunpack.c.0.s8 %v1119
    %v1121 = vlaneseq
    %v1122 = vshrl.u32 %v1121, 7
    %v1123 = vsub.s32 %v1120, %v1122
    %v1124 = vrot.slane %v1110, %v1123
    %v1125 = vcombine.low %v1093, %v1108
    %v1126 = vcombine.high %v1093, %v1108
    %v1128 = vunpack.c.l.s4 1934713408
    %v1129 = vunpack.c.0.s8 %v1128
    %v1130 = vlaneseq
    %v1131 = vshrl.u32 %v1130, 7
    %v1132 = vsub.s32 %v1129, %v1131
    %v1133 = vrot.slane %v1125, %v1132
    %v1135 = vunpack.c.l.s4 1934713408
    %v1136 = vunpack.c.0.s8 %v1135
    %v1137 = vlaneseq
    %v1138 = vshrl.u32 %v1137, 7
    %v1139 = vsub.s32 %v1136, %v1138
    %v1140 = vrot.slane %v1126, %v1139
    %v1141 = vcombine.high %v1117, 0
    %v1142 = vcombine.high %v1124, 0
    %v1143 = vcombine.high %v1133, 0
    %v1144 = vcombine.high %v1140, 0
    %v1145 = vcombine.low %v655, %v662
    %v1147 = vunpack.c.l.s4 1983009808
    %v1148 = vunpack.c.0.s8 %v1147
    %v1149 = vlaneseq
    %v1150 = vshrl.u32 %v1149, 7
    %v1151 = vsub.s32 %v1148, %v1150
    %v1152 = vrot.slane %v1145, %v1151
    %v1153 = vcombine.low %v679, %v680
    %v1155 = vunpack.c.l.s4 1983009808
    %v1156 = vunpack.c.0.s8 %v1155
    %v1157 = vlaneseq
    %v1158 = vshrl.u32 %v1157, 7
    %v1159 = vsub.s32 %v1156, %v1158
    %v1160 = vrot.slane %v1153, %v1159
    %v1161 = vcombine.low %v1152, %v1160
    %v1163 = vunpack.c.l.s4 1934713408
    %v1164 = vunpack.c.0.s8 %v1163
    %v1165 = vlaneseq
    %v1166 = vshrl.u32 %v1165, 7
    %v1167 = vsub.s32 %v1164, %v1166
    %v1168 = vrot.slane %v1161, %v1167
    %v1169 = vcombine.high %v1168, 0
    %v1170 = vcombine.low %v721, %v728
    %v1172 = vunpack.c.l.s4 1983009808
    %v1173 = vunpack.c.0.s8 %v1172
    %v1174 = vlaneseq
    %v1175 = vshrl.u32 %v1174, 7
    %v1176 = vsub.s32 %v1173, %v1175
    %v1177 = vrot.slane %v1170, %v1176
    %v1178 = vcombine.low %v745, %v746
    %v1180 = vunpack.c.l.s4 1983009808
    %v1181 = vunpack.c.0.s8 %v1180
    %v1182 = vlaneseq
    %v1183 = vshrl.u32 %v1182, 7
    %v1184 = vsub.s32 %v1181, %v1183
    %v1185 = vrot.slane %v1178, %v1184
    %v1186 = vcombine.low %v1177, %v1185
    %v1188 = vunpack.c.l.s4 1934713408
    %v1189 = vunpack.c.0.s8 %v1188
    %v1190 = vlaneseq
    %v1191 = vshrl.u32 %v1190, 7
    %v1192 = vsub.s32 %v1189, %v1191
    %v1193 = vrot.slane %v1186, %v1192
    %v1194 = vcombine.high %v1193, 0
    %v1195 = vcombine.low %v671, %v678
    %v1197 = vunpack.c.l.s4 1983009808
    %v1198 = vunpack.c.0.s8 %v1197
    %v1199 = vlaneseq
    %v1200 = vshrl.u32 %v1199, 7
    %v1201 = vsub.s32 %v1198, %v1200
    %v1202 = vrot.slane %v1195, %v1201
    %v1203 = vcombine.low %v681, %v682
    %v1205 = vunpack.c.l.s4 1983009808
    %v1206 = vunpack.c.0.s8 %v1205
    %v1207 = vlaneseq
    %v1208 = vshrl.u32 %v1207, 7
    %v1209 = vsub.s32 %v1206, %v1208
    %v1210 = vrot.slane %v1203, %v1209
    %v1211 = vcombine.low %v1202, %v1210
    %v1213 = vunpack.c.l.s4 1934713408
    %v1214 = vunpack.c.0.s8 %v1213
    %v1215 = vlaneseq
    %v1216 = vshrl.u32 %v1215, 7
    %v1217 = vsub.s32 %v1214, %v1216
    %v1218 = vrot.slane %v1211, %v1217
    %v1219 = vcombine.high %v1218, 0
    %v1220 = vcombine.low %v737, %v744
    %v1222 = vunpack.c.l.s4 1983009808
    %v1223 = vunpack.c.0.s8 %v1222
    %v1224 = vlaneseq
    %v1225 = vshrl.u32 %v1224, 7
    %v1226 = vsub.s32 %v1223, %v1225
    %v1227 = vrot.slane %v1220, %v1226
    %v1228 = vcombine.low %v747, %v748
    %v1230 = vunpack.c.l.s4 1983009808
    %v1231 = vunpack.c.0.s8 %v1230
    %v1232 = vlaneseq
    %v1233 = vshrl.u32 %v1232, 7
    %v1234 = vsub.s32 %v1231, %v1233
    %v1235 = vrot.slane %v1228, %v1234
    %v1236 = vcombine.low %v1227, %v1235
    %v1238 = vunpack.c.l.s4 1934713408
    %v1239 = vunpack.c.0.s8 %v1238
    %v1240 = vlaneseq
    %v1241 = vshrl.u32 %v1240, 7
    %v1242 = vsub.s32 %v1239, %v1241
    %v1243 = vrot.slane %v1236, %v1242
    %v1244 = vcombine.high %v1243, 0
    %v1245 = vcombine.low %v787, %v794
    %v1247 = vunpack.c.l.s4 1983009808
    %v1248 = vunpack.c.0.s8 %v1247
    %v1249 = vlaneseq
    %v1250 = vshrl.u32 %v1249, 7
    %v1251 = vsub.s32 %v1248, %v1250
    %v1252 = vrot.slane %v1245, %v1251
    %v1253 = vcombine.low %v811, %v812
    %v1255 = vunpack.c.l.s4 1983009808
    %v1256 = vunpack.c.0.s8 %v1255
    %v1257 = vlaneseq
    %v1258 = vshrl.u32 %v1257, 7
    %v1259 = vsub.s32 %v1256, %v1258
    %v1260 = vrot.slane %v1253, %v1259
    %v1261 = vcombine.low %v1252, %v1260
    %v1263 = vunpack.c.l.s4 1934713408
    %v1264 = vunpack.c.0.s8 %v1263
    %v1265 = vlaneseq
    %v1266 = vshrl.u32 %v1265, 7
    %v1267 = vsub.s32 %v1264, %v1266
    %v1268 = vrot.slane %v1261, %v1267
    %v1269 = vcombine.high %v1268, 0
    %v1270 = vcombine.low %v853, %v860
    %v1272 = vunpack.c.l.s4 1983009808
    %v1273 = vunpack.c.0.s8 %v1272
    %v1274 = vlaneseq
    %v1275 = vshrl.u32 %v1274, 7
    %v1276 = vsub.s32 %v1273, %v1275
    %v1277 = vrot.slane %v1270, %v1276
    %v1278 = vcombine.low %v877, %v878
    %v1280 = vunpack.c.l.s4 1983009808
    %v1281 = vunpack.c.0.s8 %v1280
    %v1282 = vlaneseq
    %v1283 = vshrl.u32 %v1282, 7
    %v1284 = vsub.s32 %v1281, %v1283
    %v1285 = vrot.slane %v1278, %v1284
    %v1286 = vcombine.low %v1277, %v1285
    %v1288 = vunpack.c.l.s4 1934713408
    %v1289 = vunpack.c.0.s8 %v1288
    %v1290 = vlaneseq
    %v1291 = vshrl.u32 %v1290, 7
    %v1292 = vsub.s32 %v1289, %v1291
    %v1293 = vrot.slane %v1286, %v1292
    %v1294 = vcombine.high %v1293, 0
    %v1295 = vcombine.low %v803, %v810
    %v1297 = vunpack.c.l.s4 1983009808
    %v1298 = vunpack.c.0.s8 %v1297
    %v1299 = vlaneseq
    %v1300 = vshrl.u32 %v1299, 7
    %v1301 = vsub.s32 %v1298, %v1300
    %v1302 = vrot.slane %v1295, %v1301
    %v1303 = vcombine.low %v813, %v814
    %v1305 = vunpack.c.l.s4 1983009808
    %v1306 = vunpack.c.0.s8 %v1305
    %v1307 = vlaneseq
    %v1308 = vshrl.u32 %v1307, 7
    %v1309 = vsub.s32 %v1306, %v1308
    %v1310 = vrot.slane %v1303, %v1309
    %v1311 = vcombine.low %v1302, %v1310
    %v1313 = vunpack.c.l.s4 1934713408
    %v1314 = vunpack.c.0.s8 %v1313
    %v1315 = vlaneseq
    %v1316 = vshrl.u32 %v1315, 7
    %v1317 = vsub.s32 %v1314, %v1316
    %v1318 = vrot.slane %v1311, %v1317
    %v1319 = vcombine.high %v1318, 0
    %v1320 = vcombine.low %v869, %v876
    %v1322 = vunpack.c.l.s4 1983009808
    %v1323 = vunpack.c.0.s8 %v1322
    %v1324 = vlaneseq
    %v1325 = vshrl.u32 %v1324, 7
    %v1326 = vsub.s32 %v1323, %v1325
    %v1327 = vrot.slane %v1320, %v1326
    %v1328 = vcombine.low %v879, %v880
    %v1330 = vunpack.c.l.s4 1983009808
    %v1331 = vunpack.c.0.s8 %v1330
    %v1332 = vlaneseq
    %v1333 = vshrl.u32 %v1332, 7
    %v1334 = vsub.s32 %v1331, %v1333
    %v1335 = vrot.slane %v1328, %v1334
    %v1336 = vcombine.low %v1327, %v1335
    %v1338 = vunpack.c.l.s4 1934713408
    %v1339 = vunpack.c.0.s8 %v1338
    %v1340 = vlaneseq
    %v1341 = vshrl.u32 %v1340, 7
    %v1342 = vsub.s32 %v1339, %v1341
    %v1343 = vrot.slane %v1336, %v1342
    %v1344 = vcombine.high %v1343, 0
    %v1345 = vcombine.low %v919, %v926
    %v1347 = vunpack.c.l.s4 1983009808
    %v1348 = vunpack.c.0.s8 %v1347
    %v1349 = vlaneseq
    %v1350 = vshrl.u32 %v1349, 7
    %v1351 = vsub.s32 %v1348, %v1350
    %v1352 = vrot.slane %v1345, %v1351
    %v1353 = vcombine.low %v943, %v944
    %v1355 = vunpack.c.l.s4 1983009808
    %v1356 = vunpack.c.0.s8 %v1355
    %v1357 = vlaneseq
    %v1358 = vshrl.u32 %v1357, 7
    %v1359 = vsub.s32 %v1356, %v1358
    %v1360 = vrot.slane %v1353, %v1359
    %v1361 = vcombine.low %v1352, %v1360
    %v1363 = vunpack.c.l.s4 1934713408
    %v1364 = vunpack.c.0.s8 %v1363
    %v1365 = vlaneseq
    %v1366 = vshrl.u32 %v1365, 7
    %v1367 = vsub.s32 %v1364, %v1366
    %v1368 = vrot.slane %v1361, %v1367
    %v1369 = vcombine.high %v1368, 0
    %v1370 = vcombine.low %v985, %v992
    %v1372 = vunpack.c.l.s4 1983009808
    %v1373 = vunpack.c.0.s8 %v1372
    %v1374 = vlaneseq
    %v1375 = vshrl.u32 %v1374, 7
    %v1376 = vsub.s32 %v1373, %v1375
    %v1377 = vrot.slane %v1370, %v1376
    %v1378 = vcombine.low %v1009, %v1010
    %v1380 = vunpack.c.l.s4 1983009808
    %v1381 = vunpack.c.0.s8 %v1380
    %v1382 = vlaneseq
    %v1383 = vshrl.u32 %v1382, 7
    %v1384 = vsub.s32 %v1381, %v1383
    %v1385 = vrot.slane %v1378, %v1384
    %v1386 = vcombine.low %v1377, %v1385
    %v1388 = vunpack.c.l.s4 1934713408
    %v1389 = vunpack.c.0.s8 %v1388
    %v1390 = vlaneseq
    %v1391 = vshrl.u32 %v1390, 7
    %v1392 = vsub.s32 %v1389, %v1391
    %v1393 = vrot.slane %v1386, %v1392
    %v1394 = vcombine.high %v1393, 0
    %v1395 = vcombine.low %v935, %v942
    %v1397 = vunpack.c.l.s4 1983009808
    %v1398 = vunpack.c.0.s8 %v1397
    %v1399 = vlaneseq
    %v1400 = vshrl.u32 %v1399, 7
    %v1401 = vsub.s32 %v1398, %v1400
    %v1402 = vrot.slane %v1395, %v1401
    %v1403 = vcombine.low %v945, %v946
    %v1405 = vunpack.c.l.s4 1983009808
    %v1406 = vunpack.c.0.s8 %v1405
    %v1407 = vlaneseq
    %v1408 = vshrl.u32 %v1407, 7
    %v1409 = vsub.s32 %v1406, %v1408
    %v1410 = vrot.slane %v1403, %v1409
    %v1411 = vcombine.low %v1402, %v1410
    %v1413 = vunpack.c.l.s4 1934713408
    %v1414 = vunpack.c.0.s8 %v1413
    %v1415 = vlaneseq
    %v1416 = vshrl.u32 %v1415, 7
    %v1417 = vsub.s32 %v1414, %v1416
    %v1418 = vrot.slane %v1411, %v1417
    %v1419 = vcombine.high %v1418, 0
    %v1420 = vcombine.low %v1001, %v1008
    %v1422 = vunpack.c.l.s4 1983009808
    %v1423 = vunpack.c.0.s8 %v1422
    %v1424 = vlaneseq
    %v1425 = vshrl.u32 %v1424, 7
    %v1426 = vsub.s32 %v1423, %v1425
    %v1427 = vrot.slane %v1420, %v1426
    %v1428 = vcombine.low %v1011, %v1012
    %v1430 = vunpack.c.l.s4 1983009808
    %v1431 = vunpack.c.0.s8 %v1430
    %v1432 = vlaneseq
    %v1433 = vshrl.u32 %v1432, 7
    %v1434 = vsub.s32 %v1431, %v1433
    %v1435 = vrot.slane %v1428, %v1434
    %v1436 = vcombine.low %v1427, %v1435
    %v1438 = vunpack.c.l.s4 1934713408
    %v1439 = vunpack.c.0.s8 %v1438
    %v1440 = vlaneseq
    %v1441 = vshrl.u32 %v1440, 7
    %v1442 = vsub.s32 %v1439, %v1441
    %v1443 = vrot.slane %v1436, %v1442
    %v1444 = vcombine.high %v1443, 0
    %v1445 = vcombine.low %v1051, %v1058
    %v1447 = vunpack.c.l.s4 1983009808
    %v1448 = vunpack.c.0.s8 %v1447
    %v1449 = vlaneseq
    %v1450 = vshrl.u32 %v1449, 7
    %v1451 = vsub.s32 %v1448, %v1450
    %v1452 = vrot.slane %v1445, %v1451
    %v1453 = vcombine.low %v1075, %v1076
    %v1455 = vunpack.c.l.s4 1983009808
    %v1456 = vunpack.c.0.s8 %v1455
    %v1457 = vlaneseq
    %v1458 = vshrl.u32 %v1457, 7
    %v1459 = vsub.s32 %v1456, %v1458
    %v1460 = vrot.slane %v1453, %v1459
    %v1461 = vcombine.low %v1452, %v1460
    %v1463 = vunpack.c.l.s4 1934713408
    %v1464 = vunpack.c.0.s8 %v1463
    %v1465 = vlaneseq
    %v1466 = vshrl.u32 %v1465, 7
    %v1467 = vsub.s32 %v1464, %v1466
    %v1468 = vrot.slane %v1461, %v1467
    %v1469 = vcombine.high %v1468, 0
    %v1470 = vcombine.low %v1117, %v1124
    %v1472 = vunpack.c.l.s4 1983009808
    %v1473 = vunpack.c.0.s8 %v1472
    %v1474 = vlaneseq
    %v1475 = vshrl.u32 %v1474, 7
    %v1476 = vsub.s32 %v1473, %v1475
    %v1477 = vrot.slane %v1470, %v1476
    %v1478 = vcombine.low %v1141, %v1142
    %v1480 = vunpack.c.l.s4 1983009808
    %v1481 = vunpack.c.0.s8 %v1480
    %v1482 = vlaneseq
    %v1483 = vshrl.u32 %v1482, 7
    %v1484 = vsub.s32 %v1481, %v1483
    %v1485 = vrot.slane %v1478, %v1484
    %v1486 = vcombine.low %v1477, %v1485
    %v1488 = vunpack.c.l.s4 1934713408
    %v1489 = vunpack.c.0.s8 %v1488
    %v1490 = vlaneseq
    %v1491 = vshrl.u32 %v1490, 7
    %v1492 = vsub.s32 %v1489, %v1491
    %v1493 = vrot.slane %v1486, %v1492
    %v1494 = vcombine.high %v1493, 0
    %v1495 = vcombine.low %v1067, %v1074
    %v1497 = vunpack.c.l.s4 1983009808
    %v1498 = vunpack.c.0.s8 %v1497
    %v1499 = vlaneseq
    %v1500 = vshrl.u32 %v1499, 7
    %v1501 = vsub.s32 %v1498, %v1500
    %v1502 = vrot.slane %v1495, %v1501
    %v1503 = vcombine.low %v1077, %v1078
    %v1505 = vunpack.c.l.s4 1983009808
    %v1506 = vunpack.c.0.s8 %v1505
    %v1507 = vlaneseq
    %v1508 = vshrl.u32 %v1507, 7
    %v1509 = vsub.s32 %v1506, %v1508
    %v1510 = vrot.slane %v1503, %v1509
    %v1511 = vcombine.low %v1502, %v1510
    %v1513 = vunpack.c.l.s4 1934713408
    %v1514 = vunpack.c.0.s8 %v1513
    %v1515 = vlaneseq
    %v1516 = vshrl.u32 %v1515, 7
    %v1517 = vsub.s32 %v1514, %v1516
    %v1518 = vrot.slane %v1511, %v1517
    %v1519 = vcombine.high %v1518, 0
    %v1520 = vcombine.low %v1133, %v1140
    %v1522 = vunpack.c.l.s4 1983009808
    %v1523 = vunpack.c.0.s8 %v1522
    %v1524 = vlaneseq
    %v1525 = vshrl.u32 %v1524, 7
    %v1526 = vsub.s32 %v1523, %v1525
    %v1527 = vrot.slane %v1520, %v1526
    %v1528 = vcombine.low %v1143, %v1144
    %v1530 = vunpack.c.l.s4 1983009808
    %v1531 = vunpack.c.0.s8 %v1530
    %v1532 = vlaneseq
    %v1533 = vshrl.u32 %v1532, 7
    %v1534 = vsub.s32 %v1531, %v1533
    %v1535 = vrot.slane %v1528, %v1534
    %v1536 = vcombine.low %v1527, %v1535
    %v1538 = vunpack.c.l.s4 1934713408
    %v1539 = vunpack.c.0.s8 %v1538
    %v1540 = vlaneseq
    %v1541 = vshrl.u32 %v1540, 7
    %v1542 = vsub.s32 %v1539, %v1541
    %v1543 = vrot.slane %v1536, %v1542
    %v1544 = vcombine.high %v1543, 0
    %v1547 = vpack.i.b16 %v1193, %v1168
    %v1548 = vshrl.u32 %v1168, 16
    %v1549 = vshrl.u32 %v1193, 16
    %v1550 = vpack.i.b16 %v1549, %v1548
    %v1553 = vpack.i.b16 %v1194, %v1169
    %v1554 = vshrl.u32 %v1169, 16
    %v1555 = vshrl.u32 %v1194, 16
    %v1556 = vpack.i.b16 %v1555, %v1554
    %v1559 = vpack.i.b16 %v1243, %v1218
    %v1560 = vshrl.u32 %v1218, 16
    %v1561 = vshrl.u32 %v1243, 16
    %v1562 = vpack.i.b16 %v1561, %v1560
    %v1565 = vpack.i.b16 %v1244, %v1219
    %v1566 = vshrl.u32 %v1219, 16
    %v1567 = vshrl.u32 %v1244, 16
    %v1568 = vpack.i.b16 %v1567, %v1566
    %v1571 = vpack.i.b16 %v1293, %v1268
    %v1572 = vshrl.u32 %v1268, 16
    %v1573 = vshrl.u32 %v1293, 16
    %v1574 = vpack.i.b16 %v1573, %v1572
    %v1577 = vpack.i.b16 %v1294, %v1269
    %v1578 = vshrl.u32 %v1269, 16
    %v1579 = vshrl.u32 %v1294, 16
    %v1580 = vpack.i.b16 %v1579, %v1578
    %v1583 = vpack.i.b16 %v1343, %v1318
    %v1584 = vshrl.u32 %v1318, 16
    %v1585 = vshrl.u32 %v1343, 16
    %v1586 = vpack.i.b16 %v1585, %v1584
    %v1589 = vpack.i.b16 %v1344, %v1319
    %v1590 = vshrl.u32 %v1319, 16
    %v1591 = vshrl.u32 %v1344, 16
    %v1592 = vpack.i.b16 %v1591, %v1590
    %v1595 = vpack.i.b16 %v1393, %v1368
    %v1596 = vshrl.u32 %v1368, 16
    %v1597 = vshrl.u32 %v1393, 16
    %v1598 = vpack.i.b16 %v1597, %v1596
    %v1601 = vpack.i.b16 %v1394, %v1369
    %v1602 = vshrl.u32 %v1369, 16
    %v1603 = vshrl.u32 %v1394, 16
    %v1604 = vpack.i.b16 %v1603, %v1602
    %v1607 = vpack.i.b16 %v1443, %v1418
    %v1608 = vshrl.u32 %v1418, 16
    %v1609 = vshrl.u32 %v1443, 16
    %v1610 = vpack.i.b16 %v1609, %v1608
    %v1613 = vpack.i.b16 %v1444, %v1419
    %v1614 = vshrl.u32 %v1419, 16
    %v1615 = vshrl.u32 %v1444, 16
    %v1616 = vpack.i.b16 %v1615, %v1614
    %v1619 = vpack.i.b16 %v1493, %v1468
    %v1620 = vshrl.u32 %v1468, 16
    %v1621 = vshrl.u32 %v1493, 16
    %v1622 = vpack.i.b16 %v1621, %v1620
    %v1625 = vpack.i.b16 %v1494, %v1469
    %v1626 = vshrl.u32 %v1469, 16
    %v1627 = vshrl.u32 %v1494, 16
    %v1628 = vpack.i.b16 %v1627, %v1626
    %v1631 = vpack.i.b16 %v1543, %v1518
    %v1632 = vshrl.u32 %v1518, 16
    %v1633 = vshrl.u32 %v1543, 16
    %v1634 = vpack.i.b16 %v1633, %v1632
    %v1637 = vpack.i.b16 %v1544, %v1519
    %v1638 = vshrl.u32 %v1519, 16
    %v1639 = vshrl.u32 %v1544, 16
    %v1640 = vpack.i.b16 %v1639, %v1638
    %1645 = vrot.lane.b32.xlu0 %v407, 112
    %v1646 = vpop.permute.xlu0 %1645
    %1647 = vrot.lane.b32.xlu0 %v408, 112
    %v1648 = vpop.permute.xlu0 %1647
    %1649 = vrot.lane.b32.xlu0 %v409, 112
    %v1650 = vpop.permute.xlu0 %1649
    %1651 = vrot.lane.b32.xlu0 %v410, 112
    %v1652 = vpop.permute.xlu0 %1651
    %1653 = vrot.lane.b32.xlu0 %v407, 96
    %v1654 = vpop.permute.xlu0 %1653
    %1655 = vrot.lane.b32.xlu0 %v408, 96
    %v1656 = vpop.permute.xlu0 %1655
    %1657 = vrot.lane.b32.xlu0 %v409, 96
    %v1658 = vpop.permute.xlu0 %1657
    %1659 = vrot.lane.b32.xlu0 %v410, 96
    %v1660 = vpop.permute.xlu0 %1659
    %1661 = vrot.lane.b32.xlu0 %v407, 80
    %v1662 = vpop.permute.xlu0 %1661
    %1663 = vrot.lane.b32.xlu0 %v408, 80
    %v1664 = vpop.permute.xlu0 %1663
    %1665 = vrot.lane.b32.xlu0 %v409, 80
    %v1666 = vpop.permute.xlu0 %1665
    %1667 = vrot.lane.b32.xlu0 %v410, 80
    %v1668 = vpop.permute.xlu0 %1667
    %v1671 = vpack.i.b16 %v1646, %v407
    %v1673 = vshrl.u32 %v407, 16
    %v1674 = vshrl.u32 %v1646, 16
    %v1675 = vpack.i.b16 %v1674, %v1673
    %v1679 = vpack.i.b16 %v1662, %v1654
    %v1681 = vshrl.u32 %v1654, 16
    %v1682 = vshrl.u32 %v1662, 16
    %v1683 = vpack.i.b16 %v1682, %v1681
    %v1687 = vpack.i.b16 %v1648, %v408
    %v1689 = vshrl.u32 %v408, 16
    %v1690 = vshrl.u32 %v1648, 16
    %v1691 = vpack.i.b16 %v1690, %v1689
    %v1695 = vpack.i.b16 %v1664, %v1656
    %v1697 = vshrl.u32 %v1656, 16
    %v1698 = vshrl.u32 %v1664, 16
    %v1699 = vpack.i.b16 %v1698, %v1697
    %v1703 = vpack.i.b16 %v1650, %v409
    %v1705 = vshrl.u32 %v409, 16
    %v1706 = vshrl.u32 %v1650, 16
    %v1707 = vpack.i.b16 %v1706, %v1705
    %v1711 = vpack.i.b16 %v1666, %v1658
    %v1713 = vshrl.u32 %v1658, 16
    %v1714 = vshrl.u32 %v1666, 16
    %v1715 = vpack.i.b16 %v1714, %v1713
    %v1719 = vpack.i.b16 %v1652, %v410
    %v1721 = vshrl.u32 %v410, 16
    %v1722 = vshrl.u32 %v1652, 16
    %v1723 = vpack.i.b16 %v1722, %v1721
    %v1727 = vpack.i.b16 %v1668, %v1660
    %v1729 = vshrl.u32 %v1660, 16
    %v1730 = vshrl.u32 %v1668, 16
    %v1731 = vpack.i.b16 %v1730, %v1729
    %v1733 = vcombine.high %v1671, %v564
    %v1735 = vunpack.c.l.s4 1983009808
    %v1736 = vunpack.c.0.s8 %v1735
    %v1737 = vlaneseq
    %v1738 = vshrl.u32 %v1737, 7
    %v1739 = vsub.s32 %v1736, %v1738
    %v1740 = vrot.slane %v1671, %v1739
    %v1742 = vunpack.c.l.s4 1983009808
    %v1743 = vunpack.c.0.s8 %v1742
    %v1744 = vlaneseq
    %v1745 = vshrl.u32 %v1744, 7
    %v1746 = vsub.s32 %v1743, %v1745
    %v1747 = vrot.slane %v1733, %v1746
    %v1748 = vcombine.high %v1679, %v564
    %v1750 = vunpack.c.l.s4 1983009808
    %v1751 = vunpack.c.0.s8 %v1750
    %v1752 = vlaneseq
    %v1753 = vshrl.u32 %v1752, 7
    %v1754 = vsub.s32 %v1751, %v1753
    %v1755 = vrot.slane %v1679, %v1754
    %v1757 = vunpack.c.l.s4 1983009808
    %v1758 = vunpack.c.0.s8 %v1757
    %v1759 = vlaneseq
    %v1760 = vshrl.u32 %v1759, 7
    %v1761 = vsub.s32 %v1758, %v1760
    %v1762 = vrot.slane %v1748, %v1761
    %v1763 = vcombine.low %v1740, %v1755
    %v1764 = vcombine.high %v1740, %v1755
    %v1766 = vunpack.c.l.s4 1934713408
    %v1767 = vunpack.c.0.s8 %v1766
    %v1768 = vlaneseq
    %v1769 = vshrl.u32 %v1768, 7
    %v1770 = vsub.s32 %v1767, %v1769
    %v1771 = vrot.slane %v1763, %v1770
    %v1773 = vunpack.c.l.s4 1934713408
    %v1774 = vunpack.c.0.s8 %v1773
    %v1775 = vlaneseq
    %v1776 = vshrl.u32 %v1775, 7
    %v1777 = vsub.s32 %v1774, %v1776
    %v1778 = vrot.slane %v1764, %v1777
    %v1779 = vcombine.low %v1747, %v1762
    %v1780 = vcombine.high %v1747, %v1762
    %v1782 = vunpack.c.l.s4 1934713408
    %v1783 = vunpack.c.0.s8 %v1782
    %v1784 = vlaneseq
    %v1785 = vshrl.u32 %v1784, 7
    %v1786 = vsub.s32 %v1783, %v1785
    %v1787 = vrot.slane %v1779, %v1786
    %v1789 = vunpack.c.l.s4 1934713408
    %v1790 = vunpack.c.0.s8 %v1789
    %v1791 = vlaneseq
    %v1792 = vshrl.u32 %v1791, 7
    %v1793 = vsub.s32 %v1790, %v1792
    %v1794 = vrot.slane %v1780, %v1793
    %v1795 = vcombine.high %v1771, 0
    %v1796 = vcombine.high %v1778, 0
    %v1797 = vcombine.high %v1787, 0
    %v1798 = vcombine.high %v1794, 0
    %v1799 = vcombine.high %v1675, %v567
    %v1801 = vunpack.c.l.s4 1983009808
    %v1802 = vunpack.c.0.s8 %v1801
    %v1803 = vlaneseq
    %v1804 = vshrl.u32 %v1803, 7
    %v1805 = vsub.s32 %v1802, %v1804
    %v1806 = vrot.slane %v1675, %v1805
    %v1808 = vunpack.c.l.s4 1983009808
    %v1809 = vunpack.c.0.s8 %v1808
    %v1810 = vlaneseq
    %v1811 = vshrl.u32 %v1810, 7
    %v1812 = vsub.s32 %v1809, %v1811
    %v1813 = vrot.slane %v1799, %v1812
    %v1814 = vcombine.high %v1683, %v567
    %v1816 = vunpack.c.l.s4 1983009808
    %v1817 = vunpack.c.0.s8 %v1816
    %v1818 = vlaneseq
    %v1819 = vshrl.u32 %v1818, 7
    %v1820 = vsub.s32 %v1817, %v1819
    %v1821 = vrot.slane %v1683, %v1820
    %v1823 = vunpack.c.l.s4 1983009808
    %v1824 = vunpack.c.0.s8 %v1823
    %v1825 = vlaneseq
    %v1826 = vshrl.u32 %v1825, 7
    %v1827 = vsub.s32 %v1824, %v1826
    %v1828 = vrot.slane %v1814, %v1827
    %v1829 = vcombine.low %v1806, %v1821
    %v1830 = vcombine.high %v1806, %v1821
    %v1832 = vunpack.c.l.s4 1934713408
    %v1833 = vunpack.c.0.s8 %v1832
    %v1834 = vlaneseq
    %v1835 = vshrl.u32 %v1834, 7
    %v1836 = vsub.s32 %v1833, %v1835
    %v1837 = vrot.slane %v1829, %v1836
    %v1839 = vunpack.c.l.s4 1934713408
    %v1840 = vunpack.c.0.s8 %v1839
    %v1841 = vlaneseq
    %v1842 = vshrl.u32 %v1841, 7
    %v1843 = vsub.s32 %v1840, %v1842
    %v1844 = vrot.slane %v1830, %v1843
    %v1845 = vcombine.low %v1813, %v1828
    %v1846 = vcombine.high %v1813, %v1828
    %v1848 = vunpack.c.l.s4 1934713408
    %v1849 = vunpack.c.0.s8 %v1848
    %v1850 = vlaneseq
    %v1851 = vshrl.u32 %v1850, 7
    %v1852 = vsub.s32 %v1849, %v1851
    %v1853 = vrot.slane %v1845, %v1852
    %v1855 = vunpack.c.l.s4 1934713408
    %v1856 = vunpack.c.0.s8 %v1855
    %v1857 = vlaneseq
    %v1858 = vshrl.u32 %v1857, 7
    %v1859 = vsub.s32 %v1856, %v1858
    %v1860 = vrot.slane %v1846, %v1859
    %v1861 = vcombine.high %v1837, 0
    %v1862 = vcombine.high %v1844, 0
    %v1863 = vcombine.high %v1853, 0
    %v1864 = vcombine.high %v1860, 0
    %v1865 = vcombine.high %v1687, %v564
    %v1867 = vunpack.c.l.s4 1983009808
    %v1868 = vunpack.c.0.s8 %v1867
    %v1869 = vlaneseq
    %v1870 = vshrl.u32 %v1869, 7
    %v1871 = vsub.s32 %v1868, %v1870
    %v1872 = vrot.slane %v1687, %v1871
    %v1874 = vunpack.c.l.s4 1983009808
    %v1875 = vunpack.c.0.s8 %v1874
    %v1876 = vlaneseq
    %v1877 = vshrl.u32 %v1876, 7
    %v1878 = vsub.s32 %v1875, %v1877
    %v1879 = vrot.slane %v1865, %v1878
    %v1880 = vcombine.high %v1695, %v564
    %v1882 = vunpack.c.l.s4 1983009808
    %v1883 = vunpack.c.0.s8 %v1882
    %v1884 = vlaneseq
    %v1885 = vshrl.u32 %v1884, 7
    %v1886 = vsub.s32 %v1883, %v1885
    %v1887 = vrot.slane %v1695, %v1886
    %v1889 = vunpack.c.l.s4 1983009808
    %v1890 = vunpack.c.0.s8 %v1889
    %v1891 = vlaneseq
    %v1892 = vshrl.u32 %v1891, 7
    %v1893 = vsub.s32 %v1890, %v1892
    %v1894 = vrot.slane %v1880, %v1893
    %v1895 = vcombine.low %v1872, %v1887
    %v1896 = vcombine.high %v1872, %v1887
    %v1898 = vunpack.c.l.s4 1934713408
    %v1899 = vunpack.c.0.s8 %v1898
    %v1900 = vlaneseq
    %v1901 = vshrl.u32 %v1900, 7
    %v1902 = vsub.s32 %v1899, %v1901
    %v1903 = vrot.slane %v1895, %v1902
    %v1905 = vunpack.c.l.s4 1934713408
    %v1906 = vunpack.c.0.s8 %v1905
    %v1907 = vlaneseq
    %v1908 = vshrl.u32 %v1907, 7
    %v1909 = vsub.s32 %v1906, %v1908
    %v1910 = vrot.slane %v1896, %v1909
    %v1911 = vcombine.low %v1879, %v1894
    %v1912 = vcombine.high %v1879, %v1894
    %v1914 = vunpack.c.l.s4 1934713408
    %v1915 = vunpack.c.0.s8 %v1914
    %v1916 = vlaneseq
    %v1917 = vshrl.u32 %v1916, 7
    %v1918 = vsub.s32 %v1915, %v1917
    %v1919 = vrot.slane %v1911, %v1918
    %v1921 = vunpack.c.l.s4 1934713408
    %v1922 = vunpack.c.0.s8 %v1921
    %v1923 = vlaneseq
    %v1924 = vshrl.u32 %v1923, 7
    %v1925 = vsub.s32 %v1922, %v1924
    %v1926 = vrot.slane %v1912, %v1925
    %v1927 = vcombine.high %v1903, 0
    %v1928 = vcombine.high %v1910, 0
    %v1929 = vcombine.high %v1919, 0
    %v1930 = vcombine.high %v1926, 0
    %v1931 = vcombine.high %v1691, %v567
    %v1933 = vunpack.c.l.s4 1983009808
    %v1934 = vunpack.c.0.s8 %v1933
    %v1935 = vlaneseq
    %v1936 = vshrl.u32 %v1935, 7
    %v1937 = vsub.s32 %v1934, %v1936
    %v1938 = vrot.slane %v1691, %v1937
    %v1940 = vunpack.c.l.s4 1983009808
    %v1941 = vunpack.c.0.s8 %v1940
    %v1942 = vlaneseq
    %v1943 = vshrl.u32 %v1942, 7
    %v1944 = vsub.s32 %v1941, %v1943
    %v1945 = vrot.slane %v1931, %v1944
    %v1946 = vcombine.high %v1699, %v567
    %v1948 = vunpack.c.l.s4 1983009808
    %v1949 = vunpack.c.0.s8 %v1948
    %v1950 = vlaneseq
    %v1951 = vshrl.u32 %v1950, 7
    %v1952 = vsub.s32 %v1949, %v1951
    %v1953 = vrot.slane %v1699, %v1952
    %v1955 = vunpack.c.l.s4 1983009808
    %v1956 = vunpack.c.0.s8 %v1955
    %v1957 = vlaneseq
    %v1958 = vshrl.u32 %v1957, 7
    %v1959 = vsub.s32 %v1956, %v1958
    %v1960 = vrot.slane %v1946, %v1959
    %v1961 = vcombine.low %v1938, %v1953
    %v1962 = vcombine.high %v1938, %v1953
    %v1964 = vunpack.c.l.s4 1934713408
    %v1965 = vunpack.c.0.s8 %v1964
    %v1966 = vlaneseq
    %v1967 = vshrl.u32 %v1966, 7
    %v1968 = vsub.s32 %v1965, %v1967
    %v1969 = vrot.slane %v1961, %v1968
    %v1971 = vunpack.c.l.s4 1934713408
    %v1972 = vunpack.c.0.s8 %v1971
    %v1973 = vlaneseq
    %v1974 = vshrl.u32 %v1973, 7
    %v1975 = vsub.s32 %v1972, %v1974
    %v1976 = vrot.slane %v1962, %v1975
    %v1977 = vcombine.low %v1945, %v1960
    %v1978 = vcombine.high %v1945, %v1960
    %v1980 = vunpack.c.l.s4 1934713408
    %v1981 = vunpack.c.0.s8 %v1980
    %v1982 = vlaneseq
    %v1983 = vshrl.u32 %v1982, 7
    %v1984 = vsub.s32 %v1981, %v1983
    %v1985 = vrot.slane %v1977, %v1984
    %v1987 = vunpack.c.l.s4 1934713408
    %v1988 = vunpack.c.0.s8 %v1987
    %v1989 = vlaneseq
    %v1990 = vshrl.u32 %v1989, 7
    %v1991 = vsub.s32 %v1988, %v1990
    %v1992 = vrot.slane %v1978, %v1991
    %v1993 = vcombine.high %v1969, 0
    %v1994 = vcombine.high %v1976, 0
    %v1995 = vcombine.high %v1985, 0
    %v1996 = vcombine.high %v1992, 0
    %v1997 = vcombine.high %v1703, %v564
    %v1999 = vunpack.c.l.s4 1983009808
    %v2000 = vunpack.c.0.s8 %v1999
    %v2001 = vlaneseq
    %v2002 = vshrl.u32 %v2001, 7
    %v2003 = vsub.s32 %v2000, %v2002
    %v2004 = vrot.slane %v1703, %v2003
    %v2006 = vunpack.c.l.s4 1983009808
    %v2007 = vunpack.c.0.s8 %v2006
    %v2008 = vlaneseq
    %v2009 = vshrl.u32 %v2008, 7
    %v2010 = vsub.s32 %v2007, %v2009
    %v2011 = vrot.slane %v1997, %v2010
    %v2012 = vcombine.high %v1711, %v564
    %v2014 = vunpack.c.l.s4 1983009808
    %v2015 = vunpack.c.0.s8 %v2014
    %v2016 = vlaneseq
    %v2017 = vshrl.u32 %v2016, 7
    %v2018 = vsub.s32 %v2015, %v2017
    %v2019 = vrot.slane %v1711, %v2018
    %v2021 = vunpack.c.l.s4 1983009808
    %v2022 = vunpack.c.0.s8 %v2021
    %v2023 = vlaneseq
    %v2024 = vshrl.u32 %v2023, 7
    %v2025 = vsub.s32 %v2022, %v2024
    %v2026 = vrot.slane %v2012, %v2025
    %v2027 = vcombine.low %v2004, %v2019
    %v2028 = vcombine.high %v2004, %v2019
    %v2030 = vunpack.c.l.s4 1934713408
    %v2031 = vunpack.c.0.s8 %v2030
    %v2032 = vlaneseq
    %v2033 = vshrl.u32 %v2032, 7
    %v2034 = vsub.s32 %v2031, %v2033
    %v2035 = vrot.slane %v2027, %v2034
    %v2037 = vunpack.c.l.s4 1934713408
    %v2038 = vunpack.c.0.s8 %v2037
    %v2039 = vlaneseq
    %v2040 = vshrl.u32 %v2039, 7
    %v2041 = vsub.s32 %v2038, %v2040
    %v2042 = vrot.slane %v2028, %v2041
    %v2043 = vcombine.low %v2011, %v2026
    %v2044 = vcombine.high %v2011, %v2026
    %v2046 = vunpack.c.l.s4 1934713408
    %v2047 = vunpack.c.0.s8 %v2046
    %v2048 = vlaneseq
    %v2049 = vshrl.u32 %v2048, 7
    %v2050 = vsub.s32 %v2047, %v2049
    %v2051 = vrot.slane %v2043, %v2050
    %v2053 = vunpack.c.l.s4 1934713408
    %v2054 = vunpack.c.0.s8 %v2053
    %v2055 = vlaneseq
    %v2056 = vshrl.u32 %v2055, 7
    %v2057 = vsub.s32 %v2054, %v2056
    %v2058 = vrot.slane %v2044, %v2057
    %v2059 = vcombine.high %v2035, 0
    %v2060 = vcombine.high %v2042, 0
    %v2061 = vcombine.high %v2051, 0
    %v2062 = vcombine.high %v2058, 0
    %v2063 = vcombine.high %v1707, %v567
    %v2065 = vunpack.c.l.s4 1983009808
    %v2066 = vunpack.c.0.s8 %v2065
    %v2067 = vlaneseq
    %v2068 = vshrl.u32 %v2067, 7
    %v2069 = vsub.s32 %v2066, %v2068
    %v2070 = vrot.slane %v1707, %v2069
    %v2072 = vunpack.c.l.s4 1983009808
    %v2073 = vunpack.c.0.s8 %v2072
    %v2074 = vlaneseq
    %v2075 = vshrl.u32 %v2074, 7
    %v2076 = vsub.s32 %v2073, %v2075
    %v2077 = vrot.slane %v2063, %v2076
    %v2078 = vcombine.high %v1715, %v567
    %v2080 = vunpack.c.l.s4 1983009808
    %v2081 = vunpack.c.0.s8 %v2080
    %v2082 = vlaneseq
    %v2083 = vshrl.u32 %v2082, 7
    %v2084 = vsub.s32 %v2081, %v2083
    %v2085 = vrot.slane %v1715, %v2084
    %v2087 = vunpack.c.l.s4 1983009808
    %v2088 = vunpack.c.0.s8 %v2087
    %v2089 = vlaneseq
    %v2090 = vshrl.u32 %v2089, 7
    %v2091 = vsub.s32 %v2088, %v2090
    %v2092 = vrot.slane %v2078, %v2091
    %v2093 = vcombine.low %v2070, %v2085
    %v2094 = vcombine.high %v2070, %v2085
    %v2096 = vunpack.c.l.s4 1934713408
    %v2097 = vunpack.c.0.s8 %v2096
    %v2098 = vlaneseq
    %v2099 = vshrl.u32 %v2098, 7
    %v2100 = vsub.s32 %v2097, %v2099
    %v2101 = vrot.slane %v2093, %v2100
    %v2103 = vunpack.c.l.s4 1934713408
    %v2104 = vunpack.c.0.s8 %v2103
    %v2105 = vlaneseq
    %v2106 = vshrl.u32 %v2105, 7
    %v2107 = vsub.s32 %v2104, %v2106
    %v2108 = vrot.slane %v2094, %v2107
    %v2109 = vcombine.low %v2077, %v2092
    %v2110 = vcombine.high %v2077, %v2092
    %v2112 = vunpack.c.l.s4 1934713408
    %v2113 = vunpack.c.0.s8 %v2112
    %v2114 = vlaneseq
    %v2115 = vshrl.u32 %v2114, 7
    %v2116 = vsub.s32 %v2113, %v2115
    %v2117 = vrot.slane %v2109, %v2116
    %v2119 = vunpack.c.l.s4 1934713408
    %v2120 = vunpack.c.0.s8 %v2119
    %v2121 = vlaneseq
    %v2122 = vshrl.u32 %v2121, 7
    %v2123 = vsub.s32 %v2120, %v2122
    %v2124 = vrot.slane %v2110, %v2123
    %v2125 = vcombine.high %v2101, 0
    %v2126 = vcombine.high %v2108, 0
    %v2127 = vcombine.high %v2117, 0
    %v2128 = vcombine.high %v2124, 0
    %v2129 = vcombine.high %v1719, %v564
    %v2131 = vunpack.c.l.s4 1983009808
    %v2132 = vunpack.c.0.s8 %v2131
    %v2133 = vlaneseq
    %v2134 = vshrl.u32 %v2133, 7
    %v2135 = vsub.s32 %v2132, %v2134
    %v2136 = vrot.slane %v1719, %v2135
    %v2138 = vunpack.c.l.s4 1983009808
    %v2139 = vunpack.c.0.s8 %v2138
    %v2140 = vlaneseq
    %v2141 = vshrl.u32 %v2140, 7
    %v2142 = vsub.s32 %v2139, %v2141
    %v2143 = vrot.slane %v2129, %v2142
    %v2144 = vcombine.high %v1727, %v564
    %v2146 = vunpack.c.l.s4 1983009808
    %v2147 = vunpack.c.0.s8 %v2146
    %v2148 = vlaneseq
    %v2149 = vshrl.u32 %v2148, 7
    %v2150 = vsub.s32 %v2147, %v2149
    %v2151 = vrot.slane %v1727, %v2150
    %v2153 = vunpack.c.l.s4 1983009808
    %v2154 = vunpack.c.0.s8 %v2153
    %v2155 = vlaneseq
    %v2156 = vshrl.u32 %v2155, 7
    %v2157 = vsub.s32 %v2154, %v2156
    %v2158 = vrot.slane %v2144, %v2157
    %v2159 = vcombine.low %v2136, %v2151
    %v2160 = vcombine.high %v2136, %v2151
    %v2162 = vunpack.c.l.s4 1934713408
    %v2163 = vunpack.c.0.s8 %v2162
    %v2164 = vlaneseq
    %v2165 = vshrl.u32 %v2164, 7
    %v2166 = vsub.s32 %v2163, %v2165
    %v2167 = vrot.slane %v2159, %v2166
    %v2169 = vunpack.c.l.s4 1934713408
    %v2170 = vunpack.c.0.s8 %v2169
    %v2171 = vlaneseq
    %v2172 = vshrl.u32 %v2171, 7
    %v2173 = vsub.s32 %v2170, %v2172
    %v2174 = vrot.slane %v2160, %v2173
    %v2175 = vcombine.low %v2143, %v2158
    %v2176 = vcombine.high %v2143, %v2158
    %v2178 = vunpack.c.l.s4 1934713408
    %v2179 = vunpack.c.0.s8 %v2178
    %v2180 = vlaneseq
    %v2181 = vshrl.u32 %v2180, 7
    %v2182 = vsub.s32 %v2179, %v2181
    %v2183 = vrot.slane %v2175, %v2182
    %v2185 = vunpack.c.l.s4 1934713408
    %v2186 = vunpack.c.0.s8 %v2185
    %v2187 = vlaneseq
    %v2188 = vshrl.u32 %v2187, 7
    %v2189 = vsub.s32 %v2186, %v2188
    %v2190 = vrot.slane %v2176, %v2189
    %v2191 = vcombine.high %v2167, 0
    %v2192 = vcombine.high %v2174, 0
    %v2193 = vcombine.high %v2183, 0
    %v2194 = vcombine.high %v2190, 0
    %v2195 = vcombine.high %v1723, %v567
    %v2197 = vunpack.c.l.s4 1983009808
    %v2198 = vunpack.c.0.s8 %v2197
    %v2199 = vlaneseq
    %v2200 = vshrl.u32 %v2199, 7
    %v2201 = vsub.s32 %v2198, %v2200
    %v2202 = vrot.slane %v1723, %v2201
    %v2204 = vunpack.c.l.s4 1983009808
    %v2205 = vunpack.c.0.s8 %v2204
    %v2206 = vlaneseq
    %v2207 = vshrl.u32 %v2206, 7
    %v2208 = vsub.s32 %v2205, %v2207
    %v2209 = vrot.slane %v2195, %v2208
    %v2210 = vcombine.high %v1731, %v567
    %v2212 = vunpack.c.l.s4 1983009808
    %v2213 = vunpack.c.0.s8 %v2212
    %v2214 = vlaneseq
    %v2215 = vshrl.u32 %v2214, 7
    %v2216 = vsub.s32 %v2213, %v2215
    %v2217 = vrot.slane %v1731, %v2216
    %v2219 = vunpack.c.l.s4 1983009808
    %v2220 = vunpack.c.0.s8 %v2219
    %v2221 = vlaneseq
    %v2222 = vshrl.u32 %v2221, 7
    %v2223 = vsub.s32 %v2220, %v2222
    %v2224 = vrot.slane %v2210, %v2223
    %v2225 = vcombine.low %v2202, %v2217
    %v2226 = vcombine.high %v2202, %v2217
    %v2228 = vunpack.c.l.s4 1934713408
    %v2229 = vunpack.c.0.s8 %v2228
    %v2230 = vlaneseq
    %v2231 = vshrl.u32 %v2230, 7
    %v2232 = vsub.s32 %v2229, %v2231
    %v2233 = vrot.slane %v2225, %v2232
    %v2235 = vunpack.c.l.s4 1934713408
    %v2236 = vunpack.c.0.s8 %v2235
    %v2237 = vlaneseq
    %v2238 = vshrl.u32 %v2237, 7
    %v2239 = vsub.s32 %v2236, %v2238
    %v2240 = vrot.slane %v2226, %v2239
    %v2241 = vcombine.low %v2209, %v2224
    %v2242 = vcombine.high %v2209, %v2224
    %v2244 = vunpack.c.l.s4 1934713408
    %v2245 = vunpack.c.0.s8 %v2244
    %v2246 = vlaneseq
    %v2247 = vshrl.u32 %v2246, 7
    %v2248 = vsub.s32 %v2245, %v2247
    %v2249 = vrot.slane %v2241, %v2248
    %v2251 = vunpack.c.l.s4 1934713408
    %v2252 = vunpack.c.0.s8 %v2251
    %v2253 = vlaneseq
    %v2254 = vshrl.u32 %v2253, 7
    %v2255 = vsub.s32 %v2252, %v2254
    %v2256 = vrot.slane %v2242, %v2255
    %v2257 = vcombine.high %v2233, 0
    %v2258 = vcombine.high %v2240, 0
    %v2259 = vcombine.high %v2249, 0
    %v2260 = vcombine.high %v2256, 0
    %v2261 = vcombine.low %v1771, %v1778
    %v2263 = vunpack.c.l.s4 1983009808
    %v2264 = vunpack.c.0.s8 %v2263
    %v2265 = vlaneseq
    %v2266 = vshrl.u32 %v2265, 7
    %v2267 = vsub.s32 %v2264, %v2266
    %v2268 = vrot.slane %v2261, %v2267
    %v2269 = vcombine.low %v1795, %v1796
    %v2271 = vunpack.c.l.s4 1983009808
    %v2272 = vunpack.c.0.s8 %v2271
    %v2273 = vlaneseq
    %v2274 = vshrl.u32 %v2273, 7
    %v2275 = vsub.s32 %v2272, %v2274
    %v2276 = vrot.slane %v2269, %v2275
    %v2277 = vcombine.low %v2268, %v2276
    %v2279 = vunpack.c.l.s4 1934713408
    %v2280 = vunpack.c.0.s8 %v2279
    %v2281 = vlaneseq
    %v2282 = vshrl.u32 %v2281, 7
    %v2283 = vsub.s32 %v2280, %v2282
    %v2284 = vrot.slane %v2277, %v2283
    %v2285 = vcombine.high %v2284, 0
    %v2286 = vcombine.low %v1837, %v1844
    %v2288 = vunpack.c.l.s4 1983009808
    %v2289 = vunpack.c.0.s8 %v2288
    %v2290 = vlaneseq
    %v2291 = vshrl.u32 %v2290, 7
    %v2292 = vsub.s32 %v2289, %v2291
    %v2293 = vrot.slane %v2286, %v2292
    %v2294 = vcombine.low %v1861, %v1862
    %v2296 = vunpack.c.l.s4 1983009808
    %v2297 = vunpack.c.0.s8 %v2296
    %v2298 = vlaneseq
    %v2299 = vshrl.u32 %v2298, 7
    %v2300 = vsub.s32 %v2297, %v2299
    %v2301 = vrot.slane %v2294, %v2300
    %v2302 = vcombine.low %v2293, %v2301
    %v2304 = vunpack.c.l.s4 1934713408
    %v2305 = vunpack.c.0.s8 %v2304
    %v2306 = vlaneseq
    %v2307 = vshrl.u32 %v2306, 7
    %v2308 = vsub.s32 %v2305, %v2307
    %v2309 = vrot.slane %v2302, %v2308
    %v2310 = vcombine.high %v2309, 0
    %v2311 = vcombine.low %v1787, %v1794
    %v2313 = vunpack.c.l.s4 1983009808
    %v2314 = vunpack.c.0.s8 %v2313
    %v2315 = vlaneseq
    %v2316 = vshrl.u32 %v2315, 7
    %v2317 = vsub.s32 %v2314, %v2316
    %v2318 = vrot.slane %v2311, %v2317
    %v2319 = vcombine.low %v1797, %v1798
    %v2321 = vunpack.c.l.s4 1983009808
    %v2322 = vunpack.c.0.s8 %v2321
    %v2323 = vlaneseq
    %v2324 = vshrl.u32 %v2323, 7
    %v2325 = vsub.s32 %v2322, %v2324
    %v2326 = vrot.slane %v2319, %v2325
    %v2327 = vcombine.low %v2318, %v2326
    %v2329 = vunpack.c.l.s4 1934713408
    %v2330 = vunpack.c.0.s8 %v2329
    %v2331 = vlaneseq
    %v2332 = vshrl.u32 %v2331, 7
    %v2333 = vsub.s32 %v2330, %v2332
    %v2334 = vrot.slane %v2327, %v2333
    %v2335 = vcombine.high %v2334, 0
    %v2336 = vcombine.low %v1853, %v1860
    %v2338 = vunpack.c.l.s4 1983009808
    %v2339 = vunpack.c.0.s8 %v2338
    %v2340 = vlaneseq
    %v2341 = vshrl.u32 %v2340, 7
    %v2342 = vsub.s32 %v2339, %v2341
    %v2343 = vrot.slane %v2336, %v2342
    %v2344 = vcombine.low %v1863, %v1864
    %v2346 = vunpack.c.l.s4 1983009808
    %v2347 = vunpack.c.0.s8 %v2346
    %v2348 = vlaneseq
    %v2349 = vshrl.u32 %v2348, 7
    %v2350 = vsub.s32 %v2347, %v2349
    %v2351 = vrot.slane %v2344, %v2350
    %v2352 = vcombine.low %v2343, %v2351
    %v2354 = vunpack.c.l.s4 1934713408
    %v2355 = vunpack.c.0.s8 %v2354
    %v2356 = vlaneseq
    %v2357 = vshrl.u32 %v2356, 7
    %v2358 = vsub.s32 %v2355, %v2357
    %v2359 = vrot.slane %v2352, %v2358
    %v2360 = vcombine.high %v2359, 0
    %v2361 = vcombine.low %v1903, %v1910
    %v2363 = vunpack.c.l.s4 1983009808
    %v2364 = vunpack.c.0.s8 %v2363
    %v2365 = vlaneseq
    %v2366 = vshrl.u32 %v2365, 7
    %v2367 = vsub.s32 %v2364, %v2366
    %v2368 = vrot.slane %v2361, %v2367
    %v2369 = vcombine.low %v1927, %v1928
    %v2371 = vunpack.c.l.s4 1983009808
    %v2372 = vunpack.c.0.s8 %v2371
    %v2373 = vlaneseq
    %v2374 = vshrl.u32 %v2373, 7
    %v2375 = vsub.s32 %v2372, %v2374
    %v2376 = vrot.slane %v2369, %v2375
    %v2377 = vcombine.low %v2368, %v2376
    %v2379 = vunpack.c.l.s4 1934713408
    %v2380 = vunpack.c.0.s8 %v2379
    %v2381 = vlaneseq
    %v2382 = vshrl.u32 %v2381, 7
    %v2383 = vsub.s32 %v2380, %v2382
    %v2384 = vrot.slane %v2377, %v2383
    %v2385 = vcombine.high %v2384, 0
    %v2386 = vcombine.low %v1969, %v1976
    %v2388 = vunpack.c.l.s4 1983009808
    %v2389 = vunpack.c.0.s8 %v2388
    %v2390 = vlaneseq
    %v2391 = vshrl.u32 %v2390, 7
    %v2392 = vsub.s32 %v2389, %v2391
    %v2393 = vrot.slane %v2386, %v2392
    %v2394 = vcombine.low %v1993, %v1994
    %v2396 = vunpack.c.l.s4 1983009808
    %v2397 = vunpack.c.0.s8 %v2396
    %v2398 = vlaneseq
    %v2399 = vshrl.u32 %v2398, 7
    %v2400 = vsub.s32 %v2397, %v2399
    %v2401 = vrot.slane %v2394, %v2400
    %v2402 = vcombine.low %v2393, %v2401
    %v2404 = vunpack.c.l.s4 1934713408
    %v2405 = vunpack.c.0.s8 %v2404
    %v2406 = vlaneseq
    %v2407 = vshrl.u32 %v2406, 7
    %v2408 = vsub.s32 %v2405, %v2407
    %v2409 = vrot.slane %v2402, %v2408
    %v2410 = vcombine.high %v2409, 0
    %v2411 = vcombine.low %v1919, %v1926
    %v2413 = vunpack.c.l.s4 1983009808
    %v2414 = vunpack.c.0.s8 %v2413
    %v2415 = vlaneseq
    %v2416 = vshrl.u32 %v2415, 7
    %v2417 = vsub.s32 %v2414, %v2416
    %v2418 = vrot.slane %v2411, %v2417
    %v2419 = vcombine.low %v1929, %v1930
    %v2421 = vunpack.c.l.s4 1983009808
    %v2422 = vunpack.c.0.s8 %v2421
    %v2423 = vlaneseq
    %v2424 = vshrl.u32 %v2423, 7
    %v2425 = vsub.s32 %v2422, %v2424
    %v2426 = vrot.slane %v2419, %v2425
    %v2427 = vcombine.low %v2418, %v2426
    %v2429 = vunpack.c.l.s4 1934713408
    %v2430 = vunpack.c.0.s8 %v2429
    %v2431 = vlaneseq
    %v2432 = vshrl.u32 %v2431, 7
    %v2433 = vsub.s32 %v2430, %v2432
    %v2434 = vrot.slane %v2427, %v2433
    %v2435 = vcombine.high %v2434, 0
    %v2436 = vcombine.low %v1985, %v1992
    %v2438 = vunpack.c.l.s4 1983009808
    %v2439 = vunpack.c.0.s8 %v2438
    %v2440 = vlaneseq
    %v2441 = vshrl.u32 %v2440, 7
    %v2442 = vsub.s32 %v2439, %v2441
    %v2443 = vrot.slane %v2436, %v2442
    %v2444 = vcombine.low %v1995, %v1996
    %v2446 = vunpack.c.l.s4 1983009808
    %v2447 = vunpack.c.0.s8 %v2446
    %v2448 = vlaneseq
    %v2449 = vshrl.u32 %v2448, 7
    %v2450 = vsub.s32 %v2447, %v2449
    %v2451 = vrot.slane %v2444, %v2450
    %v2452 = vcombine.low %v2443, %v2451
    %v2454 = vunpack.c.l.s4 1934713408
    %v2455 = vunpack.c.0.s8 %v2454
    %v2456 = vlaneseq
    %v2457 = vshrl.u32 %v2456, 7
    %v2458 = vsub.s32 %v2455, %v2457
    %v2459 = vrot.slane %v2452, %v2458
    %v2460 = vcombine.high %v2459, 0
    %v2461 = vcombine.low %v2035, %v2042
    %v2463 = vunpack.c.l.s4 1983009808
    %v2464 = vunpack.c.0.s8 %v2463
    %v2465 = vlaneseq
    %v2466 = vshrl.u32 %v2465, 7
    %v2467 = vsub.s32 %v2464, %v2466
    %v2468 = vrot.slane %v2461, %v2467
    %v2469 = vcombine.low %v2059, %v2060
    %v2471 = vunpack.c.l.s4 1983009808
    %v2472 = vunpack.c.0.s8 %v2471
    %v2473 = vlaneseq
    %v2474 = vshrl.u32 %v2473, 7
    %v2475 = vsub.s32 %v2472, %v2474
    %v2476 = vrot.slane %v2469, %v2475
    %v2477 = vcombine.low %v2468, %v2476
    %v2479 = vunpack.c.l.s4 1934713408
    %v2480 = vunpack.c.0.s8 %v2479
    %v2481 = vlaneseq
    %v2482 = vshrl.u32 %v2481, 7
    %v2483 = vsub.s32 %v2480, %v2482
    %v2484 = vrot.slane %v2477, %v2483
    %v2485 = vcombine.high %v2484, 0
    %v2486 = vcombine.low %v2101, %v2108
    %v2488 = vunpack.c.l.s4 1983009808
    %v2489 = vunpack.c.0.s8 %v2488
    %v2490 = vlaneseq
    %v2491 = vshrl.u32 %v2490, 7
    %v2492 = vsub.s32 %v2489, %v2491
    %v2493 = vrot.slane %v2486, %v2492
    %v2494 = vcombine.low %v2125, %v2126
    %v2496 = vunpack.c.l.s4 1983009808
    %v2497 = vunpack.c.0.s8 %v2496
    %v2498 = vlaneseq
    %v2499 = vshrl.u32 %v2498, 7
    %v2500 = vsub.s32 %v2497, %v2499
    %v2501 = vrot.slane %v2494, %v2500
    %v2502 = vcombine.low %v2493, %v2501
    %v2504 = vunpack.c.l.s4 1934713408
    %v2505 = vunpack.c.0.s8 %v2504
    %v2506 = vlaneseq
    %v2507 = vshrl.u32 %v2506, 7
    %v2508 = vsub.s32 %v2505, %v2507
    %v2509 = vrot.slane %v2502, %v2508
    %v2510 = vcombine.high %v2509, 0
    %v2511 = vcombine.low %v2051, %v2058
    %v2513 = vunpack.c.l.s4 1983009808
    %v2514 = vunpack.c.0.s8 %v2513
    %v2515 = vlaneseq
    %v2516 = vshrl.u32 %v2515, 7
    %v2517 = vsub.s32 %v2514, %v2516
    %v2518 = vrot.slane %v2511, %v2517
    %v2519 = vcombine.low %v2061, %v2062
    %v2521 = vunpack.c.l.s4 1983009808
    %v2522 = vunpack.c.0.s8 %v2521
    %v2523 = vlaneseq
    %v2524 = vshrl.u32 %v2523, 7
    %v2525 = vsub.s32 %v2522, %v2524
    %v2526 = vrot.slane %v2519, %v2525
    %v2527 = vcombine.low %v2518, %v2526
    %v2529 = vunpack.c.l.s4 1934713408
    %v2530 = vunpack.c.0.s8 %v2529
    %v2531 = vlaneseq
    %v2532 = vshrl.u32 %v2531, 7
    %v2533 = vsub.s32 %v2530, %v2532
    %v2534 = vrot.slane %v2527, %v2533
    %v2535 = vcombine.high %v2534, 0
    %v2536 = vcombine.low %v2117, %v2124
    %v2538 = vunpack.c.l.s4 1983009808
    %v2539 = vunpack.c.0.s8 %v2538
    %v2540 = vlaneseq
    %v2541 = vshrl.u32 %v2540, 7
    %v2542 = vsub.s32 %v2539, %v2541
    %v2543 = vrot.slane %v2536, %v2542
    %v2544 = vcombine.low %v2127, %v2128
    %v2546 = vunpack.c.l.s4 1983009808
    %v2547 = vunpack.c.0.s8 %v2546
    %v2548 = vlaneseq
    %v2549 = vshrl.u32 %v2548, 7
    %v2550 = vsub.s32 %v2547, %v2549
    %v2551 = vrot.slane %v2544, %v2550
    %v2552 = vcombine.low %v2543, %v2551
    %v2554 = vunpack.c.l.s4 1934713408
    %v2555 = vunpack.c.0.s8 %v2554
    %v2556 = vlaneseq
    %v2557 = vshrl.u32 %v2556, 7
    %v2558 = vsub.s32 %v2555, %v2557
    %v2559 = vrot.slane %v2552, %v2558
    %v2560 = vcombine.high %v2559, 0
    %v2561 = vcombine.low %v2167, %v2174
    %v2563 = vunpack.c.l.s4 1983009808
    %v2564 = vunpack.c.0.s8 %v2563
    %v2565 = vlaneseq
    %v2566 = vshrl.u32 %v2565, 7
    %v2567 = vsub.s32 %v2564, %v2566
    %v2568 = vrot.slane %v2561, %v2567
    %v2569 = vcombine.low %v2191, %v2192
    %v2571 = vunpack.c.l.s4 1983009808
    %v2572 = vunpack.c.0.s8 %v2571
    %v2573 = vlaneseq
    %v2574 = vshrl.u32 %v2573, 7
    %v2575 = vsub.s32 %v2572, %v2574
    %v2576 = vrot.slane %v2569, %v2575
    %v2577 = vcombine.low %v2568, %v2576
    %v2579 = vunpack.c.l.s4 1934713408
    %v2580 = vunpack.c.0.s8 %v2579
    %v2581 = vlaneseq
    %v2582 = vshrl.u32 %v2581, 7
    %v2583 = vsub.s32 %v2580, %v2582
    %v2584 = vrot.slane %v2577, %v2583
    %v2585 = vcombine.high %v2584, 0
    %v2586 = vcombine.low %v2233, %v2240
    %v2588 = vunpack.c.l.s4 1983009808
    %v2589 = vunpack.c.0.s8 %v2588
    %v2590 = vlaneseq
    %v2591 = vshrl.u32 %v2590, 7
    %v2592 = vsub.s32 %v2589, %v2591
    %v2593 = vrot.slane %v2586, %v2592
    %v2594 = vcombine.low %v2257, %v2258
    %v2596 = vunpack.c.l.s4 1983009808
    %v2597 = vunpack.c.0.s8 %v2596
    %v2598 = vlaneseq
    %v2599 = vshrl.u32 %v2598, 7
    %v2600 = vsub.s32 %v2597, %v2599
    %v2601 = vrot.slane %v2594, %v2600
    %v2602 = vcombine.low %v2593, %v2601
    %v2604 = vunpack.c.l.s4 1934713408
    %v2605 = vunpack.c.0.s8 %v2604
    %v2606 = vlaneseq
    %v2607 = vshrl.u32 %v2606, 7
    %v2608 = vsub.s32 %v2605, %v2607
    %v2609 = vrot.slane %v2602, %v2608
    %v2610 = vcombine.high %v2609, 0
    %v2611 = vcombine.low %v2183, %v2190
    %v2613 = vunpack.c.l.s4 1983009808
    %v2614 = vunpack.c.0.s8 %v2613
    %v2615 = vlaneseq
    %v2616 = vshrl.u32 %v2615, 7
    %v2617 = vsub.s32 %v2614, %v2616
    %v2618 = vrot.slane %v2611, %v2617
    %v2619 = vcombine.low %v2193, %v2194
    %v2621 = vunpack.c.l.s4 1983009808
    %v2622 = vunpack.c.0.s8 %v2621
    %v2623 = vlaneseq
    %v2624 = vshrl.u32 %v2623, 7
    %v2625 = vsub.s32 %v2622, %v2624
    %v2626 = vrot.slane %v2619, %v2625
    %v2627 = vcombine.low %v2618, %v2626
    %v2629 = vunpack.c.l.s4 1934713408
    %v2630 = vunpack.c.0.s8 %v2629
    %v2631 = vlaneseq
    %v2632 = vshrl.u32 %v2631, 7
    %v2633 = vsub.s32 %v2630, %v2632
    %v2634 = vrot.slane %v2627, %v2633
    %v2635 = vcombine.high %v2634, 0
    %v2636 = vcombine.low %v2249, %v2256
    %v2638 = vunpack.c.l.s4 1983009808
    %v2639 = vunpack.c.0.s8 %v2638
    %v2640 = vlaneseq
    %v2641 = vshrl.u32 %v2640, 7
    %v2642 = vsub.s32 %v2639, %v2641
    %v2643 = vrot.slane %v2636, %v2642
    %v2644 = vcombine.low %v2259, %v2260
    %v2646 = vunpack.c.l.s4 1983009808
    %v2647 = vunpack.c.0.s8 %v2646
    %v2648 = vlaneseq
    %v2649 = vshrl.u32 %v2648, 7
    %v2650 = vsub.s32 %v2647, %v2649
    %v2651 = vrot.slane %v2644, %v2650
    %v2652 = vcombine.low %v2643, %v2651
    %v2654 = vunpack.c.l.s4 1934713408
    %v2655 = vunpack.c.0.s8 %v2654
    %v2656 = vlaneseq
    %v2657 = vshrl.u32 %v2656, 7
    %v2658 = vsub.s32 %v2655, %v2657
    %v2659 = vrot.slane %v2652, %v2658
    %v2660 = vcombine.high %v2659, 0
    %v2663 = vpack.i.b16 %v2309, %v2284
    %v2664 = vshrl.u32 %v2284, 16
    %v2665 = vshrl.u32 %v2309, 16
    %v2666 = vpack.i.b16 %v2665, %v2664
    %v2669 = vpack.i.b16 %v2310, %v2285
    %v2670 = vshrl.u32 %v2285, 16
    %v2671 = vshrl.u32 %v2310, 16
    %v2672 = vpack.i.b16 %v2671, %v2670
    %v2675 = vpack.i.b16 %v2359, %v2334
    %v2676 = vshrl.u32 %v2334, 16
    %v2677 = vshrl.u32 %v2359, 16
    %v2678 = vpack.i.b16 %v2677, %v2676
    %v2681 = vpack.i.b16 %v2360, %v2335
    %v2682 = vshrl.u32 %v2335, 16
    %v2683 = vshrl.u32 %v2360, 16
    %v2684 = vpack.i.b16 %v2683, %v2682
    %v2687 = vpack.i.b16 %v2409, %v2384
    %v2688 = vshrl.u32 %v2384, 16
    %v2689 = vshrl.u32 %v2409, 16
    %v2690 = vpack.i.b16 %v2689, %v2688
    %v2693 = vpack.i.b16 %v2410, %v2385
    %v2694 = vshrl.u32 %v2385, 16
    %v2695 = vshrl.u32 %v2410, 16
    %v2696 = vpack.i.b16 %v2695, %v2694
    %v2699 = vpack.i.b16 %v2459, %v2434
    %v2700 = vshrl.u32 %v2434, 16
    %v2701 = vshrl.u32 %v2459, 16
    %v2702 = vpack.i.b16 %v2701, %v2700
    %v2705 = vpack.i.b16 %v2460, %v2435
    %v2706 = vshrl.u32 %v2435, 16
    %v2707 = vshrl.u32 %v2460, 16
    %v2708 = vpack.i.b16 %v2707, %v2706
    %v2711 = vpack.i.b16 %v2509, %v2484
    %v2712 = vshrl.u32 %v2484, 16
    %v2713 = vshrl.u32 %v2509, 16
    %v2714 = vpack.i.b16 %v2713, %v2712
    %v2717 = vpack.i.b16 %v2510, %v2485
    %v2718 = vshrl.u32 %v2485, 16
    %v2719 = vshrl.u32 %v2510, 16
    %v2720 = vpack.i.b16 %v2719, %v2718
    %v2723 = vpack.i.b16 %v2559, %v2534
    %v2724 = vshrl.u32 %v2534, 16
    %v2725 = vshrl.u32 %v2559, 16
    %v2726 = vpack.i.b16 %v2725, %v2724
    %v2729 = vpack.i.b16 %v2560, %v2535
    %v2730 = vshrl.u32 %v2535, 16
    %v2731 = vshrl.u32 %v2560, 16
    %v2732 = vpack.i.b16 %v2731, %v2730
    %v2735 = vpack.i.b16 %v2609, %v2584
    %v2736 = vshrl.u32 %v2584, 16
    %v2737 = vshrl.u32 %v2609, 16
    %v2738 = vpack.i.b16 %v2737, %v2736
    %v2741 = vpack.i.b16 %v2610, %v2585
    %v2742 = vshrl.u32 %v2585, 16
    %v2743 = vshrl.u32 %v2610, 16
    %v2744 = vpack.i.b16 %v2743, %v2742
    %v2747 = vpack.i.b16 %v2659, %v2634
    %v2748 = vshrl.u32 %v2634, 16
    %v2749 = vshrl.u32 %v2659, 16
    %v2750 = vpack.i.b16 %v2749, %v2748
    %v2753 = vpack.i.b16 %v2660, %v2635
    %v2754 = vshrl.u32 %v2635, 16
    %v2755 = vshrl.u32 %v2660, 16
    %v2756 = vpack.i.b16 %v2755, %v2754
    %2761 = vrot.lane.b32.xlu0 %v515, 112
    %v2762 = vpop.permute.xlu0 %2761
    %2763 = vrot.lane.b32.xlu0 %v516, 112
    %v2764 = vpop.permute.xlu0 %2763
    %2765 = vrot.lane.b32.xlu0 %v517, 112
    %v2766 = vpop.permute.xlu0 %2765
    %2767 = vrot.lane.b32.xlu0 %v518, 112
    %v2768 = vpop.permute.xlu0 %2767
    %2769 = vrot.lane.b32.xlu0 %v515, 96
    %v2770 = vpop.permute.xlu0 %2769
    %2771 = vrot.lane.b32.xlu0 %v516, 96
    %v2772 = vpop.permute.xlu0 %2771
    %2773 = vrot.lane.b32.xlu0 %v517, 96
    %v2774 = vpop.permute.xlu0 %2773
    %2775 = vrot.lane.b32.xlu0 %v518, 96
    %v2776 = vpop.permute.xlu0 %2775
    %2777 = vrot.lane.b32.xlu0 %v515, 80
    %v2778 = vpop.permute.xlu0 %2777
    %2779 = vrot.lane.b32.xlu0 %v516, 80
    %v2780 = vpop.permute.xlu0 %2779
    %2781 = vrot.lane.b32.xlu0 %v517, 80
    %v2782 = vpop.permute.xlu0 %2781
    %2783 = vrot.lane.b32.xlu0 %v518, 80
    %v2784 = vpop.permute.xlu0 %2783
    %v2787 = vpack.i.b16 %v2762, %v515
    %v2789 = vshrl.u32 %v515, 16
    %v2790 = vshrl.u32 %v2762, 16
    %v2791 = vpack.i.b16 %v2790, %v2789
    %v2795 = vpack.i.b16 %v2778, %v2770
    %v2797 = vshrl.u32 %v2770, 16
    %v2798 = vshrl.u32 %v2778, 16
    %v2799 = vpack.i.b16 %v2798, %v2797
    %v2803 = vpack.i.b16 %v2764, %v516
    %v2805 = vshrl.u32 %v516, 16
    %v2806 = vshrl.u32 %v2764, 16
    %v2807 = vpack.i.b16 %v2806, %v2805
    %v2811 = vpack.i.b16 %v2780, %v2772
    %v2813 = vshrl.u32 %v2772, 16
    %v2814 = vshrl.u32 %v2780, 16
    %v2815 = vpack.i.b16 %v2814, %v2813
    %v2819 = vpack.i.b16 %v2766, %v517
    %v2821 = vshrl.u32 %v517, 16
    %v2822 = vshrl.u32 %v2766, 16
    %v2823 = vpack.i.b16 %v2822, %v2821
    %v2827 = vpack.i.b16 %v2782, %v2774
    %v2829 = vshrl.u32 %v2774, 16
    %v2830 = vshrl.u32 %v2782, 16
    %v2831 = vpack.i.b16 %v2830, %v2829
    %v2835 = vpack.i.b16 %v2768, %v518
    %v2837 = vshrl.u32 %v518, 16
    %v2838 = vshrl.u32 %v2768, 16
    %v2839 = vpack.i.b16 %v2838, %v2837
    %v2843 = vpack.i.b16 %v2784, %v2776
    %v2845 = vshrl.u32 %v2776, 16
    %v2846 = vshrl.u32 %v2784, 16
    %v2847 = vpack.i.b16 %v2846, %v2845
    %v2849 = vcombine.high %v2787, %v564
    %v2851 = vunpack.c.l.s4 1983009808
    %v2852 = vunpack.c.0.s8 %v2851
    %v2853 = vlaneseq
    %v2854 = vshrl.u32 %v2853, 7
    %v2855 = vsub.s32 %v2852, %v2854
    %v2856 = vrot.slane %v2787, %v2855
    %v2858 = vunpack.c.l.s4 1983009808
    %v2859 = vunpack.c.0.s8 %v2858
    %v2860 = vlaneseq
    %v2861 = vshrl.u32 %v2860, 7
    %v2862 = vsub.s32 %v2859, %v2861
    %v2863 = vrot.slane %v2849, %v2862
    %v2864 = vcombine.high %v2795, %v564
    %v2866 = vunpack.c.l.s4 1983009808
    %v2867 = vunpack.c.0.s8 %v2866
    %v2868 = vlaneseq
    %v2869 = vshrl.u32 %v2868, 7
    %v2870 = vsub.s32 %v2867, %v2869
    %v2871 = vrot.slane %v2795, %v2870
    %v2873 = vunpack.c.l.s4 1983009808
    %v2874 = vunpack.c.0.s8 %v2873
    %v2875 = vlaneseq
    %v2876 = vshrl.u32 %v2875, 7
    %v2877 = vsub.s32 %v2874, %v2876
    %v2878 = vrot.slane %v2864, %v2877
    %v2879 = vcombine.low %v2856, %v2871
    %v2880 = vcombine.high %v2856, %v2871
    %v2882 = vunpack.c.l.s4 1934713408
    %v2883 = vunpack.c.0.s8 %v2882
    %v2884 = vlaneseq
    %v2885 = vshrl.u32 %v2884, 7
    %v2886 = vsub.s32 %v2883, %v2885
    %v2887 = vrot.slane %v2879, %v2886
    %v2889 = vunpack.c.l.s4 1934713408
    %v2890 = vunpack.c.0.s8 %v2889
    %v2891 = vlaneseq
    %v2892 = vshrl.u32 %v2891, 7
    %v2893 = vsub.s32 %v2890, %v2892
    %v2894 = vrot.slane %v2880, %v2893
    %v2895 = vcombine.low %v2863, %v2878
    %v2896 = vcombine.high %v2863, %v2878
    %v2898 = vunpack.c.l.s4 1934713408
    %v2899 = vunpack.c.0.s8 %v2898
    %v2900 = vlaneseq
    %v2901 = vshrl.u32 %v2900, 7
    %v2902 = vsub.s32 %v2899, %v2901
    %v2903 = vrot.slane %v2895, %v2902
    %v2905 = vunpack.c.l.s4 1934713408
    %v2906 = vunpack.c.0.s8 %v2905
    %v2907 = vlaneseq
    %v2908 = vshrl.u32 %v2907, 7
    %v2909 = vsub.s32 %v2906, %v2908
    %v2910 = vrot.slane %v2896, %v2909
    %v2911 = vcombine.high %v2887, 0
    %v2912 = vcombine.high %v2894, 0
    %v2913 = vcombine.high %v2903, 0
    %v2914 = vcombine.high %v2910, 0
    %v2915 = vcombine.high %v2791, %v567
    %v2917 = vunpack.c.l.s4 1983009808
    %v2918 = vunpack.c.0.s8 %v2917
    %v2919 = vlaneseq
    %v2920 = vshrl.u32 %v2919, 7
    %v2921 = vsub.s32 %v2918, %v2920
    %v2922 = vrot.slane %v2791, %v2921
    %v2924 = vunpack.c.l.s4 1983009808
    %v2925 = vunpack.c.0.s8 %v2924
    %v2926 = vlaneseq
    %v2927 = vshrl.u32 %v2926, 7
    %v2928 = vsub.s32 %v2925, %v2927
    %v2929 = vrot.slane %v2915, %v2928
    %v2930 = vcombine.high %v2799, %v567
    %v2932 = vunpack.c.l.s4 1983009808
    %v2933 = vunpack.c.0.s8 %v2932
    %v2934 = vlaneseq
    %v2935 = vshrl.u32 %v2934, 7
    %v2936 = vsub.s32 %v2933, %v2935
    %v2937 = vrot.slane %v2799, %v2936
    %v2939 = vunpack.c.l.s4 1983009808
    %v2940 = vunpack.c.0.s8 %v2939
    %v2941 = vlaneseq
    %v2942 = vshrl.u32 %v2941, 7
    %v2943 = vsub.s32 %v2940, %v2942
    %v2944 = vrot.slane %v2930, %v2943
    %v2945 = vcombine.low %v2922, %v2937
    %v2946 = vcombine.high %v2922, %v2937
    %v2948 = vunpack.c.l.s4 1934713408
    %v2949 = vunpack.c.0.s8 %v2948
    %v2950 = vlaneseq
    %v2951 = vshrl.u32 %v2950, 7
    %v2952 = vsub.s32 %v2949, %v2951
    %v2953 = vrot.slane %v2945, %v2952
    %v2955 = vunpack.c.l.s4 1934713408
    %v2956 = vunpack.c.0.s8 %v2955
    %v2957 = vlaneseq
    %v2958 = vshrl.u32 %v2957, 7
    %v2959 = vsub.s32 %v2956, %v2958
    %v2960 = vrot.slane %v2946, %v2959
    %v2961 = vcombine.low %v2929, %v2944
    %v2962 = vcombine.high %v2929, %v2944
    %v2964 = vunpack.c.l.s4 1934713408
    %v2965 = vunpack.c.0.s8 %v2964
    %v2966 = vlaneseq
    %v2967 = vshrl.u32 %v2966, 7
    %v2968 = vsub.s32 %v2965, %v2967
    %v2969 = vrot.slane %v2961, %v2968
    %v2971 = vunpack.c.l.s4 1934713408
    %v2972 = vunpack.c.0.s8 %v2971
    %v2973 = vlaneseq
    %v2974 = vshrl.u32 %v2973, 7
    %v2975 = vsub.s32 %v2972, %v2974
    %v2976 = vrot.slane %v2962, %v2975
    %v2977 = vcombine.high %v2953, 0
    %v2978 = vcombine.high %v2960, 0
    %v2979 = vcombine.high %v2969, 0
    %v2980 = vcombine.high %v2976, 0
    %v2981 = vcombine.high %v2803, %v564
    %v2983 = vunpack.c.l.s4 1983009808
    %v2984 = vunpack.c.0.s8 %v2983
    %v2985 = vlaneseq
    %v2986 = vshrl.u32 %v2985, 7
    %v2987 = vsub.s32 %v2984, %v2986
    %v2988 = vrot.slane %v2803, %v2987
    %v2990 = vunpack.c.l.s4 1983009808
    %v2991 = vunpack.c.0.s8 %v2990
    %v2992 = vlaneseq
    %v2993 = vshrl.u32 %v2992, 7
    %v2994 = vsub.s32 %v2991, %v2993
    %v2995 = vrot.slane %v2981, %v2994
    %v2996 = vcombine.high %v2811, %v564
    %v2998 = vunpack.c.l.s4 1983009808
    %v2999 = vunpack.c.0.s8 %v2998
    %v3000 = vlaneseq
    %v3001 = vshrl.u32 %v3000, 7
    %v3002 = vsub.s32 %v2999, %v3001
    %v3003 = vrot.slane %v2811, %v3002
    %v3005 = vunpack.c.l.s4 1983009808
    %v3006 = vunpack.c.0.s8 %v3005
    %v3007 = vlaneseq
    %v3008 = vshrl.u32 %v3007, 7
    %v3009 = vsub.s32 %v3006, %v3008
    %v3010 = vrot.slane %v2996, %v3009
    %v3011 = vcombine.low %v2988, %v3003
    %v3012 = vcombine.high %v2988, %v3003
    %v3014 = vunpack.c.l.s4 1934713408
    %v3015 = vunpack.c.0.s8 %v3014
    %v3016 = vlaneseq
    %v3017 = vshrl.u32 %v3016, 7
    %v3018 = vsub.s32 %v3015, %v3017
    %v3019 = vrot.slane %v3011, %v3018
    %v3021 = vunpack.c.l.s4 1934713408
    %v3022 = vunpack.c.0.s8 %v3021
    %v3023 = vlaneseq
    %v3024 = vshrl.u32 %v3023, 7
    %v3025 = vsub.s32 %v3022, %v3024
    %v3026 = vrot.slane %v3012, %v3025
    %v3027 = vcombine.low %v2995, %v3010
    %v3028 = vcombine.high %v2995, %v3010
    %v3030 = vunpack.c.l.s4 1934713408
    %v3031 = vunpack.c.0.s8 %v3030
    %v3032 = vlaneseq
    %v3033 = vshrl.u32 %v3032, 7
    %v3034 = vsub.s32 %v3031, %v3033
    %v3035 = vrot.slane %v3027, %v3034
    %v3037 = vunpack.c.l.s4 1934713408
    %v3038 = vunpack.c.0.s8 %v3037
    %v3039 = vlaneseq
    %v3040 = vshrl.u32 %v3039, 7
    %v3041 = vsub.s32 %v3038, %v3040
    %v3042 = vrot.slane %v3028, %v3041
    %v3043 = vcombine.high %v3019, 0
    %v3044 = vcombine.high %v3026, 0
    %v3045 = vcombine.high %v3035, 0
    %v3046 = vcombine.high %v3042, 0
    %v3047 = vcombine.high %v2807, %v567
    %v3049 = vunpack.c.l.s4 1983009808
    %v3050 = vunpack.c.0.s8 %v3049
    %v3051 = vlaneseq
    %v3052 = vshrl.u32 %v3051, 7
    %v3053 = vsub.s32 %v3050, %v3052
    %v3054 = vrot.slane %v2807, %v3053
    %v3056 = vunpack.c.l.s4 1983009808
    %v3057 = vunpack.c.0.s8 %v3056
    %v3058 = vlaneseq
    %v3059 = vshrl.u32 %v3058, 7
    %v3060 = vsub.s32 %v3057, %v3059
    %v3061 = vrot.slane %v3047, %v3060
    %v3062 = vcombine.high %v2815, %v567
    %v3064 = vunpack.c.l.s4 1983009808
    %v3065 = vunpack.c.0.s8 %v3064
    %v3066 = vlaneseq
    %v3067 = vshrl.u32 %v3066, 7
    %v3068 = vsub.s32 %v3065, %v3067
    %v3069 = vrot.slane %v2815, %v3068
    %v3071 = vunpack.c.l.s4 1983009808
    %v3072 = vunpack.c.0.s8 %v3071
    %v3073 = vlaneseq
    %v3074 = vshrl.u32 %v3073, 7
    %v3075 = vsub.s32 %v3072, %v3074
    %v3076 = vrot.slane %v3062, %v3075
    %v3077 = vcombine.low %v3054, %v3069
    %v3078 = vcombine.high %v3054, %v3069
    %v3080 = vunpack.c.l.s4 1934713408
    %v3081 = vunpack.c.0.s8 %v3080
    %v3082 = vlaneseq
    %v3083 = vshrl.u32 %v3082, 7
    %v3084 = vsub.s32 %v3081, %v3083
    %v3085 = vrot.slane %v3077, %v3084
    %v3087 = vunpack.c.l.s4 1934713408
    %v3088 = vunpack.c.0.s8 %v3087
    %v3089 = vlaneseq
    %v3090 = vshrl.u32 %v3089, 7
    %v3091 = vsub.s32 %v3088, %v3090
    %v3092 = vrot.slane %v3078, %v3091
    %v3093 = vcombine.low %v3061, %v3076
    %v3094 = vcombine.high %v3061, %v3076
    %v3096 = vunpack.c.l.s4 1934713408
    %v3097 = vunpack.c.0.s8 %v3096
    %v3098 = vlaneseq
    %v3099 = vshrl.u32 %v3098, 7
    %v3100 = vsub.s32 %v3097, %v3099
    %v3101 = vrot.slane %v3093, %v3100
    %v3103 = vunpack.c.l.s4 1934713408
    %v3104 = vunpack.c.0.s8 %v3103
    %v3105 = vlaneseq
    %v3106 = vshrl.u32 %v3105, 7
    %v3107 = vsub.s32 %v3104, %v3106
    %v3108 = vrot.slane %v3094, %v3107
    %v3109 = vcombine.high %v3085, 0
    %v3110 = vcombine.high %v3092, 0
    %v3111 = vcombine.high %v3101, 0
    %v3112 = vcombine.high %v3108, 0
    %v3113 = vcombine.high %v2819, %v564
    %v3115 = vunpack.c.l.s4 1983009808
    %v3116 = vunpack.c.0.s8 %v3115
    %v3117 = vlaneseq
    %v3118 = vshrl.u32 %v3117, 7
    %v3119 = vsub.s32 %v3116, %v3118
    %v3120 = vrot.slane %v2819, %v3119
    %v3122 = vunpack.c.l.s4 1983009808
    %v3123 = vunpack.c.0.s8 %v3122
    %v3124 = vlaneseq
    %v3125 = vshrl.u32 %v3124, 7
    %v3126 = vsub.s32 %v3123, %v3125
    %v3127 = vrot.slane %v3113, %v3126
    %v3128 = vcombine.high %v2827, %v564
    %v3130 = vunpack.c.l.s4 1983009808
    %v3131 = vunpack.c.0.s8 %v3130
    %v3132 = vlaneseq
    %v3133 = vshrl.u32 %v3132, 7
    %v3134 = vsub.s32 %v3131, %v3133
    %v3135 = vrot.slane %v2827, %v3134
    %v3137 = vunpack.c.l.s4 1983009808
    %v3138 = vunpack.c.0.s8 %v3137
    %v3139 = vlaneseq
    %v3140 = vshrl.u32 %v3139, 7
    %v3141 = vsub.s32 %v3138, %v3140
    %v3142 = vrot.slane %v3128, %v3141
    %v3143 = vcombine.low %v3120, %v3135
    %v3144 = vcombine.high %v3120, %v3135
    %v3146 = vunpack.c.l.s4 1934713408
    %v3147 = vunpack.c.0.s8 %v3146
    %v3148 = vlaneseq
    %v3149 = vshrl.u32 %v3148, 7
    %v3150 = vsub.s32 %v3147, %v3149
    %v3151 = vrot.slane %v3143, %v3150
    %v3153 = vunpack.c.l.s4 1934713408
    %v3154 = vunpack.c.0.s8 %v3153
    %v3155 = vlaneseq
    %v3156 = vshrl.u32 %v3155, 7
    %v3157 = vsub.s32 %v3154, %v3156
    %v3158 = vrot.slane %v3144, %v3157
    %v3159 = vcombine.low %v3127, %v3142
    %v3160 = vcombine.high %v3127, %v3142
    %v3162 = vunpack.c.l.s4 1934713408
    %v3163 = vunpack.c.0.s8 %v3162
    %v3164 = vlaneseq
    %v3165 = vshrl.u32 %v3164, 7
    %v3166 = vsub.s32 %v3163, %v3165
    %v3167 = vrot.slane %v3159, %v3166
    %v3169 = vunpack.c.l.s4 1934713408
    %v3170 = vunpack.c.0.s8 %v3169
    %v3171 = vlaneseq
    %v3172 = vshrl.u32 %v3171, 7
    %v3173 = vsub.s32 %v3170, %v3172
    %v3174 = vrot.slane %v3160, %v3173
    %v3175 = vcombine.high %v3151, 0
    %v3176 = vcombine.high %v3158, 0
    %v3177 = vcombine.high %v3167, 0
    %v3178 = vcombine.high %v3174, 0
    %v3179 = vcombine.high %v2823, %v567
    %v3181 = vunpack.c.l.s4 1983009808
    %v3182 = vunpack.c.0.s8 %v3181
    %v3183 = vlaneseq
    %v3184 = vshrl.u32 %v3183, 7
    %v3185 = vsub.s32 %v3182, %v3184
    %v3186 = vrot.slane %v2823, %v3185
    %v3188 = vunpack.c.l.s4 1983009808
    %v3189 = vunpack.c.0.s8 %v3188
    %v3190 = vlaneseq
    %v3191 = vshrl.u32 %v3190, 7
    %v3192 = vsub.s32 %v3189, %v3191
    %v3193 = vrot.slane %v3179, %v3192
    %v3194 = vcombine.high %v2831, %v567
    %v3196 = vunpack.c.l.s4 1983009808
    %v3197 = vunpack.c.0.s8 %v3196
    %v3198 = vlaneseq
    %v3199 = vshrl.u32 %v3198, 7
    %v3200 = vsub.s32 %v3197, %v3199
    %v3201 = vrot.slane %v2831, %v3200
    %v3203 = vunpack.c.l.s4 1983009808
    %v3204 = vunpack.c.0.s8 %v3203
    %v3205 = vlaneseq
    %v3206 = vshrl.u32 %v3205, 7
    %v3207 = vsub.s32 %v3204, %v3206
    %v3208 = vrot.slane %v3194, %v3207
    %v3209 = vcombine.low %v3186, %v3201
    %v3210 = vcombine.high %v3186, %v3201
    %v3212 = vunpack.c.l.s4 1934713408
    %v3213 = vunpack.c.0.s8 %v3212
    %v3214 = vlaneseq
    %v3215 = vshrl.u32 %v3214, 7
    %v3216 = vsub.s32 %v3213, %v3215
    %v3217 = vrot.slane %v3209, %v3216
    %v3219 = vunpack.c.l.s4 1934713408
    %v3220 = vunpack.c.0.s8 %v3219
    %v3221 = vlaneseq
    %v3222 = vshrl.u32 %v3221, 7
    %v3223 = vsub.s32 %v3220, %v3222
    %v3224 = vrot.slane %v3210, %v3223
    %v3225 = vcombine.low %v3193, %v3208
    %v3226 = vcombine.high %v3193, %v3208
    %v3228 = vunpack.c.l.s4 1934713408
    %v3229 = vunpack.c.0.s8 %v3228
    %v3230 = vlaneseq
    %v3231 = vshrl.u32 %v3230, 7
    %v3232 = vsub.s32 %v3229, %v3231
    %v3233 = vrot.slane %v3225, %v3232
    %v3235 = vunpack.c.l.s4 1934713408
    %v3236 = vunpack.c.0.s8 %v3235
    %v3237 = vlaneseq
    %v3238 = vshrl.u32 %v3237, 7
    %v3239 = vsub.s32 %v3236, %v3238
    %v3240 = vrot.slane %v3226, %v3239
    %v3241 = vcombine.high %v3217, 0
    %v3242 = vcombine.high %v3224, 0
    %v3243 = vcombine.high %v3233, 0
    %v3244 = vcombine.high %v3240, 0
    %v3245 = vcombine.high %v2835, %v564
    %v3247 = vunpack.c.l.s4 1983009808
    %v3248 = vunpack.c.0.s8 %v3247
    %v3249 = vlaneseq
    %v3250 = vshrl.u32 %v3249, 7
    %v3251 = vsub.s32 %v3248, %v3250
    %v3252 = vrot.slane %v2835, %v3251
    %v3254 = vunpack.c.l.s4 1983009808
    %v3255 = vunpack.c.0.s8 %v3254
    %v3256 = vlaneseq
    %v3257 = vshrl.u32 %v3256, 7
    %v3258 = vsub.s32 %v3255, %v3257
    %v3259 = vrot.slane %v3245, %v3258
    %v3260 = vcombine.high %v2843, %v564
    %v3262 = vunpack.c.l.s4 1983009808
    %v3263 = vunpack.c.0.s8 %v3262
    %v3264 = vlaneseq
    %v3265 = vshrl.u32 %v3264, 7
    %v3266 = vsub.s32 %v3263, %v3265
    %v3267 = vrot.slane %v2843, %v3266
    %v3269 = vunpack.c.l.s4 1983009808
    %v3270 = vunpack.c.0.s8 %v3269
    %v3271 = vlaneseq
    %v3272 = vshrl.u32 %v3271, 7
    %v3273 = vsub.s32 %v3270, %v3272
    %v3274 = vrot.slane %v3260, %v3273
    %v3275 = vcombine.low %v3252, %v3267
    %v3276 = vcombine.high %v3252, %v3267
    %v3278 = vunpack.c.l.s4 1934713408
    %v3279 = vunpack.c.0.s8 %v3278
    %v3280 = vlaneseq
    %v3281 = vshrl.u32 %v3280, 7
    %v3282 = vsub.s32 %v3279, %v3281
    %v3283 = vrot.slane %v3275, %v3282
    %v3285 = vunpack.c.l.s4 1934713408
    %v3286 = vunpack.c.0.s8 %v3285
    %v3287 = vlaneseq
    %v3288 = vshrl.u32 %v3287, 7
    %v3289 = vsub.s32 %v3286, %v3288
    %v3290 = vrot.slane %v3276, %v3289
    %v3291 = vcombine.low %v3259, %v3274
    %v3292 = vcombine.high %v3259, %v3274
    %v3294 = vunpack.c.l.s4 1934713408
    %v3295 = vunpack.c.0.s8 %v3294
    %v3296 = vlaneseq
    %v3297 = vshrl.u32 %v3296, 7
    %v3298 = vsub.s32 %v3295, %v3297
    %v3299 = vrot.slane %v3291, %v3298
    %v3301 = vunpack.c.l.s4 1934713408
    %v3302 = vunpack.c.0.s8 %v3301
    %v3303 = vlaneseq
    %v3304 = vshrl.u32 %v3303, 7
    %v3305 = vsub.s32 %v3302, %v3304
    %v3306 = vrot.slane %v3292, %v3305
    %v3307 = vcombine.high %v3283, 0
    %v3308 = vcombine.high %v3290, 0
    %v3309 = vcombine.high %v3299, 0
    %v3310 = vcombine.high %v3306, 0
    %v3311 = vcombine.high %v2839, %v567
    %v3313 = vunpack.c.l.s4 1983009808
    %v3314 = vunpack.c.0.s8 %v3313
    %v3315 = vlaneseq
    %v3316 = vshrl.u32 %v3315, 7
    %v3317 = vsub.s32 %v3314, %v3316
    %v3318 = vrot.slane %v2839, %v3317
    %v3320 = vunpack.c.l.s4 1983009808
    %v3321 = vunpack.c.0.s8 %v3320
    %v3322 = vlaneseq
    %v3323 = vshrl.u32 %v3322, 7
    %v3324 = vsub.s32 %v3321, %v3323
    %v3325 = vrot.slane %v3311, %v3324
    %v3326 = vcombine.high %v2847, %v567
    %v3328 = vunpack.c.l.s4 1983009808
    %v3329 = vunpack.c.0.s8 %v3328
    %v3330 = vlaneseq
    %v3331 = vshrl.u32 %v3330, 7
    %v3332 = vsub.s32 %v3329, %v3331
    %v3333 = vrot.slane %v2847, %v3332
    %v3335 = vunpack.c.l.s4 1983009808
    %v3336 = vunpack.c.0.s8 %v3335
    %v3337 = vlaneseq
    %v3338 = vshrl.u32 %v3337, 7
    %v3339 = vsub.s32 %v3336, %v3338
    %v3340 = vrot.slane %v3326, %v3339
    %v3341 = vcombine.low %v3318, %v3333
    %v3342 = vcombine.high %v3318, %v3333
    %v3344 = vunpack.c.l.s4 1934713408
    %v3345 = vunpack.c.0.s8 %v3344
    %v3346 = vlaneseq
    %v3347 = vshrl.u32 %v3346, 7
    %v3348 = vsub.s32 %v3345, %v3347
    %v3349 = vrot.slane %v3341, %v3348
    %v3351 = vunpack.c.l.s4 1934713408
    %v3352 = vunpack.c.0.s8 %v3351
    %v3353 = vlaneseq
    %v3354 = vshrl.u32 %v3353, 7
    %v3355 = vsub.s32 %v3352, %v3354
    %v3356 = vrot.slane %v3342, %v3355
    %v3357 = vcombine.low %v3325, %v3340
    %v3358 = vcombine.high %v3325, %v3340
    %v3360 = vunpack.c.l.s4 1934713408
    %v3361 = vunpack.c.0.s8 %v3360
    %v3362 = vlaneseq
    %v3363 = vshrl.u32 %v3362, 7
    %v3364 = vsub.s32 %v3361, %v3363
    %v3365 = vrot.slane %v3357, %v3364
    %v3367 = vunpack.c.l.s4 1934713408
    %v3368 = vunpack.c.0.s8 %v3367
    %v3369 = vlaneseq
    %v3370 = vshrl.u32 %v3369, 7
    %v3371 = vsub.s32 %v3368, %v3370
    %v3372 = vrot.slane %v3358, %v3371
    %v3373 = vcombine.high %v3349, 0
    %v3374 = vcombine.high %v3356, 0
    %v3375 = vcombine.high %v3365, 0
    %v3376 = vcombine.high %v3372, 0
    %v3377 = vcombine.low %v2887, %v2894
    %v3379 = vunpack.c.l.s4 1983009808
    %v3380 = vunpack.c.0.s8 %v3379
    %v3381 = vlaneseq
    %v3382 = vshrl.u32 %v3381, 7
    %v3383 = vsub.s32 %v3380, %v3382
    %v3384 = vrot.slane %v3377, %v3383
    %v3385 = vcombine.low %v2911, %v2912
    %v3387 = vunpack.c.l.s4 1983009808
    %v3388 = vunpack.c.0.s8 %v3387
    %v3389 = vlaneseq
    %v3390 = vshrl.u32 %v3389, 7
    %v3391 = vsub.s32 %v3388, %v3390
    %v3392 = vrot.slane %v3385, %v3391
    %v3393 = vcombine.low %v3384, %v3392
    %v3395 = vunpack.c.l.s4 1934713408
    %v3396 = vunpack.c.0.s8 %v3395
    %v3397 = vlaneseq
    %v3398 = vshrl.u32 %v3397, 7
    %v3399 = vsub.s32 %v3396, %v3398
    %v3400 = vrot.slane %v3393, %v3399
    %v3401 = vcombine.high %v3400, 0
    %v3402 = vcombine.low %v2953, %v2960
    %v3404 = vunpack.c.l.s4 1983009808
    %v3405 = vunpack.c.0.s8 %v3404
    %v3406 = vlaneseq
    %v3407 = vshrl.u32 %v3406, 7
    %v3408 = vsub.s32 %v3405, %v3407
    %v3409 = vrot.slane %v3402, %v3408
    %v3410 = vcombine.low %v2977, %v2978
    %v3412 = vunpack.c.l.s4 1983009808
    %v3413 = vunpack.c.0.s8 %v3412
    %v3414 = vlaneseq
    %v3415 = vshrl.u32 %v3414, 7
    %v3416 = vsub.s32 %v3413, %v3415
    %v3417 = vrot.slane %v3410, %v3416
    %v3418 = vcombine.low %v3409, %v3417
    %v3420 = vunpack.c.l.s4 1934713408
    %v3421 = vunpack.c.0.s8 %v3420
    %v3422 = vlaneseq
    %v3423 = vshrl.u32 %v3422, 7
    %v3424 = vsub.s32 %v3421, %v3423
    %v3425 = vrot.slane %v3418, %v3424
    %v3426 = vcombine.high %v3425, 0
    %v3427 = vcombine.low %v2903, %v2910
    %v3429 = vunpack.c.l.s4 1983009808
    %v3430 = vunpack.c.0.s8 %v3429
    %v3431 = vlaneseq
    %v3432 = vshrl.u32 %v3431, 7
    %v3433 = vsub.s32 %v3430, %v3432
    %v3434 = vrot.slane %v3427, %v3433
    %v3435 = vcombine.low %v2913, %v2914
    %v3437 = vunpack.c.l.s4 1983009808
    %v3438 = vunpack.c.0.s8 %v3437
    %v3439 = vlaneseq
    %v3440 = vshrl.u32 %v3439, 7
    %v3441 = vsub.s32 %v3438, %v3440
    %v3442 = vrot.slane %v3435, %v3441
    %v3443 = vcombine.low %v3434, %v3442
    %v3445 = vunpack.c.l.s4 1934713408
    %v3446 = vunpack.c.0.s8 %v3445
    %v3447 = vlaneseq
    %v3448 = vshrl.u32 %v3447, 7
    %v3449 = vsub.s32 %v3446, %v3448
    %v3450 = vrot.slane %v3443, %v3449
    %v3451 = vcombine.high %v3450, 0
    %v3452 = vcombine.low %v2969, %v2976
    %v3454 = vunpack.c.l.s4 1983009808
    %v3455 = vunpack.c.0.s8 %v3454
    %v3456 = vlaneseq
    %v3457 = vshrl.u32 %v3456, 7
    %v3458 = vsub.s32 %v3455, %v3457
    %v3459 = vrot.slane %v3452, %v3458
    %v3460 = vcombine.low %v2979, %v2980
    %v3462 = vunpack.c.l.s4 1983009808
    %v3463 = vunpack.c.0.s8 %v3462
    %v3464 = vlaneseq
    %v3465 = vshrl.u32 %v3464, 7
    %v3466 = vsub.s32 %v3463, %v3465
    %v3467 = vrot.slane %v3460, %v3466
    %v3468 = vcombine.low %v3459, %v3467
    %v3470 = vunpack.c.l.s4 1934713408
    %v3471 = vunpack.c.0.s8 %v3470
    %v3472 = vlaneseq
    %v3473 = vshrl.u32 %v3472, 7
    %v3474 = vsub.s32 %v3471, %v3473
    %v3475 = vrot.slane %v3468, %v3474
    %v3476 = vcombine.high %v3475, 0
    %v3477 = vcombine.low %v3019, %v3026
    %v3479 = vunpack.c.l.s4 1983009808
    %v3480 = vunpack.c.0.s8 %v3479
    %v3481 = vlaneseq
    %v3482 = vshrl.u32 %v3481, 7
    %v3483 = vsub.s32 %v3480, %v3482
    %v3484 = vrot.slane %v3477, %v3483
    %v3485 = vcombine.low %v3043, %v3044
    %v3487 = vunpack.c.l.s4 1983009808
    %v3488 = vunpack.c.0.s8 %v3487
    %v3489 = vlaneseq
    %v3490 = vshrl.u32 %v3489, 7
    %v3491 = vsub.s32 %v3488, %v3490
    %v3492 = vrot.slane %v3485, %v3491
    %v3493 = vcombine.low %v3484, %v3492
    %v3495 = vunpack.c.l.s4 1934713408
    %v3496 = vunpack.c.0.s8 %v3495
    %v3497 = vlaneseq
    %v3498 = vshrl.u32 %v3497, 7
    %v3499 = vsub.s32 %v3496, %v3498
    %v3500 = vrot.slane %v3493, %v3499
    %v3501 = vcombine.high %v3500, 0
    %v3502 = vcombine.low %v3085, %v3092
    %v3504 = vunpack.c.l.s4 1983009808
    %v3505 = vunpack.c.0.s8 %v3504
    %v3506 = vlaneseq
    %v3507 = vshrl.u32 %v3506, 7
    %v3508 = vsub.s32 %v3505, %v3507
    %v3509 = vrot.slane %v3502, %v3508
    %v3510 = vcombine.low %v3109, %v3110
    %v3512 = vunpack.c.l.s4 1983009808
    %v3513 = vunpack.c.0.s8 %v3512
    %v3514 = vlaneseq
    %v3515 = vshrl.u32 %v3514, 7
    %v3516 = vsub.s32 %v3513, %v3515
    %v3517 = vrot.slane %v3510, %v3516
    %v3518 = vcombine.low %v3509, %v3517
    %v3520 = vunpack.c.l.s4 1934713408
    %v3521 = vunpack.c.0.s8 %v3520
    %v3522 = vlaneseq
    %v3523 = vshrl.u32 %v3522, 7
    %v3524 = vsub.s32 %v3521, %v3523
    %v3525 = vrot.slane %v3518, %v3524
    %v3526 = vcombine.high %v3525, 0
    %v3527 = vcombine.low %v3035, %v3042
    %v3529 = vunpack.c.l.s4 1983009808
    %v3530 = vunpack.c.0.s8 %v3529
    %v3531 = vlaneseq
    %v3532 = vshrl.u32 %v3531, 7
    %v3533 = vsub.s32 %v3530, %v3532
    %v3534 = vrot.slane %v3527, %v3533
    %v3535 = vcombine.low %v3045, %v3046
    %v3537 = vunpack.c.l.s4 1983009808
    %v3538 = vunpack.c.0.s8 %v3537
    %v3539 = vlaneseq
    %v3540 = vshrl.u32 %v3539, 7
    %v3541 = vsub.s32 %v3538, %v3540
    %v3542 = vrot.slane %v3535, %v3541
    %v3543 = vcombine.low %v3534, %v3542
    %v3545 = vunpack.c.l.s4 1934713408
    %v3546 = vunpack.c.0.s8 %v3545
    %v3547 = vlaneseq
    %v3548 = vshrl.u32 %v3547, 7
    %v3549 = vsub.s32 %v3546, %v3548
    %v3550 = vrot.slane %v3543, %v3549
    %v3551 = vcombine.high %v3550, 0
    %v3552 = vcombine.low %v3101, %v3108
    %v3554 = vunpack.c.l.s4 1983009808
    %v3555 = vunpack.c.0.s8 %v3554
    %v3556 = vlaneseq
    %v3557 = vshrl.u32 %v3556, 7
    %v3558 = vsub.s32 %v3555, %v3557
    %v3559 = vrot.slane %v3552, %v3558
    %v3560 = vcombine.low %v3111, %v3112
    %v3562 = vunpack.c.l.s4 1983009808
    %v3563 = vunpack.c.0.s8 %v3562
    %v3564 = vlaneseq
    %v3565 = vshrl.u32 %v3564, 7
    %v3566 = vsub.s32 %v3563, %v3565
    %v3567 = vrot.slane %v3560, %v3566
    %v3568 = vcombine.low %v3559, %v3567
    %v3570 = vunpack.c.l.s4 1934713408
    %v3571 = vunpack.c.0.s8 %v3570
    %v3572 = vlaneseq
    %v3573 = vshrl.u32 %v3572, 7
    %v3574 = vsub.s32 %v3571, %v3573
    %v3575 = vrot.slane %v3568, %v3574
    %v3576 = vcombine.high %v3575, 0
    %v3577 = vcombine.low %v3151, %v3158
    %v3579 = vunpack.c.l.s4 1983009808
    %v3580 = vunpack.c.0.s8 %v3579
    %v3581 = vlaneseq
    %v3582 = vshrl.u32 %v3581, 7
    %v3583 = vsub.s32 %v3580, %v3582
    %v3584 = vrot.slane %v3577, %v3583
    %v3585 = vcombine.low %v3175, %v3176
    %v3587 = vunpack.c.l.s4 1983009808
    %v3588 = vunpack.c.0.s8 %v3587
    %v3589 = vlaneseq
    %v3590 = vshrl.u32 %v3589, 7
    %v3591 = vsub.s32 %v3588, %v3590
    %v3592 = vrot.slane %v3585, %v3591
    %v3593 = vcombine.low %v3584, %v3592
    %v3595 = vunpack.c.l.s4 1934713408
    %v3596 = vunpack.c.0.s8 %v3595
    %v3597 = vlaneseq
    %v3598 = vshrl.u32 %v3597, 7
    %v3599 = vsub.s32 %v3596, %v3598
    %v3600 = vrot.slane %v3593, %v3599
    %v3601 = vcombine.high %v3600, 0
    %v3602 = vcombine.low %v3217, %v3224
    %v3604 = vunpack.c.l.s4 1983009808
    %v3605 = vunpack.c.0.s8 %v3604
    %v3606 = vlaneseq
    %v3607 = vshrl.u32 %v3606, 7
    %v3608 = vsub.s32 %v3605, %v3607
    %v3609 = vrot.slane %v3602, %v3608
    %v3610 = vcombine.low %v3241, %v3242
    %v3612 = vunpack.c.l.s4 1983009808
    %v3613 = vunpack.c.0.s8 %v3612
    %v3614 = vlaneseq
    %v3615 = vshrl.u32 %v3614, 7
    %v3616 = vsub.s32 %v3613, %v3615
    %v3617 = vrot.slane %v3610, %v3616
    %v3618 = vcombine.low %v3609, %v3617
    %v3620 = vunpack.c.l.s4 1934713408
    %v3621 = vunpack.c.0.s8 %v3620
    %v3622 = vlaneseq
    %v3623 = vshrl.u32 %v3622, 7
    %v3624 = vsub.s32 %v3621, %v3623
    %v3625 = vrot.slane %v3618, %v3624
    %v3626 = vcombine.high %v3625, 0
    %v3627 = vcombine.low %v3167, %v3174
    %v3629 = vunpack.c.l.s4 1983009808
    %v3630 = vunpack.c.0.s8 %v3629
    %v3631 = vlaneseq
    %v3632 = vshrl.u32 %v3631, 7
    %v3633 = vsub.s32 %v3630, %v3632
    %v3634 = vrot.slane %v3627, %v3633
    %v3635 = vcombine.low %v3177, %v3178
    %v3637 = vunpack.c.l.s4 1983009808
    %v3638 = vunpack.c.0.s8 %v3637
    %v3639 = vlaneseq
    %v3640 = vshrl.u32 %v3639, 7
    %v3641 = vsub.s32 %v3638, %v3640
    %v3642 = vrot.slane %v3635, %v3641
    %v3643 = vcombine.low %v3634, %v3642
    %v3645 = vunpack.c.l.s4 1934713408
    %v3646 = vunpack.c.0.s8 %v3645
    %v3647 = vlaneseq
    %v3648 = vshrl.u32 %v3647, 7
    %v3649 = vsub.s32 %v3646, %v3648
    %v3650 = vrot.slane %v3643, %v3649
    %v3651 = vcombine.high %v3650, 0
    %v3652 = vcombine.low %v3233, %v3240
    %v3654 = vunpack.c.l.s4 1983009808
    %v3655 = vunpack.c.0.s8 %v3654
    %v3656 = vlaneseq
    %v3657 = vshrl.u32 %v3656, 7
    %v3658 = vsub.s32 %v3655, %v3657
    %v3659 = vrot.slane %v3652, %v3658
    %v3660 = vcombine.low %v3243, %v3244
    %v3662 = vunpack.c.l.s4 1983009808
    %v3663 = vunpack.c.0.s8 %v3662
    %v3664 = vlaneseq
    %v3665 = vshrl.u32 %v3664, 7
    %v3666 = vsub.s32 %v3663, %v3665
    %v3667 = vrot.slane %v3660, %v3666
    %v3668 = vcombine.low %v3659, %v3667
    %v3670 = vunpack.c.l.s4 1934713408
    %v3671 = vunpack.c.0.s8 %v3670
    %v3672 = vlaneseq
    %v3673 = vshrl.u32 %v3672, 7
    %v3674 = vsub.s32 %v3671, %v3673
    %v3675 = vrot.slane %v3668, %v3674
    %v3676 = vcombine.high %v3675, 0
    %v3677 = vcombine.low %v3283, %v3290
    %v3679 = vunpack.c.l.s4 1983009808
    %v3680 = vunpack.c.0.s8 %v3679
    %v3681 = vlaneseq
    %v3682 = vshrl.u32 %v3681, 7
    %v3683 = vsub.s32 %v3680, %v3682
    %v3684 = vrot.slane %v3677, %v3683
    %v3685 = vcombine.low %v3307, %v3308
    %v3687 = vunpack.c.l.s4 1983009808
    %v3688 = vunpack.c.0.s8 %v3687
    %v3689 = vlaneseq
    %v3690 = vshrl.u32 %v3689, 7
    %v3691 = vsub.s32 %v3688, %v3690
    %v3692 = vrot.slane %v3685, %v3691
    %v3693 = vcombine.low %v3684, %v3692
    %v3695 = vunpack.c.l.s4 1934713408
    %v3696 = vunpack.c.0.s8 %v3695
    %v3697 = vlaneseq
    %v3698 = vshrl.u32 %v3697, 7
    %v3699 = vsub.s32 %v3696, %v3698
    %v3700 = vrot.slane %v3693, %v3699
    %v3701 = vcombine.high %v3700, 0
    %v3702 = vcombine.low %v3349, %v3356
    %v3704 = vunpack.c.l.s4 1983009808
    %v3705 = vunpack.c.0.s8 %v3704
    %v3706 = vlaneseq
    %v3707 = vshrl.u32 %v3706, 7
    %v3708 = vsub.s32 %v3705, %v3707
    %v3709 = vrot.slane %v3702, %v3708
    %v3710 = vcombine.low %v3373, %v3374
    %v3712 = vunpack.c.l.s4 1983009808
    %v3713 = vunpack.c.0.s8 %v3712
    %v3714 = vlaneseq
    %v3715 = vshrl.u32 %v3714, 7
    %v3716 = vsub.s32 %v3713, %v3715
    %v3717 = vrot.slane %v3710, %v3716
    %v3718 = vcombine.low %v3709, %v3717
    %v3720 = vunpack.c.l.s4 1934713408
    %v3721 = vunpack.c.0.s8 %v3720
    %v3722 = vlaneseq
    %v3723 = vshrl.u32 %v3722, 7
    %v3724 = vsub.s32 %v3721, %v3723
    %v3725 = vrot.slane %v3718, %v3724
    %v3726 = vcombine.high %v3725, 0
    %v3727 = vcombine.low %v3299, %v3306
    %v3729 = vunpack.c.l.s4 1983009808
    %v3730 = vunpack.c.0.s8 %v3729
    %v3731 = vlaneseq
    %v3732 = vshrl.u32 %v3731, 7
    %v3733 = vsub.s32 %v3730, %v3732
    %v3734 = vrot.slane %v3727, %v3733
    %v3735 = vcombine.low %v3309, %v3310
    %v3737 = vunpack.c.l.s4 1983009808
    %v3738 = vunpack.c.0.s8 %v3737
    %v3739 = vlaneseq
    %v3740 = vshrl.u32 %v3739, 7
    %v3741 = vsub.s32 %v3738, %v3740
    %v3742 = vrot.slane %v3735, %v3741
    %v3743 = vcombine.low %v3734, %v3742
    %v3745 = vunpack.c.l.s4 1934713408
    %v3746 = vunpack.c.0.s8 %v3745
    %v3747 = vlaneseq
    %v3748 = vshrl.u32 %v3747, 7
    %v3749 = vsub.s32 %v3746, %v3748
    %v3750 = vrot.slane %v3743, %v3749
    %v3751 = vcombine.high %v3750, 0
    %v3752 = vcombine.low %v3365, %v3372
    %v3754 = vunpack.c.l.s4 1983009808
    %v3755 = vunpack.c.0.s8 %v3754
    %v3756 = vlaneseq
    %v3757 = vshrl.u32 %v3756, 7
    %v3758 = vsub.s32 %v3755, %v3757
    %v3759 = vrot.slane %v3752, %v3758
    %v3760 = vcombine.low %v3375, %v3376
    %v3762 = vunpack.c.l.s4 1983009808
    %v3763 = vunpack.c.0.s8 %v3762
    %v3764 = vlaneseq
    %v3765 = vshrl.u32 %v3764, 7
    %v3766 = vsub.s32 %v3763, %v3765
    %v3767 = vrot.slane %v3760, %v3766
    %v3768 = vcombine.low %v3759, %v3767
    %v3770 = vunpack.c.l.s4 1934713408
    %v3771 = vunpack.c.0.s8 %v3770
    %v3772 = vlaneseq
    %v3773 = vshrl.u32 %v3772, 7
    %v3774 = vsub.s32 %v3771, %v3773
    %v3775 = vrot.slane %v3768, %v3774
    %v3776 = vcombine.high %v3775, 0
    %v3779 = vpack.i.b16 %v3425, %v3400
    %v3780 = vshrl.u32 %v3400, 16
    %v3781 = vshrl.u32 %v3425, 16
    %v3782 = vpack.i.b16 %v3781, %v3780
    %v3785 = vpack.i.b16 %v3426, %v3401
    %v3786 = vshrl.u32 %v3401, 16
    %v3787 = vshrl.u32 %v3426, 16
    %v3788 = vpack.i.b16 %v3787, %v3786
    %v3791 = vpack.i.b16 %v3475, %v3450
    %v3792 = vshrl.u32 %v3450, 16
    %v3793 = vshrl.u32 %v3475, 16
    %v3794 = vpack.i.b16 %v3793, %v3792
    %v3797 = vpack.i.b16 %v3476, %v3451
    %v3798 = vshrl.u32 %v3451, 16
    %v3799 = vshrl.u32 %v3476, 16
    %v3800 = vpack.i.b16 %v3799, %v3798
    %v3803 = vpack.i.b16 %v3525, %v3500
    %v3804 = vshrl.u32 %v3500, 16
    %v3805 = vshrl.u32 %v3525, 16
    %v3806 = vpack.i.b16 %v3805, %v3804
    %v3809 = vpack.i.b16 %v3526, %v3501
    %v3810 = vshrl.u32 %v3501, 16
    %v3811 = vshrl.u32 %v3526, 16
    %v3812 = vpack.i.b16 %v3811, %v3810
    %v3815 = vpack.i.b16 %v3575, %v3550
    %v3816 = vshrl.u32 %v3550, 16
    %v3817 = vshrl.u32 %v3575, 16
    %v3818 = vpack.i.b16 %v3817, %v3816
    %v3821 = vpack.i.b16 %v3576, %v3551
    %v3822 = vshrl.u32 %v3551, 16
    %v3823 = vshrl.u32 %v3576, 16
    %v3824 = vpack.i.b16 %v3823, %v3822
    %v3827 = vpack.i.b16 %v3625, %v3600
    %v3828 = vshrl.u32 %v3600, 16
    %v3829 = vshrl.u32 %v3625, 16
    %v3830 = vpack.i.b16 %v3829, %v3828
    %v3833 = vpack.i.b16 %v3626, %v3601
    %v3834 = vshrl.u32 %v3601, 16
    %v3835 = vshrl.u32 %v3626, 16
    %v3836 = vpack.i.b16 %v3835, %v3834
    %v3839 = vpack.i.b16 %v3675, %v3650
    %v3840 = vshrl.u32 %v3650, 16
    %v3841 = vshrl.u32 %v3675, 16
    %v3842 = vpack.i.b16 %v3841, %v3840
    %v3845 = vpack.i.b16 %v3676, %v3651
    %v3846 = vshrl.u32 %v3651, 16
    %v3847 = vshrl.u32 %v3676, 16
    %v3848 = vpack.i.b16 %v3847, %v3846
    %v3851 = vpack.i.b16 %v3725, %v3700
    %v3852 = vshrl.u32 %v3700, 16
    %v3853 = vshrl.u32 %v3725, 16
    %v3854 = vpack.i.b16 %v3853, %v3852
    %v3857 = vpack.i.b16 %v3726, %v3701
    %v3858 = vshrl.u32 %v3701, 16
    %v3859 = vshrl.u32 %v3726, 16
    %v3860 = vpack.i.b16 %v3859, %v3858
    %v3863 = vpack.i.b16 %v3775, %v3750
    %v3864 = vshrl.u32 %v3750, 16
    %v3865 = vshrl.u32 %v3775, 16
    %v3866 = vpack.i.b16 %v3865, %v3864
    %v3869 = vpack.i.b16 %v3776, %v3751
    %v3870 = vshrl.u32 %v3751, 16
    %v3871 = vshrl.u32 %v3776, 16
    %v3872 = vpack.i.b16 %v3871, %v3870
    %vm3873 = vcmask 130048
    %v3875 = vsel %vm3873, %v1547, 0
    %v3878 = vsel %vm3873, %v2663, 0
    %3880 = vmatprep.subr.bf16.mxu0 0
    %3881 = vmatpush1.bf16.xpose.msra.mxu0 %v3878
    %3882 = vmatprep.subr.bf16.mxu0 0
    %3883 = vmatpush1.bf16.xpose.msra.mxu0 0
    %3884 = vmatprep.subr.bf16.mxu0 0
    %3885 = vmatpush1.bf16.xpose.msra.mxu0 0
    %3886 = vmatprep.subr.bf16.mxu0 0
    %3887 = vmatpush1.bf16.xpose.msra.mxu0 0
    %3888 = vmatprep.subr.bf16.mxu0 0
    %3889 = vmatpush1.bf16.xpose.msra.mxu0 0
    %3890 = vmatprep.subr.bf16.mxu0 0
    %3891 = vmatpush1.bf16.xpose.msra.mxu0 0
    %3892 = vmatprep.subr.bf16.mxu0 0
    %3893 = vmatpush1.bf16.xpose.msra.mxu0 0
    %3894 = vmatprep.subr.bf16.mxu0 0
    %3895 = vmatpush1.bf16.xpose.msra.mxu0 0
    %3896 = vmatprep.subr.bf16.mxu0 0
    %3897 = vmatpush1.bf16.xpose.msra.mxu0 0
    %3898 = vmatprep.subr.bf16.mxu0 0
    %3899 = vmatpush1.bf16.xpose.msra.mxu0 0
    %3900 = vmatprep.subr.bf16.mxu0 0
    %3901 = vmatpush1.bf16.xpose.msra.mxu0 0
    %3902 = vmatprep.subr.bf16.mxu0 0
    %3903 = vmatpush1.bf16.xpose.msra.mxu0 0
    %3904 = vmatprep.subr.bf16.mxu0 0
    %3905 = vmatpush1.bf16.xpose.msra.mxu0 0
    %3906 = vmatprep.subr.bf16.mxu0 0
    %3907 = vmatpush1.bf16.xpose.msra.mxu0 0
    %3908 = vmatprep.subr.bf16.mxu0 0
    %3909 = vmatpush1.bf16.xpose.msra.mxu0 0
    %3910 = vmatprep.subr.bf16.mxu0 0
    %3911 = vmatpush1.bf16.xpose.msra.mxu0 0
    %3912 = vmatprep.mubr.bf16.mxu0 0
    %3913 = vmatmul.mubr.bf16.gmra.mrb[0].mxu0 %v3875
    %v3914 = vpop.f32.mrb[0].mxu0
    %v3915 = vadd.f32 0.0, %v3914
    %v3916 = vpop.f32.mrb[0].mxu0
    %v3917 = vpop.f32.mrb[0].mxu0
    %v3918 = vpop.f32.mrb[0].mxu0
    %3919 = vdwg.mxu0
    %v3921 = vsel %vm3873, %v1550, 0
    %v3924 = vsel %vm3873, %v2666, 0
    %3926 = vmatprep.subr.bf16.mxu0 0
    %3927 = vmatpush1.bf16.xpose.msra.mxu0 %v3924
    %3928 = vmatprep.subr.bf16.mxu0 0
    %3929 = vmatpush1.bf16.xpose.msra.mxu0 0
    %3930 = vmatprep.subr.bf16.mxu0 0
    %3931 = vmatpush1.bf16.xpose.msra.mxu0 0
    %3932 = vmatprep.subr.bf16.mxu0 0
    %3933 = vmatpush1.bf16.xpose.msra.mxu0 0
    %3934 = vmatprep.subr.bf16.mxu0 0
    %3935 = vmatpush1.bf16.xpose.msra.mxu0 0
    %3936 = vmatprep.subr.bf16.mxu0 0
    %3937 = vmatpush1.bf16.xpose.msra.mxu0 0
    %3938 = vmatprep.subr.bf16.mxu0 0
    %3939 = vmatpush1.bf16.xpose.msra.mxu0 0
    %3940 = vmatprep.subr.bf16.mxu0 0
    %3941 = vmatpush1.bf16.xpose.msra.mxu0 0
    %3942 = vmatprep.subr.bf16.mxu0 0
    %3943 = vmatpush1.bf16.xpose.msra.mxu0 0
    %3944 = vmatprep.subr.bf16.mxu0 0
    %3945 = vmatpush1.bf16.xpose.msra.mxu0 0
    %3946 = vmatprep.subr.bf16.mxu0 0
    %3947 = vmatpush1.bf16.xpose.msra.mxu0 0
    %3948 = vmatprep.subr.bf16.mxu0 0
    %3949 = vmatpush1.bf16.xpose.msra.mxu0 0
    %3950 = vmatprep.subr.bf16.mxu0 0
    %3951 = vmatpush1.bf16.xpose.msra.mxu0 0
    %3952 = vmatprep.subr.bf16.mxu0 0
    %3953 = vmatpush1.bf16.xpose.msra.mxu0 0
    %3954 = vmatprep.subr.bf16.mxu0 0
    %3955 = vmatpush1.bf16.xpose.msra.mxu0 0
    %3956 = vmatprep.subr.bf16.mxu0 0
    %3957 = vmatpush1.bf16.xpose.msra.mxu0 0
    %3958 = vmatprep.mubr.bf16.mxu0 0
    %3959 = vmatmul.mubr.bf16.gmra.mrb[0].mxu0 %v3921
    %v3960 = vpop.f32.mrb[0].mxu0
    %v3961 = vadd.f32 0.0, %v3960
    %v3962 = vpop.f32.mrb[0].mxu0
    %v3963 = vpop.f32.mrb[0].mxu0
    %v3964 = vpop.f32.mrb[0].mxu0
    %3965 = vdwg.mxu0
    %v3967 = vsel %vm3873, %v1553, 0
    %v3970 = vsel %vm3873, %v2669, 0
    %3972 = vmatprep.subr.bf16.mxu0 0
    %3973 = vmatpush1.bf16.xpose.msra.mxu0 %v3970
    %3974 = vmatprep.subr.bf16.mxu0 0
    %3975 = vmatpush1.bf16.xpose.msra.mxu0 0
    %3976 = vmatprep.subr.bf16.mxu0 0
    %3977 = vmatpush1.bf16.xpose.msra.mxu0 0
    %3978 = vmatprep.subr.bf16.mxu0 0
    %3979 = vmatpush1.bf16.xpose.msra.mxu0 0
    %3980 = vmatprep.subr.bf16.mxu0 0
    %3981 = vmatpush1.bf16.xpose.msra.mxu0 0
    %3982 = vmatprep.subr.bf16.mxu0 0
    %3983 = vmatpush1.bf16.xpose.msra.mxu0 0
    %3984 = vmatprep.subr.bf16.mxu0 0
    %3985 = vmatpush1.bf16.xpose.msra.mxu0 0
    %3986 = vmatprep.subr.bf16.mxu0 0
    %3987 = vmatpush1.bf16.xpose.msra.mxu0 0
    %3988 = vmatprep.subr.bf16.mxu0 0
    %3989 = vmatpush1.bf16.xpose.msra.mxu0 0
    %3990 = vmatprep.subr.bf16.mxu0 0
    %3991 = vmatpush1.bf16.xpose.msra.mxu0 0
    %3992 = vmatprep.subr.bf16.mxu0 0
    %3993 = vmatpush1.bf16.xpose.msra.mxu0 0
    %3994 = vmatprep.subr.bf16.mxu0 0
    %3995 = vmatpush1.bf16.xpose.msra.mxu0 0
    %3996 = vmatprep.subr.bf16.mxu0 0
    %3997 = vmatpush1.bf16.xpose.msra.mxu0 0
    %3998 = vmatprep.subr.bf16.mxu0 0
    %3999 = vmatpush1.bf16.xpose.msra.mxu0 0
    %4000 = vmatprep.subr.bf16.mxu0 0
    %4001 = vmatpush1.bf16.xpose.msra.mxu0 0
    %4002 = vmatprep.subr.bf16.mxu0 0
    %4003 = vmatpush1.bf16.xpose.msra.mxu0 0
    %4004 = vmatprep.mubr.bf16.mxu0 0
    %4005 = vmatmul.mubr.bf16.gmra.mrb[0].mxu0 %v3967
    %v4006 = vpop.f32.mrb[0].mxu0
    %v4007 = vadd.f32 0.0, %v4006
    %v4008 = vpop.f32.mrb[0].mxu0
    %v4009 = vpop.f32.mrb[0].mxu0
    %v4010 = vpop.f32.mrb[0].mxu0
    %4011 = vdwg.mxu0
    %v4013 = vsel %vm3873, %v1556, 0
    %v4016 = vsel %vm3873, %v2672, 0
    %4018 = vmatprep.subr.bf16.mxu0 0
    %4019 = vmatpush1.bf16.xpose.msra.mxu0 %v4016
    %4020 = vmatprep.subr.bf16.mxu0 0
    %4021 = vmatpush1.bf16.xpose.msra.mxu0 0
    %4022 = vmatprep.subr.bf16.mxu0 0
    %4023 = vmatpush1.bf16.xpose.msra.mxu0 0
    %4024 = vmatprep.subr.bf16.mxu0 0
    %4025 = vmatpush1.bf16.xpose.msra.mxu0 0
    %4026 = vmatprep.subr.bf16.mxu0 0
    %4027 = vmatpush1.bf16.xpose.msra.mxu0 0
    %4028 = vmatprep.subr.bf16.mxu0 0
    %4029 = vmatpush1.bf16.xpose.msra.mxu0 0
    %4030 = vmatprep.subr.bf16.mxu0 0
    %4031 = vmatpush1.bf16.xpose.msra.mxu0 0
    %4032 = vmatprep.subr.bf16.mxu0 0
    %4033 = vmatpush1.bf16.xpose.msra.mxu0 0
    %4034 = vmatprep.subr.bf16.mxu0 0
    %4035 = vmatpush1.bf16.xpose.msra.mxu0 0
    %4036 = vmatprep.subr.bf16.mxu0 0
    %4037 = vmatpush1.bf16.xpose.msra.mxu0 0
    %4038 = vmatprep.subr.bf16.mxu0 0
    %4039 = vmatpush1.bf16.xpose.msra.mxu0 0
    %4040 = vmatprep.subr.bf16.mxu0 0
    %4041 = vmatpush1.bf16.xpose.msra.mxu0 0
    %4042 = vmatprep.subr.bf16.mxu0 0
    %4043 = vmatpush1.bf16.xpose.msra.mxu0 0
    %4044 = vmatprep.subr.bf16.mxu0 0
    %4045 = vmatpush1.bf16.xpose.msra.mxu0 0
    %4046 = vmatprep.subr.bf16.mxu0 0
    %4047 = vmatpush1.bf16.xpose.msra.mxu0 0
    %4048 = vmatprep.subr.bf16.mxu0 0
    %4049 = vmatpush1.bf16.xpose.msra.mxu0 0
    %4050 = vmatprep.mubr.bf16.mxu0 0
    %4051 = vmatmul.mubr.bf16.gmra.mrb[0].mxu0 %v4013
    %v4052 = vpop.f32.mrb[0].mxu0
    %v4053 = vadd.f32 0.0, %v4052
    %v4054 = vpop.f32.mrb[0].mxu0
    %v4055 = vpop.f32.mrb[0].mxu0
    %v4056 = vpop.f32.mrb[0].mxu0
    %4057 = vdwg.mxu0
    %v4059 = vsel %vm3873, %v1559, 0
    %v4062 = vsel %vm3873, %v2675, 0
    %4064 = vmatprep.subr.bf16.mxu0 0
    %4065 = vmatpush1.bf16.xpose.msra.mxu0 %v4062
    %4066 = vmatprep.subr.bf16.mxu0 0
    %4067 = vmatpush1.bf16.xpose.msra.mxu0 0
    %4068 = vmatprep.subr.bf16.mxu0 0
    %4069 = vmatpush1.bf16.xpose.msra.mxu0 0
    %4070 = vmatprep.subr.bf16.mxu0 0
    %4071 = vmatpush1.bf16.xpose.msra.mxu0 0
    %4072 = vmatprep.subr.bf16.mxu0 0
    %4073 = vmatpush1.bf16.xpose.msra.mxu0 0
    %4074 = vmatprep.subr.bf16.mxu0 0
    %4075 = vmatpush1.bf16.xpose.msra.mxu0 0
    %4076 = vmatprep.subr.bf16.mxu0 0
    %4077 = vmatpush1.bf16.xpose.msra.mxu0 0
    %4078 = vmatprep.subr.bf16.mxu0 0
    %4079 = vmatpush1.bf16.xpose.msra.mxu0 0
    %4080 = vmatprep.subr.bf16.mxu0 0
    %4081 = vmatpush1.bf16.xpose.msra.mxu0 0
    %4082 = vmatprep.subr.bf16.mxu0 0
    %4083 = vmatpush1.bf16.xpose.msra.mxu0 0
    %4084 = vmatprep.subr.bf16.mxu0 0
    %4085 = vmatpush1.bf16.xpose.msra.mxu0 0
    %4086 = vmatprep.subr.bf16.mxu0 0
    %4087 = vmatpush1.bf16.xpose.msra.mxu0 0
    %4088 = vmatprep.subr.bf16.mxu0 0
    %4089 = vmatpush1.bf16.xpose.msra.mxu0 0
    %4090 = vmatprep.subr.bf16.mxu0 0
    %4091 = vmatpush1.bf16.xpose.msra.mxu0 0
    %4092 = vmatprep.subr.bf16.mxu0 0
    %4093 = vmatpush1.bf16.xpose.msra.mxu0 0
    %4094 = vmatprep.subr.bf16.mxu0 0
    %4095 = vmatpush1.bf16.xpose.msra.mxu0 0
    %4096 = vmatprep.mubr.bf16.mxu0 0
    %4097 = vmatmul.mubr.bf16.gmra.mrb[0].mxu0 %v4059
    %v4098 = vpop.f32.mrb[0].mxu0
    %v4099 = vadd.f32 0.0, %v4098
    %v4100 = vpop.f32.mrb[0].mxu0
    %v4101 = vpop.f32.mrb[0].mxu0
    %v4102 = vpop.f32.mrb[0].mxu0
    %4103 = vdwg.mxu0
    %v4105 = vsel %vm3873, %v1562, 0
    %v4108 = vsel %vm3873, %v2678, 0
    %4110 = vmatprep.subr.bf16.mxu0 0
    %4111 = vmatpush1.bf16.xpose.msra.mxu0 %v4108
    %4112 = vmatprep.subr.bf16.mxu0 0
    %4113 = vmatpush1.bf16.xpose.msra.mxu0 0
    %4114 = vmatprep.subr.bf16.mxu0 0
    %4115 = vmatpush1.bf16.xpose.msra.mxu0 0
    %4116 = vmatprep.subr.bf16.mxu0 0
    %4117 = vmatpush1.bf16.xpose.msra.mxu0 0
    %4118 = vmatprep.subr.bf16.mxu0 0
    %4119 = vmatpush1.bf16.xpose.msra.mxu0 0
    %4120 = vmatprep.subr.bf16.mxu0 0
    %4121 = vmatpush1.bf16.xpose.msra.mxu0 0
    %4122 = vmatprep.subr.bf16.mxu0 0
    %4123 = vmatpush1.bf16.xpose.msra.mxu0 0
    %4124 = vmatprep.subr.bf16.mxu0 0
    %4125 = vmatpush1.bf16.xpose.msra.mxu0 0
    %4126 = vmatprep.subr.bf16.mxu0 0
    %4127 = vmatpush1.bf16.xpose.msra.mxu0 0
    %4128 = vmatprep.subr.bf16.mxu0 0
    %4129 = vmatpush1.bf16.xpose.msra.mxu0 0
    %4130 = vmatprep.subr.bf16.mxu0 0
    %4131 = vmatpush1.bf16.xpose.msra.mxu0 0
    %4132 = vmatprep.subr.bf16.mxu0 0
    %4133 = vmatpush1.bf16.xpose.msra.mxu0 0
    %4134 = vmatprep.subr.bf16.mxu0 0
    %4135 = vmatpush1.bf16.xpose.msra.mxu0 0
    %4136 = vmatprep.subr.bf16.mxu0 0
    %4137 = vmatpush1.bf16.xpose.msra.mxu0 0
    %4138 = vmatprep.subr.bf16.mxu0 0
    %4139 = vmatpush1.bf16.xpose.msra.mxu0 0
    %4140 = vmatprep.subr.bf16.mxu0 0
    %4141 = vmatpush1.bf16.xpose.msra.mxu0 0
    %4142 = vmatprep.mubr.bf16.mxu0 0
    %4143 = vmatmul.mubr.bf16.gmra.mrb[0].mxu0 %v4105
    %v4144 = vpop.f32.mrb[0].mxu0
    %v4145 = vadd.f32 0.0, %v4144
    %v4146 = vpop.f32.mrb[0].mxu0
    %v4147 = vpop.f32.mrb[0].mxu0
    %v4148 = vpop.f32.mrb[0].mxu0
    %4149 = vdwg.mxu0
    %v4151 = vsel %vm3873, %v1565, 0
    %v4154 = vsel %vm3873, %v2681, 0
    %4156 = vmatprep.subr.bf16.mxu0 0
    %4157 = vmatpush1.bf16.xpose.msra.mxu0 %v4154
    %4158 = vmatprep.subr.bf16.mxu0 0
    %4159 = vmatpush1.bf16.xpose.msra.mxu0 0
    %4160 = vmatprep.subr.bf16.mxu0 0
    %4161 = vmatpush1.bf16.xpose.msra.mxu0 0
    %4162 = vmatprep.subr.bf16.mxu0 0
    %4163 = vmatpush1.bf16.xpose.msra.mxu0 0
    %4164 = vmatprep.subr.bf16.mxu0 0
    %4165 = vmatpush1.bf16.xpose.msra.mxu0 0
    %4166 = vmatprep.subr.bf16.mxu0 0
    %4167 = vmatpush1.bf16.xpose.msra.mxu0 0
    %4168 = vmatprep.subr.bf16.mxu0 0
    %4169 = vmatpush1.bf16.xpose.msra.mxu0 0
    %4170 = vmatprep.subr.bf16.mxu0 0
    %4171 = vmatpush1.bf16.xpose.msra.mxu0 0
    %4172 = vmatprep.subr.bf16.mxu0 0
    %4173 = vmatpush1.bf16.xpose.msra.mxu0 0
    %4174 = vmatprep.subr.bf16.mxu0 0
    %4175 = vmatpush1.bf16.xpose.msra.mxu0 0
    %4176 = vmatprep.subr.bf16.mxu0 0
    %4177 = vmatpush1.bf16.xpose.msra.mxu0 0
    %4178 = vmatprep.subr.bf16.mxu0 0
    %4179 = vmatpush1.bf16.xpose.msra.mxu0 0
    %4180 = vmatprep.subr.bf16.mxu0 0
    %4181 = vmatpush1.bf16.xpose.msra.mxu0 0
    %4182 = vmatprep.subr.bf16.mxu0 0
    %4183 = vmatpush1.bf16.xpose.msra.mxu0 0
    %4184 = vmatprep.subr.bf16.mxu0 0
    %4185 = vmatpush1.bf16.xpose.msra.mxu0 0
    %4186 = vmatprep.subr.bf16.mxu0 0
    %4187 = vmatpush1.bf16.xpose.msra.mxu0 0
    %4188 = vmatprep.mubr.bf16.mxu0 0
    %4189 = vmatmul.mubr.bf16.gmra.mrb[0].mxu0 %v4151
    %v4190 = vpop.f32.mrb[0].mxu0
    %v4191 = vadd.f32 0.0, %v4190
    %v4192 = vpop.f32.mrb[0].mxu0
    %v4193 = vpop.f32.mrb[0].mxu0
    %v4194 = vpop.f32.mrb[0].mxu0
    %4195 = vdwg.mxu0
    %v4197 = vsel %vm3873, %v1568, 0
    %v4200 = vsel %vm3873, %v2684, 0
    %4202 = vmatprep.subr.bf16.mxu0 0
    %4203 = vmatpush1.bf16.xpose.msra.mxu0 %v4200
    %4204 = vmatprep.subr.bf16.mxu0 0
    %4205 = vmatpush1.bf16.xpose.msra.mxu0 0
    %4206 = vmatprep.subr.bf16.mxu0 0
    %4207 = vmatpush1.bf16.xpose.msra.mxu0 0
    %4208 = vmatprep.subr.bf16.mxu0 0
    %4209 = vmatpush1.bf16.xpose.msra.mxu0 0
    %4210 = vmatprep.subr.bf16.mxu0 0
    %4211 = vmatpush1.bf16.xpose.msra.mxu0 0
    %4212 = vmatprep.subr.bf16.mxu0 0
    %4213 = vmatpush1.bf16.xpose.msra.mxu0 0
    %4214 = vmatprep.subr.bf16.mxu0 0
    %4215 = vmatpush1.bf16.xpose.msra.mxu0 0
    %4216 = vmatprep.subr.bf16.mxu0 0
    %4217 = vmatpush1.bf16.xpose.msra.mxu0 0
    %4218 = vmatprep.subr.bf16.mxu0 0
    %4219 = vmatpush1.bf16.xpose.msra.mxu0 0
    %4220 = vmatprep.subr.bf16.mxu0 0
    %4221 = vmatpush1.bf16.xpose.msra.mxu0 0
    %4222 = vmatprep.subr.bf16.mxu0 0
    %4223 = vmatpush1.bf16.xpose.msra.mxu0 0
    %4224 = vmatprep.subr.bf16.mxu0 0
    %4225 = vmatpush1.bf16.xpose.msra.mxu0 0
    %4226 = vmatprep.subr.bf16.mxu0 0
    %4227 = vmatpush1.bf16.xpose.msra.mxu0 0
    %4228 = vmatprep.subr.bf16.mxu0 0
    %4229 = vmatpush1.bf16.xpose.msra.mxu0 0
    %4230 = vmatprep.subr.bf16.mxu0 0
    %4231 = vmatpush1.bf16.xpose.msra.mxu0 0
    %4232 = vmatprep.subr.bf16.mxu0 0
    %4233 = vmatpush1.bf16.xpose.msra.mxu0 0
    %4234 = vmatprep.mubr.bf16.mxu0 0
    %4235 = vmatmul.mubr.bf16.gmra.mrb[0].mxu0 %v4197
    %v4236 = vpop.f32.mrb[0].mxu0
    %v4237 = vadd.f32 0.0, %v4236
    %v4238 = vpop.f32.mrb[0].mxu0
    %v4239 = vpop.f32.mrb[0].mxu0
    %v4240 = vpop.f32.mrb[0].mxu0
    %4241 = vdwg.mxu0
    %v4243 = vsel %vm3873, %v1571, 0
    %v4246 = vsel %vm3873, %v2687, 0
    %4248 = vmatprep.subr.bf16.mxu0 0
    %4249 = vmatpush1.bf16.xpose.msra.mxu0 %v4246
    %4250 = vmatprep.subr.bf16.mxu0 0
    %4251 = vmatpush1.bf16.xpose.msra.mxu0 0
    %4252 = vmatprep.subr.bf16.mxu0 0
    %4253 = vmatpush1.bf16.xpose.msra.mxu0 0
    %4254 = vmatprep.subr.bf16.mxu0 0
    %4255 = vmatpush1.bf16.xpose.msra.mxu0 0
    %4256 = vmatprep.subr.bf16.mxu0 0
    %4257 = vmatpush1.bf16.xpose.msra.mxu0 0
    %4258 = vmatprep.subr.bf16.mxu0 0
    %4259 = vmatpush1.bf16.xpose.msra.mxu0 0
    %4260 = vmatprep.subr.bf16.mxu0 0
    %4261 = vmatpush1.bf16.xpose.msra.mxu0 0
    %4262 = vmatprep.subr.bf16.mxu0 0
    %4263 = vmatpush1.bf16.xpose.msra.mxu0 0
    %4264 = vmatprep.subr.bf16.mxu0 0
    %4265 = vmatpush1.bf16.xpose.msra.mxu0 0
    %4266 = vmatprep.subr.bf16.mxu0 0
    %4267 = vmatpush1.bf16.xpose.msra.mxu0 0
    %4268 = vmatprep.subr.bf16.mxu0 0
    %4269 = vmatpush1.bf16.xpose.msra.mxu0 0
    %4270 = vmatprep.subr.bf16.mxu0 0
    %4271 = vmatpush1.bf16.xpose.msra.mxu0 0
    %4272 = vmatprep.subr.bf16.mxu0 0
    %4273 = vmatpush1.bf16.xpose.msra.mxu0 0
    %4274 = vmatprep.subr.bf16.mxu0 0
    %4275 = vmatpush1.bf16.xpose.msra.mxu0 0
    %4276 = vmatprep.subr.bf16.mxu0 0
    %4277 = vmatpush1.bf16.xpose.msra.mxu0 0
    %4278 = vmatprep.subr.bf16.mxu0 0
    %4279 = vmatpush1.bf16.xpose.msra.mxu0 0
    %4280 = vmatprep.mubr.bf16.mxu0 0
    %4281 = vmatmul.mubr.bf16.gmra.mrb[0].mxu0 %v4243
    %v4282 = vpop.f32.mrb[0].mxu0
    %v4283 = vadd.f32 0.0, %v4282
    %v4284 = vpop.f32.mrb[0].mxu0
    %v4285 = vpop.f32.mrb[0].mxu0
    %v4286 = vpop.f32.mrb[0].mxu0
    %4287 = vdwg.mxu0
    %v4289 = vsel %vm3873, %v1574, 0
    %v4292 = vsel %vm3873, %v2690, 0
    %4294 = vmatprep.subr.bf16.mxu0 0
    %4295 = vmatpush1.bf16.xpose.msra.mxu0 %v4292
    %4296 = vmatprep.subr.bf16.mxu0 0
    %4297 = vmatpush1.bf16.xpose.msra.mxu0 0
    %4298 = vmatprep.subr.bf16.mxu0 0
    %4299 = vmatpush1.bf16.xpose.msra.mxu0 0
    %4300 = vmatprep.subr.bf16.mxu0 0
    %4301 = vmatpush1.bf16.xpose.msra.mxu0 0
    %4302 = vmatprep.subr.bf16.mxu0 0
    %4303 = vmatpush1.bf16.xpose.msra.mxu0 0
    %4304 = vmatprep.subr.bf16.mxu0 0
    %4305 = vmatpush1.bf16.xpose.msra.mxu0 0
    %4306 = vmatprep.subr.bf16.mxu0 0
    %4307 = vmatpush1.bf16.xpose.msra.mxu0 0
    %4308 = vmatprep.subr.bf16.mxu0 0
    %4309 = vmatpush1.bf16.xpose.msra.mxu0 0
    %4310 = vmatprep.subr.bf16.mxu0 0
    %4311 = vmatpush1.bf16.xpose.msra.mxu0 0
    %4312 = vmatprep.subr.bf16.mxu0 0
    %4313 = vmatpush1.bf16.xpose.msra.mxu0 0
    %4314 = vmatprep.subr.bf16.mxu0 0
    %4315 = vmatpush1.bf16.xpose.msra.mxu0 0
    %4316 = vmatprep.subr.bf16.mxu0 0
    %4317 = vmatpush1.bf16.xpose.msra.mxu0 0
    %4318 = vmatprep.subr.bf16.mxu0 0
    %4319 = vmatpush1.bf16.xpose.msra.mxu0 0
    %4320 = vmatprep.subr.bf16.mxu0 0
    %4321 = vmatpush1.bf16.xpose.msra.mxu0 0
    %4322 = vmatprep.subr.bf16.mxu0 0
    %4323 = vmatpush1.bf16.xpose.msra.mxu0 0
    %4324 = vmatprep.subr.bf16.mxu0 0
    %4325 = vmatpush1.bf16.xpose.msra.mxu0 0
    %4326 = vmatprep.mubr.bf16.mxu0 0
    %4327 = vmatmul.mubr.bf16.gmra.mrb[0].mxu0 %v4289
    %v4328 = vpop.f32.mrb[0].mxu0
    %v4329 = vadd.f32 0.0, %v4328
    %v4330 = vpop.f32.mrb[0].mxu0
    %v4331 = vpop.f32.mrb[0].mxu0
    %v4332 = vpop.f32.mrb[0].mxu0
    %4333 = vdwg.mxu0
    %v4335 = vsel %vm3873, %v1577, 0
    %v4338 = vsel %vm3873, %v2693, 0
    %4340 = vmatprep.subr.bf16.mxu0 0
    %4341 = vmatpush1.bf16.xpose.msra.mxu0 %v4338
    %4342 = vmatprep.subr.bf16.mxu0 0
    %4343 = vmatpush1.bf16.xpose.msra.mxu0 0
    %4344 = vmatprep.subr.bf16.mxu0 0
    %4345 = vmatpush1.bf16.xpose.msra.mxu0 0
    %4346 = vmatprep.subr.bf16.mxu0 0
    %4347 = vmatpush1.bf16.xpose.msra.mxu0 0
    %4348 = vmatprep.subr.bf16.mxu0 0
    %4349 = vmatpush1.bf16.xpose.msra.mxu0 0
    %4350 = vmatprep.subr.bf16.mxu0 0
    %4351 = vmatpush1.bf16.xpose.msra.mxu0 0
    %4352 = vmatprep.subr.bf16.mxu0 0
    %4353 = vmatpush1.bf16.xpose.msra.mxu0 0
    %4354 = vmatprep.subr.bf16.mxu0 0
    %4355 = vmatpush1.bf16.xpose.msra.mxu0 0
    %4356 = vmatprep.subr.bf16.mxu0 0
    %4357 = vmatpush1.bf16.xpose.msra.mxu0 0
    %4358 = vmatprep.subr.bf16.mxu0 0
    %4359 = vmatpush1.bf16.xpose.msra.mxu0 0
    %4360 = vmatprep.subr.bf16.mxu0 0
    %4361 = vmatpush1.bf16.xpose.msra.mxu0 0
    %4362 = vmatprep.subr.bf16.mxu0 0
    %4363 = vmatpush1.bf16.xpose.msra.mxu0 0
    %4364 = vmatprep.subr.bf16.mxu0 0
    %4365 = vmatpush1.bf16.xpose.msra.mxu0 0
    %4366 = vmatprep.subr.bf16.mxu0 0
    %4367 = vmatpush1.bf16.xpose.msra.mxu0 0
    %4368 = vmatprep.subr.bf16.mxu0 0
    %4369 = vmatpush1.bf16.xpose.msra.mxu0 0
    %4370 = vmatprep.subr.bf16.mxu0 0
    %4371 = vmatpush1.bf16.xpose.msra.mxu0 0
    %4372 = vmatprep.mubr.bf16.mxu0 0
    %4373 = vmatmul.mubr.bf16.gmra.mrb[0].mxu0 %v4335
    %v4374 = vpop.f32.mrb[0].mxu0
    %v4375 = vadd.f32 0.0, %v4374
    %v4376 = vpop.f32.mrb[0].mxu0
    %v4377 = vpop.f32.mrb[0].mxu0
    %v4378 = vpop.f32.mrb[0].mxu0
    %4379 = vdwg.mxu0
    %v4381 = vsel %vm3873, %v1580, 0
    %v4384 = vsel %vm3873, %v2696, 0
    %4386 = vmatprep.subr.bf16.mxu0 0
    %4387 = vmatpush1.bf16.xpose.msra.mxu0 %v4384
    %4388 = vmatprep.subr.bf16.mxu0 0
    %4389 = vmatpush1.bf16.xpose.msra.mxu0 0
    %4390 = vmatprep.subr.bf16.mxu0 0
    %4391 = vmatpush1.bf16.xpose.msra.mxu0 0
    %4392 = vmatprep.subr.bf16.mxu0 0
    %4393 = vmatpush1.bf16.xpose.msra.mxu0 0
    %4394 = vmatprep.subr.bf16.mxu0 0
    %4395 = vmatpush1.bf16.xpose.msra.mxu0 0
    %4396 = vmatprep.subr.bf16.mxu0 0
    %4397 = vmatpush1.bf16.xpose.msra.mxu0 0
    %4398 = vmatprep.subr.bf16.mxu0 0
    %4399 = vmatpush1.bf16.xpose.msra.mxu0 0
    %4400 = vmatprep.subr.bf16.mxu0 0
    %4401 = vmatpush1.bf16.xpose.msra.mxu0 0
    %4402 = vmatprep.subr.bf16.mxu0 0
    %4403 = vmatpush1.bf16.xpose.msra.mxu0 0
    %4404 = vmatprep.subr.bf16.mxu0 0
    %4405 = vmatpush1.bf16.xpose.msra.mxu0 0
    %4406 = vmatprep.subr.bf16.mxu0 0
    %4407 = vmatpush1.bf16.xpose.msra.mxu0 0
    %4408 = vmatprep.subr.bf16.mxu0 0
    %4409 = vmatpush1.bf16.xpose.msra.mxu0 0
    %4410 = vmatprep.subr.bf16.mxu0 0
    %4411 = vmatpush1.bf16.xpose.msra.mxu0 0
    %4412 = vmatprep.subr.bf16.mxu0 0
    %4413 = vmatpush1.bf16.xpose.msra.mxu0 0
    %4414 = vmatprep.subr.bf16.mxu0 0
    %4415 = vmatpush1.bf16.xpose.msra.mxu0 0
    %4416 = vmatprep.subr.bf16.mxu0 0
    %4417 = vmatpush1.bf16.xpose.msra.mxu0 0
    %4418 = vmatprep.mubr.bf16.mxu0 0
    %4419 = vmatmul.mubr.bf16.gmra.mrb[0].mxu0 %v4381
    %v4420 = vpop.f32.mrb[0].mxu0
    %v4421 = vadd.f32 0.0, %v4420
    %v4422 = vpop.f32.mrb[0].mxu0
    %v4423 = vpop.f32.mrb[0].mxu0
    %v4424 = vpop.f32.mrb[0].mxu0
    %4425 = vdwg.mxu0
    %v4427 = vsel %vm3873, %v1583, 0
    %v4430 = vsel %vm3873, %v2699, 0
    %4432 = vmatprep.subr.bf16.mxu0 0
    %4433 = vmatpush1.bf16.xpose.msra.mxu0 %v4430
    %4434 = vmatprep.subr.bf16.mxu0 0
    %4435 = vmatpush1.bf16.xpose.msra.mxu0 0
    %4436 = vmatprep.subr.bf16.mxu0 0
    %4437 = vmatpush1.bf16.xpose.msra.mxu0 0
    %4438 = vmatprep.subr.bf16.mxu0 0
    %4439 = vmatpush1.bf16.xpose.msra.mxu0 0
    %4440 = vmatprep.subr.bf16.mxu0 0
    %4441 = vmatpush1.bf16.xpose.msra.mxu0 0
    %4442 = vmatprep.subr.bf16.mxu0 0
    %4443 = vmatpush1.bf16.xpose.msra.mxu0 0
    %4444 = vmatprep.subr.bf16.mxu0 0
    %4445 = vmatpush1.bf16.xpose.msra.mxu0 0
    %4446 = vmatprep.subr.bf16.mxu0 0
    %4447 = vmatpush1.bf16.xpose.msra.mxu0 0
    %4448 = vmatprep.subr.bf16.mxu0 0
    %4449 = vmatpush1.bf16.xpose.msra.mxu0 0
    %4450 = vmatprep.subr.bf16.mxu0 0
    %4451 = vmatpush1.bf16.xpose.msra.mxu0 0
    %4452 = vmatprep.subr.bf16.mxu0 0
    %4453 = vmatpush1.bf16.xpose.msra.mxu0 0
    %4454 = vmatprep.subr.bf16.mxu0 0
    %4455 = vmatpush1.bf16.xpose.msra.mxu0 0
    %4456 = vmatprep.subr.bf16.mxu0 0
    %4457 = vmatpush1.bf16.xpose.msra.mxu0 0
    %4458 = vmatprep.subr.bf16.mxu0 0
    %4459 = vmatpush1.bf16.xpose.msra.mxu0 0
    %4460 = vmatprep.subr.bf16.mxu0 0
    %4461 = vmatpush1.bf16.xpose.msra.mxu0 0
    %4462 = vmatprep.subr.bf16.mxu0 0
    %4463 = vmatpush1.bf16.xpose.msra.mxu0 0
    %4464 = vmatprep.mubr.bf16.mxu0 0
    %4465 = vmatmul.mubr.bf16.gmra.mrb[0].mxu0 %v4427
    %v4466 = vpop.f32.mrb[0].mxu0
    %v4467 = vadd.f32 0.0, %v4466
    %v4468 = vpop.f32.mrb[0].mxu0
    %v4469 = vpop.f32.mrb[0].mxu0
    %v4470 = vpop.f32.mrb[0].mxu0
    %4471 = vdwg.mxu0
    %v4473 = vsel %vm3873, %v1586, 0
    %v4476 = vsel %vm3873, %v2702, 0
    %4478 = vmatprep.subr.bf16.mxu0 0
    %4479 = vmatpush1.bf16.xpose.msra.mxu0 %v4476
    %4480 = vmatprep.subr.bf16.mxu0 0
    %4481 = vmatpush1.bf16.xpose.msra.mxu0 0
    %4482 = vmatprep.subr.bf16.mxu0 0
    %4483 = vmatpush1.bf16.xpose.msra.mxu0 0
    %4484 = vmatprep.subr.bf16.mxu0 0
    %4485 = vmatpush1.bf16.xpose.msra.mxu0 0
    %4486 = vmatprep.subr.bf16.mxu0 0
    %4487 = vmatpush1.bf16.xpose.msra.mxu0 0
    %4488 = vmatprep.subr.bf16.mxu0 0
    %4489 = vmatpush1.bf16.xpose.msra.mxu0 0
    %4490 = vmatprep.subr.bf16.mxu0 0
    %4491 = vmatpush1.bf16.xpose.msra.mxu0 0
    %4492 = vmatprep.subr.bf16.mxu0 0
    %4493 = vmatpush1.bf16.xpose.msra.mxu0 0
    %4494 = vmatprep.subr.bf16.mxu0 0
    %4495 = vmatpush1.bf16.xpose.msra.mxu0 0
    %4496 = vmatprep.subr.bf16.mxu0 0
    %4497 = vmatpush1.bf16.xpose.msra.mxu0 0
    %4498 = vmatprep.subr.bf16.mxu0 0
    %4499 = vmatpush1.bf16.xpose.msra.mxu0 0
    %4500 = vmatprep.subr.bf16.mxu0 0
    %4501 = vmatpush1.bf16.xpose.msra.mxu0 0
    %4502 = vmatprep.subr.bf16.mxu0 0
    %4503 = vmatpush1.bf16.xpose.msra.mxu0 0
    %4504 = vmatprep.subr.bf16.mxu0 0
    %4505 = vmatpush1.bf16.xpose.msra.mxu0 0
    %4506 = vmatprep.subr.bf16.mxu0 0
    %4507 = vmatpush1.bf16.xpose.msra.mxu0 0
    %4508 = vmatprep.subr.bf16.mxu0 0
    %4509 = vmatpush1.bf16.xpose.msra.mxu0 0
    %4510 = vmatprep.mubr.bf16.mxu0 0
    %4511 = vmatmul.mubr.bf16.gmra.mrb[0].mxu0 %v4473
    %v4512 = vpop.f32.mrb[0].mxu0
    %v4513 = vadd.f32 0.0, %v4512
    %v4514 = vpop.f32.mrb[0].mxu0
    %v4515 = vpop.f32.mrb[0].mxu0
    %v4516 = vpop.f32.mrb[0].mxu0
    %4517 = vdwg.mxu0
    %v4519 = vsel %vm3873, %v1589, 0
    %v4522 = vsel %vm3873, %v2705, 0
    %4524 = vmatprep.subr.bf16.mxu0 0
    %4525 = vmatpush1.bf16.xpose.msra.mxu0 %v4522
    %4526 = vmatprep.subr.bf16.mxu0 0
    %4527 = vmatpush1.bf16.xpose.msra.mxu0 0
    %4528 = vmatprep.subr.bf16.mxu0 0
    %4529 = vmatpush1.bf16.xpose.msra.mxu0 0
    %4530 = vmatprep.subr.bf16.mxu0 0
    %4531 = vmatpush1.bf16.xpose.msra.mxu0 0
    %4532 = vmatprep.subr.bf16.mxu0 0
    %4533 = vmatpush1.bf16.xpose.msra.mxu0 0
    %4534 = vmatprep.subr.bf16.mxu0 0
    %4535 = vmatpush1.bf16.xpose.msra.mxu0 0
    %4536 = vmatprep.subr.bf16.mxu0 0
    %4537 = vmatpush1.bf16.xpose.msra.mxu0 0
    %4538 = vmatprep.subr.bf16.mxu0 0
    %4539 = vmatpush1.bf16.xpose.msra.mxu0 0
    %4540 = vmatprep.subr.bf16.mxu0 0
    %4541 = vmatpush1.bf16.xpose.msra.mxu0 0
    %4542 = vmatprep.subr.bf16.mxu0 0
    %4543 = vmatpush1.bf16.xpose.msra.mxu0 0
    %4544 = vmatprep.subr.bf16.mxu0 0
    %4545 = vmatpush1.bf16.xpose.msra.mxu0 0
    %4546 = vmatprep.subr.bf16.mxu0 0
    %4547 = vmatpush1.bf16.xpose.msra.mxu0 0
    %4548 = vmatprep.subr.bf16.mxu0 0
    %4549 = vmatpush1.bf16.xpose.msra.mxu0 0
    %4550 = vmatprep.subr.bf16.mxu0 0
    %4551 = vmatpush1.bf16.xpose.msra.mxu0 0
    %4552 = vmatprep.subr.bf16.mxu0 0
    %4553 = vmatpush1.bf16.xpose.msra.mxu0 0
    %4554 = vmatprep.subr.bf16.mxu0 0
    %4555 = vmatpush1.bf16.xpose.msra.mxu0 0
    %4556 = vmatprep.mubr.bf16.mxu0 0
    %4557 = vmatmul.mubr.bf16.gmra.mrb[0].mxu0 %v4519
    %v4558 = vpop.f32.mrb[0].mxu0
    %v4559 = vadd.f32 0.0, %v4558
    %v4560 = vpop.f32.mrb[0].mxu0
    %v4561 = vpop.f32.mrb[0].mxu0
    %v4562 = vpop.f32.mrb[0].mxu0
    %4563 = vdwg.mxu0
    %v4565 = vsel %vm3873, %v1592, 0
    %v4568 = vsel %vm3873, %v2708, 0
    %4570 = vmatprep.subr.bf16.mxu0 0
    %4571 = vmatpush1.bf16.xpose.msra.mxu0 %v4568
    %4572 = vmatprep.subr.bf16.mxu0 0
    %4573 = vmatpush1.bf16.xpose.msra.mxu0 0
    %4574 = vmatprep.subr.bf16.mxu0 0
    %4575 = vmatpush1.bf16.xpose.msra.mxu0 0
    %4576 = vmatprep.subr.bf16.mxu0 0
    %4577 = vmatpush1.bf16.xpose.msra.mxu0 0
    %4578 = vmatprep.subr.bf16.mxu0 0
    %4579 = vmatpush1.bf16.xpose.msra.mxu0 0
    %4580 = vmatprep.subr.bf16.mxu0 0
    %4581 = vmatpush1.bf16.xpose.msra.mxu0 0
    %4582 = vmatprep.subr.bf16.mxu0 0
    %4583 = vmatpush1.bf16.xpose.msra.mxu0 0
    %4584 = vmatprep.subr.bf16.mxu0 0
    %4585 = vmatpush1.bf16.xpose.msra.mxu0 0
    %4586 = vmatprep.subr.bf16.mxu0 0
    %4587 = vmatpush1.bf16.xpose.msra.mxu0 0
    %4588 = vmatprep.subr.bf16.mxu0 0
    %4589 = vmatpush1.bf16.xpose.msra.mxu0 0
    %4590 = vmatprep.subr.bf16.mxu0 0
    %4591 = vmatpush1.bf16.xpose.msra.mxu0 0
    %4592 = vmatprep.subr.bf16.mxu0 0
    %4593 = vmatpush1.bf16.xpose.msra.mxu0 0
    %4594 = vmatprep.subr.bf16.mxu0 0
    %4595 = vmatpush1.bf16.xpose.msra.mxu0 0
    %4596 = vmatprep.subr.bf16.mxu0 0
    %4597 = vmatpush1.bf16.xpose.msra.mxu0 0
    %4598 = vmatprep.subr.bf16.mxu0 0
    %4599 = vmatpush1.bf16.xpose.msra.mxu0 0
    %4600 = vmatprep.subr.bf16.mxu0 0
    %4601 = vmatpush1.bf16.xpose.msra.mxu0 0
    %4602 = vmatprep.mubr.bf16.mxu0 0
    %4603 = vmatmul.mubr.bf16.gmra.mrb[0].mxu0 %v4565
    %v4604 = vpop.f32.mrb[0].mxu0
    %v4605 = vadd.f32 0.0, %v4604
    %v4606 = vpop.f32.mrb[0].mxu0
    %v4607 = vpop.f32.mrb[0].mxu0
    %v4608 = vpop.f32.mrb[0].mxu0
    %4609 = vdwg.mxu0
    %v4611 = vsel %vm3873, %v1595, 0
    %v4614 = vsel %vm3873, %v2711, 0
    %4616 = vmatprep.subr.bf16.mxu0 0
    %4617 = vmatpush1.bf16.xpose.msra.mxu0 %v4614
    %4618 = vmatprep.subr.bf16.mxu0 0
    %4619 = vmatpush1.bf16.xpose.msra.mxu0 0
    %4620 = vmatprep.subr.bf16.mxu0 0
    %4621 = vmatpush1.bf16.xpose.msra.mxu0 0
    %4622 = vmatprep.subr.bf16.mxu0 0
    %4623 = vmatpush1.bf16.xpose.msra.mxu0 0
    %4624 = vmatprep.subr.bf16.mxu0 0
    %4625 = vmatpush1.bf16.xpose.msra.mxu0 0
    %4626 = vmatprep.subr.bf16.mxu0 0
    %4627 = vmatpush1.bf16.xpose.msra.mxu0 0
    %4628 = vmatprep.subr.bf16.mxu0 0
    %4629 = vmatpush1.bf16.xpose.msra.mxu0 0
    %4630 = vmatprep.subr.bf16.mxu0 0
    %4631 = vmatpush1.bf16.xpose.msra.mxu0 0
    %4632 = vmatprep.subr.bf16.mxu0 0
    %4633 = vmatpush1.bf16.xpose.msra.mxu0 0
    %4634 = vmatprep.subr.bf16.mxu0 0
    %4635 = vmatpush1.bf16.xpose.msra.mxu0 0
    %4636 = vmatprep.subr.bf16.mxu0 0
    %4637 = vmatpush1.bf16.xpose.msra.mxu0 0
    %4638 = vmatprep.subr.bf16.mxu0 0
    %4639 = vmatpush1.bf16.xpose.msra.mxu0 0
    %4640 = vmatprep.subr.bf16.mxu0 0
    %4641 = vmatpush1.bf16.xpose.msra.mxu0 0
    %4642 = vmatprep.subr.bf16.mxu0 0
    %4643 = vmatpush1.bf16.xpose.msra.mxu0 0
    %4644 = vmatprep.subr.bf16.mxu0 0
    %4645 = vmatpush1.bf16.xpose.msra.mxu0 0
    %4646 = vmatprep.subr.bf16.mxu0 0
    %4647 = vmatpush1.bf16.xpose.msra.mxu0 0
    %4648 = vmatprep.mubr.bf16.mxu0 0
    %4649 = vmatmul.mubr.bf16.gmra.mrb[0].mxu0 %v4611
    %v4650 = vpop.f32.mrb[0].mxu0
    %v4651 = vadd.f32 0.0, %v4650
    %v4652 = vpop.f32.mrb[0].mxu0
    %v4653 = vpop.f32.mrb[0].mxu0
    %v4654 = vpop.f32.mrb[0].mxu0
    %4655 = vdwg.mxu0
    %v4657 = vsel %vm3873, %v1598, 0
    %v4660 = vsel %vm3873, %v2714, 0
    %4662 = vmatprep.subr.bf16.mxu0 0
    %4663 = vmatpush1.bf16.xpose.msra.mxu0 %v4660
    %4664 = vmatprep.subr.bf16.mxu0 0
    %4665 = vmatpush1.bf16.xpose.msra.mxu0 0
    %4666 = vmatprep.subr.bf16.mxu0 0
    %4667 = vmatpush1.bf16.xpose.msra.mxu0 0
    %4668 = vmatprep.subr.bf16.mxu0 0
    %4669 = vmatpush1.bf16.xpose.msra.mxu0 0
    %4670 = vmatprep.subr.bf16.mxu0 0
    %4671 = vmatpush1.bf16.xpose.msra.mxu0 0
    %4672 = vmatprep.subr.bf16.mxu0 0
    %4673 = vmatpush1.bf16.xpose.msra.mxu0 0
    %4674 = vmatprep.subr.bf16.mxu0 0
    %4675 = vmatpush1.bf16.xpose.msra.mxu0 0
    %4676 = vmatprep.subr.bf16.mxu0 0
    %4677 = vmatpush1.bf16.xpose.msra.mxu0 0
    %4678 = vmatprep.subr.bf16.mxu0 0
    %4679 = vmatpush1.bf16.xpose.msra.mxu0 0
    %4680 = vmatprep.subr.bf16.mxu0 0
    %4681 = vmatpush1.bf16.xpose.msra.mxu0 0
    %4682 = vmatprep.subr.bf16.mxu0 0
    %4683 = vmatpush1.bf16.xpose.msra.mxu0 0
    %4684 = vmatprep.subr.bf16.mxu0 0
    %4685 = vmatpush1.bf16.xpose.msra.mxu0 0
    %4686 = vmatprep.subr.bf16.mxu0 0
    %4687 = vmatpush1.bf16.xpose.msra.mxu0 0
    %4688 = vmatprep.subr.bf16.mxu0 0
    %4689 = vmatpush1.bf16.xpose.msra.mxu0 0
    %4690 = vmatprep.subr.bf16.mxu0 0
    %4691 = vmatpush1.bf16.xpose.msra.mxu0 0
    %4692 = vmatprep.subr.bf16.mxu0 0
    %4693 = vmatpush1.bf16.xpose.msra.mxu0 0
    %4694 = vmatprep.mubr.bf16.mxu0 0
    %4695 = vmatmul.mubr.bf16.gmra.mrb[0].mxu0 %v4657
    %v4696 = vpop.f32.mrb[0].mxu0
    %v4697 = vadd.f32 0.0, %v4696
    %v4698 = vpop.f32.mrb[0].mxu0
    %v4699 = vpop.f32.mrb[0].mxu0
    %v4700 = vpop.f32.mrb[0].mxu0
    %4701 = vdwg.mxu0
    %v4703 = vsel %vm3873, %v1601, 0
    %v4706 = vsel %vm3873, %v2717, 0
    %4708 = vmatprep.subr.bf16.mxu0 0
    %4709 = vmatpush1.bf16.xpose.msra.mxu0 %v4706
    %4710 = vmatprep.subr.bf16.mxu0 0
    %4711 = vmatpush1.bf16.xpose.msra.mxu0 0
    %4712 = vmatprep.subr.bf16.mxu0 0
    %4713 = vmatpush1.bf16.xpose.msra.mxu0 0
    %4714 = vmatprep.subr.bf16.mxu0 0
    %4715 = vmatpush1.bf16.xpose.msra.mxu0 0
    %4716 = vmatprep.subr.bf16.mxu0 0
    %4717 = vmatpush1.bf16.xpose.msra.mxu0 0
    %4718 = vmatprep.subr.bf16.mxu0 0
    %4719 = vmatpush1.bf16.xpose.msra.mxu0 0
    %4720 = vmatprep.subr.bf16.mxu0 0
    %4721 = vmatpush1.bf16.xpose.msra.mxu0 0
    %4722 = vmatprep.subr.bf16.mxu0 0
    %4723 = vmatpush1.bf16.xpose.msra.mxu0 0
    %4724 = vmatprep.subr.bf16.mxu0 0
    %4725 = vmatpush1.bf16.xpose.msra.mxu0 0
    %4726 = vmatprep.subr.bf16.mxu0 0
    %4727 = vmatpush1.bf16.xpose.msra.mxu0 0
    %4728 = vmatprep.subr.bf16.mxu0 0
    %4729 = vmatpush1.bf16.xpose.msra.mxu0 0
    %4730 = vmatprep.subr.bf16.mxu0 0
    %4731 = vmatpush1.bf16.xpose.msra.mxu0 0
    %4732 = vmatprep.subr.bf16.mxu0 0
    %4733 = vmatpush1.bf16.xpose.msra.mxu0 0
    %4734 = vmatprep.subr.bf16.mxu0 0
    %4735 = vmatpush1.bf16.xpose.msra.mxu0 0
    %4736 = vmatprep.subr.bf16.mxu0 0
    %4737 = vmatpush1.bf16.xpose.msra.mxu0 0
    %4738 = vmatprep.subr.bf16.mxu0 0
    %4739 = vmatpush1.bf16.xpose.msra.mxu0 0
    %4740 = vmatprep.mubr.bf16.mxu0 0
    %4741 = vmatmul.mubr.bf16.gmra.mrb[0].mxu0 %v4703
    %v4742 = vpop.f32.mrb[0].mxu0
    %v4743 = vadd.f32 0.0, %v4742
    %v4744 = vpop.f32.mrb[0].mxu0
    %v4745 = vpop.f32.mrb[0].mxu0
    %v4746 = vpop.f32.mrb[0].mxu0
    %4747 = vdwg.mxu0
    %v4749 = vsel %vm3873, %v1604, 0
    %v4752 = vsel %vm3873, %v2720, 0
    %4754 = vmatprep.subr.bf16.mxu0 0
    %4755 = vmatpush1.bf16.xpose.msra.mxu0 %v4752
    %4756 = vmatprep.subr.bf16.mxu0 0
    %4757 = vmatpush1.bf16.xpose.msra.mxu0 0
    %4758 = vmatprep.subr.bf16.mxu0 0
    %4759 = vmatpush1.bf16.xpose.msra.mxu0 0
    %4760 = vmatprep.subr.bf16.mxu0 0
    %4761 = vmatpush1.bf16.xpose.msra.mxu0 0
    %4762 = vmatprep.subr.bf16.mxu0 0
    %4763 = vmatpush1.bf16.xpose.msra.mxu0 0
    %4764 = vmatprep.subr.bf16.mxu0 0
    %4765 = vmatpush1.bf16.xpose.msra.mxu0 0
    %4766 = vmatprep.subr.bf16.mxu0 0
    %4767 = vmatpush1.bf16.xpose.msra.mxu0 0
    %4768 = vmatprep.subr.bf16.mxu0 0
    %4769 = vmatpush1.bf16.xpose.msra.mxu0 0
    %4770 = vmatprep.subr.bf16.mxu0 0
    %4771 = vmatpush1.bf16.xpose.msra.mxu0 0
    %4772 = vmatprep.subr.bf16.mxu0 0
    %4773 = vmatpush1.bf16.xpose.msra.mxu0 0
    %4774 = vmatprep.subr.bf16.mxu0 0
    %4775 = vmatpush1.bf16.xpose.msra.mxu0 0
    %4776 = vmatprep.subr.bf16.mxu0 0
    %4777 = vmatpush1.bf16.xpose.msra.mxu0 0
    %4778 = vmatprep.subr.bf16.mxu0 0
    %4779 = vmatpush1.bf16.xpose.msra.mxu0 0
    %4780 = vmatprep.subr.bf16.mxu0 0
    %4781 = vmatpush1.bf16.xpose.msra.mxu0 0
    %4782 = vmatprep.subr.bf16.mxu0 0
    %4783 = vmatpush1.bf16.xpose.msra.mxu0 0
    %4784 = vmatprep.subr.bf16.mxu0 0
    %4785 = vmatpush1.bf16.xpose.msra.mxu0 0
    %4786 = vmatprep.mubr.bf16.mxu0 0
    %4787 = vmatmul.mubr.bf16.gmra.mrb[0].mxu0 %v4749
    %v4788 = vpop.f32.mrb[0].mxu0
    %v4789 = vadd.f32 0.0, %v4788
    %v4790 = vpop.f32.mrb[0].mxu0
    %v4791 = vpop.f32.mrb[0].mxu0
    %v4792 = vpop.f32.mrb[0].mxu0
    %4793 = vdwg.mxu0
    %v4795 = vsel %vm3873, %v1607, 0
    %v4798 = vsel %vm3873, %v2723, 0
    %4800 = vmatprep.subr.bf16.mxu0 0
    %4801 = vmatpush1.bf16.xpose.msra.mxu0 %v4798
    %4802 = vmatprep.subr.bf16.mxu0 0
    %4803 = vmatpush1.bf16.xpose.msra.mxu0 0
    %4804 = vmatprep.subr.bf16.mxu0 0
    %4805 = vmatpush1.bf16.xpose.msra.mxu0 0
    %4806 = vmatprep.subr.bf16.mxu0 0
    %4807 = vmatpush1.bf16.xpose.msra.mxu0 0
    %4808 = vmatprep.subr.bf16.mxu0 0
    %4809 = vmatpush1.bf16.xpose.msra.mxu0 0
    %4810 = vmatprep.subr.bf16.mxu0 0
    %4811 = vmatpush1.bf16.xpose.msra.mxu0 0
    %4812 = vmatprep.subr.bf16.mxu0 0
    %4813 = vmatpush1.bf16.xpose.msra.mxu0 0
    %4814 = vmatprep.subr.bf16.mxu0 0
    %4815 = vmatpush1.bf16.xpose.msra.mxu0 0
    %4816 = vmatprep.subr.bf16.mxu0 0
    %4817 = vmatpush1.bf16.xpose.msra.mxu0 0
    %4818 = vmatprep.subr.bf16.mxu0 0
    %4819 = vmatpush1.bf16.xpose.msra.mxu0 0
    %4820 = vmatprep.subr.bf16.mxu0 0
    %4821 = vmatpush1.bf16.xpose.msra.mxu0 0
    %4822 = vmatprep.subr.bf16.mxu0 0
    %4823 = vmatpush1.bf16.xpose.msra.mxu0 0
    %4824 = vmatprep.subr.bf16.mxu0 0
    %4825 = vmatpush1.bf16.xpose.msra.mxu0 0
    %4826 = vmatprep.subr.bf16.mxu0 0
    %4827 = vmatpush1.bf16.xpose.msra.mxu0 0
    %4828 = vmatprep.subr.bf16.mxu0 0
    %4829 = vmatpush1.bf16.xpose.msra.mxu0 0
    %4830 = vmatprep.subr.bf16.mxu0 0
    %4831 = vmatpush1.bf16.xpose.msra.mxu0 0
    %4832 = vmatprep.mubr.bf16.mxu0 0
    %4833 = vmatmul.mubr.bf16.gmra.mrb[0].mxu0 %v4795
    %v4834 = vpop.f32.mrb[0].mxu0
    %v4835 = vadd.f32 0.0, %v4834
    %v4836 = vpop.f32.mrb[0].mxu0
    %v4837 = vpop.f32.mrb[0].mxu0
    %v4838 = vpop.f32.mrb[0].mxu0
    %4839 = vdwg.mxu0
    %v4841 = vsel %vm3873, %v1610, 0
    %v4844 = vsel %vm3873, %v2726, 0
    %4846 = vmatprep.subr.bf16.mxu0 0
    %4847 = vmatpush1.bf16.xpose.msra.mxu0 %v4844
    %4848 = vmatprep.subr.bf16.mxu0 0
    %4849 = vmatpush1.bf16.xpose.msra.mxu0 0
    %4850 = vmatprep.subr.bf16.mxu0 0
    %4851 = vmatpush1.bf16.xpose.msra.mxu0 0
    %4852 = vmatprep.subr.bf16.mxu0 0
    %4853 = vmatpush1.bf16.xpose.msra.mxu0 0
    %4854 = vmatprep.subr.bf16.mxu0 0
    %4855 = vmatpush1.bf16.xpose.msra.mxu0 0
    %4856 = vmatprep.subr.bf16.mxu0 0
    %4857 = vmatpush1.bf16.xpose.msra.mxu0 0
    %4858 = vmatprep.subr.bf16.mxu0 0
    %4859 = vmatpush1.bf16.xpose.msra.mxu0 0
    %4860 = vmatprep.subr.bf16.mxu0 0
    %4861 = vmatpush1.bf16.xpose.msra.mxu0 0
    %4862 = vmatprep.subr.bf16.mxu0 0
    %4863 = vmatpush1.bf16.xpose.msra.mxu0 0
    %4864 = vmatprep.subr.bf16.mxu0 0
    %4865 = vmatpush1.bf16.xpose.msra.mxu0 0
    %4866 = vmatprep.subr.bf16.mxu0 0
    %4867 = vmatpush1.bf16.xpose.msra.mxu0 0
    %4868 = vmatprep.subr.bf16.mxu0 0
    %4869 = vmatpush1.bf16.xpose.msra.mxu0 0
    %4870 = vmatprep.subr.bf16.mxu0 0
    %4871 = vmatpush1.bf16.xpose.msra.mxu0 0
    %4872 = vmatprep.subr.bf16.mxu0 0
    %4873 = vmatpush1.bf16.xpose.msra.mxu0 0
    %4874 = vmatprep.subr.bf16.mxu0 0
    %4875 = vmatpush1.bf16.xpose.msra.mxu0 0
    %4876 = vmatprep.subr.bf16.mxu0 0
    %4877 = vmatpush1.bf16.xpose.msra.mxu0 0
    %4878 = vmatprep.mubr.bf16.mxu0 0
    %4879 = vmatmul.mubr.bf16.gmra.mrb[0].mxu0 %v4841
    %v4880 = vpop.f32.mrb[0].mxu0
    %v4881 = vadd.f32 0.0, %v4880
    %v4882 = vpop.f32.mrb[0].mxu0
    %v4883 = vpop.f32.mrb[0].mxu0
    %v4884 = vpop.f32.mrb[0].mxu0
    %4885 = vdwg.mxu0
    %v4887 = vsel %vm3873, %v1613, 0
    %v4890 = vsel %vm3873, %v2729, 0
    %4892 = vmatprep.subr.bf16.mxu0 0
    %4893 = vmatpush1.bf16.xpose.msra.mxu0 %v4890
    %4894 = vmatprep.subr.bf16.mxu0 0
    %4895 = vmatpush1.bf16.xpose.msra.mxu0 0
    %4896 = vmatprep.subr.bf16.mxu0 0
    %4897 = vmatpush1.bf16.xpose.msra.mxu0 0
    %4898 = vmatprep.subr.bf16.mxu0 0
    %4899 = vmatpush1.bf16.xpose.msra.mxu0 0
    %4900 = vmatprep.subr.bf16.mxu0 0
    %4901 = vmatpush1.bf16.xpose.msra.mxu0 0
    %4902 = vmatprep.subr.bf16.mxu0 0
    %4903 = vmatpush1.bf16.xpose.msra.mxu0 0
    %4904 = vmatprep.subr.bf16.mxu0 0
    %4905 = vmatpush1.bf16.xpose.msra.mxu0 0
    %4906 = vmatprep.subr.bf16.mxu0 0
    %4907 = vmatpush1.bf16.xpose.msra.mxu0 0
    %4908 = vmatprep.subr.bf16.mxu0 0
    %4909 = vmatpush1.bf16.xpose.msra.mxu0 0
    %4910 = vmatprep.subr.bf16.mxu0 0
    %4911 = vmatpush1.bf16.xpose.msra.mxu0 0
    %4912 = vmatprep.subr.bf16.mxu0 0
    %4913 = vmatpush1.bf16.xpose.msra.mxu0 0
    %4914 = vmatprep.subr.bf16.mxu0 0
    %4915 = vmatpush1.bf16.xpose.msra.mxu0 0
    %4916 = vmatprep.subr.bf16.mxu0 0
    %4917 = vmatpush1.bf16.xpose.msra.mxu0 0
    %4918 = vmatprep.subr.bf16.mxu0 0
    %4919 = vmatpush1.bf16.xpose.msra.mxu0 0
    %4920 = vmatprep.subr.bf16.mxu0 0
    %4921 = vmatpush1.bf16.xpose.msra.mxu0 0
    %4922 = vmatprep.subr.bf16.mxu0 0
    %4923 = vmatpush1.bf16.xpose.msra.mxu0 0
    %4924 = vmatprep.mubr.bf16.mxu0 0
    %4925 = vmatmul.mubr.bf16.gmra.mrb[0].mxu0 %v4887
    %v4926 = vpop.f32.mrb[0].mxu0
    %v4927 = vadd.f32 0.0, %v4926
    %v4928 = vpop.f32.mrb[0].mxu0
    %v4929 = vpop.f32.mrb[0].mxu0
    %v4930 = vpop.f32.mrb[0].mxu0
    %4931 = vdwg.mxu0
    %v4933 = vsel %vm3873, %v1616, 0
    %v4936 = vsel %vm3873, %v2732, 0
    %4938 = vmatprep.subr.bf16.mxu0 0
    %4939 = vmatpush1.bf16.xpose.msra.mxu0 %v4936
    %4940 = vmatprep.subr.bf16.mxu0 0
    %4941 = vmatpush1.bf16.xpose.msra.mxu0 0
    %4942 = vmatprep.subr.bf16.mxu0 0
    %4943 = vmatpush1.bf16.xpose.msra.mxu0 0
    %4944 = vmatprep.subr.bf16.mxu0 0
    %4945 = vmatpush1.bf16.xpose.msra.mxu0 0
    %4946 = vmatprep.subr.bf16.mxu0 0
    %4947 = vmatpush1.bf16.xpose.msra.mxu0 0
    %4948 = vmatprep.subr.bf16.mxu0 0
    %4949 = vmatpush1.bf16.xpose.msra.mxu0 0
    %4950 = vmatprep.subr.bf16.mxu0 0
    %4951 = vmatpush1.bf16.xpose.msra.mxu0 0
    %4952 = vmatprep.subr.bf16.mxu0 0
    %4953 = vmatpush1.bf16.xpose.msra.mxu0 0
    %4954 = vmatprep.subr.bf16.mxu0 0
    %4955 = vmatpush1.bf16.xpose.msra.mxu0 0
    %4956 = vmatprep.subr.bf16.mxu0 0
    %4957 = vmatpush1.bf16.xpose.msra.mxu0 0
    %4958 = vmatprep.subr.bf16.mxu0 0
    %4959 = vmatpush1.bf16.xpose.msra.mxu0 0
    %4960 = vmatprep.subr.bf16.mxu0 0
    %4961 = vmatpush1.bf16.xpose.msra.mxu0 0
    %4962 = vmatprep.subr.bf16.mxu0 0
    %4963 = vmatpush1.bf16.xpose.msra.mxu0 0
    %4964 = vmatprep.subr.bf16.mxu0 0
    %4965 = vmatpush1.bf16.xpose.msra.mxu0 0
    %4966 = vmatprep.subr.bf16.mxu0 0
    %4967 = vmatpush1.bf16.xpose.msra.mxu0 0
    %4968 = vmatprep.subr.bf16.mxu0 0
    %4969 = vmatpush1.bf16.xpose.msra.mxu0 0
    %4970 = vmatprep.mubr.bf16.mxu0 0
    %4971 = vmatmul.mubr.bf16.gmra.mrb[0].mxu0 %v4933
    %v4972 = vpop.f32.mrb[0].mxu0
    %v4973 = vadd.f32 0.0, %v4972
    %v4974 = vpop.f32.mrb[0].mxu0
    %v4975 = vpop.f32.mrb[0].mxu0
    %v4976 = vpop.f32.mrb[0].mxu0
    %4977 = vdwg.mxu0
    %v4979 = vsel %vm3873, %v1619, 0
    %v4982 = vsel %vm3873, %v2735, 0
    %4984 = vmatprep.subr.bf16.mxu0 0
    %4985 = vmatpush1.bf16.xpose.msra.mxu0 %v4982
    %4986 = vmatprep.subr.bf16.mxu0 0
    %4987 = vmatpush1.bf16.xpose.msra.mxu0 0
    %4988 = vmatprep.subr.bf16.mxu0 0
    %4989 = vmatpush1.bf16.xpose.msra.mxu0 0
    %4990 = vmatprep.subr.bf16.mxu0 0
    %4991 = vmatpush1.bf16.xpose.msra.mxu0 0
    %4992 = vmatprep.subr.bf16.mxu0 0
    %4993 = vmatpush1.bf16.xpose.msra.mxu0 0
    %4994 = vmatprep.subr.bf16.mxu0 0
    %4995 = vmatpush1.bf16.xpose.msra.mxu0 0
    %4996 = vmatprep.subr.bf16.mxu0 0
    %4997 = vmatpush1.bf16.xpose.msra.mxu0 0
    %4998 = vmatprep.subr.bf16.mxu0 0
    %4999 = vmatpush1.bf16.xpose.msra.mxu0 0
    %5000 = vmatprep.subr.bf16.mxu0 0
    %5001 = vmatpush1.bf16.xpose.msra.mxu0 0
    %5002 = vmatprep.subr.bf16.mxu0 0
    %5003 = vmatpush1.bf16.xpose.msra.mxu0 0
    %5004 = vmatprep.subr.bf16.mxu0 0
    %5005 = vmatpush1.bf16.xpose.msra.mxu0 0
    %5006 = vmatprep.subr.bf16.mxu0 0
    %5007 = vmatpush1.bf16.xpose.msra.mxu0 0
    %5008 = vmatprep.subr.bf16.mxu0 0
    %5009 = vmatpush1.bf16.xpose.msra.mxu0 0
    %5010 = vmatprep.subr.bf16.mxu0 0
    %5011 = vmatpush1.bf16.xpose.msra.mxu0 0
    %5012 = vmatprep.subr.bf16.mxu0 0
    %5013 = vmatpush1.bf16.xpose.msra.mxu0 0
    %5014 = vmatprep.subr.bf16.mxu0 0
    %5015 = vmatpush1.bf16.xpose.msra.mxu0 0
    %5016 = vmatprep.mubr.bf16.mxu0 0
    %5017 = vmatmul.mubr.bf16.gmra.mrb[0].mxu0 %v4979
    %v5018 = vpop.f32.mrb[0].mxu0
    %v5019 = vadd.f32 0.0, %v5018
    %v5020 = vpop.f32.mrb[0].mxu0
    %v5021 = vpop.f32.mrb[0].mxu0
    %v5022 = vpop.f32.mrb[0].mxu0
    %5023 = vdwg.mxu0
    %v5025 = vsel %vm3873, %v1622, 0
    %v5028 = vsel %vm3873, %v2738, 0
    %5030 = vmatprep.subr.bf16.mxu0 0
    %5031 = vmatpush1.bf16.xpose.msra.mxu0 %v5028
    %5032 = vmatprep.subr.bf16.mxu0 0
    %5033 = vmatpush1.bf16.xpose.msra.mxu0 0
    %5034 = vmatprep.subr.bf16.mxu0 0
    %5035 = vmatpush1.bf16.xpose.msra.mxu0 0
    %5036 = vmatprep.subr.bf16.mxu0 0
    %5037 = vmatpush1.bf16.xpose.msra.mxu0 0
    %5038 = vmatprep.subr.bf16.mxu0 0
    %5039 = vmatpush1.bf16.xpose.msra.mxu0 0
    %5040 = vmatprep.subr.bf16.mxu0 0
    %5041 = vmatpush1.bf16.xpose.msra.mxu0 0
    %5042 = vmatprep.subr.bf16.mxu0 0
    %5043 = vmatpush1.bf16.xpose.msra.mxu0 0
    %5044 = vmatprep.subr.bf16.mxu0 0
    %5045 = vmatpush1.bf16.xpose.msra.mxu0 0
    %5046 = vmatprep.subr.bf16.mxu0 0
    %5047 = vmatpush1.bf16.xpose.msra.mxu0 0
    %5048 = vmatprep.subr.bf16.mxu0 0
    %5049 = vmatpush1.bf16.xpose.msra.mxu0 0
    %5050 = vmatprep.subr.bf16.mxu0 0
    %5051 = vmatpush1.bf16.xpose.msra.mxu0 0
    %5052 = vmatprep.subr.bf16.mxu0 0
    %5053 = vmatpush1.bf16.xpose.msra.mxu0 0
    %5054 = vmatprep.subr.bf16.mxu0 0
    %5055 = vmatpush1.bf16.xpose.msra.mxu0 0
    %5056 = vmatprep.subr.bf16.mxu0 0
    %5057 = vmatpush1.bf16.xpose.msra.mxu0 0
    %5058 = vmatprep.subr.bf16.mxu0 0
    %5059 = vmatpush1.bf16.xpose.msra.mxu0 0
    %5060 = vmatprep.subr.bf16.mxu0 0
    %5061 = vmatpush1.bf16.xpose.msra.mxu0 0
    %5062 = vmatprep.mubr.bf16.mxu0 0
    %5063 = vmatmul.mubr.bf16.gmra.mrb[0].mxu0 %v5025
    %v5064 = vpop.f32.mrb[0].mxu0
    %v5065 = vadd.f32 0.0, %v5064
    %v5066 = vpop.f32.mrb[0].mxu0
    %v5067 = vpop.f32.mrb[0].mxu0
    %v5068 = vpop.f32.mrb[0].mxu0
    %5069 = vdwg.mxu0
    %v5071 = vsel %vm3873, %v1625, 0
    %v5074 = vsel %vm3873, %v2741, 0
    %5076 = vmatprep.subr.bf16.mxu0 0
    %5077 = vmatpush1.bf16.xpose.msra.mxu0 %v5074
    %5078 = vmatprep.subr.bf16.mxu0 0
    %5079 = vmatpush1.bf16.xpose.msra.mxu0 0
    %5080 = vmatprep.subr.bf16.mxu0 0
    %5081 = vmatpush1.bf16.xpose.msra.mxu0 0
    %5082 = vmatprep.subr.bf16.mxu0 0
    %5083 = vmatpush1.bf16.xpose.msra.mxu0 0
    %5084 = vmatprep.subr.bf16.mxu0 0
    %5085 = vmatpush1.bf16.xpose.msra.mxu0 0
    %5086 = vmatprep.subr.bf16.mxu0 0
    %5087 = vmatpush1.bf16.xpose.msra.mxu0 0
    %5088 = vmatprep.subr.bf16.mxu0 0
    %5089 = vmatpush1.bf16.xpose.msra.mxu0 0
    %5090 = vmatprep.subr.bf16.mxu0 0
    %5091 = vmatpush1.bf16.xpose.msra.mxu0 0
    %5092 = vmatprep.subr.bf16.mxu0 0
    %5093 = vmatpush1.bf16.xpose.msra.mxu0 0
    %5094 = vmatprep.subr.bf16.mxu0 0
    %5095 = vmatpush1.bf16.xpose.msra.mxu0 0
    %5096 = vmatprep.subr.bf16.mxu0 0
    %5097 = vmatpush1.bf16.xpose.msra.mxu0 0
    %5098 = vmatprep.subr.bf16.mxu0 0
    %5099 = vmatpush1.bf16.xpose.msra.mxu0 0
    %5100 = vmatprep.subr.bf16.mxu0 0
    %5101 = vmatpush1.bf16.xpose.msra.mxu0 0
    %5102 = vmatprep.subr.bf16.mxu0 0
    %5103 = vmatpush1.bf16.xpose.msra.mxu0 0
    %5104 = vmatprep.subr.bf16.mxu0 0
    %5105 = vmatpush1.bf16.xpose.msra.mxu0 0
    %5106 = vmatprep.subr.bf16.mxu0 0
    %5107 = vmatpush1.bf16.xpose.msra.mxu0 0
    %5108 = vmatprep.mubr.bf16.mxu0 0
    %5109 = vmatmul.mubr.bf16.gmra.mrb[0].mxu0 %v5071
    %v5110 = vpop.f32.mrb[0].mxu0
    %v5111 = vadd.f32 0.0, %v5110
    %v5112 = vpop.f32.mrb[0].mxu0
    %v5113 = vpop.f32.mrb[0].mxu0
    %v5114 = vpop.f32.mrb[0].mxu0
    %5115 = vdwg.mxu0
    %v5117 = vsel %vm3873, %v1628, 0
    %v5120 = vsel %vm3873, %v2744, 0
    %5122 = vmatprep.subr.bf16.mxu0 0
    %5123 = vmatpush1.bf16.xpose.msra.mxu0 %v5120
    %5124 = vmatprep.subr.bf16.mxu0 0
    %5125 = vmatpush1.bf16.xpose.msra.mxu0 0
    %5126 = vmatprep.subr.bf16.mxu0 0
    %5127 = vmatpush1.bf16.xpose.msra.mxu0 0
    %5128 = vmatprep.subr.bf16.mxu0 0
    %5129 = vmatpush1.bf16.xpose.msra.mxu0 0
    %5130 = vmatprep.subr.bf16.mxu0 0
    %5131 = vmatpush1.bf16.xpose.msra.mxu0 0
    %5132 = vmatprep.subr.bf16.mxu0 0
    %5133 = vmatpush1.bf16.xpose.msra.mxu0 0
    %5134 = vmatprep.subr.bf16.mxu0 0
    %5135 = vmatpush1.bf16.xpose.msra.mxu0 0
    %5136 = vmatprep.subr.bf16.mxu0 0
    %5137 = vmatpush1.bf16.xpose.msra.mxu0 0
    %5138 = vmatprep.subr.bf16.mxu0 0
    %5139 = vmatpush1.bf16.xpose.msra.mxu0 0
    %5140 = vmatprep.subr.bf16.mxu0 0
    %5141 = vmatpush1.bf16.xpose.msra.mxu0 0
    %5142 = vmatprep.subr.bf16.mxu0 0
    %5143 = vmatpush1.bf16.xpose.msra.mxu0 0
    %5144 = vmatprep.subr.bf16.mxu0 0
    %5145 = vmatpush1.bf16.xpose.msra.mxu0 0
    %5146 = vmatprep.subr.bf16.mxu0 0
    %5147 = vmatpush1.bf16.xpose.msra.mxu0 0
    %5148 = vmatprep.subr.bf16.mxu0 0
    %5149 = vmatpush1.bf16.xpose.msra.mxu0 0
    %5150 = vmatprep.subr.bf16.mxu0 0
    %5151 = vmatpush1.bf16.xpose.msra.mxu0 0
    %5152 = vmatprep.subr.bf16.mxu0 0
    %5153 = vmatpush1.bf16.xpose.msra.mxu0 0
    %5154 = vmatprep.mubr.bf16.mxu0 0
    %5155 = vmatmul.mubr.bf16.gmra.mrb[0].mxu0 %v5117
    %v5156 = vpop.f32.mrb[0].mxu0
    %v5157 = vadd.f32 0.0, %v5156
    %v5158 = vpop.f32.mrb[0].mxu0
    %v5159 = vpop.f32.mrb[0].mxu0
    %v5160 = vpop.f32.mrb[0].mxu0
    %5161 = vdwg.mxu0
    %v5163 = vsel %vm3873, %v1631, 0
    %v5166 = vsel %vm3873, %v2747, 0
    %5168 = vmatprep.subr.bf16.mxu0 0
    %5169 = vmatpush1.bf16.xpose.msra.mxu0 %v5166
    %5170 = vmatprep.subr.bf16.mxu0 0
    %5171 = vmatpush1.bf16.xpose.msra.mxu0 0
    %5172 = vmatprep.subr.bf16.mxu0 0
    %5173 = vmatpush1.bf16.xpose.msra.mxu0 0
    %5174 = vmatprep.subr.bf16.mxu0 0
    %5175 = vmatpush1.bf16.xpose.msra.mxu0 0
    %5176 = vmatprep.subr.bf16.mxu0 0
    %5177 = vmatpush1.bf16.xpose.msra.mxu0 0
    %5178 = vmatprep.subr.bf16.mxu0 0
    %5179 = vmatpush1.bf16.xpose.msra.mxu0 0
    %5180 = vmatprep.subr.bf16.mxu0 0
    %5181 = vmatpush1.bf16.xpose.msra.mxu0 0
    %5182 = vmatprep.subr.bf16.mxu0 0
    %5183 = vmatpush1.bf16.xpose.msra.mxu0 0
    %5184 = vmatprep.subr.bf16.mxu0 0
    %5185 = vmatpush1.bf16.xpose.msra.mxu0 0
    %5186 = vmatprep.subr.bf16.mxu0 0
    %5187 = vmatpush1.bf16.xpose.msra.mxu0 0
    %5188 = vmatprep.subr.bf16.mxu0 0
    %5189 = vmatpush1.bf16.xpose.msra.mxu0 0
    %5190 = vmatprep.subr.bf16.mxu0 0
    %5191 = vmatpush1.bf16.xpose.msra.mxu0 0
    %5192 = vmatprep.subr.bf16.mxu0 0
    %5193 = vmatpush1.bf16.xpose.msra.mxu0 0
    %5194 = vmatprep.subr.bf16.mxu0 0
    %5195 = vmatpush1.bf16.xpose.msra.mxu0 0
    %5196 = vmatprep.subr.bf16.mxu0 0
    %5197 = vmatpush1.bf16.xpose.msra.mxu0 0
    %5198 = vmatprep.subr.bf16.mxu0 0
    %5199 = vmatpush1.bf16.xpose.msra.mxu0 0
    %5200 = vmatprep.mubr.bf16.mxu0 0
    %5201 = vmatmul.mubr.bf16.gmra.mrb[0].mxu0 %v5163
    %v5202 = vpop.f32.mrb[0].mxu0
    %v5203 = vadd.f32 0.0, %v5202
    %v5204 = vpop.f32.mrb[0].mxu0
    %v5205 = vpop.f32.mrb[0].mxu0
    %v5206 = vpop.f32.mrb[0].mxu0
    %5207 = vdwg.mxu0
    %v5209 = vsel %vm3873, %v1634, 0
    %v5212 = vsel %vm3873, %v2750, 0
    %5214 = vmatprep.subr.bf16.mxu0 0
    %5215 = vmatpush1.bf16.xpose.msra.mxu0 %v5212
    %5216 = vmatprep.subr.bf16.mxu0 0
    %5217 = vmatpush1.bf16.xpose.msra.mxu0 0
    %5218 = vmatprep.subr.bf16.mxu0 0
    %5219 = vmatpush1.bf16.xpose.msra.mxu0 0
    %5220 = vmatprep.subr.bf16.mxu0 0
    %5221 = vmatpush1.bf16.xpose.msra.mxu0 0
    %5222 = vmatprep.subr.bf16.mxu0 0
    %5223 = vmatpush1.bf16.xpose.msra.mxu0 0
    %5224 = vmatprep.subr.bf16.mxu0 0
    %5225 = vmatpush1.bf16.xpose.msra.mxu0 0
    %5226 = vmatprep.subr.bf16.mxu0 0
    %5227 = vmatpush1.bf16.xpose.msra.mxu0 0
    %5228 = vmatprep.subr.bf16.mxu0 0
    %5229 = vmatpush1.bf16.xpose.msra.mxu0 0
    %5230 = vmatprep.subr.bf16.mxu0 0
    %5231 = vmatpush1.bf16.xpose.msra.mxu0 0
    %5232 = vmatprep.subr.bf16.mxu0 0
    %5233 = vmatpush1.bf16.xpose.msra.mxu0 0
    %5234 = vmatprep.subr.bf16.mxu0 0
    %5235 = vmatpush1.bf16.xpose.msra.mxu0 0
    %5236 = vmatprep.subr.bf16.mxu0 0
    %5237 = vmatpush1.bf16.xpose.msra.mxu0 0
    %5238 = vmatprep.subr.bf16.mxu0 0
    %5239 = vmatpush1.bf16.xpose.msra.mxu0 0
    %5240 = vmatprep.subr.bf16.mxu0 0
    %5241 = vmatpush1.bf16.xpose.msra.mxu0 0
    %5242 = vmatprep.subr.bf16.mxu0 0
    %5243 = vmatpush1.bf16.xpose.msra.mxu0 0
    %5244 = vmatprep.subr.bf16.mxu0 0
    %5245 = vmatpush1.bf16.xpose.msra.mxu0 0
    %5246 = vmatprep.mubr.bf16.mxu0 0
    %5247 = vmatmul.mubr.bf16.gmra.mrb[0].mxu0 %v5209
    %v5248 = vpop.f32.mrb[0].mxu0
    %v5249 = vadd.f32 0.0, %v5248
    %v5250 = vpop.f32.mrb[0].mxu0
    %v5251 = vpop.f32.mrb[0].mxu0
    %v5252 = vpop.f32.mrb[0].mxu0
    %5253 = vdwg.mxu0
    %v5255 = vsel %vm3873, %v1637, 0
    %v5258 = vsel %vm3873, %v2753, 0
    %5260 = vmatprep.subr.bf16.mxu0 0
    %5261 = vmatpush1.bf16.xpose.msra.mxu0 %v5258
    %5262 = vmatprep.subr.bf16.mxu0 0
    %5263 = vmatpush1.bf16.xpose.msra.mxu0 0
    %5264 = vmatprep.subr.bf16.mxu0 0
    %5265 = vmatpush1.bf16.xpose.msra.mxu0 0
    %5266 = vmatprep.subr.bf16.mxu0 0
    %5267 = vmatpush1.bf16.xpose.msra.mxu0 0
    %5268 = vmatprep.subr.bf16.mxu0 0
    %5269 = vmatpush1.bf16.xpose.msra.mxu0 0
    %5270 = vmatprep.subr.bf16.mxu0 0
    %5271 = vmatpush1.bf16.xpose.msra.mxu0 0
    %5272 = vmatprep.subr.bf16.mxu0 0
    %5273 = vmatpush1.bf16.xpose.msra.mxu0 0
    %5274 = vmatprep.subr.bf16.mxu0 0
    %5275 = vmatpush1.bf16.xpose.msra.mxu0 0
    %5276 = vmatprep.subr.bf16.mxu0 0
    %5277 = vmatpush1.bf16.xpose.msra.mxu0 0
    %5278 = vmatprep.subr.bf16.mxu0 0
    %5279 = vmatpush1.bf16.xpose.msra.mxu0 0
    %5280 = vmatprep.subr.bf16.mxu0 0
    %5281 = vmatpush1.bf16.xpose.msra.mxu0 0
    %5282 = vmatprep.subr.bf16.mxu0 0
    %5283 = vmatpush1.bf16.xpose.msra.mxu0 0
    %5284 = vmatprep.subr.bf16.mxu0 0
    %5285 = vmatpush1.bf16.xpose.msra.mxu0 0
    %5286 = vmatprep.subr.bf16.mxu0 0
    %5287 = vmatpush1.bf16.xpose.msra.mxu0 0
    %5288 = vmatprep.subr.bf16.mxu0 0
    %5289 = vmatpush1.bf16.xpose.msra.mxu0 0
    %5290 = vmatprep.subr.bf16.mxu0 0
    %5291 = vmatpush1.bf16.xpose.msra.mxu0 0
    %5292 = vmatprep.mubr.bf16.mxu0 0
    %5293 = vmatmul.mubr.bf16.gmra.mrb[0].mxu0 %v5255
    %v5294 = vpop.f32.mrb[0].mxu0
    %v5295 = vadd.f32 0.0, %v5294
    %v5296 = vpop.f32.mrb[0].mxu0
    %v5297 = vpop.f32.mrb[0].mxu0
    %v5298 = vpop.f32.mrb[0].mxu0
    %5299 = vdwg.mxu0
    %v5301 = vsel %vm3873, %v1640, 0
    %v5304 = vsel %vm3873, %v2756, 0
    %5306 = vmatprep.subr.bf16.mxu0 0
    %5307 = vmatpush1.bf16.xpose.msra.mxu0 %v5304
    %5308 = vmatprep.subr.bf16.mxu0 0
    %5309 = vmatpush1.bf16.xpose.msra.mxu0 0
    %5310 = vmatprep.subr.bf16.mxu0 0
    %5311 = vmatpush1.bf16.xpose.msra.mxu0 0
    %5312 = vmatprep.subr.bf16.mxu0 0
    %5313 = vmatpush1.bf16.xpose.msra.mxu0 0
    %5314 = vmatprep.subr.bf16.mxu0 0
    %5315 = vmatpush1.bf16.xpose.msra.mxu0 0
    %5316 = vmatprep.subr.bf16.mxu0 0
    %5317 = vmatpush1.bf16.xpose.msra.mxu0 0
    %5318 = vmatprep.subr.bf16.mxu0 0
    %5319 = vmatpush1.bf16.xpose.msra.mxu0 0
    %5320 = vmatprep.subr.bf16.mxu0 0
    %5321 = vmatpush1.bf16.xpose.msra.mxu0 0
    %5322 = vmatprep.subr.bf16.mxu0 0
    %5323 = vmatpush1.bf16.xpose.msra.mxu0 0
    %5324 = vmatprep.subr.bf16.mxu0 0
    %5325 = vmatpush1.bf16.xpose.msra.mxu0 0
    %5326 = vmatprep.subr.bf16.mxu0 0
    %5327 = vmatpush1.bf16.xpose.msra.mxu0 0
    %5328 = vmatprep.subr.bf16.mxu0 0
    %5329 = vmatpush1.bf16.xpose.msra.mxu0 0
    %5330 = vmatprep.subr.bf16.mxu0 0
    %5331 = vmatpush1.bf16.xpose.msra.mxu0 0
    %5332 = vmatprep.subr.bf16.mxu0 0
    %5333 = vmatpush1.bf16.xpose.msra.mxu0 0
    %5334 = vmatprep.subr.bf16.mxu0 0
    %5335 = vmatpush1.bf16.xpose.msra.mxu0 0
    %5336 = vmatprep.subr.bf16.mxu0 0
    %5337 = vmatpush1.bf16.xpose.msra.mxu0 0
    %5338 = vmatprep.mubr.bf16.mxu0 0
    %5339 = vmatmul.mubr.bf16.gmra.mrb[0].mxu0 %v5301
    %v5340 = vpop.f32.mrb[0].mxu0
    %v5341 = vadd.f32 0.0, %v5340
    %v5342 = vpop.f32.mrb[0].mxu0
    %v5343 = vpop.f32.mrb[0].mxu0
    %v5344 = vpop.f32.mrb[0].mxu0
    %5345 = vdwg.mxu0
    %vm5346 = vcmask 64512
    %v5347 = vsel %vm5346, %v3915, -inf
    %5348 = vmax.xlane.f32.xlu0 %v5347
    %v5349 = vpop.xlane.xlu0 %5348
    %v5350 = vsel %vm5346, %v3961, -inf
    %5351 = vmax.xlane.f32.xlu0 %v5350
    %v5352 = vpop.xlane.xlu0 %5351
    %v5353 = vsel %vm5346, %v4007, -inf
    %5354 = vmax.xlane.f32.xlu0 %v5353
    %v5355 = vpop.xlane.xlu0 %5354
    %v5356 = vsel %vm5346, %v4053, -inf
    %5357 = vmax.xlane.f32.xlu0 %v5356
    %v5358 = vpop.xlane.xlu0 %5357
    %v5359 = vsel %vm5346, %v4099, -inf
    %5360 = vmax.xlane.f32.xlu0 %v5359
    %v5361 = vpop.xlane.xlu0 %5360
    %v5362 = vsel %vm5346, %v4145, -inf
    %5363 = vmax.xlane.f32.xlu0 %v5362
    %v5364 = vpop.xlane.xlu0 %5363
    %v5365 = vsel %vm5346, %v4191, -inf
    %5366 = vmax.xlane.f32.xlu0 %v5365
    %v5367 = vpop.xlane.xlu0 %5366
    %v5368 = vsel %vm5346, %v4237, -inf
    %5369 = vmax.xlane.f32.xlu0 %v5368
    %v5370 = vpop.xlane.xlu0 %5369
    %v5371 = vsel %vm5346, %v4283, -inf
    %5372 = vmax.xlane.f32.xlu0 %v5371
    %v5373 = vpop.xlane.xlu0 %5372
    %v5374 = vsel %vm5346, %v4329, -inf
    %5375 = vmax.xlane.f32.xlu0 %v5374
    %v5376 = vpop.xlane.xlu0 %5375
    %v5377 = vsel %vm5346, %v4375, -inf
    %5378 = vmax.xlane.f32.xlu0 %v5377
    %v5379 = vpop.xlane.xlu0 %5378
    %v5380 = vsel %vm5346, %v4421, -inf
    %5381 = vmax.xlane.f32.xlu0 %v5380
    %v5382 = vpop.xlane.xlu0 %5381
    %v5383 = vsel %vm5346, %v4467, -inf
    %5384 = vmax.xlane.f32.xlu0 %v5383
    %v5385 = vpop.xlane.xlu0 %5384
    %v5386 = vsel %vm5346, %v4513, -inf
    %5387 = vmax.xlane.f32.xlu0 %v5386
    %v5388 = vpop.xlane.xlu0 %5387
    %v5389 = vsel %vm5346, %v4559, -inf
    %5390 = vmax.xlane.f32.xlu0 %v5389
    %v5391 = vpop.xlane.xlu0 %5390
    %v5392 = vsel %vm5346, %v4605, -inf
    %5393 = vmax.xlane.f32.xlu0 %v5392
    %v5394 = vpop.xlane.xlu0 %5393
    %v5395 = vsel %vm5346, %v4651, -inf
    %5396 = vmax.xlane.f32.xlu0 %v5395
    %v5397 = vpop.xlane.xlu0 %5396
    %v5398 = vsel %vm5346, %v4697, -inf
    %5399 = vmax.xlane.f32.xlu0 %v5398
    %v5400 = vpop.xlane.xlu0 %5399
    %v5401 = vsel %vm5346, %v4743, -inf
    %5402 = vmax.xlane.f32.xlu0 %v5401
    %v5403 = vpop.xlane.xlu0 %5402
    %v5404 = vsel %vm5346, %v4789, -inf
    %5405 = vmax.xlane.f32.xlu0 %v5404
    %v5406 = vpop.xlane.xlu0 %5405
    %v5407 = vsel %vm5346, %v4835, -inf
    %5408 = vmax.xlane.f32.xlu0 %v5407
    %v5409 = vpop.xlane.xlu0 %5408
    %v5410 = vsel %vm5346, %v4881, -inf
    %5411 = vmax.xlane.f32.xlu0 %v5410
    %v5412 = vpop.xlane.xlu0 %5411
    %v5413 = vsel %vm5346, %v4927, -inf
    %5414 = vmax.xlane.f32.xlu0 %v5413
    %v5415 = vpop.xlane.xlu0 %5414
    %v5416 = vsel %vm5346, %v4973, -inf
    %5417 = vmax.xlane.f32.xlu0 %v5416
    %v5418 = vpop.xlane.xlu0 %5417
    %v5419 = vsel %vm5346, %v5019, -inf
    %5420 = vmax.xlane.f32.xlu0 %v5419
    %v5421 = vpop.xlane.xlu0 %5420
    %v5422 = vsel %vm5346, %v5065, -inf
    %5423 = vmax.xlane.f32.xlu0 %v5422
    %v5424 = vpop.xlane.xlu0 %5423
    %v5425 = vsel %vm5346, %v5111, -inf
    %5426 = vmax.xlane.f32.xlu0 %v5425
    %v5427 = vpop.xlane.xlu0 %5426
    %v5428 = vsel %vm5346, %v5157, -inf
    %5429 = vmax.xlane.f32.xlu0 %v5428
    %v5430 = vpop.xlane.xlu0 %5429
    %v5431 = vsel %vm5346, %v5203, -inf
    %5432 = vmax.xlane.f32.xlu0 %v5431
    %v5433 = vpop.xlane.xlu0 %5432
    %v5434 = vsel %vm5346, %v5249, -inf
    %5435 = vmax.xlane.f32.xlu0 %v5434
    %v5436 = vpop.xlane.xlu0 %5435
    %v5437 = vsel %vm5346, %v5295, -inf
    %5438 = vmax.xlane.f32.xlu0 %v5437
    %v5439 = vpop.xlane.xlu0 %5438
    %v5440 = vsel %vm5346, %v5341, -inf
    %5441 = vmax.xlane.f32.xlu0 %v5440
    %v5442 = vpop.xlane.xlu0 %5441
    %v5443 = vsub.f32 %v3915, %v5349
    %v5444 = vsub.f32 %v3961, %v5352
    %v5445 = vsub.f32 %v4007, %v5355
    %v5446 = vsub.f32 %v4053, %v5358
    %v5447 = vsub.f32 %v4099, %v5361
    %v5448 = vsub.f32 %v4145, %v5364
    %v5449 = vsub.f32 %v4191, %v5367
    %v5450 = vsub.f32 %v4237, %v5370
    %v5451 = vsub.f32 %v4283, %v5373
    %v5452 = vsub.f32 %v4329, %v5376
    %v5453 = vsub.f32 %v4375, %v5379
    %v5454 = vsub.f32 %v4421, %v5382
    %v5455 = vsub.f32 %v4467, %v5385
    %v5456 = vsub.f32 %v4513, %v5388
    %v5457 = vsub.f32 %v4559, %v5391
    %v5458 = vsub.f32 %v4605, %v5394
    %v5459 = vsub.f32 %v4651, %v5397
    %v5460 = vsub.f32 %v4697, %v5400
    %v5461 = vsub.f32 %v4743, %v5403
    %v5462 = vsub.f32 %v4789, %v5406
    %v5463 = vsub.f32 %v4835, %v5409
    %v5464 = vsub.f32 %v4881, %v5412
    %v5465 = vsub.f32 %v4927, %v5415
    %v5466 = vsub.f32 %v4973, %v5418
    %v5467 = vsub.f32 %v5019, %v5421
    %v5468 = vsub.f32 %v5065, %v5424
    %v5469 = vsub.f32 %v5111, %v5427
    %v5470 = vsub.f32 %v5157, %v5430
    %v5471 = vsub.f32 %v5203, %v5433
    %v5472 = vsub.f32 %v5249, %v5436
    %v5473 = vsub.f32 %v5295, %v5439
    %v5474 = vsub.f32 %v5341, %v5442
    %v5475 = vmul.f32 %v5443, 1.442695
    %v5476 = vpow.pop %v5475
    %v5477 = vmul.f32 %v5444, 1.442695
    %v5478 = vpow.pop %v5477
    %v5479 = vmul.f32 %v5445, 1.442695
    %v5480 = vpow.pop %v5479
    %v5481 = vmul.f32 %v5446, 1.442695
    %v5482 = vpow.pop %v5481
    %v5483 = vmul.f32 %v5447, 1.442695
    %v5484 = vpow.pop %v5483
    %v5485 = vmul.f32 %v5448, 1.442695
    %v5486 = vpow.pop %v5485
    %v5487 = vmul.f32 %v5449, 1.442695
    %v5488 = vpow.pop %v5487
    %v5489 = vmul.f32 %v5450, 1.442695
    %v5490 = vpow.pop %v5489
    %v5491 = vmul.f32 %v5451, 1.442695
    %v5492 = vpow.pop %v5491
    %v5493 = vmul.f32 %v5452, 1.442695
    %v5494 = vpow.pop %v5493
    %v5495 = vmul.f32 %v5453, 1.442695
    %v5496 = vpow.pop %v5495
    %v5497 = vmul.f32 %v5454, 1.442695
    %v5498 = vpow.pop %v5497
    %v5499 = vmul.f32 %v5455, 1.442695
    %v5500 = vpow.pop %v5499
    %v5501 = vmul.f32 %v5456, 1.442695
    %v5502 = vpow.pop %v5501
    %v5503 = vmul.f32 %v5457, 1.442695
    %v5504 = vpow.pop %v5503
    %v5505 = vmul.f32 %v5458, 1.442695
    %v5506 = vpow.pop %v5505
    %v5507 = vmul.f32 %v5459, 1.442695
    %v5508 = vpow.pop %v5507
    %v5509 = vmul.f32 %v5460, 1.442695
    %v5510 = vpow.pop %v5509
    %v5511 = vmul.f32 %v5461, 1.442695
    %v5512 = vpow.pop %v5511
    %v5513 = vmul.f32 %v5462, 1.442695
    %v5514 = vpow.pop %v5513
    %v5515 = vmul.f32 %v5463, 1.442695
    %v5516 = vpow.pop %v5515
    %v5517 = vmul.f32 %v5464, 1.442695
    %v5518 = vpow.pop %v5517
    %v5519 = vmul.f32 %v5465, 1.442695
    %v5520 = vpow.pop %v5519
    %v5521 = vmul.f32 %v5466, 1.442695
    %v5522 = vpow.pop %v5521
    %v5523 = vmul.f32 %v5467, 1.442695
    %v5524 = vpow.pop %v5523
    %v5525 = vmul.f32 %v5468, 1.442695
    %v5526 = vpow.pop %v5525
    %v5527 = vmul.f32 %v5469, 1.442695
    %v5528 = vpow.pop %v5527
    %v5529 = vmul.f32 %v5470, 1.442695
    %v5530 = vpow.pop %v5529
    %v5531 = vmul.f32 %v5471, 1.442695
    %v5532 = vpow.pop %v5531
    %v5533 = vmul.f32 %v5472, 1.442695
    %v5534 = vpow.pop %v5533
    %v5535 = vmul.f32 %v5473, 1.442695
    %v5536 = vpow.pop %v5535
    %v5537 = vmul.f32 %v5474, 1.442695
    %v5538 = vpow.pop %v5537
    %v5539 = vsel %vm5346, %v5476, 0.0
    %5540 = vadd.xlane.f32.xlu0 %v5539
    %v5541 = vpop.xlane.xlu0 %5540
    %v5542 = vsel %vm5346, %v5478, 0.0
    %5543 = vadd.xlane.f32.xlu0 %v5542
    %v5544 = vpop.xlane.xlu0 %5543
    %v5545 = vsel %vm5346, %v5480, 0.0
    %5546 = vadd.xlane.f32.xlu0 %v5545
    %v5547 = vpop.xlane.xlu0 %5546
    %v5548 = vsel %vm5346, %v5482, 0.0
    %5549 = vadd.xlane.f32.xlu0 %v5548
    %v5550 = vpop.xlane.xlu0 %5549
    %v5551 = vsel %vm5346, %v5484, 0.0
    %5552 = vadd.xlane.f32.xlu0 %v5551
    %v5553 = vpop.xlane.xlu0 %5552
    %v5554 = vsel %vm5346, %v5486, 0.0
    %5555 = vadd.xlane.f32.xlu0 %v5554
    %v5556 = vpop.xlane.xlu0 %5555
    %v5557 = vsel %vm5346, %v5488, 0.0
    %5558 = vadd.xlane.f32.xlu0 %v5557
    %v5559 = vpop.xlane.xlu0 %5558
    %v5560 = vsel %vm5346, %v5490, 0.0
    %5561 = vadd.xlane.f32.xlu0 %v5560
    %v5562 = vpop.xlane.xlu0 %5561
    %v5563 = vsel %vm5346, %v5492, 0.0
    %5564 = vadd.xlane.f32.xlu0 %v5563
    %v5565 = vpop.xlane.xlu0 %5564
    %v5566 = vsel %vm5346, %v5494, 0.0
    %5567 = vadd.xlane.f32.xlu0 %v5566
    %v5568 = vpop.xlane.xlu0 %5567
    %v5569 = vsel %vm5346, %v5496, 0.0
    %5570 = vadd.xlane.f32.xlu0 %v5569
    %v5571 = vpop.xlane.xlu0 %5570
    %v5572 = vsel %vm5346, %v5498, 0.0
    %5573 = vadd.xlane.f32.xlu0 %v5572
    %v5574 = vpop.xlane.xlu0 %5573
    %v5575 = vsel %vm5346, %v5500, 0.0
    %5576 = vadd.xlane.f32.xlu0 %v5575
    %v5577 = vpop.xlane.xlu0 %5576
    %v5578 = vsel %vm5346, %v5502, 0.0
    %5579 = vadd.xlane.f32.xlu0 %v5578
    %v5580 = vpop.xlane.xlu0 %5579
    %v5581 = vsel %vm5346, %v5504, 0.0
    %5582 = vadd.xlane.f32.xlu0 %v5581
    %v5583 = vpop.xlane.xlu0 %5582
    %v5584 = vsel %vm5346, %v5506, 0.0
    %5585 = vadd.xlane.f32.xlu0 %v5584
    %v5586 = vpop.xlane.xlu0 %5585
    %v5587 = vsel %vm5346, %v5508, 0.0
    %5588 = vadd.xlane.f32.xlu0 %v5587
    %v5589 = vpop.xlane.xlu0 %5588
    %v5590 = vsel %vm5346, %v5510, 0.0
    %5591 = vadd.xlane.f32.xlu0 %v5590
    %v5592 = vpop.xlane.xlu0 %5591
    %v5593 = vsel %vm5346, %v5512, 0.0
    %5594 = vadd.xlane.f32.xlu0 %v5593
    %v5595 = vpop.xlane.xlu0 %5594
    %v5596 = vsel %vm5346, %v5514, 0.0
    %5597 = vadd.xlane.f32.xlu0 %v5596
    %v5598 = vpop.xlane.xlu0 %5597
    %v5599 = vsel %vm5346, %v5516, 0.0
    %5600 = vadd.xlane.f32.xlu0 %v5599
    %v5601 = vpop.xlane.xlu0 %5600
    %v5602 = vsel %vm5346, %v5518, 0.0
    %5603 = vadd.xlane.f32.xlu0 %v5602
    %v5604 = vpop.xlane.xlu0 %5603
    %v5605 = vsel %vm5346, %v5520, 0.0
    %5606 = vadd.xlane.f32.xlu0 %v5605
    %v5607 = vpop.xlane.xlu0 %5606
    %v5608 = vsel %vm5346, %v5522, 0.0
    %5609 = vadd.xlane.f32.xlu0 %v5608
    %v5610 = vpop.xlane.xlu0 %5609
    %v5611 = vsel %vm5346, %v5524, 0.0
    %5612 = vadd.xlane.f32.xlu0 %v5611
    %v5613 = vpop.xlane.xlu0 %5612
    %v5614 = vsel %vm5346, %v5526, 0.0
    %5615 = vadd.xlane.f32.xlu0 %v5614
    %v5616 = vpop.xlane.xlu0 %5615
    %v5617 = vsel %vm5346, %v5528, 0.0
    %5618 = vadd.xlane.f32.xlu0 %v5617
    %v5619 = vpop.xlane.xlu0 %5618
    %v5620 = vsel %vm5346, %v5530, 0.0
    %5621 = vadd.xlane.f32.xlu0 %v5620
    %v5622 = vpop.xlane.xlu0 %5621
    %v5623 = vsel %vm5346, %v5532, 0.0
    %5624 = vadd.xlane.f32.xlu0 %v5623
    %v5625 = vpop.xlane.xlu0 %5624
    %v5626 = vsel %vm5346, %v5534, 0.0
    %5627 = vadd.xlane.f32.xlu0 %v5626
    %v5628 = vpop.xlane.xlu0 %5627
    %v5629 = vsel %vm5346, %v5536, 0.0
    %5630 = vadd.xlane.f32.xlu0 %v5629
    %v5631 = vpop.xlane.xlu0 %5630
    %v5632 = vsel %vm5346, %v5538, 0.0
    %5633 = vadd.xlane.f32.xlu0 %v5632
    %v5634 = vpop.xlane.xlu0 %5633
    %v5635 = vrcp.pop %v5541
    %v5636 = vrcp.pop %v5544
    %v5637 = vrcp.pop %v5547
    %v5638 = vrcp.pop %v5550
    %v5639 = vrcp.pop %v5553
    %v5640 = vrcp.pop %v5556
    %v5641 = vrcp.pop %v5559
    %v5642 = vrcp.pop %v5562
    %v5643 = vrcp.pop %v5565
    %v5644 = vrcp.pop %v5568
    %v5645 = vrcp.pop %v5571
    %v5646 = vrcp.pop %v5574
    %v5647 = vrcp.pop %v5577
    %v5648 = vrcp.pop %v5580
    %v5649 = vrcp.pop %v5583
    %v5650 = vrcp.pop %v5586
    %v5651 = vrcp.pop %v5589
    %v5652 = vrcp.pop %v5592
    %v5653 = vrcp.pop %v5595
    %v5654 = vrcp.pop %v5598
    %v5655 = vrcp.pop %v5601
    %v5656 = vrcp.pop %v5604
    %v5657 = vrcp.pop %v5607
    %v5658 = vrcp.pop %v5610
    %v5659 = vrcp.pop %v5613
    %v5660 = vrcp.pop %v5616
    %v5661 = vrcp.pop %v5619
    %v5662 = vrcp.pop %v5622
    %v5663 = vrcp.pop %v5625
    %v5664 = vrcp.pop %v5628
    %v5665 = vrcp.pop %v5631
    %v5666 = vrcp.pop %v5634
    %v5667 = vmul.f32 %v5476, %v5635
    %v5668 = vmul.f32 %v5478, %v5636
    %v5669 = vmul.f32 %v5480, %v5637
    %v5670 = vmul.f32 %v5482, %v5638
    %v5671 = vmul.f32 %v5484, %v5639
    %v5672 = vmul.f32 %v5486, %v5640
    %v5673 = vmul.f32 %v5488, %v5641
    %v5674 = vmul.f32 %v5490, %v5642
    %v5675 = vmul.f32 %v5492, %v5643
    %v5676 = vmul.f32 %v5494, %v5644
    %v5677 = vmul.f32 %v5496, %v5645
    %v5678 = vmul.f32 %v5498, %v5646
    %v5679 = vmul.f32 %v5500, %v5647
    %v5680 = vmul.f32 %v5502, %v5648
    %v5681 = vmul.f32 %v5504, %v5649
    %v5682 = vmul.f32 %v5506, %v5650
    %v5683 = vmul.f32 %v5508, %v5651
    %v5684 = vmul.f32 %v5510, %v5652
    %v5685 = vmul.f32 %v5512, %v5653
    %v5686 = vmul.f32 %v5514, %v5654
    %v5687 = vmul.f32 %v5516, %v5655
    %v5688 = vmul.f32 %v5518, %v5656
    %v5689 = vmul.f32 %v5520, %v5657
    %v5690 = vmul.f32 %v5522, %v5658
    %v5691 = vmul.f32 %v5524, %v5659
    %v5692 = vmul.f32 %v5526, %v5660
    %v5693 = vmul.f32 %v5528, %v5661
    %v5694 = vmul.f32 %v5530, %v5662
    %v5695 = vmul.f32 %v5532, %v5663
    %v5696 = vmul.f32 %v5534, %v5664
    %v5697 = vmul.f32 %v5536, %v5665
    %v5698 = vmul.f32 %v5538, %v5666
    %v5699 = vpack.c.bf16 %v5667, %v5667
    %v5700 = vpack.c.bf16 %v5668, %v5668
    %v5701 = vpack.c.bf16 %v5669, %v5669
    %v5702 = vpack.c.bf16 %v5670, %v5670
    %v5703 = vpack.c.bf16 %v5671, %v5671
    %v5704 = vpack.c.bf16 %v5672, %v5672
    %v5705 = vpack.c.bf16 %v5673, %v5673
    %v5706 = vpack.c.bf16 %v5674, %v5674
    %v5707 = vpack.c.bf16 %v5675, %v5675
    %v5708 = vpack.c.bf16 %v5676, %v5676
    %v5709 = vpack.c.bf16 %v5677, %v5677
    %v5710 = vpack.c.bf16 %v5678, %v5678
    %v5711 = vpack.c.bf16 %v5679, %v5679
    %v5712 = vpack.c.bf16 %v5680, %v5680
    %v5713 = vpack.c.bf16 %v5681, %v5681
    %v5714 = vpack.c.bf16 %v5682, %v5682
    %v5715 = vpack.c.bf16 %v5683, %v5683
    %v5716 = vpack.c.bf16 %v5684, %v5684
    %v5717 = vpack.c.bf16 %v5685, %v5685
    %v5718 = vpack.c.bf16 %v5686, %v5686
    %v5719 = vpack.c.bf16 %v5687, %v5687
    %v5720 = vpack.c.bf16 %v5688, %v5688
    %v5721 = vpack.c.bf16 %v5689, %v5689
    %v5722 = vpack.c.bf16 %v5690, %v5690
    %v5723 = vpack.c.bf16 %v5691, %v5691
    %v5724 = vpack.c.bf16 %v5692, %v5692
    %v5725 = vpack.c.bf16 %v5693, %v5693
    %v5726 = vpack.c.bf16 %v5694, %v5694
    %v5727 = vpack.c.bf16 %v5695, %v5695
    %v5728 = vpack.c.bf16 %v5696, %v5696
    %v5729 = vpack.c.bf16 %v5697, %v5697
    %v5730 = vpack.c.bf16 %v5698, %v5698
    %v5732 = vsel %vm5346, %v5699, 0
    %vm5734 = vcmask 1043456
    %v5736 = vsel %vm5734, %v3779, 0
    %5738 = vmatprep.subr.bf16.mxu0 0
    %5739 = vmatpush1.bf16.msra.mxu0 %v5736
    %5740 = vmatprep.subr.bf16.mxu0 0
    %5741 = vmatpush1.bf16.msra.mxu0 0
    %5742 = vmatprep.subr.bf16.mxu0 0
    %5743 = vmatpush1.bf16.msra.mxu0 0
    %5744 = vmatprep.subr.bf16.mxu0 0
    %5745 = vmatpush1.bf16.msra.mxu0 0
    %5746 = vmatprep.subr.bf16.mxu0 0
    %5747 = vmatpush1.bf16.msra.mxu0 0
    %5748 = vmatprep.subr.bf16.mxu0 0
    %5749 = vmatpush1.bf16.msra.mxu0 0
    %5750 = vmatprep.subr.bf16.mxu0 0
    %5751 = vmatpush1.bf16.msra.mxu0 0
    %5752 = vmatprep.subr.bf16.mxu0 0
    %5753 = vmatpush1.bf16.msra.mxu0 0
    %5754 = vmatprep.subr.bf16.mxu0 0
    %5755 = vmatpush1.bf16.msra.mxu0 0
    %5756 = vmatprep.subr.bf16.mxu0 0
    %5757 = vmatpush1.bf16.msra.mxu0 0
    %5758 = vmatprep.subr.bf16.mxu0 0
    %5759 = vmatpush1.bf16.msra.mxu0 0
    %5760 = vmatprep.subr.bf16.mxu0 0
    %5761 = vmatpush1.bf16.msra.mxu0 0
    %5762 = vmatprep.subr.bf16.mxu0 0
    %5763 = vmatpush1.bf16.msra.mxu0 0
    %5764 = vmatprep.subr.bf16.mxu0 0
    %5765 = vmatpush1.bf16.msra.mxu0 0
    %5766 = vmatprep.subr.bf16.mxu0 0
    %5767 = vmatpush1.bf16.msra.mxu0 0
    %5768 = vmatprep.subr.bf16.mxu0 0
    %5769 = vmatpush1.bf16.msra.mxu0 0
    %5770 = vmatprep.mubr.bf16.mxu0 0
    %5771 = vmatmul.mubr.bf16.gmra.mrb[0].mxu0 %v5732
    %v5772 = vpop.f32.mrb[0].mxu0
    %v5773 = vadd.f32 0.0, %v5772
    %v5774 = vpop.f32.mrb[0].mxu0
    %v5775 = vpop.f32.mrb[0].mxu0
    %v5776 = vpop.f32.mrb[0].mxu0
    %5777 = vdwg.mxu0
    %v5779 = vsel %vm5346, %v5700, 0
    %v5782 = vsel %vm5734, %v3782, 0
    %5784 = vmatprep.subr.bf16.mxu0 0
    %5785 = vmatpush1.bf16.msra.mxu0 %v5782
    %5786 = vmatprep.subr.bf16.mxu0 0
    %5787 = vmatpush1.bf16.msra.mxu0 0
    %5788 = vmatprep.subr.bf16.mxu0 0
    %5789 = vmatpush1.bf16.msra.mxu0 0
    %5790 = vmatprep.subr.bf16.mxu0 0
    %5791 = vmatpush1.bf16.msra.mxu0 0
    %5792 = vmatprep.subr.bf16.mxu0 0
    %5793 = vmatpush1.bf16.msra.mxu0 0
    %5794 = vmatprep.subr.bf16.mxu0 0
    %5795 = vmatpush1.bf16.msra.mxu0 0
    %5796 = vmatprep.subr.bf16.mxu0 0
    %5797 = vmatpush1.bf16.msra.mxu0 0
    %5798 = vmatprep.subr.bf16.mxu0 0
    %5799 = vmatpush1.bf16.msra.mxu0 0
    %5800 = vmatprep.subr.bf16.mxu0 0
    %5801 = vmatpush1.bf16.msra.mxu0 0
    %5802 = vmatprep.subr.bf16.mxu0 0
    %5803 = vmatpush1.bf16.msra.mxu0 0
    %5804 = vmatprep.subr.bf16.mxu0 0
    %5805 = vmatpush1.bf16.msra.mxu0 0
    %5806 = vmatprep.subr.bf16.mxu0 0
    %5807 = vmatpush1.bf16.msra.mxu0 0
    %5808 = vmatprep.subr.bf16.mxu0 0
    %5809 = vmatpush1.bf16.msra.mxu0 0
    %5810 = vmatprep.subr.bf16.mxu0 0
    %5811 = vmatpush1.bf16.msra.mxu0 0
    %5812 = vmatprep.subr.bf16.mxu0 0
    %5813 = vmatpush1.bf16.msra.mxu0 0
    %5814 = vmatprep.subr.bf16.mxu0 0
    %5815 = vmatpush1.bf16.msra.mxu0 0
    %5816 = vmatprep.mubr.bf16.mxu0 0
    %5817 = vmatmul.mubr.bf16.gmra.mrb[0].mxu0 %v5779
    %v5818 = vpop.f32.mrb[0].mxu0
    %v5819 = vadd.f32 0.0, %v5818
    %v5820 = vpop.f32.mrb[0].mxu0
    %v5821 = vpop.f32.mrb[0].mxu0
    %v5822 = vpop.f32.mrb[0].mxu0
    %5823 = vdwg.mxu0
    %v5825 = vsel %vm5346, %v5701, 0
    %v5828 = vsel %vm5734, %v3785, 0
    %5830 = vmatprep.subr.bf16.mxu0 0
    %5831 = vmatpush1.bf16.msra.mxu0 %v5828
    %5832 = vmatprep.subr.bf16.mxu0 0
    %5833 = vmatpush1.bf16.msra.mxu0 0
    %5834 = vmatprep.subr.bf16.mxu0 0
    %5835 = vmatpush1.bf16.msra.mxu0 0
    %5836 = vmatprep.subr.bf16.mxu0 0
    %5837 = vmatpush1.bf16.msra.mxu0 0
    %5838 = vmatprep.subr.bf16.mxu0 0
    %5839 = vmatpush1.bf16.msra.mxu0 0
    %5840 = vmatprep.subr.bf16.mxu0 0
    %5841 = vmatpush1.bf16.msra.mxu0 0
    %5842 = vmatprep.subr.bf16.mxu0 0
    %5843 = vmatpush1.bf16.msra.mxu0 0
    %5844 = vmatprep.subr.bf16.mxu0 0
    %5845 = vmatpush1.bf16.msra.mxu0 0
    %5846 = vmatprep.subr.bf16.mxu0 0
    %5847 = vmatpush1.bf16.msra.mxu0 0
    %5848 = vmatprep.subr.bf16.mxu0 0
    %5849 = vmatpush1.bf16.msra.mxu0 0
    %5850 = vmatprep.subr.bf16.mxu0 0
    %5851 = vmatpush1.bf16.msra.mxu0 0
    %5852 = vmatprep.subr.bf16.mxu0 0
    %5853 = vmatpush1.bf16.msra.mxu0 0
    %5854 = vmatprep.subr.bf16.mxu0 0
    %5855 = vmatpush1.bf16.msra.mxu0 0
    %5856 = vmatprep.subr.bf16.mxu0 0
    %5857 = vmatpush1.bf16.msra.mxu0 0
    %5858 = vmatprep.subr.bf16.mxu0 0
    %5859 = vmatpush1.bf16.msra.mxu0 0
    %5860 = vmatprep.subr.bf16.mxu0 0
    %5861 = vmatpush1.bf16.msra.mxu0 0
    %5862 = vmatprep.mubr.bf16.mxu0 0
    %5863 = vmatmul.mubr.bf16.gmra.mrb[0].mxu0 %v5825
    %v5864 = vpop.f32.mrb[0].mxu0
    %v5865 = vadd.f32 0.0, %v5864
    %v5866 = vpop.f32.mrb[0].mxu0
    %v5867 = vpop.f32.mrb[0].mxu0
    %v5868 = vpop.f32.mrb[0].mxu0
    %5869 = vdwg.mxu0
    %v5871 = vsel %vm5346, %v5702, 0
    %v5874 = vsel %vm5734, %v3788, 0
    %5876 = vmatprep.subr.bf16.mxu0 0
    %5877 = vmatpush1.bf16.msra.mxu0 %v5874
    %5878 = vmatprep.subr.bf16.mxu0 0
    %5879 = vmatpush1.bf16.msra.mxu0 0
    %5880 = vmatprep.subr.bf16.mxu0 0
    %5881 = vmatpush1.bf16.msra.mxu0 0
    %5882 = vmatprep.subr.bf16.mxu0 0
    %5883 = vmatpush1.bf16.msra.mxu0 0
    %5884 = vmatprep.subr.bf16.mxu0 0
    %5885 = vmatpush1.bf16.msra.mxu0 0
    %5886 = vmatprep.subr.bf16.mxu0 0
    %5887 = vmatpush1.bf16.msra.mxu0 0
    %5888 = vmatprep.subr.bf16.mxu0 0
    %5889 = vmatpush1.bf16.msra.mxu0 0
    %5890 = vmatprep.subr.bf16.mxu0 0
    %5891 = vmatpush1.bf16.msra.mxu0 0
    %5892 = vmatprep.subr.bf16.mxu0 0
    %5893 = vmatpush1.bf16.msra.mxu0 0
    %5894 = vmatprep.subr.bf16.mxu0 0
    %5895 = vmatpush1.bf16.msra.mxu0 0
    %5896 = vmatprep.subr.bf16.mxu0 0
    %5897 = vmatpush1.bf16.msra.mxu0 0
    %5898 = vmatprep.subr.bf16.mxu0 0
    %5899 = vmatpush1.bf16.msra.mxu0 0
    %5900 = vmatprep.subr.bf16.mxu0 0
    %5901 = vmatpush1.bf16.msra.mxu0 0
    %5902 = vmatprep.subr.bf16.mxu0 0
    %5903 = vmatpush1.bf16.msra.mxu0 0
    %5904 = vmatprep.subr.bf16.mxu0 0
    %5905 = vmatpush1.bf16.msra.mxu0 0
    %5906 = vmatprep.subr.bf16.mxu0 0
    %5907 = vmatpush1.bf16.msra.mxu0 0
    %5908 = vmatprep.mubr.bf16.mxu0 0
    %5909 = vmatmul.mubr.bf16.gmra.mrb[0].mxu0 %v5871
    %v5910 = vpop.f32.mrb[0].mxu0
    %v5911 = vadd.f32 0.0, %v5910
    %v5912 = vpop.f32.mrb[0].mxu0
    %v5913 = vpop.f32.mrb[0].mxu0
    %v5914 = vpop.f32.mrb[0].mxu0
    %5915 = vdwg.mxu0
    %v5917 = vsel %vm5346, %v5703, 0
    %v5920 = vsel %vm5734, %v3791, 0
    %5922 = vmatprep.subr.bf16.mxu0 0
    %5923 = vmatpush1.bf16.msra.mxu0 %v5920
    %5924 = vmatprep.subr.bf16.mxu0 0
    %5925 = vmatpush1.bf16.msra.mxu0 0
    %5926 = vmatprep.subr.bf16.mxu0 0
    %5927 = vmatpush1.bf16.msra.mxu0 0
    %5928 = vmatprep.subr.bf16.mxu0 0
    %5929 = vmatpush1.bf16.msra.mxu0 0
    %5930 = vmatprep.subr.bf16.mxu0 0
    %5931 = vmatpush1.bf16.msra.mxu0 0
    %5932 = vmatprep.subr.bf16.mxu0 0
    %5933 = vmatpush1.bf16.msra.mxu0 0
    %5934 = vmatprep.subr.bf16.mxu0 0
    %5935 = vmatpush1.bf16.msra.mxu0 0
    %5936 = vmatprep.subr.bf16.mxu0 0
    %5937 = vmatpush1.bf16.msra.mxu0 0
    %5938 = vmatprep.subr.bf16.mxu0 0
    %5939 = vmatpush1.bf16.msra.mxu0 0
    %5940 = vmatprep.subr.bf16.mxu0 0
    %5941 = vmatpush1.bf16.msra.mxu0 0
    %5942 = vmatprep.subr.bf16.mxu0 0
    %5943 = vmatpush1.bf16.msra.mxu0 0
    %5944 = vmatprep.subr.bf16.mxu0 0
    %5945 = vmatpush1.bf16.msra.mxu0 0
    %5946 = vmatprep.subr.bf16.mxu0 0
    %5947 = vmatpush1.bf16.msra.mxu0 0
    %5948 = vmatprep.subr.bf16.mxu0 0
    %5949 = vmatpush1.bf16.msra.mxu0 0
    %5950 = vmatprep.subr.bf16.mxu0 0
    %5951 = vmatpush1.bf16.msra.mxu0 0
    %5952 = vmatprep.subr.bf16.mxu0 0
    %5953 = vmatpush1.bf16.msra.mxu0 0
    %5954 = vmatprep.mubr.bf16.mxu0 0
    %5955 = vmatmul.mubr.bf16.gmra.mrb[0].mxu0 %v5917
    %v5956 = vpop.f32.mrb[0].mxu0
    %v5957 = vadd.f32 0.0, %v5956
    %v5958 = vpop.f32.mrb[0].mxu0
    %v5959 = vpop.f32.mrb[0].mxu0
    %v5960 = vpop.f32.mrb[0].mxu0
    %5961 = vdwg.mxu0
    %v5963 = vsel %vm5346, %v5704, 0
    %v5966 = vsel %vm5734, %v3794, 0
    %5968 = vmatprep.subr.bf16.mxu0 0
    %5969 = vmatpush1.bf16.msra.mxu0 %v5966
    %5970 = vmatprep.subr.bf16.mxu0 0
    %5971 = vmatpush1.bf16.msra.mxu0 0
    %5972 = vmatprep.subr.bf16.mxu0 0
    %5973 = vmatpush1.bf16.msra.mxu0 0
    %5974 = vmatprep.subr.bf16.mxu0 0
    %5975 = vmatpush1.bf16.msra.mxu0 0
    %5976 = vmatprep.subr.bf16.mxu0 0
    %5977 = vmatpush1.bf16.msra.mxu0 0
    %5978 = vmatprep.subr.bf16.mxu0 0
    %5979 = vmatpush1.bf16.msra.mxu0 0
    %5980 = vmatprep.subr.bf16.mxu0 0
    %5981 = vmatpush1.bf16.msra.mxu0 0
    %5982 = vmatprep.subr.bf16.mxu0 0
    %5983 = vmatpush1.bf16.msra.mxu0 0
    %5984 = vmatprep.subr.bf16.mxu0 0
    %5985 = vmatpush1.bf16.msra.mxu0 0
    %5986 = vmatprep.subr.bf16.mxu0 0
    %5987 = vmatpush1.bf16.msra.mxu0 0
    %5988 = vmatprep.subr.bf16.mxu0 0
    %5989 = vmatpush1.bf16.msra.mxu0 0
    %5990 = vmatprep.subr.bf16.mxu0 0
    %5991 = vmatpush1.bf16.msra.mxu0 0
    %5992 = vmatprep.subr.bf16.mxu0 0
    %5993 = vmatpush1.bf16.msra.mxu0 0
    %5994 = vmatprep.subr.bf16.mxu0 0
    %5995 = vmatpush1.bf16.msra.mxu0 0
    %5996 = vmatprep.subr.bf16.mxu0 0
    %5997 = vmatpush1.bf16.msra.mxu0 0
    %5998 = vmatprep.subr.bf16.mxu0 0
    %5999 = vmatpush1.bf16.msra.mxu0 0
    %6000 = vmatprep.mubr.bf16.mxu0 0
    %6001 = vmatmul.mubr.bf16.gmra.mrb[0].mxu0 %v5963
    %v6002 = vpop.f32.mrb[0].mxu0
    %v6003 = vadd.f32 0.0, %v6002
    %v6004 = vpop.f32.mrb[0].mxu0
    %v6005 = vpop.f32.mrb[0].mxu0
    %v6006 = vpop.f32.mrb[0].mxu0
    %6007 = vdwg.mxu0
    %v6009 = vsel %vm5346, %v5705, 0
    %v6012 = vsel %vm5734, %v3797, 0
    %6014 = vmatprep.subr.bf16.mxu0 0
    %6015 = vmatpush1.bf16.msra.mxu0 %v6012
    %6016 = vmatprep.subr.bf16.mxu0 0
    %6017 = vmatpush1.bf16.msra.mxu0 0
    %6018 = vmatprep.subr.bf16.mxu0 0
    %6019 = vmatpush1.bf16.msra.mxu0 0
    %6020 = vmatprep.subr.bf16.mxu0 0
    %6021 = vmatpush1.bf16.msra.mxu0 0
    %6022 = vmatprep.subr.bf16.mxu0 0
    %6023 = vmatpush1.bf16.msra.mxu0 0
    %6024 = vmatprep.subr.bf16.mxu0 0
    %6025 = vmatpush1.bf16.msra.mxu0 0
    %6026 = vmatprep.subr.bf16.mxu0 0
    %6027 = vmatpush1.bf16.msra.mxu0 0
    %6028 = vmatprep.subr.bf16.mxu0 0
    %6029 = vmatpush1.bf16.msra.mxu0 0
    %6030 = vmatprep.subr.bf16.mxu0 0
    %6031 = vmatpush1.bf16.msra.mxu0 0
    %6032 = vmatprep.subr.bf16.mxu0 0
    %6033 = vmatpush1.bf16.msra.mxu0 0
    %6034 = vmatprep.subr.bf16.mxu0 0
    %6035 = vmatpush1.bf16.msra.mxu0 0
    %6036 = vmatprep.subr.bf16.mxu0 0
    %6037 = vmatpush1.bf16.msra.mxu0 0
    %6038 = vmatprep.subr.bf16.mxu0 0
    %6039 = vmatpush1.bf16.msra.mxu0 0
    %6040 = vmatprep.subr.bf16.mxu0 0
    %6041 = vmatpush1.bf16.msra.mxu0 0
    %6042 = vmatprep.subr.bf16.mxu0 0
    %6043 = vmatpush1.bf16.msra.mxu0 0
    %6044 = vmatprep.subr.bf16.mxu0 0
    %6045 = vmatpush1.bf16.msra.mxu0 0
    %6046 = vmatprep.mubr.bf16.mxu0 0
    %6047 = vmatmul.mubr.bf16.gmra.mrb[0].mxu0 %v6009
    %v6048 = vpop.f32.mrb[0].mxu0
    %v6049 = vadd.f32 0.0, %v6048
    %v6050 = vpop.f32.mrb[0].mxu0
    %v6051 = vpop.f32.mrb[0].mxu0
    %v6052 = vpop.f32.mrb[0].mxu0
    %6053 = vdwg.mxu0
    %v6055 = vsel %vm5346, %v5706, 0
    %v6058 = vsel %vm5734, %v3800, 0
    %6060 = vmatprep.subr.bf16.mxu0 0
    %6061 = vmatpush1.bf16.msra.mxu0 %v6058
    %6062 = vmatprep.subr.bf16.mxu0 0
    %6063 = vmatpush1.bf16.msra.mxu0 0
    %6064 = vmatprep.subr.bf16.mxu0 0
    %6065 = vmatpush1.bf16.msra.mxu0 0
    %6066 = vmatprep.subr.bf16.mxu0 0
    %6067 = vmatpush1.bf16.msra.mxu0 0
    %6068 = vmatprep.subr.bf16.mxu0 0
    %6069 = vmatpush1.bf16.msra.mxu0 0
    %6070 = vmatprep.subr.bf16.mxu0 0
    %6071 = vmatpush1.bf16.msra.mxu0 0
    %6072 = vmatprep.subr.bf16.mxu0 0
    %6073 = vmatpush1.bf16.msra.mxu0 0
    %6074 = vmatprep.subr.bf16.mxu0 0
    %6075 = vmatpush1.bf16.msra.mxu0 0
    %6076 = vmatprep.subr.bf16.mxu0 0
    %6077 = vmatpush1.bf16.msra.mxu0 0
    %6078 = vmatprep.subr.bf16.mxu0 0
    %6079 = vmatpush1.bf16.msra.mxu0 0
    %6080 = vmatprep.subr.bf16.mxu0 0
    %6081 = vmatpush1.bf16.msra.mxu0 0
    %6082 = vmatprep.subr.bf16.mxu0 0
    %6083 = vmatpush1.bf16.msra.mxu0 0
    %6084 = vmatprep.subr.bf16.mxu0 0
    %6085 = vmatpush1.bf16.msra.mxu0 0
    %6086 = vmatprep.subr.bf16.mxu0 0
    %6087 = vmatpush1.bf16.msra.mxu0 0
    %6088 = vmatprep.subr.bf16.mxu0 0
    %6089 = vmatpush1.bf16.msra.mxu0 0
    %6090 = vmatprep.subr.bf16.mxu0 0
    %6091 = vmatpush1.bf16.msra.mxu0 0
    %6092 = vmatprep.mubr.bf16.mxu0 0
    %6093 = vmatmul.mubr.bf16.gmra.mrb[0].mxu0 %v6055
    %v6094 = vpop.f32.mrb[0].mxu0
    %v6095 = vadd.f32 0.0, %v6094
    %v6096 = vpop.f32.mrb[0].mxu0
    %v6097 = vpop.f32.mrb[0].mxu0
    %v6098 = vpop.f32.mrb[0].mxu0
    %6099 = vdwg.mxu0
    %v6101 = vsel %vm5346, %v5707, 0
    %v6104 = vsel %vm5734, %v3803, 0
    %6106 = vmatprep.subr.bf16.mxu0 0
    %6107 = vmatpush1.bf16.msra.mxu0 %v6104
    %6108 = vmatprep.subr.bf16.mxu0 0
    %6109 = vmatpush1.bf16.msra.mxu0 0
    %6110 = vmatprep.subr.bf16.mxu0 0
    %6111 = vmatpush1.bf16.msra.mxu0 0
    %6112 = vmatprep.subr.bf16.mxu0 0
    %6113 = vmatpush1.bf16.msra.mxu0 0
    %6114 = vmatprep.subr.bf16.mxu0 0
    %6115 = vmatpush1.bf16.msra.mxu0 0
    %6116 = vmatprep.subr.bf16.mxu0 0
    %6117 = vmatpush1.bf16.msra.mxu0 0
    %6118 = vmatprep.subr.bf16.mxu0 0
    %6119 = vmatpush1.bf16.msra.mxu0 0
    %6120 = vmatprep.subr.bf16.mxu0 0
    %6121 = vmatpush1.bf16.msra.mxu0 0
    %6122 = vmatprep.subr.bf16.mxu0 0
    %6123 = vmatpush1.bf16.msra.mxu0 0
    %6124 = vmatprep.subr.bf16.mxu0 0
    %6125 = vmatpush1.bf16.msra.mxu0 0
    %6126 = vmatprep.subr.bf16.mxu0 0
    %6127 = vmatpush1.bf16.msra.mxu0 0
    %6128 = vmatprep.subr.bf16.mxu0 0
    %6129 = vmatpush1.bf16.msra.mxu0 0
    %6130 = vmatprep.subr.bf16.mxu0 0
    %6131 = vmatpush1.bf16.msra.mxu0 0
    %6132 = vmatprep.subr.bf16.mxu0 0
    %6133 = vmatpush1.bf16.msra.mxu0 0
    %6134 = vmatprep.subr.bf16.mxu0 0
    %6135 = vmatpush1.bf16.msra.mxu0 0
    %6136 = vmatprep.subr.bf16.mxu0 0
    %6137 = vmatpush1.bf16.msra.mxu0 0
    %6138 = vmatprep.mubr.bf16.mxu0 0
    %6139 = vmatmul.mubr.bf16.gmra.mrb[0].mxu0 %v6101
    %v6140 = vpop.f32.mrb[0].mxu0
    %v6141 = vadd.f32 0.0, %v6140
    %v6142 = vpop.f32.mrb[0].mxu0
    %v6143 = vpop.f32.mrb[0].mxu0
    %v6144 = vpop.f32.mrb[0].mxu0
    %6145 = vdwg.mxu0
    %v6147 = vsel %vm5346, %v5708, 0
    %v6150 = vsel %vm5734, %v3806, 0
    %6152 = vmatprep.subr.bf16.mxu0 0
    %6153 = vmatpush1.bf16.msra.mxu0 %v6150
    %6154 = vmatprep.subr.bf16.mxu0 0
    %6155 = vmatpush1.bf16.msra.mxu0 0
    %6156 = vmatprep.subr.bf16.mxu0 0
    %6157 = vmatpush1.bf16.msra.mxu0 0
    %6158 = vmatprep.subr.bf16.mxu0 0
    %6159 = vmatpush1.bf16.msra.mxu0 0
    %6160 = vmatprep.subr.bf16.mxu0 0
    %6161 = vmatpush1.bf16.msra.mxu0 0
    %6162 = vmatprep.subr.bf16.mxu0 0
    %6163 = vmatpush1.bf16.msra.mxu0 0
    %6164 = vmatprep.subr.bf16.mxu0 0
    %6165 = vmatpush1.bf16.msra.mxu0 0
    %6166 = vmatprep.subr.bf16.mxu0 0
    %6167 = vmatpush1.bf16.msra.mxu0 0
    %6168 = vmatprep.subr.bf16.mxu0 0
    %6169 = vmatpush1.bf16.msra.mxu0 0
    %6170 = vmatprep.subr.bf16.mxu0 0
    %6171 = vmatpush1.bf16.msra.mxu0 0
    %6172 = vmatprep.subr.bf16.mxu0 0
    %6173 = vmatpush1.bf16.msra.mxu0 0
    %6174 = vmatprep.subr.bf16.mxu0 0
    %6175 = vmatpush1.bf16.msra.mxu0 0
    %6176 = vmatprep.subr.bf16.mxu0 0
    %6177 = vmatpush1.bf16.msra.mxu0 0
    %6178 = vmatprep.subr.bf16.mxu0 0
    %6179 = vmatpush1.bf16.msra.mxu0 0
    %6180 = vmatprep.subr.bf16.mxu0 0
    %6181 = vmatpush1.bf16.msra.mxu0 0
    %6182 = vmatprep.subr.bf16.mxu0 0
    %6183 = vmatpush1.bf16.msra.mxu0 0
    %6184 = vmatprep.mubr.bf16.mxu0 0
    %6185 = vmatmul.mubr.bf16.gmra.mrb[0].mxu0 %v6147
    %v6186 = vpop.f32.mrb[0].mxu0
    %v6187 = vadd.f32 0.0, %v6186
    %v6188 = vpop.f32.mrb[0].mxu0
    %v6189 = vpop.f32.mrb[0].mxu0
    %v6190 = vpop.f32.mrb[0].mxu0
    %6191 = vdwg.mxu0
    %v6193 = vsel %vm5346, %v5709, 0
    %v6196 = vsel %vm5734, %v3809, 0
    %6198 = vmatprep.subr.bf16.mxu0 0
    %6199 = vmatpush1.bf16.msra.mxu0 %v6196
    %6200 = vmatprep.subr.bf16.mxu0 0
    %6201 = vmatpush1.bf16.msra.mxu0 0
    %6202 = vmatprep.subr.bf16.mxu0 0
    %6203 = vmatpush1.bf16.msra.mxu0 0
    %6204 = vmatprep.subr.bf16.mxu0 0
    %6205 = vmatpush1.bf16.msra.mxu0 0
    %6206 = vmatprep.subr.bf16.mxu0 0
    %6207 = vmatpush1.bf16.msra.mxu0 0
    %6208 = vmatprep.subr.bf16.mxu0 0
    %6209 = vmatpush1.bf16.msra.mxu0 0
    %6210 = vmatprep.subr.bf16.mxu0 0
    %6211 = vmatpush1.bf16.msra.mxu0 0
    %6212 = vmatprep.subr.bf16.mxu0 0
    %6213 = vmatpush1.bf16.msra.mxu0 0
    %6214 = vmatprep.subr.bf16.mxu0 0
    %6215 = vmatpush1.bf16.msra.mxu0 0
    %6216 = vmatprep.subr.bf16.mxu0 0
    %6217 = vmatpush1.bf16.msra.mxu0 0
    %6218 = vmatprep.subr.bf16.mxu0 0
    %6219 = vmatpush1.bf16.msra.mxu0 0
    %6220 = vmatprep.subr.bf16.mxu0 0
    %6221 = vmatpush1.bf16.msra.mxu0 0
    %6222 = vmatprep.subr.bf16.mxu0 0
    %6223 = vmatpush1.bf16.msra.mxu0 0
    %6224 = vmatprep.subr.bf16.mxu0 0
    %6225 = vmatpush1.bf16.msra.mxu0 0
    %6226 = vmatprep.subr.bf16.mxu0 0
    %6227 = vmatpush1.bf16.msra.mxu0 0
    %6228 = vmatprep.subr.bf16.mxu0 0
    %6229 = vmatpush1.bf16.msra.mxu0 0
    %6230 = vmatprep.mubr.bf16.mxu0 0
    %6231 = vmatmul.mubr.bf16.gmra.mrb[0].mxu0 %v6193
    %v6232 = vpop.f32.mrb[0].mxu0
    %v6233 = vadd.f32 0.0, %v6232
    %v6234 = vpop.f32.mrb[0].mxu0
    %v6235 = vpop.f32.mrb[0].mxu0
    %v6236 = vpop.f32.mrb[0].mxu0
    %6237 = vdwg.mxu0
    %v6239 = vsel %vm5346, %v5710, 0
    %v6242 = vsel %vm5734, %v3812, 0
    %6244 = vmatprep.subr.bf16.mxu0 0
    %6245 = vmatpush1.bf16.msra.mxu0 %v6242
    %6246 = vmatprep.subr.bf16.mxu0 0
    %6247 = vmatpush1.bf16.msra.mxu0 0
    %6248 = vmatprep.subr.bf16.mxu0 0
    %6249 = vmatpush1.bf16.msra.mxu0 0
    %6250 = vmatprep.subr.bf16.mxu0 0
    %6251 = vmatpush1.bf16.msra.mxu0 0
    %6252 = vmatprep.subr.bf16.mxu0 0
    %6253 = vmatpush1.bf16.msra.mxu0 0
    %6254 = vmatprep.subr.bf16.mxu0 0
    %6255 = vmatpush1.bf16.msra.mxu0 0
    %6256 = vmatprep.subr.bf16.mxu0 0
    %6257 = vmatpush1.bf16.msra.mxu0 0
    %6258 = vmatprep.subr.bf16.mxu0 0
    %6259 = vmatpush1.bf16.msra.mxu0 0
    %6260 = vmatprep.subr.bf16.mxu0 0
    %6261 = vmatpush1.bf16.msra.mxu0 0
    %6262 = vmatprep.subr.bf16.mxu0 0
    %6263 = vmatpush1.bf16.msra.mxu0 0
    %6264 = vmatprep.subr.bf16.mxu0 0
    %6265 = vmatpush1.bf16.msra.mxu0 0
    %6266 = vmatprep.subr.bf16.mxu0 0
    %6267 = vmatpush1.bf16.msra.mxu0 0
    %6268 = vmatprep.subr.bf16.mxu0 0
    %6269 = vmatpush1.bf16.msra.mxu0 0
    %6270 = vmatprep.subr.bf16.mxu0 0
    %6271 = vmatpush1.bf16.msra.mxu0 0
    %6272 = vmatprep.subr.bf16.mxu0 0
    %6273 = vmatpush1.bf16.msra.mxu0 0
    %6274 = vmatprep.subr.bf16.mxu0 0
    %6275 = vmatpush1.bf16.msra.mxu0 0
    %6276 = vmatprep.mubr.bf16.mxu0 0
    %6277 = vmatmul.mubr.bf16.gmra.mrb[0].mxu0 %v6239
    %v6278 = vpop.f32.mrb[0].mxu0
    %v6279 = vadd.f32 0.0, %v6278
    %v6280 = vpop.f32.mrb[0].mxu0
    %v6281 = vpop.f32.mrb[0].mxu0
    %v6282 = vpop.f32.mrb[0].mxu0
    %6283 = vdwg.mxu0
    %v6285 = vsel %vm5346, %v5711, 0
    %v6288 = vsel %vm5734, %v3815, 0
    %6290 = vmatprep.subr.bf16.mxu0 0
    %6291 = vmatpush1.bf16.msra.mxu0 %v6288
    %6292 = vmatprep.subr.bf16.mxu0 0
    %6293 = vmatpush1.bf16.msra.mxu0 0
    %6294 = vmatprep.subr.bf16.mxu0 0
    %6295 = vmatpush1.bf16.msra.mxu0 0
    %6296 = vmatprep.subr.bf16.mxu0 0
    %6297 = vmatpush1.bf16.msra.mxu0 0
    %6298 = vmatprep.subr.bf16.mxu0 0
    %6299 = vmatpush1.bf16.msra.mxu0 0
    %6300 = vmatprep.subr.bf16.mxu0 0
    %6301 = vmatpush1.bf16.msra.mxu0 0
    %6302 = vmatprep.subr.bf16.mxu0 0
    %6303 = vmatpush1.bf16.msra.mxu0 0
    %6304 = vmatprep.subr.bf16.mxu0 0
    %6305 = vmatpush1.bf16.msra.mxu0 0
    %6306 = vmatprep.subr.bf16.mxu0 0
    %6307 = vmatpush1.bf16.msra.mxu0 0
    %6308 = vmatprep.subr.bf16.mxu0 0
    %6309 = vmatpush1.bf16.msra.mxu0 0
    %6310 = vmatprep.subr.bf16.mxu0 0
    %6311 = vmatpush1.bf16.msra.mxu0 0
    %6312 = vmatprep.subr.bf16.mxu0 0
    %6313 = vmatpush1.bf16.msra.mxu0 0
    %6314 = vmatprep.subr.bf16.mxu0 0
    %6315 = vmatpush1.bf16.msra.mxu0 0
    %6316 = vmatprep.subr.bf16.mxu0 0
    %6317 = vmatpush1.bf16.msra.mxu0 0
    %6318 = vmatprep.subr.bf16.mxu0 0
    %6319 = vmatpush1.bf16.msra.mxu0 0
    %6320 = vmatprep.subr.bf16.mxu0 0
    %6321 = vmatpush1.bf16.msra.mxu0 0
    %6322 = vmatprep.mubr.bf16.mxu0 0
    %6323 = vmatmul.mubr.bf16.gmra.mrb[0].mxu0 %v6285
    %v6324 = vpop.f32.mrb[0].mxu0
    %v6325 = vadd.f32 0.0, %v6324
    %v6326 = vpop.f32.mrb[0].mxu0
    %v6327 = vpop.f32.mrb[0].mxu0
    %v6328 = vpop.f32.mrb[0].mxu0
    %6329 = vdwg.mxu0
    %v6331 = vsel %vm5346, %v5712, 0
    %v6334 = vsel %vm5734, %v3818, 0
    %6336 = vmatprep.subr.bf16.mxu0 0
    %6337 = vmatpush1.bf16.msra.mxu0 %v6334
    %6338 = vmatprep.subr.bf16.mxu0 0
    %6339 = vmatpush1.bf16.msra.mxu0 0
    %6340 = vmatprep.subr.bf16.mxu0 0
    %6341 = vmatpush1.bf16.msra.mxu0 0
    %6342 = vmatprep.subr.bf16.mxu0 0
    %6343 = vmatpush1.bf16.msra.mxu0 0
    %6344 = vmatprep.subr.bf16.mxu0 0
    %6345 = vmatpush1.bf16.msra.mxu0 0
    %6346 = vmatprep.subr.bf16.mxu0 0
    %6347 = vmatpush1.bf16.msra.mxu0 0
    %6348 = vmatprep.subr.bf16.mxu0 0
    %6349 = vmatpush1.bf16.msra.mxu0 0
    %6350 = vmatprep.subr.bf16.mxu0 0
    %6351 = vmatpush1.bf16.msra.mxu0 0
    %6352 = vmatprep.subr.bf16.mxu0 0
    %6353 = vmatpush1.bf16.msra.mxu0 0
    %6354 = vmatprep.subr.bf16.mxu0 0
    %6355 = vmatpush1.bf16.msra.mxu0 0
    %6356 = vmatprep.subr.bf16.mxu0 0
    %6357 = vmatpush1.bf16.msra.mxu0 0
    %6358 = vmatprep.subr.bf16.mxu0 0
    %6359 = vmatpush1.bf16.msra.mxu0 0
    %6360 = vmatprep.subr.bf16.mxu0 0
    %6361 = vmatpush1.bf16.msra.mxu0 0
    %6362 = vmatprep.subr.bf16.mxu0 0
    %6363 = vmatpush1.bf16.msra.mxu0 0
    %6364 = vmatprep.subr.bf16.mxu0 0
    %6365 = vmatpush1.bf16.msra.mxu0 0
    %6366 = vmatprep.subr.bf16.mxu0 0
    %6367 = vmatpush1.bf16.msra.mxu0 0
    %6368 = vmatprep.mubr.bf16.mxu0 0
    %6369 = vmatmul.mubr.bf16.gmra.mrb[0].mxu0 %v6331
    %v6370 = vpop.f32.mrb[0].mxu0
    %v6371 = vadd.f32 0.0, %v6370
    %v6372 = vpop.f32.mrb[0].mxu0
    %v6373 = vpop.f32.mrb[0].mxu0
    %v6374 = vpop.f32.mrb[0].mxu0
    %6375 = vdwg.mxu0
    %v6377 = vsel %vm5346, %v5713, 0
    %v6380 = vsel %vm5734, %v3821, 0
    %6382 = vmatprep.subr.bf16.mxu0 0
    %6383 = vmatpush1.bf16.msra.mxu0 %v6380
    %6384 = vmatprep.subr.bf16.mxu0 0
    %6385 = vmatpush1.bf16.msra.mxu0 0
    %6386 = vmatprep.subr.bf16.mxu0 0
    %6387 = vmatpush1.bf16.msra.mxu0 0
    %6388 = vmatprep.subr.bf16.mxu0 0
    %6389 = vmatpush1.bf16.msra.mxu0 0
    %6390 = vmatprep.subr.bf16.mxu0 0
    %6391 = vmatpush1.bf16.msra.mxu0 0
    %6392 = vmatprep.subr.bf16.mxu0 0
    %6393 = vmatpush1.bf16.msra.mxu0 0
    %6394 = vmatprep.subr.bf16.mxu0 0
    %6395 = vmatpush1.bf16.msra.mxu0 0
    %6396 = vmatprep.subr.bf16.mxu0 0
    %6397 = vmatpush1.bf16.msra.mxu0 0
    %6398 = vmatprep.subr.bf16.mxu0 0
    %6399 = vmatpush1.bf16.msra.mxu0 0
    %6400 = vmatprep.subr.bf16.mxu0 0
    %6401 = vmatpush1.bf16.msra.mxu0 0
    %6402 = vmatprep.subr.bf16.mxu0 0
    %6403 = vmatpush1.bf16.msra.mxu0 0
    %6404 = vmatprep.subr.bf16.mxu0 0
    %6405 = vmatpush1.bf16.msra.mxu0 0
    %6406 = vmatprep.subr.bf16.mxu0 0
    %6407 = vmatpush1.bf16.msra.mxu0 0
    %6408 = vmatprep.subr.bf16.mxu0 0
    %6409 = vmatpush1.bf16.msra.mxu0 0
    %6410 = vmatprep.subr.bf16.mxu0 0
    %6411 = vmatpush1.bf16.msra.mxu0 0
    %6412 = vmatprep.subr.bf16.mxu0 0
    %6413 = vmatpush1.bf16.msra.mxu0 0
    %6414 = vmatprep.mubr.bf16.mxu0 0
    %6415 = vmatmul.mubr.bf16.gmra.mrb[0].mxu0 %v6377
    %v6416 = vpop.f32.mrb[0].mxu0
    %v6417 = vadd.f32 0.0, %v6416
    %v6418 = vpop.f32.mrb[0].mxu0
    %v6419 = vpop.f32.mrb[0].mxu0
    %v6420 = vpop.f32.mrb[0].mxu0
    %6421 = vdwg.mxu0
    %v6423 = vsel %vm5346, %v5714, 0
    %v6426 = vsel %vm5734, %v3824, 0
    %6428 = vmatprep.subr.bf16.mxu0 0
    %6429 = vmatpush1.bf16.msra.mxu0 %v6426
    %6430 = vmatprep.subr.bf16.mxu0 0
    %6431 = vmatpush1.bf16.msra.mxu0 0
    %6432 = vmatprep.subr.bf16.mxu0 0
    %6433 = vmatpush1.bf16.msra.mxu0 0
    %6434 = vmatprep.subr.bf16.mxu0 0
    %6435 = vmatpush1.bf16.msra.mxu0 0
    %6436 = vmatprep.subr.bf16.mxu0 0
    %6437 = vmatpush1.bf16.msra.mxu0 0
    %6438 = vmatprep.subr.bf16.mxu0 0
    %6439 = vmatpush1.bf16.msra.mxu0 0
    %6440 = vmatprep.subr.bf16.mxu0 0
    %6441 = vmatpush1.bf16.msra.mxu0 0
    %6442 = vmatprep.subr.bf16.mxu0 0
    %6443 = vmatpush1.bf16.msra.mxu0 0
    %6444 = vmatprep.subr.bf16.mxu0 0
    %6445 = vmatpush1.bf16.msra.mxu0 0
    %6446 = vmatprep.subr.bf16.mxu0 0
    %6447 = vmatpush1.bf16.msra.mxu0 0
    %6448 = vmatprep.subr.bf16.mxu0 0
    %6449 = vmatpush1.bf16.msra.mxu0 0
    %6450 = vmatprep.subr.bf16.mxu0 0
    %6451 = vmatpush1.bf16.msra.mxu0 0
    %6452 = vmatprep.subr.bf16.mxu0 0
    %6453 = vmatpush1.bf16.msra.mxu0 0
    %6454 = vmatprep.subr.bf16.mxu0 0
    %6455 = vmatpush1.bf16.msra.mxu0 0
    %6456 = vmatprep.subr.bf16.mxu0 0
    %6457 = vmatpush1.bf16.msra.mxu0 0
    %6458 = vmatprep.subr.bf16.mxu0 0
    %6459 = vmatpush1.bf16.msra.mxu0 0
    %6460 = vmatprep.mubr.bf16.mxu0 0
    %6461 = vmatmul.mubr.bf16.gmra.mrb[0].mxu0 %v6423
    %v6462 = vpop.f32.mrb[0].mxu0
    %v6463 = vadd.f32 0.0, %v6462
    %v6464 = vpop.f32.mrb[0].mxu0
    %v6465 = vpop.f32.mrb[0].mxu0
    %v6466 = vpop.f32.mrb[0].mxu0
    %6467 = vdwg.mxu0
    %v6469 = vsel %vm5346, %v5715, 0
    %v6472 = vsel %vm5734, %v3827, 0
    %6474 = vmatprep.subr.bf16.mxu0 0
    %6475 = vmatpush1.bf16.msra.mxu0 %v6472
    %6476 = vmatprep.subr.bf16.mxu0 0
    %6477 = vmatpush1.bf16.msra.mxu0 0
    %6478 = vmatprep.subr.bf16.mxu0 0
    %6479 = vmatpush1.bf16.msra.mxu0 0
    %6480 = vmatprep.subr.bf16.mxu0 0
    %6481 = vmatpush1.bf16.msra.mxu0 0
    %6482 = vmatprep.subr.bf16.mxu0 0
    %6483 = vmatpush1.bf16.msra.mxu0 0
    %6484 = vmatprep.subr.bf16.mxu0 0
    %6485 = vmatpush1.bf16.msra.mxu0 0
    %6486 = vmatprep.subr.bf16.mxu0 0
    %6487 = vmatpush1.bf16.msra.mxu0 0
    %6488 = vmatprep.subr.bf16.mxu0 0
    %6489 = vmatpush1.bf16.msra.mxu0 0
    %6490 = vmatprep.subr.bf16.mxu0 0
    %6491 = vmatpush1.bf16.msra.mxu0 0
    %6492 = vmatprep.subr.bf16.mxu0 0
    %6493 = vmatpush1.bf16.msra.mxu0 0
    %6494 = vmatprep.subr.bf16.mxu0 0
    %6495 = vmatpush1.bf16.msra.mxu0 0
    %6496 = vmatprep.subr.bf16.mxu0 0
    %6497 = vmatpush1.bf16.msra.mxu0 0
    %6498 = vmatprep.subr.bf16.mxu0 0
    %6499 = vmatpush1.bf16.msra.mxu0 0
    %6500 = vmatprep.subr.bf16.mxu0 0
    %6501 = vmatpush1.bf16.msra.mxu0 0
    %6502 = vmatprep.subr.bf16.mxu0 0
    %6503 = vmatpush1.bf16.msra.mxu0 0
    %6504 = vmatprep.subr.bf16.mxu0 0
    %6505 = vmatpush1.bf16.msra.mxu0 0
    %6506 = vmatprep.mubr.bf16.mxu0 0
    %6507 = vmatmul.mubr.bf16.gmra.mrb[0].mxu0 %v6469
    %v6508 = vpop.f32.mrb[0].mxu0
    %v6509 = vadd.f32 0.0, %v6508
    %v6510 = vpop.f32.mrb[0].mxu0
    %v6511 = vpop.f32.mrb[0].mxu0
    %v6512 = vpop.f32.mrb[0].mxu0
    %6513 = vdwg.mxu0
    %v6515 = vsel %vm5346, %v5716, 0
    %v6518 = vsel %vm5734, %v3830, 0
    %6520 = vmatprep.subr.bf16.mxu0 0
    %6521 = vmatpush1.bf16.msra.mxu0 %v6518
    %6522 = vmatprep.subr.bf16.mxu0 0
    %6523 = vmatpush1.bf16.msra.mxu0 0
    %6524 = vmatprep.subr.bf16.mxu0 0
    %6525 = vmatpush1.bf16.msra.mxu0 0
    %6526 = vmatprep.subr.bf16.mxu0 0
    %6527 = vmatpush1.bf16.msra.mxu0 0
    %6528 = vmatprep.subr.bf16.mxu0 0
    %6529 = vmatpush1.bf16.msra.mxu0 0
    %6530 = vmatprep.subr.bf16.mxu0 0
    %6531 = vmatpush1.bf16.msra.mxu0 0
    %6532 = vmatprep.subr.bf16.mxu0 0
    %6533 = vmatpush1.bf16.msra.mxu0 0
    %6534 = vmatprep.subr.bf16.mxu0 0
    %6535 = vmatpush1.bf16.msra.mxu0 0
    %6536 = vmatprep.subr.bf16.mxu0 0
    %6537 = vmatpush1.bf16.msra.mxu0 0
    %6538 = vmatprep.subr.bf16.mxu0 0
    %6539 = vmatpush1.bf16.msra.mxu0 0
    %6540 = vmatprep.subr.bf16.mxu0 0
    %6541 = vmatpush1.bf16.msra.mxu0 0
    %6542 = vmatprep.subr.bf16.mxu0 0
    %6543 = vmatpush1.bf16.msra.mxu0 0
    %6544 = vmatprep.subr.bf16.mxu0 0
    %6545 = vmatpush1.bf16.msra.mxu0 0
    %6546 = vmatprep.subr.bf16.mxu0 0
    %6547 = vmatpush1.bf16.msra.mxu0 0
    %6548 = vmatprep.subr.bf16.mxu0 0
    %6549 = vmatpush1.bf16.msra.mxu0 0
    %6550 = vmatprep.subr.bf16.mxu0 0
    %6551 = vmatpush1.bf16.msra.mxu0 0
    %6552 = vmatprep.mubr.bf16.mxu0 0
    %6553 = vmatmul.mubr.bf16.gmra.mrb[0].mxu0 %v6515
    %v6554 = vpop.f32.mrb[0].mxu0
    %v6555 = vadd.f32 0.0, %v6554
    %v6556 = vpop.f32.mrb[0].mxu0
    %v6557 = vpop.f32.mrb[0].mxu0
    %v6558 = vpop.f32.mrb[0].mxu0
    %6559 = vdwg.mxu0
    %v6561 = vsel %vm5346, %v5717, 0
    %v6564 = vsel %vm5734, %v3833, 0
    %6566 = vmatprep.subr.bf16.mxu0 0
    %6567 = vmatpush1.bf16.msra.mxu0 %v6564
    %6568 = vmatprep.subr.bf16.mxu0 0
    %6569 = vmatpush1.bf16.msra.mxu0 0
    %6570 = vmatprep.subr.bf16.mxu0 0
    %6571 = vmatpush1.bf16.msra.mxu0 0
    %6572 = vmatprep.subr.bf16.mxu0 0
    %6573 = vmatpush1.bf16.msra.mxu0 0
    %6574 = vmatprep.subr.bf16.mxu0 0
    %6575 = vmatpush1.bf16.msra.mxu0 0
    %6576 = vmatprep.subr.bf16.mxu0 0
    %6577 = vmatpush1.bf16.msra.mxu0 0
    %6578 = vmatprep.subr.bf16.mxu0 0
    %6579 = vmatpush1.bf16.msra.mxu0 0
    %6580 = vmatprep.subr.bf16.mxu0 0
    %6581 = vmatpush1.bf16.msra.mxu0 0
    %6582 = vmatprep.subr.bf16.mxu0 0
    %6583 = vmatpush1.bf16.msra.mxu0 0
    %6584 = vmatprep.subr.bf16.mxu0 0
    %6585 = vmatpush1.bf16.msra.mxu0 0
    %6586 = vmatprep.subr.bf16.mxu0 0
    %6587 = vmatpush1.bf16.msra.mxu0 0
    %6588 = vmatprep.subr.bf16.mxu0 0
    %6589 = vmatpush1.bf16.msra.mxu0 0
    %6590 = vmatprep.subr.bf16.mxu0 0
    %6591 = vmatpush1.bf16.msra.mxu0 0
    %6592 = vmatprep.subr.bf16.mxu0 0
    %6593 = vmatpush1.bf16.msra.mxu0 0
    %6594 = vmatprep.subr.bf16.mxu0 0
    %6595 = vmatpush1.bf16.msra.mxu0 0
    %6596 = vmatprep.subr.bf16.mxu0 0
    %6597 = vmatpush1.bf16.msra.mxu0 0
    %6598 = vmatprep.mubr.bf16.mxu0 0
    %6599 = vmatmul.mubr.bf16.gmra.mrb[0].mxu0 %v6561
    %v6600 = vpop.f32.mrb[0].mxu0
    %v6601 = vadd.f32 0.0, %v6600
    %v6602 = vpop.f32.mrb[0].mxu0
    %v6603 = vpop.f32.mrb[0].mxu0
    %v6604 = vpop.f32.mrb[0].mxu0
    %6605 = vdwg.mxu0
    %v6607 = vsel %vm5346, %v5718, 0
    %v6610 = vsel %vm5734, %v3836, 0
    %6612 = vmatprep.subr.bf16.mxu0 0
    %6613 = vmatpush1.bf16.msra.mxu0 %v6610
    %6614 = vmatprep.subr.bf16.mxu0 0
    %6615 = vmatpush1.bf16.msra.mxu0 0
    %6616 = vmatprep.subr.bf16.mxu0 0
    %6617 = vmatpush1.bf16.msra.mxu0 0
    %6618 = vmatprep.subr.bf16.mxu0 0
    %6619 = vmatpush1.bf16.msra.mxu0 0
    %6620 = vmatprep.subr.bf16.mxu0 0
    %6621 = vmatpush1.bf16.msra.mxu0 0
    %6622 = vmatprep.subr.bf16.mxu0 0
    %6623 = vmatpush1.bf16.msra.mxu0 0
    %6624 = vmatprep.subr.bf16.mxu0 0
    %6625 = vmatpush1.bf16.msra.mxu0 0
    %6626 = vmatprep.subr.bf16.mxu0 0
    %6627 = vmatpush1.bf16.msra.mxu0 0
    %6628 = vmatprep.subr.bf16.mxu0 0
    %6629 = vmatpush1.bf16.msra.mxu0 0
    %6630 = vmatprep.subr.bf16.mxu0 0
    %6631 = vmatpush1.bf16.msra.mxu0 0
    %6632 = vmatprep.subr.bf16.mxu0 0
    %6633 = vmatpush1.bf16.msra.mxu0 0
    %6634 = vmatprep.subr.bf16.mxu0 0
    %6635 = vmatpush1.bf16.msra.mxu0 0
    %6636 = vmatprep.subr.bf16.mxu0 0
    %6637 = vmatpush1.bf16.msra.mxu0 0
    %6638 = vmatprep.subr.bf16.mxu0 0
    %6639 = vmatpush1.bf16.msra.mxu0 0
    %6640 = vmatprep.subr.bf16.mxu0 0
    %6641 = vmatpush1.bf16.msra.mxu0 0
    %6642 = vmatprep.subr.bf16.mxu0 0
    %6643 = vmatpush1.bf16.msra.mxu0 0
    %6644 = vmatprep.mubr.bf16.mxu0 0
    %6645 = vmatmul.mubr.bf16.gmra.mrb[0].mxu0 %v6607
    %v6646 = vpop.f32.mrb[0].mxu0
    %v6647 = vadd.f32 0.0, %v6646
    %v6648 = vpop.f32.mrb[0].mxu0
    %v6649 = vpop.f32.mrb[0].mxu0
    %v6650 = vpop.f32.mrb[0].mxu0
    %6651 = vdwg.mxu0
    %v6653 = vsel %vm5346, %v5719, 0
    %v6656 = vsel %vm5734, %v3839, 0
    %6658 = vmatprep.subr.bf16.mxu0 0
    %6659 = vmatpush1.bf16.msra.mxu0 %v6656
    %6660 = vmatprep.subr.bf16.mxu0 0
    %6661 = vmatpush1.bf16.msra.mxu0 0
    %6662 = vmatprep.subr.bf16.mxu0 0
    %6663 = vmatpush1.bf16.msra.mxu0 0
    %6664 = vmatprep.subr.bf16.mxu0 0
    %6665 = vmatpush1.bf16.msra.mxu0 0
    %6666 = vmatprep.subr.bf16.mxu0 0
    %6667 = vmatpush1.bf16.msra.mxu0 0
    %6668 = vmatprep.subr.bf16.mxu0 0
    %6669 = vmatpush1.bf16.msra.mxu0 0
    %6670 = vmatprep.subr.bf16.mxu0 0
    %6671 = vmatpush1.bf16.msra.mxu0 0
    %6672 = vmatprep.subr.bf16.mxu0 0
    %6673 = vmatpush1.bf16.msra.mxu0 0
    %6674 = vmatprep.subr.bf16.mxu0 0
    %6675 = vmatpush1.bf16.msra.mxu0 0
    %6676 = vmatprep.subr.bf16.mxu0 0
    %6677 = vmatpush1.bf16.msra.mxu0 0
    %6678 = vmatprep.subr.bf16.mxu0 0
    %6679 = vmatpush1.bf16.msra.mxu0 0
    %6680 = vmatprep.subr.bf16.mxu0 0
    %6681 = vmatpush1.bf16.msra.mxu0 0
    %6682 = vmatprep.subr.bf16.mxu0 0
    %6683 = vmatpush1.bf16.msra.mxu0 0
    %6684 = vmatprep.subr.bf16.mxu0 0
    %6685 = vmatpush1.bf16.msra.mxu0 0
    %6686 = vmatprep.subr.bf16.mxu0 0
    %6687 = vmatpush1.bf16.msra.mxu0 0
    %6688 = vmatprep.subr.bf16.mxu0 0
    %6689 = vmatpush1.bf16.msra.mxu0 0
    %6690 = vmatprep.mubr.bf16.mxu0 0
    %6691 = vmatmul.mubr.bf16.gmra.mrb[0].mxu0 %v6653
    %v6692 = vpop.f32.mrb[0].mxu0
    %v6693 = vadd.f32 0.0, %v6692
    %v6694 = vpop.f32.mrb[0].mxu0
    %v6695 = vpop.f32.mrb[0].mxu0
    %v6696 = vpop.f32.mrb[0].mxu0
    %6697 = vdwg.mxu0
    %v6699 = vsel %vm5346, %v5720, 0
    %v6702 = vsel %vm5734, %v3842, 0
    %6704 = vmatprep.subr.bf16.mxu0 0
    %6705 = vmatpush1.bf16.msra.mxu0 %v6702
    %6706 = vmatprep.subr.bf16.mxu0 0
    %6707 = vmatpush1.bf16.msra.mxu0 0
    %6708 = vmatprep.subr.bf16.mxu0 0
    %6709 = vmatpush1.bf16.msra.mxu0 0
    %6710 = vmatprep.subr.bf16.mxu0 0
    %6711 = vmatpush1.bf16.msra.mxu0 0
    %6712 = vmatprep.subr.bf16.mxu0 0
    %6713 = vmatpush1.bf16.msra.mxu0 0
    %6714 = vmatprep.subr.bf16.mxu0 0
    %6715 = vmatpush1.bf16.msra.mxu0 0
    %6716 = vmatprep.subr.bf16.mxu0 0
    %6717 = vmatpush1.bf16.msra.mxu0 0
    %6718 = vmatprep.subr.bf16.mxu0 0
    %6719 = vmatpush1.bf16.msra.mxu0 0
    %6720 = vmatprep.subr.bf16.mxu0 0
    %6721 = vmatpush1.bf16.msra.mxu0 0
    %6722 = vmatprep.subr.bf16.mxu0 0
    %6723 = vmatpush1.bf16.msra.mxu0 0
    %6724 = vmatprep.subr.bf16.mxu0 0
    %6725 = vmatpush1.bf16.msra.mxu0 0
    %6726 = vmatprep.subr.bf16.mxu0 0
    %6727 = vmatpush1.bf16.msra.mxu0 0
    %6728 = vmatprep.subr.bf16.mxu0 0
    %6729 = vmatpush1.bf16.msra.mxu0 0
    %6730 = vmatprep.subr.bf16.mxu0 0
    %6731 = vmatpush1.bf16.msra.mxu0 0
    %6732 = vmatprep.subr.bf16.mxu0 0
    %6733 = vmatpush1.bf16.msra.mxu0 0
    %6734 = vmatprep.subr.bf16.mxu0 0
    %6735 = vmatpush1.bf16.msra.mxu0 0
    %6736 = vmatprep.mubr.bf16.mxu0 0
    %6737 = vmatmul.mubr.bf16.gmra.mrb[0].mxu0 %v6699
    %v6738 = vpop.f32.mrb[0].mxu0
    %v6739 = vadd.f32 0.0, %v6738
    %v6740 = vpop.f32.mrb[0].mxu0
    %v6741 = vpop.f32.mrb[0].mxu0
    %v6742 = vpop.f32.mrb[0].mxu0
    %6743 = vdwg.mxu0
    %v6745 = vsel %vm5346, %v5721, 0
    %v6748 = vsel %vm5734, %v3845, 0
    %6750 = vmatprep.subr.bf16.mxu0 0
    %6751 = vmatpush1.bf16.msra.mxu0 %v6748
    %6752 = vmatprep.subr.bf16.mxu0 0
    %6753 = vmatpush1.bf16.msra.mxu0 0
    %6754 = vmatprep.subr.bf16.mxu0 0
    %6755 = vmatpush1.bf16.msra.mxu0 0
    %6756 = vmatprep.subr.bf16.mxu0 0
    %6757 = vmatpush1.bf16.msra.mxu0 0
    %6758 = vmatprep.subr.bf16.mxu0 0
    %6759 = vmatpush1.bf16.msra.mxu0 0
    %6760 = vmatprep.subr.bf16.mxu0 0
    %6761 = vmatpush1.bf16.msra.mxu0 0
    %6762 = vmatprep.subr.bf16.mxu0 0
    %6763 = vmatpush1.bf16.msra.mxu0 0
    %6764 = vmatprep.subr.bf16.mxu0 0
    %6765 = vmatpush1.bf16.msra.mxu0 0
    %6766 = vmatprep.subr.bf16.mxu0 0
    %6767 = vmatpush1.bf16.msra.mxu0 0
    %6768 = vmatprep.subr.bf16.mxu0 0
    %6769 = vmatpush1.bf16.msra.mxu0 0
    %6770 = vmatprep.subr.bf16.mxu0 0
    %6771 = vmatpush1.bf16.msra.mxu0 0
    %6772 = vmatprep.subr.bf16.mxu0 0
    %6773 = vmatpush1.bf16.msra.mxu0 0
    %6774 = vmatprep.subr.bf16.mxu0 0
    %6775 = vmatpush1.bf16.msra.mxu0 0
    %6776 = vmatprep.subr.bf16.mxu0 0
    %6777 = vmatpush1.bf16.msra.mxu0 0
    %6778 = vmatprep.subr.bf16.mxu0 0
    %6779 = vmatpush1.bf16.msra.mxu0 0
    %6780 = vmatprep.subr.bf16.mxu0 0
    %6781 = vmatpush1.bf16.msra.mxu0 0
    %6782 = vmatprep.mubr.bf16.mxu0 0
    %6783 = vmatmul.mubr.bf16.gmra.mrb[0].mxu0 %v6745
    %v6784 = vpop.f32.mrb[0].mxu0
    %v6785 = vadd.f32 0.0, %v6784
    %v6786 = vpop.f32.mrb[0].mxu0
    %v6787 = vpop.f32.mrb[0].mxu0
    %v6788 = vpop.f32.mrb[0].mxu0
    %6789 = vdwg.mxu0
    %v6791 = vsel %vm5346, %v5722, 0
    %v6794 = vsel %vm5734, %v3848, 0
    %6796 = vmatprep.subr.bf16.mxu0 0
    %6797 = vmatpush1.bf16.msra.mxu0 %v6794
    %6798 = vmatprep.subr.bf16.mxu0 0
    %6799 = vmatpush1.bf16.msra.mxu0 0
    %6800 = vmatprep.subr.bf16.mxu0 0
    %6801 = vmatpush1.bf16.msra.mxu0 0
    %6802 = vmatprep.subr.bf16.mxu0 0
    %6803 = vmatpush1.bf16.msra.mxu0 0
    %6804 = vmatprep.subr.bf16.mxu0 0
    %6805 = vmatpush1.bf16.msra.mxu0 0
    %6806 = vmatprep.subr.bf16.mxu0 0
    %6807 = vmatpush1.bf16.msra.mxu0 0
    %6808 = vmatprep.subr.bf16.mxu0 0
    %6809 = vmatpush1.bf16.msra.mxu0 0
    %6810 = vmatprep.subr.bf16.mxu0 0
    %6811 = vmatpush1.bf16.msra.mxu0 0
    %6812 = vmatprep.subr.bf16.mxu0 0
    %6813 = vmatpush1.bf16.msra.mxu0 0
    %6814 = vmatprep.subr.bf16.mxu0 0
    %6815 = vmatpush1.bf16.msra.mxu0 0
    %6816 = vmatprep.subr.bf16.mxu0 0
    %6817 = vmatpush1.bf16.msra.mxu0 0
    %6818 = vmatprep.subr.bf16.mxu0 0
    %6819 = vmatpush1.bf16.msra.mxu0 0
    %6820 = vmatprep.subr.bf16.mxu0 0
    %6821 = vmatpush1.bf16.msra.mxu0 0
    %6822 = vmatprep.subr.bf16.mxu0 0
    %6823 = vmatpush1.bf16.msra.mxu0 0
    %6824 = vmatprep.subr.bf16.mxu0 0
    %6825 = vmatpush1.bf16.msra.mxu0 0
    %6826 = vmatprep.subr.bf16.mxu0 0
    %6827 = vmatpush1.bf16.msra.mxu0 0
    %6828 = vmatprep.mubr.bf16.mxu0 0
    %6829 = vmatmul.mubr.bf16.gmra.mrb[0].mxu0 %v6791
    %v6830 = vpop.f32.mrb[0].mxu0
    %v6831 = vadd.f32 0.0, %v6830
    %v6832 = vpop.f32.mrb[0].mxu0
    %v6833 = vpop.f32.mrb[0].mxu0
    %v6834 = vpop.f32.mrb[0].mxu0
    %6835 = vdwg.mxu0
    %v6837 = vsel %vm5346, %v5723, 0
    %v6840 = vsel %vm5734, %v3851, 0
    %6842 = vmatprep.subr.bf16.mxu0 0
    %6843 = vmatpush1.bf16.msra.mxu0 %v6840
    %6844 = vmatprep.subr.bf16.mxu0 0
    %6845 = vmatpush1.bf16.msra.mxu0 0
    %6846 = vmatprep.subr.bf16.mxu0 0
    %6847 = vmatpush1.bf16.msra.mxu0 0
    %6848 = vmatprep.subr.bf16.mxu0 0
    %6849 = vmatpush1.bf16.msra.mxu0 0
    %6850 = vmatprep.subr.bf16.mxu0 0
    %6851 = vmatpush1.bf16.msra.mxu0 0
    %6852 = vmatprep.subr.bf16.mxu0 0
    %6853 = vmatpush1.bf16.msra.mxu0 0
    %6854 = vmatprep.subr.bf16.mxu0 0
    %6855 = vmatpush1.bf16.msra.mxu0 0
    %6856 = vmatprep.subr.bf16.mxu0 0
    %6857 = vmatpush1.bf16.msra.mxu0 0
    %6858 = vmatprep.subr.bf16.mxu0 0
    %6859 = vmatpush1.bf16.msra.mxu0 0
    %6860 = vmatprep.subr.bf16.mxu0 0
    %6861 = vmatpush1.bf16.msra.mxu0 0
    %6862 = vmatprep.subr.bf16.mxu0 0
    %6863 = vmatpush1.bf16.msra.mxu0 0
    %6864 = vmatprep.subr.bf16.mxu0 0
    %6865 = vmatpush1.bf16.msra.mxu0 0
    %6866 = vmatprep.subr.bf16.mxu0 0
    %6867 = vmatpush1.bf16.msra.mxu0 0
    %6868 = vmatprep.subr.bf16.mxu0 0
    %6869 = vmatpush1.bf16.msra.mxu0 0
    %6870 = vmatprep.subr.bf16.mxu0 0
    %6871 = vmatpush1.bf16.msra.mxu0 0
    %6872 = vmatprep.subr.bf16.mxu0 0
    %6873 = vmatpush1.bf16.msra.mxu0 0
    %6874 = vmatprep.mubr.bf16.mxu0 0
    %6875 = vmatmul.mubr.bf16.gmra.mrb[0].mxu0 %v6837
    %v6876 = vpop.f32.mrb[0].mxu0
    %v6877 = vadd.f32 0.0, %v6876
    %v6878 = vpop.f32.mrb[0].mxu0
    %v6879 = vpop.f32.mrb[0].mxu0
    %v6880 = vpop.f32.mrb[0].mxu0
    %6881 = vdwg.mxu0
    %v6883 = vsel %vm5346, %v5724, 0
    %v6886 = vsel %vm5734, %v3854, 0
    %6888 = vmatprep.subr.bf16.mxu0 0
    %6889 = vmatpush1.bf16.msra.mxu0 %v6886
    %6890 = vmatprep.subr.bf16.mxu0 0
    %6891 = vmatpush1.bf16.msra.mxu0 0
    %6892 = vmatprep.subr.bf16.mxu0 0
    %6893 = vmatpush1.bf16.msra.mxu0 0
    %6894 = vmatprep.subr.bf16.mxu0 0
    %6895 = vmatpush1.bf16.msra.mxu0 0
    %6896 = vmatprep.subr.bf16.mxu0 0
    %6897 = vmatpush1.bf16.msra.mxu0 0
    %6898 = vmatprep.subr.bf16.mxu0 0
    %6899 = vmatpush1.bf16.msra.mxu0 0
    %6900 = vmatprep.subr.bf16.mxu0 0
    %6901 = vmatpush1.bf16.msra.mxu0 0
    %6902 = vmatprep.subr.bf16.mxu0 0
    %6903 = vmatpush1.bf16.msra.mxu0 0
    %6904 = vmatprep.subr.bf16.mxu0 0
    %6905 = vmatpush1.bf16.msra.mxu0 0
    %6906 = vmatprep.subr.bf16.mxu0 0
    %6907 = vmatpush1.bf16.msra.mxu0 0
    %6908 = vmatprep.subr.bf16.mxu0 0
    %6909 = vmatpush1.bf16.msra.mxu0 0
    %6910 = vmatprep.subr.bf16.mxu0 0
    %6911 = vmatpush1.bf16.msra.mxu0 0
    %6912 = vmatprep.subr.bf16.mxu0 0
    %6913 = vmatpush1.bf16.msra.mxu0 0
    %6914 = vmatprep.subr.bf16.mxu0 0
    %6915 = vmatpush1.bf16.msra.mxu0 0
    %6916 = vmatprep.subr.bf16.mxu0 0
    %6917 = vmatpush1.bf16.msra.mxu0 0
    %6918 = vmatprep.subr.bf16.mxu0 0
    %6919 = vmatpush1.bf16.msra.mxu0 0
    %6920 = vmatprep.mubr.bf16.mxu0 0
    %6921 = vmatmul.mubr.bf16.gmra.mrb[0].mxu0 %v6883
    %v6922 = vpop.f32.mrb[0].mxu0
    %v6923 = vadd.f32 0.0, %v6922
    %v6924 = vpop.f32.mrb[0].mxu0
    %v6925 = vpop.f32.mrb[0].mxu0
    %v6926 = vpop.f32.mrb[0].mxu0
    %6927 = vdwg.mxu0
    %v6929 = vsel %vm5346, %v5725, 0
    %v6932 = vsel %vm5734, %v3857, 0
    %6934 = vmatprep.subr.bf16.mxu0 0
    %6935 = vmatpush1.bf16.msra.mxu0 %v6932
    %6936 = vmatprep.subr.bf16.mxu0 0
    %6937 = vmatpush1.bf16.msra.mxu0 0
    %6938 = vmatprep.subr.bf16.mxu0 0
    %6939 = vmatpush1.bf16.msra.mxu0 0
    %6940 = vmatprep.subr.bf16.mxu0 0
    %6941 = vmatpush1.bf16.msra.mxu0 0
    %6942 = vmatprep.subr.bf16.mxu0 0
    %6943 = vmatpush1.bf16.msra.mxu0 0
    %6944 = vmatprep.subr.bf16.mxu0 0
    %6945 = vmatpush1.bf16.msra.mxu0 0
    %6946 = vmatprep.subr.bf16.mxu0 0
    %6947 = vmatpush1.bf16.msra.mxu0 0
    %6948 = vmatprep.subr.bf16.mxu0 0
    %6949 = vmatpush1.bf16.msra.mxu0 0
    %6950 = vmatprep.subr.bf16.mxu0 0
    %6951 = vmatpush1.bf16.msra.mxu0 0
    %6952 = vmatprep.subr.bf16.mxu0 0
    %6953 = vmatpush1.bf16.msra.mxu0 0
    %6954 = vmatprep.subr.bf16.mxu0 0
    %6955 = vmatpush1.bf16.msra.mxu0 0
    %6956 = vmatprep.subr.bf16.mxu0 0
    %6957 = vmatpush1.bf16.msra.mxu0 0
    %6958 = vmatprep.subr.bf16.mxu0 0
    %6959 = vmatpush1.bf16.msra.mxu0 0
    %6960 = vmatprep.subr.bf16.mxu0 0
    %6961 = vmatpush1.bf16.msra.mxu0 0
    %6962 = vmatprep.subr.bf16.mxu0 0
    %6963 = vmatpush1.bf16.msra.mxu0 0
    %6964 = vmatprep.subr.bf16.mxu0 0
    %6965 = vmatpush1.bf16.msra.mxu0 0
    %6966 = vmatprep.mubr.bf16.mxu0 0
    %6967 = vmatmul.mubr.bf16.gmra.mrb[0].mxu0 %v6929
    %v6968 = vpop.f32.mrb[0].mxu0
    %v6969 = vadd.f32 0.0, %v6968
    %v6970 = vpop.f32.mrb[0].mxu0
    %v6971 = vpop.f32.mrb[0].mxu0
    %v6972 = vpop.f32.mrb[0].mxu0
    %6973 = vdwg.mxu0
    %v6975 = vsel %vm5346, %v5726, 0
    %v6978 = vsel %vm5734, %v3860, 0
    %6980 = vmatprep.subr.bf16.mxu0 0
    %6981 = vmatpush1.bf16.msra.mxu0 %v6978
    %6982 = vmatprep.subr.bf16.mxu0 0
    %6983 = vmatpush1.bf16.msra.mxu0 0
    %6984 = vmatprep.subr.bf16.mxu0 0
    %6985 = vmatpush1.bf16.msra.mxu0 0
    %6986 = vmatprep.subr.bf16.mxu0 0
    %6987 = vmatpush1.bf16.msra.mxu0 0
    %6988 = vmatprep.subr.bf16.mxu0 0
    %6989 = vmatpush1.bf16.msra.mxu0 0
    %6990 = vmatprep.subr.bf16.mxu0 0
    %6991 = vmatpush1.bf16.msra.mxu0 0
    %6992 = vmatprep.subr.bf16.mxu0 0
    %6993 = vmatpush1.bf16.msra.mxu0 0
    %6994 = vmatprep.subr.bf16.mxu0 0
    %6995 = vmatpush1.bf16.msra.mxu0 0
    %6996 = vmatprep.subr.bf16.mxu0 0
    %6997 = vmatpush1.bf16.msra.mxu0 0
    %6998 = vmatprep.subr.bf16.mxu0 0
    %6999 = vmatpush1.bf16.msra.mxu0 0
    %7000 = vmatprep.subr.bf16.mxu0 0
    %7001 = vmatpush1.bf16.msra.mxu0 0
    %7002 = vmatprep.subr.bf16.mxu0 0
    %7003 = vmatpush1.bf16.msra.mxu0 0
    %7004 = vmatprep.subr.bf16.mxu0 0
    %7005 = vmatpush1.bf16.msra.mxu0 0
    %7006 = vmatprep.subr.bf16.mxu0 0
    %7007 = vmatpush1.bf16.msra.mxu0 0
    %7008 = vmatprep.subr.bf16.mxu0 0
    %7009 = vmatpush1.bf16.msra.mxu0 0
    %7010 = vmatprep.subr.bf16.mxu0 0
    %7011 = vmatpush1.bf16.msra.mxu0 0
    %7012 = vmatprep.mubr.bf16.mxu0 0
    %7013 = vmatmul.mubr.bf16.gmra.mrb[0].mxu0 %v6975
    %v7014 = vpop.f32.mrb[0].mxu0
    %v7015 = vadd.f32 0.0, %v7014
    %v7016 = vpop.f32.mrb[0].mxu0
    %v7017 = vpop.f32.mrb[0].mxu0
    %v7018 = vpop.f32.mrb[0].mxu0
    %7019 = vdwg.mxu0
    %v7021 = vsel %vm5346, %v5727, 0
    %v7024 = vsel %vm5734, %v3863, 0
    %7026 = vmatprep.subr.bf16.mxu0 0
    %7027 = vmatpush1.bf16.msra.mxu0 %v7024
    %7028 = vmatprep.subr.bf16.mxu0 0
    %7029 = vmatpush1.bf16.msra.mxu0 0
    %7030 = vmatprep.subr.bf16.mxu0 0
    %7031 = vmatpush1.bf16.msra.mxu0 0
    %7032 = vmatprep.subr.bf16.mxu0 0
    %7033 = vmatpush1.bf16.msra.mxu0 0
    %7034 = vmatprep.subr.bf16.mxu0 0
    %7035 = vmatpush1.bf16.msra.mxu0 0
    %7036 = vmatprep.subr.bf16.mxu0 0
    %7037 = vmatpush1.bf16.msra.mxu0 0
    %7038 = vmatprep.subr.bf16.mxu0 0
    %7039 = vmatpush1.bf16.msra.mxu0 0
    %7040 = vmatprep.subr.bf16.mxu0 0
    %7041 = vmatpush1.bf16.msra.mxu0 0
    %7042 = vmatprep.subr.bf16.mxu0 0
    %7043 = vmatpush1.bf16.msra.mxu0 0
    %7044 = vmatprep.subr.bf16.mxu0 0
    %7045 = vmatpush1.bf16.msra.mxu0 0
    %7046 = vmatprep.subr.bf16.mxu0 0
    %7047 = vmatpush1.bf16.msra.mxu0 0
    %7048 = vmatprep.subr.bf16.mxu0 0
    %7049 = vmatpush1.bf16.msra.mxu0 0
    %7050 = vmatprep.subr.bf16.mxu0 0
    %7051 = vmatpush1.bf16.msra.mxu0 0
    %7052 = vmatprep.subr.bf16.mxu0 0
    %7053 = vmatpush1.bf16.msra.mxu0 0
    %7054 = vmatprep.subr.bf16.mxu0 0
    %7055 = vmatpush1.bf16.msra.mxu0 0
    %7056 = vmatprep.subr.bf16.mxu0 0
    %7057 = vmatpush1.bf16.msra.mxu0 0
    %7058 = vmatprep.mubr.bf16.mxu0 0
    %7059 = vmatmul.mubr.bf16.gmra.mrb[0].mxu0 %v7021
    %v7060 = vpop.f32.mrb[0].mxu0
    %v7061 = vadd.f32 0.0, %v7060
    %v7062 = vpop.f32.mrb[0].mxu0
    %v7063 = vpop.f32.mrb[0].mxu0
    %v7064 = vpop.f32.mrb[0].mxu0
    %7065 = vdwg.mxu0
    %v7067 = vsel %vm5346, %v5728, 0
    %v7070 = vsel %vm5734, %v3866, 0
    %7072 = vmatprep.subr.bf16.mxu0 0
    %7073 = vmatpush1.bf16.msra.mxu0 %v7070
    %7074 = vmatprep.subr.bf16.mxu0 0
    %7075 = vmatpush1.bf16.msra.mxu0 0
    %7076 = vmatprep.subr.bf16.mxu0 0
    %7077 = vmatpush1.bf16.msra.mxu0 0
    %7078 = vmatprep.subr.bf16.mxu0 0
    %7079 = vmatpush1.bf16.msra.mxu0 0
    %7080 = vmatprep.subr.bf16.mxu0 0
    %7081 = vmatpush1.bf16.msra.mxu0 0
    %7082 = vmatprep.subr.bf16.mxu0 0
    %7083 = vmatpush1.bf16.msra.mxu0 0
    %7084 = vmatprep.subr.bf16.mxu0 0
    %7085 = vmatpush1.bf16.msra.mxu0 0
    %7086 = vmatprep.subr.bf16.mxu0 0
    %7087 = vmatpush1.bf16.msra.mxu0 0
    %7088 = vmatprep.subr.bf16.mxu0 0
    %7089 = vmatpush1.bf16.msra.mxu0 0
    %7090 = vmatprep.subr.bf16.mxu0 0
    %7091 = vmatpush1.bf16.msra.mxu0 0
    %7092 = vmatprep.subr.bf16.mxu0 0
    %7093 = vmatpush1.bf16.msra.mxu0 0
    %7094 = vmatprep.subr.bf16.mxu0 0
    %7095 = vmatpush1.bf16.msra.mxu0 0
    %7096 = vmatprep.subr.bf16.mxu0 0
    %7097 = vmatpush1.bf16.msra.mxu0 0
    %7098 = vmatprep.subr.bf16.mxu0 0
    %7099 = vmatpush1.bf16.msra.mxu0 0
    %7100 = vmatprep.subr.bf16.mxu0 0
    %7101 = vmatpush1.bf16.msra.mxu0 0
    %7102 = vmatprep.subr.bf16.mxu0 0
    %7103 = vmatpush1.bf16.msra.mxu0 0
    %7104 = vmatprep.mubr.bf16.mxu0 0
    %7105 = vmatmul.mubr.bf16.gmra.mrb[0].mxu0 %v7067
    %v7106 = vpop.f32.mrb[0].mxu0
    %v7107 = vadd.f32 0.0, %v7106
    %v7108 = vpop.f32.mrb[0].mxu0
    %v7109 = vpop.f32.mrb[0].mxu0
    %v7110 = vpop.f32.mrb[0].mxu0
    %7111 = vdwg.mxu0
    %v7113 = vsel %vm5346, %v5729, 0
    %v7116 = vsel %vm5734, %v3869, 0
    %7118 = vmatprep.subr.bf16.mxu0 0
    %7119 = vmatpush1.bf16.msra.mxu0 %v7116
    %7120 = vmatprep.subr.bf16.mxu0 0
    %7121 = vmatpush1.bf16.msra.mxu0 0
    %7122 = vmatprep.subr.bf16.mxu0 0
    %7123 = vmatpush1.bf16.msra.mxu0 0
    %7124 = vmatprep.subr.bf16.mxu0 0
    %7125 = vmatpush1.bf16.msra.mxu0 0
    %7126 = vmatprep.subr.bf16.mxu0 0
    %7127 = vmatpush1.bf16.msra.mxu0 0
    %7128 = vmatprep.subr.bf16.mxu0 0
    %7129 = vmatpush1.bf16.msra.mxu0 0
    %7130 = vmatprep.subr.bf16.mxu0 0
    %7131 = vmatpush1.bf16.msra.mxu0 0
    %7132 = vmatprep.subr.bf16.mxu0 0
    %7133 = vmatpush1.bf16.msra.mxu0 0
    %7134 = vmatprep.subr.bf16.mxu0 0
    %7135 = vmatpush1.bf16.msra.mxu0 0
    %7136 = vmatprep.subr.bf16.mxu0 0
    %7137 = vmatpush1.bf16.msra.mxu0 0
    %7138 = vmatprep.subr.bf16.mxu0 0
    %7139 = vmatpush1.bf16.msra.mxu0 0
    %7140 = vmatprep.subr.bf16.mxu0 0
    %7141 = vmatpush1.bf16.msra.mxu0 0
    %7142 = vmatprep.subr.bf16.mxu0 0
    %7143 = vmatpush1.bf16.msra.mxu0 0
    %7144 = vmatprep.subr.bf16.mxu0 0
    %7145 = vmatpush1.bf16.msra.mxu0 0
    %7146 = vmatprep.subr.bf16.mxu0 0
    %7147 = vmatpush1.bf16.msra.mxu0 0
    %7148 = vmatprep.subr.bf16.mxu0 0
    %7149 = vmatpush1.bf16.msra.mxu0 0
    %7150 = vmatprep.mubr.bf16.mxu0 0
    %7151 = vmatmul.mubr.bf16.gmra.mrb[0].mxu0 %v7113
    %v7152 = vpop.f32.mrb[0].mxu0
    %v7153 = vadd.f32 0.0, %v7152
    %v7154 = vpop.f32.mrb[0].mxu0
    %v7155 = vpop.f32.mrb[0].mxu0
    %v7156 = vpop.f32.mrb[0].mxu0
    %7157 = vdwg.mxu0
    %v7159 = vsel %vm5346, %v5730, 0
    %v7162 = vsel %vm5734, %v3872, 0
    %7164 = vmatprep.subr.bf16.mxu0 0
    %7165 = vmatpush1.bf16.msra.mxu0 %v7162
    %7166 = vmatprep.subr.bf16.mxu0 0
    %7167 = vmatpush1.bf16.msra.mxu0 0
    %7168 = vmatprep.subr.bf16.mxu0 0
    %7169 = vmatpush1.bf16.msra.mxu0 0
    %7170 = vmatprep.subr.bf16.mxu0 0
    %7171 = vmatpush1.bf16.msra.mxu0 0
    %7172 = vmatprep.subr.bf16.mxu0 0
    %7173 = vmatpush1.bf16.msra.mxu0 0
    %7174 = vmatprep.subr.bf16.mxu0 0
    %7175 = vmatpush1.bf16.msra.mxu0 0
    %7176 = vmatprep.subr.bf16.mxu0 0
    %7177 = vmatpush1.bf16.msra.mxu0 0
    %7178 = vmatprep.subr.bf16.mxu0 0
    %7179 = vmatpush1.bf16.msra.mxu0 0
    %7180 = vmatprep.subr.bf16.mxu0 0
    %7181 = vmatpush1.bf16.msra.mxu0 0
    %7182 = vmatprep.subr.bf16.mxu0 0
    %7183 = vmatpush1.bf16.msra.mxu0 0
    %7184 = vmatprep.subr.bf16.mxu0 0
    %7185 = vmatpush1.bf16.msra.mxu0 0
    %7186 = vmatprep.subr.bf16.mxu0 0
    %7187 = vmatpush1.bf16.msra.mxu0 0
    %7188 = vmatprep.subr.bf16.mxu0 0
    %7189 = vmatpush1.bf16.msra.mxu0 0
    %7190 = vmatprep.subr.bf16.mxu0 0
    %7191 = vmatpush1.bf16.msra.mxu0 0
    %7192 = vmatprep.subr.bf16.mxu0 0
    %7193 = vmatpush1.bf16.msra.mxu0 0
    %7194 = vmatprep.subr.bf16.mxu0 0
    %7195 = vmatpush1.bf16.msra.mxu0 0
    %7196 = vmatprep.mubr.bf16.mxu0 0
    %7197 = vmatmul.mubr.bf16.gmra.mrb[0].mxu0 %v7159
    %v7198 = vpop.f32.mrb[0].mxu0
    %v7199 = vadd.f32 0.0, %v7198
    %v7200 = vpop.f32.mrb[0].mxu0
    %v7201 = vpop.f32.mrb[0].mxu0
    %v7202 = vpop.f32.mrb[0].mxu0
    %7203 = vdwg.mxu0
    %v7204 = vcombine.low %v5773, %v5865
    %v7205 = vcombine.high %v5773, %v5865
    %v7207 = vunpack.c.l.s4 1983009808
    %v7208 = vunpack.c.0.s8 %v7207
    %v7209 = vlaneseq
    %v7210 = vshrl.u32 %v7209, 7
    %v7211 = vsub.s32 %v7208, %v7210
    %v7212 = vrot.slane %v7204, %v7211
    %v7214 = vunpack.c.l.s4 1983009808
    %v7215 = vunpack.c.0.s8 %v7214
    %v7216 = vlaneseq
    %v7217 = vshrl.u32 %v7216, 7
    %v7218 = vsub.s32 %v7215, %v7217
    %v7219 = vrot.slane %v7205, %v7218
    %v7220 = vcombine.low %v5819, %v5911
    %v7221 = vcombine.high %v5819, %v5911
    %v7223 = vunpack.c.l.s4 1983009808
    %v7224 = vunpack.c.0.s8 %v7223
    %v7225 = vlaneseq
    %v7226 = vshrl.u32 %v7225, 7
    %v7227 = vsub.s32 %v7224, %v7226
    %v7228 = vrot.slane %v7220, %v7227
    %v7230 = vunpack.c.l.s4 1983009808
    %v7231 = vunpack.c.0.s8 %v7230
    %v7232 = vlaneseq
    %v7233 = vshrl.u32 %v7232, 7
    %v7234 = vsub.s32 %v7231, %v7233
    %v7235 = vrot.slane %v7221, %v7234
    %v7236 = vcombine.low %v7212, %v7228
    %v7237 = vcombine.high %v7212, %v7228
    %v7239 = vunpack.c.l.s4 1934713408
    %v7240 = vunpack.c.0.s8 %v7239
    %v7241 = vlaneseq
    %v7242 = vshrl.u32 %v7241, 7
    %v7243 = vsub.s32 %v7240, %v7242
    %v7244 = vrot.slane %v7236, %v7243
    %v7246 = vunpack.c.l.s4 1934713408
    %v7247 = vunpack.c.0.s8 %v7246
    %v7248 = vlaneseq
    %v7249 = vshrl.u32 %v7248, 7
    %v7250 = vsub.s32 %v7247, %v7249
    %v7251 = vrot.slane %v7237, %v7250
    %v7252 = vcombine.low %v7219, %v7235
    %v7253 = vcombine.high %v7219, %v7235
    %v7255 = vunpack.c.l.s4 1934713408
    %v7256 = vunpack.c.0.s8 %v7255
    %v7257 = vlaneseq
    %v7258 = vshrl.u32 %v7257, 7
    %v7259 = vsub.s32 %v7256, %v7258
    %v7260 = vrot.slane %v7252, %v7259
    %v7262 = vunpack.c.l.s4 1934713408
    %v7263 = vunpack.c.0.s8 %v7262
    %v7264 = vlaneseq
    %v7265 = vshrl.u32 %v7264, 7
    %v7266 = vsub.s32 %v7263, %v7265
    %v7267 = vrot.slane %v7253, %v7266
    %v7268 = vcombine.high %v7244, 0.0
    %v7269 = vcombine.high %v7251, 0.0
    %v7270 = vcombine.high %v7260, 0.0
    %v7271 = vcombine.high %v7267, 0.0
    %v7272 = vcombine.low %v5957, %v6049
    %v7273 = vcombine.high %v5957, %v6049
    %v7275 = vunpack.c.l.s4 1983009808
    %v7276 = vunpack.c.0.s8 %v7275
    %v7277 = vlaneseq
    %v7278 = vshrl.u32 %v7277, 7
    %v7279 = vsub.s32 %v7276, %v7278
    %v7280 = vrot.slane %v7272, %v7279
    %v7282 = vunpack.c.l.s4 1983009808
    %v7283 = vunpack.c.0.s8 %v7282
    %v7284 = vlaneseq
    %v7285 = vshrl.u32 %v7284, 7
    %v7286 = vsub.s32 %v7283, %v7285
    %v7287 = vrot.slane %v7273, %v7286
    %v7288 = vcombine.low %v6003, %v6095
    %v7289 = vcombine.high %v6003, %v6095
    %v7291 = vunpack.c.l.s4 1983009808
    %v7292 = vunpack.c.0.s8 %v7291
    %v7293 = vlaneseq
    %v7294 = vshrl.u32 %v7293, 7
    %v7295 = vsub.s32 %v7292, %v7294
    %v7296 = vrot.slane %v7288, %v7295
    %v7298 = vunpack.c.l.s4 1983009808
    %v7299 = vunpack.c.0.s8 %v7298
    %v7300 = vlaneseq
    %v7301 = vshrl.u32 %v7300, 7
    %v7302 = vsub.s32 %v7299, %v7301
    %v7303 = vrot.slane %v7289, %v7302
    %v7304 = vcombine.low %v7280, %v7296
    %v7305 = vcombine.high %v7280, %v7296
    %v7307 = vunpack.c.l.s4 1934713408
    %v7308 = vunpack.c.0.s8 %v7307
    %v7309 = vlaneseq
    %v7310 = vshrl.u32 %v7309, 7
    %v7311 = vsub.s32 %v7308, %v7310
    %v7312 = vrot.slane %v7304, %v7311
    %v7314 = vunpack.c.l.s4 1934713408
    %v7315 = vunpack.c.0.s8 %v7314
    %v7316 = vlaneseq
    %v7317 = vshrl.u32 %v7316, 7
    %v7318 = vsub.s32 %v7315, %v7317
    %v7319 = vrot.slane %v7305, %v7318
    %v7320 = vcombine.low %v7287, %v7303
    %v7321 = vcombine.high %v7287, %v7303
    %v7323 = vunpack.c.l.s4 1934713408
    %v7324 = vunpack.c.0.s8 %v7323
    %v7325 = vlaneseq
    %v7326 = vshrl.u32 %v7325, 7
    %v7327 = vsub.s32 %v7324, %v7326
    %v7328 = vrot.slane %v7320, %v7327
    %v7330 = vunpack.c.l.s4 1934713408
    %v7331 = vunpack.c.0.s8 %v7330
    %v7332 = vlaneseq
    %v7333 = vshrl.u32 %v7332, 7
    %v7334 = vsub.s32 %v7331, %v7333
    %v7335 = vrot.slane %v7321, %v7334
    %v7336 = vcombine.high %v7312, 0.0
    %v7337 = vcombine.high %v7319, 0.0
    %v7338 = vcombine.high %v7328, 0.0
    %v7339 = vcombine.high %v7335, 0.0
    %v7340 = vcombine.low %v6141, %v6233
    %v7341 = vcombine.high %v6141, %v6233
    %v7343 = vunpack.c.l.s4 1983009808
    %v7344 = vunpack.c.0.s8 %v7343
    %v7345 = vlaneseq
    %v7346 = vshrl.u32 %v7345, 7
    %v7347 = vsub.s32 %v7344, %v7346
    %v7348 = vrot.slane %v7340, %v7347
    %v7350 = vunpack.c.l.s4 1983009808
    %v7351 = vunpack.c.0.s8 %v7350
    %v7352 = vlaneseq
    %v7353 = vshrl.u32 %v7352, 7
    %v7354 = vsub.s32 %v7351, %v7353
    %v7355 = vrot.slane %v7341, %v7354
    %v7356 = vcombine.low %v6187, %v6279
    %v7357 = vcombine.high %v6187, %v6279
    %v7359 = vunpack.c.l.s4 1983009808
    %v7360 = vunpack.c.0.s8 %v7359
    %v7361 = vlaneseq
    %v7362 = vshrl.u32 %v7361, 7
    %v7363 = vsub.s32 %v7360, %v7362
    %v7364 = vrot.slane %v7356, %v7363
    %v7366 = vunpack.c.l.s4 1983009808
    %v7367 = vunpack.c.0.s8 %v7366
    %v7368 = vlaneseq
    %v7369 = vshrl.u32 %v7368, 7
    %v7370 = vsub.s32 %v7367, %v7369
    %v7371 = vrot.slane %v7357, %v7370
    %v7372 = vcombine.low %v7348, %v7364
    %v7373 = vcombine.high %v7348, %v7364
    %v7375 = vunpack.c.l.s4 1934713408
    %v7376 = vunpack.c.0.s8 %v7375
    %v7377 = vlaneseq
    %v7378 = vshrl.u32 %v7377, 7
    %v7379 = vsub.s32 %v7376, %v7378
    %v7380 = vrot.slane %v7372, %v7379
    %v7382 = vunpack.c.l.s4 1934713408
    %v7383 = vunpack.c.0.s8 %v7382
    %v7384 = vlaneseq
    %v7385 = vshrl.u32 %v7384, 7
    %v7386 = vsub.s32 %v7383, %v7385
    %v7387 = vrot.slane %v7373, %v7386
    %v7388 = vcombine.low %v7355, %v7371
    %v7389 = vcombine.high %v7355, %v7371
    %v7391 = vunpack.c.l.s4 1934713408
    %v7392 = vunpack.c.0.s8 %v7391
    %v7393 = vlaneseq
    %v7394 = vshrl.u32 %v7393, 7
    %v7395 = vsub.s32 %v7392, %v7394
    %v7396 = vrot.slane %v7388, %v7395
    %v7398 = vunpack.c.l.s4 1934713408
    %v7399 = vunpack.c.0.s8 %v7398
    %v7400 = vlaneseq
    %v7401 = vshrl.u32 %v7400, 7
    %v7402 = vsub.s32 %v7399, %v7401
    %v7403 = vrot.slane %v7389, %v7402
    %v7404 = vcombine.high %v7380, 0.0
    %v7405 = vcombine.high %v7387, 0.0
    %v7406 = vcombine.high %v7396, 0.0
    %v7407 = vcombine.high %v7403, 0.0
    %v7408 = vcombine.low %v6325, %v6417
    %v7409 = vcombine.high %v6325, %v6417
    %v7411 = vunpack.c.l.s4 1983009808
    %v7412 = vunpack.c.0.s8 %v7411
    %v7413 = vlaneseq
    %v7414 = vshrl.u32 %v7413, 7
    %v7415 = vsub.s32 %v7412, %v7414
    %v7416 = vrot.slane %v7408, %v7415
    %v7418 = vunpack.c.l.s4 1983009808
    %v7419 = vunpack.c.0.s8 %v7418
    %v7420 = vlaneseq
    %v7421 = vshrl.u32 %v7420, 7
    %v7422 = vsub.s32 %v7419, %v7421
    %v7423 = vrot.slane %v7409, %v7422
    %v7424 = vcombine.low %v6371, %v6463
    %v7425 = vcombine.high %v6371, %v6463
    %v7427 = vunpack.c.l.s4 1983009808
    %v7428 = vunpack.c.0.s8 %v7427
    %v7429 = vlaneseq
    %v7430 = vshrl.u32 %v7429, 7
    %v7431 = vsub.s32 %v7428, %v7430
    %v7432 = vrot.slane %v7424, %v7431
    %v7434 = vunpack.c.l.s4 1983009808
    %v7435 = vunpack.c.0.s8 %v7434
    %v7436 = vlaneseq
    %v7437 = vshrl.u32 %v7436, 7
    %v7438 = vsub.s32 %v7435, %v7437
    %v7439 = vrot.slane %v7425, %v7438
    %v7440 = vcombine.low %v7416, %v7432
    %v7441 = vcombine.high %v7416, %v7432
    %v7443 = vunpack.c.l.s4 1934713408
    %v7444 = vunpack.c.0.s8 %v7443
    %v7445 = vlaneseq
    %v7446 = vshrl.u32 %v7445, 7
    %v7447 = vsub.s32 %v7444, %v7446
    %v7448 = vrot.slane %v7440, %v7447
    %v7450 = vunpack.c.l.s4 1934713408
    %v7451 = vunpack.c.0.s8 %v7450
    %v7452 = vlaneseq
    %v7453 = vshrl.u32 %v7452, 7
    %v7454 = vsub.s32 %v7451, %v7453
    %v7455 = vrot.slane %v7441, %v7454
    %v7456 = vcombine.low %v7423, %v7439
    %v7457 = vcombine.high %v7423, %v7439
    %v7459 = vunpack.c.l.s4 1934713408
    %v7460 = vunpack.c.0.s8 %v7459
    %v7461 = vlaneseq
    %v7462 = vshrl.u32 %v7461, 7
    %v7463 = vsub.s32 %v7460, %v7462
    %v7464 = vrot.slane %v7456, %v7463
    %v7466 = vunpack.c.l.s4 1934713408
    %v7467 = vunpack.c.0.s8 %v7466
    %v7468 = vlaneseq
    %v7469 = vshrl.u32 %v7468, 7
    %v7470 = vsub.s32 %v7467, %v7469
    %v7471 = vrot.slane %v7457, %v7470
    %v7472 = vcombine.high %v7448, 0.0
    %v7473 = vcombine.high %v7455, 0.0
    %v7474 = vcombine.high %v7464, 0.0
    %v7475 = vcombine.high %v7471, 0.0
    %v7476 = vcombine.low %v6509, %v6601
    %v7477 = vcombine.high %v6509, %v6601
    %v7479 = vunpack.c.l.s4 1983009808
    %v7480 = vunpack.c.0.s8 %v7479
    %v7481 = vlaneseq
    %v7482 = vshrl.u32 %v7481, 7
    %v7483 = vsub.s32 %v7480, %v7482
    %v7484 = vrot.slane %v7476, %v7483
    %v7486 = vunpack.c.l.s4 1983009808
    %v7487 = vunpack.c.0.s8 %v7486
    %v7488 = vlaneseq
    %v7489 = vshrl.u32 %v7488, 7
    %v7490 = vsub.s32 %v7487, %v7489
    %v7491 = vrot.slane %v7477, %v7490
    %v7492 = vcombine.low %v6555, %v6647
    %v7493 = vcombine.high %v6555, %v6647
    %v7495 = vunpack.c.l.s4 1983009808
    %v7496 = vunpack.c.0.s8 %v7495
    %v7497 = vlaneseq
    %v7498 = vshrl.u32 %v7497, 7
    %v7499 = vsub.s32 %v7496, %v7498
    %v7500 = vrot.slane %v7492, %v7499
    %v7502 = vunpack.c.l.s4 1983009808
    %v7503 = vunpack.c.0.s8 %v7502
    %v7504 = vlaneseq
    %v7505 = vshrl.u32 %v7504, 7
    %v7506 = vsub.s32 %v7503, %v7505
    %v7507 = vrot.slane %v7493, %v7506
    %v7508 = vcombine.low %v7484, %v7500
    %v7509 = vcombine.high %v7484, %v7500
    %v7511 = vunpack.c.l.s4 1934713408
    %v7512 = vunpack.c.0.s8 %v7511
    %v7513 = vlaneseq
    %v7514 = vshrl.u32 %v7513, 7
    %v7515 = vsub.s32 %v7512, %v7514
    %v7516 = vrot.slane %v7508, %v7515
    %v7518 = vunpack.c.l.s4 1934713408
    %v7519 = vunpack.c.0.s8 %v7518
    %v7520 = vlaneseq
    %v7521 = vshrl.u32 %v7520, 7
    %v7522 = vsub.s32 %v7519, %v7521
    %v7523 = vrot.slane %v7509, %v7522
    %v7524 = vcombine.low %v7491, %v7507
    %v7525 = vcombine.high %v7491, %v7507
    %v7527 = vunpack.c.l.s4 1934713408
    %v7528 = vunpack.c.0.s8 %v7527
    %v7529 = vlaneseq
    %v7530 = vshrl.u32 %v7529, 7
    %v7531 = vsub.s32 %v7528, %v7530
    %v7532 = vrot.slane %v7524, %v7531
    %v7534 = vunpack.c.l.s4 1934713408
    %v7535 = vunpack.c.0.s8 %v7534
    %v7536 = vlaneseq
    %v7537 = vshrl.u32 %v7536, 7
    %v7538 = vsub.s32 %v7535, %v7537
    %v7539 = vrot.slane %v7525, %v7538
    %v7540 = vcombine.high %v7516, 0.0
    %v7541 = vcombine.high %v7523, 0.0
    %v7542 = vcombine.high %v7532, 0.0
    %v7543 = vcombine.high %v7539, 0.0
    %v7544 = vcombine.low %v6693, %v6785
    %v7545 = vcombine.high %v6693, %v6785
    %v7547 = vunpack.c.l.s4 1983009808
    %v7548 = vunpack.c.0.s8 %v7547
    %v7549 = vlaneseq
    %v7550 = vshrl.u32 %v7549, 7
    %v7551 = vsub.s32 %v7548, %v7550
    %v7552 = vrot.slane %v7544, %v7551
    %v7554 = vunpack.c.l.s4 1983009808
    %v7555 = vunpack.c.0.s8 %v7554
    %v7556 = vlaneseq
    %v7557 = vshrl.u32 %v7556, 7
    %v7558 = vsub.s32 %v7555, %v7557
    %v7559 = vrot.slane %v7545, %v7558
    %v7560 = vcombine.low %v6739, %v6831
    %v7561 = vcombine.high %v6739, %v6831
    %v7563 = vunpack.c.l.s4 1983009808
    %v7564 = vunpack.c.0.s8 %v7563
    %v7565 = vlaneseq
    %v7566 = vshrl.u32 %v7565, 7
    %v7567 = vsub.s32 %v7564, %v7566
    %v7568 = vrot.slane %v7560, %v7567
    %v7570 = vunpack.c.l.s4 1983009808
    %v7571 = vunpack.c.0.s8 %v7570
    %v7572 = vlaneseq
    %v7573 = vshrl.u32 %v7572, 7
    %v7574 = vsub.s32 %v7571, %v7573
    %v7575 = vrot.slane %v7561, %v7574
    %v7576 = vcombine.low %v7552, %v7568
    %v7577 = vcombine.high %v7552, %v7568
    %v7579 = vunpack.c.l.s4 1934713408
    %v7580 = vunpack.c.0.s8 %v7579
    %v7581 = vlaneseq
    %v7582 = vshrl.u32 %v7581, 7
    %v7583 = vsub.s32 %v7580, %v7582
    %v7584 = vrot.slane %v7576, %v7583
    %v7586 = vunpack.c.l.s4 1934713408
    %v7587 = vunpack.c.0.s8 %v7586
    %v7588 = vlaneseq
    %v7589 = vshrl.u32 %v7588, 7
    %v7590 = vsub.s32 %v7587, %v7589
    %v7591 = vrot.slane %v7577, %v7590
    %v7592 = vcombine.low %v7559, %v7575
    %v7593 = vcombine.high %v7559, %v7575
    %v7595 = vunpack.c.l.s4 1934713408
    %v7596 = vunpack.c.0.s8 %v7595
    %v7597 = vlaneseq
    %v7598 = vshrl.u32 %v7597, 7
    %v7599 = vsub.s32 %v7596, %v7598
    %v7600 = vrot.slane %v7592, %v7599
    %v7602 = vunpack.c.l.s4 1934713408
    %v7603 = vunpack.c.0.s8 %v7602
    %v7604 = vlaneseq
    %v7605 = vshrl.u32 %v7604, 7
    %v7606 = vsub.s32 %v7603, %v7605
    %v7607 = vrot.slane %v7593, %v7606
    %v7608 = vcombine.high %v7584, 0.0
    %v7609 = vcombine.high %v7591, 0.0
    %v7610 = vcombine.high %v7600, 0.0
    %v7611 = vcombine.high %v7607, 0.0
    %v7612 = vcombine.low %v6877, %v6969
    %v7613 = vcombine.high %v6877, %v6969
    %v7615 = vunpack.c.l.s4 1983009808
    %v7616 = vunpack.c.0.s8 %v7615
    %v7617 = vlaneseq
    %v7618 = vshrl.u32 %v7617, 7
    %v7619 = vsub.s32 %v7616, %v7618
    %v7620 = vrot.slane %v7612, %v7619
    %v7622 = vunpack.c.l.s4 1983009808
    %v7623 = vunpack.c.0.s8 %v7622
    %v7624 = vlaneseq
    %v7625 = vshrl.u32 %v7624, 7
    %v7626 = vsub.s32 %v7623, %v7625
    %v7627 = vrot.slane %v7613, %v7626
    %v7628 = vcombine.low %v6923, %v7015
    %v7629 = vcombine.high %v6923, %v7015
    %v7631 = vunpack.c.l.s4 1983009808
    %v7632 = vunpack.c.0.s8 %v7631
    %v7633 = vlaneseq
    %v7634 = vshrl.u32 %v7633, 7
    %v7635 = vsub.s32 %v7632, %v7634
    %v7636 = vrot.slane %v7628, %v7635
    %v7638 = vunpack.c.l.s4 1983009808
    %v7639 = vunpack.c.0.s8 %v7638
    %v7640 = vlaneseq
    %v7641 = vshrl.u32 %v7640, 7
    %v7642 = vsub.s32 %v7639, %v7641
    %v7643 = vrot.slane %v7629, %v7642
    %v7644 = vcombine.low %v7620, %v7636
    %v7645 = vcombine.high %v7620, %v7636
    %v7647 = vunpack.c.l.s4 1934713408
    %v7648 = vunpack.c.0.s8 %v7647
    %v7649 = vlaneseq
    %v7650 = vshrl.u32 %v7649, 7
    %v7651 = vsub.s32 %v7648, %v7650
    %v7652 = vrot.slane %v7644, %v7651
    %v7654 = vunpack.c.l.s4 1934713408
    %v7655 = vunpack.c.0.s8 %v7654
    %v7656 = vlaneseq
    %v7657 = vshrl.u32 %v7656, 7
    %v7658 = vsub.s32 %v7655, %v7657
    %v7659 = vrot.slane %v7645, %v7658
    %v7660 = vcombine.low %v7627, %v7643
    %v7661 = vcombine.high %v7627, %v7643
    %v7663 = vunpack.c.l.s4 1934713408
    %v7664 = vunpack.c.0.s8 %v7663
    %v7665 = vlaneseq
    %v7666 = vshrl.u32 %v7665, 7
    %v7667 = vsub.s32 %v7664, %v7666
    %v7668 = vrot.slane %v7660, %v7667
    %v7670 = vunpack.c.l.s4 1934713408
    %v7671 = vunpack.c.0.s8 %v7670
    %v7672 = vlaneseq
    %v7673 = vshrl.u32 %v7672, 7
    %v7674 = vsub.s32 %v7671, %v7673
    %v7675 = vrot.slane %v7661, %v7674
    %v7676 = vcombine.high %v7652, 0.0
    %v7677 = vcombine.high %v7659, 0.0
    %v7678 = vcombine.high %v7668, 0.0
    %v7679 = vcombine.high %v7675, 0.0
    %v7680 = vcombine.low %v7061, %v7153
    %v7681 = vcombine.high %v7061, %v7153
    %v7683 = vunpack.c.l.s4 1983009808
    %v7684 = vunpack.c.0.s8 %v7683
    %v7685 = vlaneseq
    %v7686 = vshrl.u32 %v7685, 7
    %v7687 = vsub.s32 %v7684, %v7686
    %v7688 = vrot.slane %v7680, %v7687
    %v7690 = vunpack.c.l.s4 1983009808
    %v7691 = vunpack.c.0.s8 %v7690
    %v7692 = vlaneseq
    %v7693 = vshrl.u32 %v7692, 7
    %v7694 = vsub.s32 %v7691, %v7693
    %v7695 = vrot.slane %v7681, %v7694
    %v7696 = vcombine.low %v7107, %v7199
    %v7697 = vcombine.high %v7107, %v7199
    %v7699 = vunpack.c.l.s4 1983009808
    %v7700 = vunpack.c.0.s8 %v7699
    %v7701 = vlaneseq
    %v7702 = vshrl.u32 %v7701, 7
    %v7703 = vsub.s32 %v7700, %v7702
    %v7704 = vrot.slane %v7696, %v7703
    %v7706 = vunpack.c.l.s4 1983009808
    %v7707 = vunpack.c.0.s8 %v7706
    %v7708 = vlaneseq
    %v7709 = vshrl.u32 %v7708, 7
    %v7710 = vsub.s32 %v7707, %v7709
    %v7711 = vrot.slane %v7697, %v7710
    %v7712 = vcombine.low %v7688, %v7704
    %v7713 = vcombine.high %v7688, %v7704
    %v7715 = vunpack.c.l.s4 1934713408
    %v7716 = vunpack.c.0.s8 %v7715
    %v7717 = vlaneseq
    %v7718 = vshrl.u32 %v7717, 7
    %v7719 = vsub.s32 %v7716, %v7718
    %v7720 = vrot.slane %v7712, %v7719
    %v7722 = vunpack.c.l.s4 1934713408
    %v7723 = vunpack.c.0.s8 %v7722
    %v7724 = vlaneseq
    %v7725 = vshrl.u32 %v7724, 7
    %v7726 = vsub.s32 %v7723, %v7725
    %v7727 = vrot.slane %v7713, %v7726
    %v7728 = vcombine.low %v7695, %v7711
    %v7729 = vcombine.high %v7695, %v7711
    %v7731 = vunpack.c.l.s4 1934713408
    %v7732 = vunpack.c.0.s8 %v7731
    %v7733 = vlaneseq
    %v7734 = vshrl.u32 %v7733, 7
    %v7735 = vsub.s32 %v7732, %v7734
    %v7736 = vrot.slane %v7728, %v7735
    %v7738 = vunpack.c.l.s4 1934713408
    %v7739 = vunpack.c.0.s8 %v7738
    %v7740 = vlaneseq
    %v7741 = vshrl.u32 %v7740, 7
    %v7742 = vsub.s32 %v7739, %v7741
    %v7743 = vrot.slane %v7729, %v7742
    %v7744 = vcombine.high %v7720, 0.0
    %v7745 = vcombine.high %v7727, 0.0
    %v7746 = vcombine.high %v7736, 0.0
    %v7747 = vcombine.high %v7743, 0.0
    %v7748 = vcombine.low %v7244, %v7251
    %v7750 = vunpack.c.l.s4 1983009808
    %v7751 = vunpack.c.0.s8 %v7750
    %v7752 = vlaneseq
    %v7753 = vshrl.u32 %v7752, 7
    %v7754 = vsub.s32 %v7751, %v7753
    %v7755 = vrot.slane %v7748, %v7754
    %v7756 = vcombine.low %v7268, %v7269
    %v7758 = vunpack.c.l.s4 1983009808
    %v7759 = vunpack.c.0.s8 %v7758
    %v7760 = vlaneseq
    %v7761 = vshrl.u32 %v7760, 7
    %v7762 = vsub.s32 %v7759, %v7761
    %v7763 = vrot.slane %v7756, %v7762
    %v7764 = vcombine.low %v7260, %v7267
    %v7766 = vunpack.c.l.s4 1983009808
    %v7767 = vunpack.c.0.s8 %v7766
    %v7768 = vlaneseq
    %v7769 = vshrl.u32 %v7768, 7
    %v7770 = vsub.s32 %v7767, %v7769
    %v7771 = vrot.slane %v7764, %v7770
    %v7772 = vcombine.low %v7270, %v7271
    %v7774 = vunpack.c.l.s4 1983009808
    %v7775 = vunpack.c.0.s8 %v7774
    %v7776 = vlaneseq
    %v7777 = vshrl.u32 %v7776, 7
    %v7778 = vsub.s32 %v7775, %v7777
    %v7779 = vrot.slane %v7772, %v7778
    %v7780 = vcombine.low %v7755, %v7763
    %v7781 = vcombine.high %v7755, %v7763
    %v7783 = vunpack.c.l.s4 1934713408
    %v7784 = vunpack.c.0.s8 %v7783
    %v7785 = vlaneseq
    %v7786 = vshrl.u32 %v7785, 7
    %v7787 = vsub.s32 %v7784, %v7786
    %v7788 = vrot.slane %v7780, %v7787
    %v7790 = vunpack.c.l.s4 1934713408
    %v7791 = vunpack.c.0.s8 %v7790
    %v7792 = vlaneseq
    %v7793 = vshrl.u32 %v7792, 7
    %v7794 = vsub.s32 %v7791, %v7793
    %v7795 = vrot.slane %v7781, %v7794
    %v7796 = vcombine.low %v7771, %v7779
    %v7797 = vcombine.high %v7771, %v7779
    %v7799 = vunpack.c.l.s4 1934713408
    %v7800 = vunpack.c.0.s8 %v7799
    %v7801 = vlaneseq
    %v7802 = vshrl.u32 %v7801, 7
    %v7803 = vsub.s32 %v7800, %v7802
    %v7804 = vrot.slane %v7796, %v7803
    %v7806 = vunpack.c.l.s4 1934713408
    %v7807 = vunpack.c.0.s8 %v7806
    %v7808 = vlaneseq
    %v7809 = vshrl.u32 %v7808, 7
    %v7810 = vsub.s32 %v7807, %v7809
    %v7811 = vrot.slane %v7797, %v7810
    %v7812 = vcombine.low %v7788, %v7804
    %v7813 = vcombine.high %v7788, %v7804
    %v7814 = vcombine.low %v7795, %v7811
    %v7815 = vcombine.high %v7795, %v7811
    %v7816 = vcombine.low %v7312, %v7319
    %v7818 = vunpack.c.l.s4 1983009808
    %v7819 = vunpack.c.0.s8 %v7818
    %v7820 = vlaneseq
    %v7821 = vshrl.u32 %v7820, 7
    %v7822 = vsub.s32 %v7819, %v7821
    %v7823 = vrot.slane %v7816, %v7822
    %v7824 = vcombine.low %v7336, %v7337
    %v7826 = vunpack.c.l.s4 1983009808
    %v7827 = vunpack.c.0.s8 %v7826
    %v7828 = vlaneseq
    %v7829 = vshrl.u32 %v7828, 7
    %v7830 = vsub.s32 %v7827, %v7829
    %v7831 = vrot.slane %v7824, %v7830
    %v7832 = vcombine.low %v7328, %v7335
    %v7834 = vunpack.c.l.s4 1983009808
    %v7835 = vunpack.c.0.s8 %v7834
    %v7836 = vlaneseq
    %v7837 = vshrl.u32 %v7836, 7
    %v7838 = vsub.s32 %v7835, %v7837
    %v7839 = vrot.slane %v7832, %v7838
    %v7840 = vcombine.low %v7338, %v7339
    %v7842 = vunpack.c.l.s4 1983009808
    %v7843 = vunpack.c.0.s8 %v7842
    %v7844 = vlaneseq
    %v7845 = vshrl.u32 %v7844, 7
    %v7846 = vsub.s32 %v7843, %v7845
    %v7847 = vrot.slane %v7840, %v7846
    %v7848 = vcombine.low %v7823, %v7831
    %v7849 = vcombine.high %v7823, %v7831
    %v7851 = vunpack.c.l.s4 1934713408
    %v7852 = vunpack.c.0.s8 %v7851
    %v7853 = vlaneseq
    %v7854 = vshrl.u32 %v7853, 7
    %v7855 = vsub.s32 %v7852, %v7854
    %v7856 = vrot.slane %v7848, %v7855
    %v7858 = vunpack.c.l.s4 1934713408
    %v7859 = vunpack.c.0.s8 %v7858
    %v7860 = vlaneseq
    %v7861 = vshrl.u32 %v7860, 7
    %v7862 = vsub.s32 %v7859, %v7861
    %v7863 = vrot.slane %v7849, %v7862
    %v7864 = vcombine.low %v7839, %v7847
    %v7865 = vcombine.high %v7839, %v7847
    %v7867 = vunpack.c.l.s4 1934713408
    %v7868 = vunpack.c.0.s8 %v7867
    %v7869 = vlaneseq
    %v7870 = vshrl.u32 %v7869, 7
    %v7871 = vsub.s32 %v7868, %v7870
    %v7872 = vrot.slane %v7864, %v7871
    %v7874 = vunpack.c.l.s4 1934713408
    %v7875 = vunpack.c.0.s8 %v7874
    %v7876 = vlaneseq
    %v7877 = vshrl.u32 %v7876, 7
    %v7878 = vsub.s32 %v7875, %v7877
    %v7879 = vrot.slane %v7865, %v7878
    %v7880 = vcombine.low %v7856, %v7872
    %v7881 = vcombine.high %v7856, %v7872
    %v7882 = vcombine.low %v7863, %v7879
    %v7883 = vcombine.high %v7863, %v7879
    %v7884 = vcombine.low %v7380, %v7387
    %v7886 = vunpack.c.l.s4 1983009808
    %v7887 = vunpack.c.0.s8 %v7886
    %v7888 = vlaneseq
    %v7889 = vshrl.u32 %v7888, 7
    %v7890 = vsub.s32 %v7887, %v7889
    %v7891 = vrot.slane %v7884, %v7890
    %v7892 = vcombine.low %v7404, %v7405
    %v7894 = vunpack.c.l.s4 1983009808
    %v7895 = vunpack.c.0.s8 %v7894
    %v7896 = vlaneseq
    %v7897 = vshrl.u32 %v7896, 7
    %v7898 = vsub.s32 %v7895, %v7897
    %v7899 = vrot.slane %v7892, %v7898
    %v7900 = vcombine.low %v7396, %v7403
    %v7902 = vunpack.c.l.s4 1983009808
    %v7903 = vunpack.c.0.s8 %v7902
    %v7904 = vlaneseq
    %v7905 = vshrl.u32 %v7904, 7
    %v7906 = vsub.s32 %v7903, %v7905
    %v7907 = vrot.slane %v7900, %v7906
    %v7908 = vcombine.low %v7406, %v7407
    %v7910 = vunpack.c.l.s4 1983009808
    %v7911 = vunpack.c.0.s8 %v7910
    %v7912 = vlaneseq
    %v7913 = vshrl.u32 %v7912, 7
    %v7914 = vsub.s32 %v7911, %v7913
    %v7915 = vrot.slane %v7908, %v7914
    %v7916 = vcombine.low %v7891, %v7899
    %v7917 = vcombine.high %v7891, %v7899
    %v7919 = vunpack.c.l.s4 1934713408
    %v7920 = vunpack.c.0.s8 %v7919
    %v7921 = vlaneseq
    %v7922 = vshrl.u32 %v7921, 7
    %v7923 = vsub.s32 %v7920, %v7922
    %v7924 = vrot.slane %v7916, %v7923
    %v7926 = vunpack.c.l.s4 1934713408
    %v7927 = vunpack.c.0.s8 %v7926
    %v7928 = vlaneseq
    %v7929 = vshrl.u32 %v7928, 7
    %v7930 = vsub.s32 %v7927, %v7929
    %v7931 = vrot.slane %v7917, %v7930
    %v7932 = vcombine.low %v7907, %v7915
    %v7933 = vcombine.high %v7907, %v7915
    %v7935 = vunpack.c.l.s4 1934713408
    %v7936 = vunpack.c.0.s8 %v7935
    %v7937 = vlaneseq
    %v7938 = vshrl.u32 %v7937, 7
    %v7939 = vsub.s32 %v7936, %v7938
    %v7940 = vrot.slane %v7932, %v7939
    %v7942 = vunpack.c.l.s4 1934713408
    %v7943 = vunpack.c.0.s8 %v7942
    %v7944 = vlaneseq
    %v7945 = vshrl.u32 %v7944, 7
    %v7946 = vsub.s32 %v7943, %v7945
    %v7947 = vrot.slane %v7933, %v7946
    %v7948 = vcombine.low %v7924, %v7940
    %v7949 = vcombine.high %v7924, %v7940
    %v7950 = vcombine.low %v7931, %v7947
    %v7951 = vcombine.high %v7931, %v7947
    %v7952 = vcombine.low %v7448, %v7455
    %v7954 = vunpack.c.l.s4 1983009808
    %v7955 = vunpack.c.0.s8 %v7954
    %v7956 = vlaneseq
    %v7957 = vshrl.u32 %v7956, 7
    %v7958 = vsub.s32 %v7955, %v7957
    %v7959 = vrot.slane %v7952, %v7958
    %v7960 = vcombine.low %v7472, %v7473
    %v7962 = vunpack.c.l.s4 1983009808
    %v7963 = vunpack.c.0.s8 %v7962
    %v7964 = vlaneseq
    %v7965 = vshrl.u32 %v7964, 7
    %v7966 = vsub.s32 %v7963, %v7965
    %v7967 = vrot.slane %v7960, %v7966
    %v7968 = vcombine.low %v7464, %v7471
    %v7970 = vunpack.c.l.s4 1983009808
    %v7971 = vunpack.c.0.s8 %v7970
    %v7972 = vlaneseq
    %v7973 = vshrl.u32 %v7972, 7
    %v7974 = vsub.s32 %v7971, %v7973
    %v7975 = vrot.slane %v7968, %v7974
    %v7976 = vcombine.low %v7474, %v7475
    %v7978 = vunpack.c.l.s4 1983009808
    %v7979 = vunpack.c.0.s8 %v7978
    %v7980 = vlaneseq
    %v7981 = vshrl.u32 %v7980, 7
    %v7982 = vsub.s32 %v7979, %v7981
    %v7983 = vrot.slane %v7976, %v7982
    %v7984 = vcombine.low %v7959, %v7967
    %v7985 = vcombine.high %v7959, %v7967
    %v7987 = vunpack.c.l.s4 1934713408
    %v7988 = vunpack.c.0.s8 %v7987
    %v7989 = vlaneseq
    %v7990 = vshrl.u32 %v7989, 7
    %v7991 = vsub.s32 %v7988, %v7990
    %v7992 = vrot.slane %v7984, %v7991
    %v7994 = vunpack.c.l.s4 1934713408
    %v7995 = vunpack.c.0.s8 %v7994
    %v7996 = vlaneseq
    %v7997 = vshrl.u32 %v7996, 7
    %v7998 = vsub.s32 %v7995, %v7997
    %v7999 = vrot.slane %v7985, %v7998
    %v8000 = vcombine.low %v7975, %v7983
    %v8001 = vcombine.high %v7975, %v7983
    %v8003 = vunpack.c.l.s4 1934713408
    %v8004 = vunpack.c.0.s8 %v8003
    %v8005 = vlaneseq
    %v8006 = vshrl.u32 %v8005, 7
    %v8007 = vsub.s32 %v8004, %v8006
    %v8008 = vrot.slane %v8000, %v8007
    %v8010 = vunpack.c.l.s4 1934713408
    %v8011 = vunpack.c.0.s8 %v8010
    %v8012 = vlaneseq
    %v8013 = vshrl.u32 %v8012, 7
    %v8014 = vsub.s32 %v8011, %v8013
    %v8015 = vrot.slane %v8001, %v8014
    %v8016 = vcombine.low %v7992, %v8008
    %v8017 = vcombine.high %v7992, %v8008
    %v8018 = vcombine.low %v7999, %v8015
    %v8019 = vcombine.high %v7999, %v8015
    %v8020 = vcombine.low %v7516, %v7523
    %v8022 = vunpack.c.l.s4 1983009808
    %v8023 = vunpack.c.0.s8 %v8022
    %v8024 = vlaneseq
    %v8025 = vshrl.u32 %v8024, 7
    %v8026 = vsub.s32 %v8023, %v8025
    %v8027 = vrot.slane %v8020, %v8026
    %v8028 = vcombine.low %v7540, %v7541
    %v8030 = vunpack.c.l.s4 1983009808
    %v8031 = vunpack.c.0.s8 %v8030
    %v8032 = vlaneseq
    %v8033 = vshrl.u32 %v8032, 7
    %v8034 = vsub.s32 %v8031, %v8033
    %v8035 = vrot.slane %v8028, %v8034
    %v8036 = vcombine.low %v7532, %v7539
    %v8038 = vunpack.c.l.s4 1983009808
    %v8039 = vunpack.c.0.s8 %v8038
    %v8040 = vlaneseq
    %v8041 = vshrl.u32 %v8040, 7
    %v8042 = vsub.s32 %v8039, %v8041
    %v8043 = vrot.slane %v8036, %v8042
    %v8044 = vcombine.low %v7542, %v7543
    %v8046 = vunpack.c.l.s4 1983009808
    %v8047 = vunpack.c.0.s8 %v8046
    %v8048 = vlaneseq
    %v8049 = vshrl.u32 %v8048, 7
    %v8050 = vsub.s32 %v8047, %v8049
    %v8051 = vrot.slane %v8044, %v8050
    %v8052 = vcombine.low %v8027, %v8035
    %v8053 = vcombine.high %v8027, %v8035
    %v8055 = vunpack.c.l.s4 1934713408
    %v8056 = vunpack.c.0.s8 %v8055
    %v8057 = vlaneseq
    %v8058 = vshrl.u32 %v8057, 7
    %v8059 = vsub.s32 %v8056, %v8058
    %v8060 = vrot.slane %v8052, %v8059
    %v8062 = vunpack.c.l.s4 1934713408
    %v8063 = vunpack.c.0.s8 %v8062
    %v8064 = vlaneseq
    %v8065 = vshrl.u32 %v8064, 7
    %v8066 = vsub.s32 %v8063, %v8065
    %v8067 = vrot.slane %v8053, %v8066
    %v8068 = vcombine.low %v8043, %v8051
    %v8069 = vcombine.high %v8043, %v8051
    %v8071 = vunpack.c.l.s4 1934713408
    %v8072 = vunpack.c.0.s8 %v8071
    %v8073 = vlaneseq
    %v8074 = vshrl.u32 %v8073, 7
    %v8075 = vsub.s32 %v8072, %v8074
    %v8076 = vrot.slane %v8068, %v8075
    %v8078 = vunpack.c.l.s4 1934713408
    %v8079 = vunpack.c.0.s8 %v8078
    %v8080 = vlaneseq
    %v8081 = vshrl.u32 %v8080, 7
    %v8082 = vsub.s32 %v8079, %v8081
    %v8083 = vrot.slane %v8069, %v8082
    %v8084 = vcombine.low %v8060, %v8076
    %v8085 = vcombine.high %v8060, %v8076
    %v8086 = vcombine.low %v8067, %v8083
    %v8087 = vcombine.high %v8067, %v8083
    %v8088 = vcombine.low %v7584, %v7591
    %v8090 = vunpack.c.l.s4 1983009808
    %v8091 = vunpack.c.0.s8 %v8090
    %v8092 = vlaneseq
    %v8093 = vshrl.u32 %v8092, 7
    %v8094 = vsub.s32 %v8091, %v8093
    %v8095 = vrot.slane %v8088, %v8094
    %v8096 = vcombine.low %v7608, %v7609
    %v8098 = vunpack.c.l.s4 1983009808
    %v8099 = vunpack.c.0.s8 %v8098
    %v8100 = vlaneseq
    %v8101 = vshrl.u32 %v8100, 7
    %v8102 = vsub.s32 %v8099, %v8101
    %v8103 = vrot.slane %v8096, %v8102
    %v8104 = vcombine.low %v7600, %v7607
    %v8106 = vunpack.c.l.s4 1983009808
    %v8107 = vunpack.c.0.s8 %v8106
    %v8108 = vlaneseq
    %v8109 = vshrl.u32 %v8108, 7
    %v8110 = vsub.s32 %v8107, %v8109
    %v8111 = vrot.slane %v8104, %v8110
    %v8112 = vcombine.low %v7610, %v7611
    %v8114 = vunpack.c.l.s4 1983009808
    %v8115 = vunpack.c.0.s8 %v8114
    %v8116 = vlaneseq
    %v8117 = vshrl.u32 %v8116, 7
    %v8118 = vsub.s32 %v8115, %v8117
    %v8119 = vrot.slane %v8112, %v8118
    %v8120 = vcombine.low %v8095, %v8103
    %v8121 = vcombine.high %v8095, %v8103
    %v8123 = vunpack.c.l.s4 1934713408
    %v8124 = vunpack.c.0.s8 %v8123
    %v8125 = vlaneseq
    %v8126 = vshrl.u32 %v8125, 7
    %v8127 = vsub.s32 %v8124, %v8126
    %v8128 = vrot.slane %v8120, %v8127
    %v8130 = vunpack.c.l.s4 1934713408
    %v8131 = vunpack.c.0.s8 %v8130
    %v8132 = vlaneseq
    %v8133 = vshrl.u32 %v8132, 7
    %v8134 = vsub.s32 %v8131, %v8133
    %v8135 = vrot.slane %v8121, %v8134
    %v8136 = vcombine.low %v8111, %v8119
    %v8137 = vcombine.high %v8111, %v8119
    %v8139 = vunpack.c.l.s4 1934713408
    %v8140 = vunpack.c.0.s8 %v8139
    %v8141 = vlaneseq
    %v8142 = vshrl.u32 %v8141, 7
    %v8143 = vsub.s32 %v8140, %v8142
    %v8144 = vrot.slane %v8136, %v8143
    %v8146 = vunpack.c.l.s4 1934713408
    %v8147 = vunpack.c.0.s8 %v8146
    %v8148 = vlaneseq
    %v8149 = vshrl.u32 %v8148, 7
    %v8150 = vsub.s32 %v8147, %v8149
    %v8151 = vrot.slane %v8137, %v8150
    %v8152 = vcombine.low %v8128, %v8144
    %v8153 = vcombine.high %v8128, %v8144
    %v8154 = vcombine.low %v8135, %v8151
    %v8155 = vcombine.high %v8135, %v8151
    %v8156 = vcombine.low %v7652, %v7659
    %v8158 = vunpack.c.l.s4 1983009808
    %v8159 = vunpack.c.0.s8 %v8158
    %v8160 = vlaneseq
    %v8161 = vshrl.u32 %v8160, 7
    %v8162 = vsub.s32 %v8159, %v8161
    %v8163 = vrot.slane %v8156, %v8162
    %v8164 = vcombine.low %v7676, %v7677
    %v8166 = vunpack.c.l.s4 1983009808
    %v8167 = vunpack.c.0.s8 %v8166
    %v8168 = vlaneseq
    %v8169 = vshrl.u32 %v8168, 7
    %v8170 = vsub.s32 %v8167, %v8169
    %v8171 = vrot.slane %v8164, %v8170
    %v8172 = vcombine.low %v7668, %v7675
    %v8174 = vunpack.c.l.s4 1983009808
    %v8175 = vunpack.c.0.s8 %v8174
    %v8176 = vlaneseq
    %v8177 = vshrl.u32 %v8176, 7
    %v8178 = vsub.s32 %v8175, %v8177
    %v8179 = vrot.slane %v8172, %v8178
    %v8180 = vcombine.low %v7678, %v7679
    %v8182 = vunpack.c.l.s4 1983009808
    %v8183 = vunpack.c.0.s8 %v8182
    %v8184 = vlaneseq
    %v8185 = vshrl.u32 %v8184, 7
    %v8186 = vsub.s32 %v8183, %v8185
    %v8187 = vrot.slane %v8180, %v8186
    %v8188 = vcombine.low %v8163, %v8171
    %v8189 = vcombine.high %v8163, %v8171
    %v8191 = vunpack.c.l.s4 1934713408
    %v8192 = vunpack.c.0.s8 %v8191
    %v8193 = vlaneseq
    %v8194 = vshrl.u32 %v8193, 7
    %v8195 = vsub.s32 %v8192, %v8194
    %v8196 = vrot.slane %v8188, %v8195
    %v8198 = vunpack.c.l.s4 1934713408
    %v8199 = vunpack.c.0.s8 %v8198
    %v8200 = vlaneseq
    %v8201 = vshrl.u32 %v8200, 7
    %v8202 = vsub.s32 %v8199, %v8201
    %v8203 = vrot.slane %v8189, %v8202
    %v8204 = vcombine.low %v8179, %v8187
    %v8205 = vcombine.high %v8179, %v8187
    %v8207 = vunpack.c.l.s4 1934713408
    %v8208 = vunpack.c.0.s8 %v8207
    %v8209 = vlaneseq
    %v8210 = vshrl.u32 %v8209, 7
    %v8211 = vsub.s32 %v8208, %v8210
    %v8212 = vrot.slane %v8204, %v8211
    %v8214 = vunpack.c.l.s4 1934713408
    %v8215 = vunpack.c.0.s8 %v8214
    %v8216 = vlaneseq
    %v8217 = vshrl.u32 %v8216, 7
    %v8218 = vsub.s32 %v8215, %v8217
    %v8219 = vrot.slane %v8205, %v8218
    %v8220 = vcombine.low %v8196, %v8212
    %v8221 = vcombine.high %v8196, %v8212
    %v8222 = vcombine.low %v8203, %v8219
    %v8223 = vcombine.high %v8203, %v8219
    %v8224 = vcombine.low %v7720, %v7727
    %v8226 = vunpack.c.l.s4 1983009808
    %v8227 = vunpack.c.0.s8 %v8226
    %v8228 = vlaneseq
    %v8229 = vshrl.u32 %v8228, 7
    %v8230 = vsub.s32 %v8227, %v8229
    %v8231 = vrot.slane %v8224, %v8230
    %v8232 = vcombine.low %v7744, %v7745
    %v8234 = vunpack.c.l.s4 1983009808
    %v8235 = vunpack.c.0.s8 %v8234
    %v8236 = vlaneseq
    %v8237 = vshrl.u32 %v8236, 7
    %v8238 = vsub.s32 %v8235, %v8237
    %v8239 = vrot.slane %v8232, %v8238
    %v8240 = vcombine.low %v7736, %v7743
    %v8242 = vunpack.c.l.s4 1983009808
    %v8243 = vunpack.c.0.s8 %v8242
    %v8244 = vlaneseq
    %v8245 = vshrl.u32 %v8244, 7
    %v8246 = vsub.s32 %v8243, %v8245
    %v8247 = vrot.slane %v8240, %v8246
    %v8248 = vcombine.low %v7746, %v7747
    %v8250 = vunpack.c.l.s4 1983009808
    %v8251 = vunpack.c.0.s8 %v8250
    %v8252 = vlaneseq
    %v8253 = vshrl.u32 %v8252, 7
    %v8254 = vsub.s32 %v8251, %v8253
    %v8255 = vrot.slane %v8248, %v8254
    %v8256 = vcombine.low %v8231, %v8239
    %v8257 = vcombine.high %v8231, %v8239
    %v8259 = vunpack.c.l.s4 1934713408
    %v8260 = vunpack.c.0.s8 %v8259
    %v8261 = vlaneseq
    %v8262 = vshrl.u32 %v8261, 7
    %v8263 = vsub.s32 %v8260, %v8262
    %v8264 = vrot.slane %v8256, %v8263
    %v8266 = vunpack.c.l.s4 1934713408
    %v8267 = vunpack.c.0.s8 %v8266
    %v8268 = vlaneseq
    %v8269 = vshrl.u32 %v8268, 7
    %v8270 = vsub.s32 %v8267, %v8269
    %v8271 = vrot.slane %v8257, %v8270
    %v8272 = vcombine.low %v8247, %v8255
    %v8273 = vcombine.high %v8247, %v8255
    %v8275 = vunpack.c.l.s4 1934713408
    %v8276 = vunpack.c.0.s8 %v8275
    %v8277 = vlaneseq
    %v8278 = vshrl.u32 %v8277, 7
    %v8279 = vsub.s32 %v8276, %v8278
    %v8280 = vrot.slane %v8272, %v8279
    %v8282 = vunpack.c.l.s4 1934713408
    %v8283 = vunpack.c.0.s8 %v8282
    %v8284 = vlaneseq
    %v8285 = vshrl.u32 %v8284, 7
    %v8286 = vsub.s32 %v8283, %v8285
    %v8287 = vrot.slane %v8273, %v8286
    %v8288 = vcombine.low %v8264, %v8280
    %v8289 = vcombine.high %v8264, %v8280
    %v8290 = vcombine.low %v8271, %v8287
    %v8291 = vcombine.high %v8271, %v8287
    %8300 = vrot.lane.b32.xlu0 %v7813, 16
    %v8301 = vpop.permute.xlu0 %8300
    %8302 = vrot.lane.b32.xlu0 %v7881, 16
    %v8303 = vpop.permute.xlu0 %8302
    %8304 = vrot.lane.b32.xlu0 %v7949, 16
    %v8305 = vpop.permute.xlu0 %8304
    %8306 = vrot.lane.b32.xlu0 %v8017, 16
    %v8307 = vpop.permute.xlu0 %8306
    %8308 = vrot.lane.b32.xlu0 %v8085, 16
    %v8309 = vpop.permute.xlu0 %8308
    %8310 = vrot.lane.b32.xlu0 %v8153, 16
    %v8311 = vpop.permute.xlu0 %8310
    %8312 = vrot.lane.b32.xlu0 %v8221, 16
    %v8313 = vpop.permute.xlu0 %8312
    %8314 = vrot.lane.b32.xlu0 %v8289, 16
    %v8315 = vpop.permute.xlu0 %8314
    %8332 = vrot.lane.b32.xlu0 %v7814, 32
    %v8333 = vpop.permute.xlu0 %8332
    %8334 = vrot.lane.b32.xlu0 %v7882, 32
    %v8335 = vpop.permute.xlu0 %8334
    %8336 = vrot.lane.b32.xlu0 %v7950, 32
    %v8337 = vpop.permute.xlu0 %8336
    %8338 = vrot.lane.b32.xlu0 %v8018, 32
    %v8339 = vpop.permute.xlu0 %8338
    %8340 = vrot.lane.b32.xlu0 %v8086, 32
    %v8341 = vpop.permute.xlu0 %8340
    %8342 = vrot.lane.b32.xlu0 %v8154, 32
    %v8343 = vpop.permute.xlu0 %8342
    %8344 = vrot.lane.b32.xlu0 %v8222, 32
    %v8345 = vpop.permute.xlu0 %8344
    %8346 = vrot.lane.b32.xlu0 %v8290, 32
    %v8347 = vpop.permute.xlu0 %8346
    %8364 = vrot.lane.b32.xlu0 %v7815, 48
    %v8365 = vpop.permute.xlu0 %8364
    %8366 = vrot.lane.b32.xlu0 %v7883, 48
    %v8367 = vpop.permute.xlu0 %8366
    %8368 = vrot.lane.b32.xlu0 %v7951, 48
    %v8369 = vpop.permute.xlu0 %8368
    %8370 = vrot.lane.b32.xlu0 %v8019, 48
    %v8371 = vpop.permute.xlu0 %8370
    %8372 = vrot.lane.b32.xlu0 %v8087, 48
    %v8373 = vpop.permute.xlu0 %8372
    %8374 = vrot.lane.b32.xlu0 %v8155, 48
    %v8375 = vpop.permute.xlu0 %8374
    %8376 = vrot.lane.b32.xlu0 %v8223, 48
    %v8377 = vpop.permute.xlu0 %8376
    %8378 = vrot.lane.b32.xlu0 %v8291, 48
    %v8379 = vpop.permute.xlu0 %8378
    %v8388 = vsel %vm3873, %v7812, %v8301
    %v8389 = vsel %vm3873, %v7880, %v8303
    %v8390 = vsel %vm3873, %v7948, %v8305
    %v8391 = vsel %vm3873, %v8016, %v8307
    %v8392 = vsel %vm3873, %v8084, %v8309
    %v8393 = vsel %vm3873, %v8152, %v8311
    %v8394 = vsel %vm3873, %v8220, %v8313
    %v8395 = vsel %vm3873, %v8288, %v8315
    %vm8396 = vcmask 261120
    %v8397 = vsel %vm8396, %v8388, %v8333
    %v8398 = vsel %vm8396, %v8389, %v8335
    %v8399 = vsel %vm8396, %v8390, %v8337
    %v8400 = vsel %vm8396, %v8391, %v8339
    %v8401 = vsel %vm8396, %v8392, %v8341
    %v8402 = vsel %vm8396, %v8393, %v8343
    %v8403 = vsel %vm8396, %v8394, %v8345
    %v8404 = vsel %vm8396, %v8395, %v8347
    %vm8405 = vcmask 392192
    %v8406 = vsel %vm8405, %v8397, %v8365
    %v8407 = vsel %vm8405, %v8398, %v8367
    %v8408 = vsel %vm8405, %v8399, %v8369
    %v8409 = vsel %vm8405, %v8400, %v8371
    %v8410 = vsel %vm8405, %v8401, %v8373
    %v8411 = vsel %vm8405, %v8402, %v8375
    %v8412 = vsel %vm8405, %v8403, %v8377
    %v8413 = vsel %vm8405, %v8404, %v8379
    %v8414 = vpack.c.bf16 %v8407, %v8406
    %v8415 = vpack.c.bf16 %v8409, %v8408
    %v8416 = vpack.c.bf16 %v8411, %v8410
    %v8417 = vpack.c.bf16 %v8413, %v8412
    %v8418 = vld [vmem:[#allocation11] sm:$0xf]
    %v8419 = vld [vmem:[#allocation11 + $0x4] sm:$0xf]
    %v8420 = vld [vmem:[#allocation11 + $0x8] sm:$0xf]
    %v8421 = vld [vmem:[#allocation11 + $0xc] sm:$0xf]
    %v8422 = vld [vmem:[#allocation11 + $0x10] sm:$0xf]
    %v8423 = vld [vmem:[#allocation11 + $0x14] sm:$0xf]
    %v8424 = vld [vmem:[#allocation11 + $0x18] sm:$0xf]
    %v8425 = vld [vmem:[#allocation11 + $0x1c] sm:$0xf]
    %v8426 = vld [vmem:[#allocation13] sm:$0x1]
    %v8428 = vlaneseq
    %v8429 = vshrl.u32 %v8428, 7
    %v8430 = vsub.s32 0, %v8429
    %v8431 = vrot.slane %v8426, %v8430
    %v8441 = vunpack.c.l.b16 %v8418
    %v8442 = vunpack.c.l.b16 %v8419
    %v8443 = vunpack.c.l.b16 %v8420
    %v8444 = vunpack.c.l.b16 %v8421
    %v8445 = vunpack.c.l.b16 %v8422
    %v8446 = vunpack.c.l.b16 %v8423
    %v8447 = vunpack.c.l.b16 %v8424
    %v8448 = vunpack.c.l.b16 %v8425
    %v8449 = vpack.c.b16 %v8442, %v8441
    %v8450 = vpack.c.b16 %v8444, %v8443
    %v8451 = vpack.c.b16 %v8446, %v8445
    %v8452 = vpack.c.b16 %v8448, %v8447
    %v8458 = vsel %vm221, %v8414, 0
    %v8461 = vsel %vm221, %v8415, 0
    %v8464 = vsel %vm221, %v8416, 0
    %v8467 = vsel %vm221, %v8417, 0
    %8469 = vmatprep.subr.bf16.mxu0 0
    %8470 = vmatpush1.bf16.msra.mxu0 %v8449
    %8471 = vmatprep.subr.bf16.mxu0 0
    %8472 = vmatpush1.bf16.msra.mxu0 %v8450
    %8473 = vmatprep.subr.bf16.mxu0 0
    %8474 = vmatpush1.bf16.msra.mxu0 %v8451
    %8475 = vmatprep.subr.bf16.mxu0 0
    %8476 = vmatpush1.bf16.msra.mxu0 %v8452
    %8477 = vmatprep.subr.bf16.mxu0 0
    %8478 = vmatpush1.bf16.msra.mxu0 0
    %8479 = vmatprep.subr.bf16.mxu0 0
    %8480 = vmatpush1.bf16.msra.mxu0 0
    %8481 = vmatprep.subr.bf16.mxu0 0
    %8482 = vmatpush1.bf16.msra.mxu0 0
    %8483 = vmatprep.subr.bf16.mxu0 0
    %8484 = vmatpush1.bf16.msra.mxu0 0
    %8485 = vmatprep.subr.bf16.mxu0 0
    %8486 = vmatpush1.bf16.msra.mxu0 0
    %8487 = vmatprep.subr.bf16.mxu0 0
    %8488 = vmatpush1.bf16.msra.mxu0 0
    %8489 = vmatprep.subr.bf16.mxu0 0
    %8490 = vmatpush1.bf16.msra.mxu0 0
    %8491 = vmatprep.subr.bf16.mxu0 0
    %8492 = vmatpush1.bf16.msra.mxu0 0
    %8493 = vmatprep.subr.bf16.mxu0 0
    %8494 = vmatpush1.bf16.msra.mxu0 0
    %8495 = vmatprep.subr.bf16.mxu0 0
    %8496 = vmatpush1.bf16.msra.mxu0 0
    %8497 = vmatprep.subr.bf16.mxu0 0
    %8498 = vmatpush1.bf16.msra.mxu0 0
    %8499 = vmatprep.subr.bf16.mxu0 0
    %8500 = vmatpush1.bf16.msra.mxu0 0
    %8501 = vmatprep.mubr.bf16.mxu0 0
    %8502 = vmatmul.mubr.bf16.gmra.mrb[0].mxu0 %v8458
    %v8503 = vpop.f32.mrb[0].mxu0
    %v8504 = vadd.f32 %v8431, %v8503
    %v8505 = vpop.f32.mrb[0].mxu0
    %v8506 = vpop.f32.mrb[0].mxu0
    %v8507 = vadd.f32 %v8431, %v8506
    %v8508 = vpop.f32.mrb[0].mxu0
    %8509 = vmatprep.mubr.bf16.mxu0 0
    %8510 = vmatmul.mubr.bf16.gmra.mrb[0].mxu0 %v8461
    %v8511 = vpop.f32.mrb[0].mxu0
    %v8512 = vadd.f32 %v8431, %v8511
    %v8513 = vpop.f32.mrb[0].mxu0
    %v8514 = vpop.f32.mrb[0].mxu0
    %v8515 = vadd.f32 %v8431, %v8514
    %v8516 = vpop.f32.mrb[0].mxu0
    %8517 = vmatprep.mubr.bf16.mxu0 0
    %8518 = vmatmul.mubr.bf16.gmra.mrb[0].mxu0 %v8464
    %v8519 = vpop.f32.mrb[0].mxu0
    %v8520 = vadd.f32 %v8431, %v8519
    %v8521 = vpop.f32.mrb[0].mxu0
    %v8522 = vpop.f32.mrb[0].mxu0
    %v8523 = vadd.f32 %v8431, %v8522
    %v8524 = vpop.f32.mrb[0].mxu0
    %8525 = vmatprep.mubr.bf16.mxu0 0
    %8526 = vmatmul.mubr.bf16.gmra.mrb[0].mxu0 %v8467
    %v8527 = vpop.f32.mrb[0].mxu0
    %v8528 = vadd.f32 %v8431, %v8527
    %v8529 = vpop.f32.mrb[0].mxu0
    %v8530 = vpop.f32.mrb[0].mxu0
    %v8531 = vadd.f32 %v8431, %v8530
    %v8532 = vpop.f32.mrb[0].mxu0
    %8533 = vdwg.mxu0
    %v8534 = vpack.c.bf16 %v8507, %v8504
    %v8535 = vpack.c.bf16 %v8515, %v8512
    %v8536 = vpack.c.bf16 %v8523, %v8520
    %v8537 = vpack.c.bf16 %v8531, %v8528
    %v8538 = vld [vmem:[%s9] sm:$0xf]
    %v8539 = vld [vmem:[%s9 + $0x4] sm:$0xf]
    %v8540 = vld [vmem:[%s9 + $0x8] sm:$0xf]
    %v8541 = vld [vmem:[%s9 + $0xc] sm:$0xf]
    %v8542 = vld [vmem:[%s9 + $0x10] sm:$0xf]
    %v8543 = vld [vmem:[%s9 + $0x14] sm:$0xf]
    %v8544 = vld [vmem:[%s9 + $0x18] sm:$0xf]
    %v8545 = vld [vmem:[%s9 + $0x1c] sm:$0xf]
    %v8546 = vld [vmem:[%s10] sm:$0x1]
    %v8548 = vlaneseq
    %v8549 = vshrl.u32 %v8548, 7
    %v8550 = vsub.s32 0, %v8549
    %v8551 = vrot.slane %v8546, %v8550
    %v8561 = vunpack.c.l.b16 %v8538
    %v8562 = vunpack.c.l.b16 %v8539
    %v8563 = vunpack.c.l.b16 %v8540
    %v8564 = vunpack.c.l.b16 %v8541
    %v8565 = vunpack.c.l.b16 %v8542
    %v8566 = vunpack.c.l.b16 %v8543
    %v8567 = vunpack.c.l.b16 %v8544
    %v8568 = vunpack.c.l.b16 %v8545
    %v8569 = vpack.c.b16 %v8562, %v8561
    %v8570 = vpack.c.b16 %v8564, %v8563
    %v8571 = vpack.c.b16 %v8566, %v8565
    %v8572 = vpack.c.b16 %v8568, %v8567
    %v8578 = vsel %vm221, %v8534, 0
    %v8581 = vsel %vm221, %v8535, 0
    %v8584 = vsel %vm221, %v8536, 0
    %v8587 = vsel %vm221, %v8537, 0
    %8589 = vmatprep.subr.bf16.mxu0 0
    %8590 = vmatpush1.bf16.msra.mxu0 %v8569
    %8591 = vmatprep.subr.bf16.mxu0 0
    %8592 = vmatpush1.bf16.msra.mxu0 %v8570
    %8593 = vmatprep.subr.bf16.mxu0 0
    %8594 = vmatpush1.bf16.msra.mxu0 %v8571
    %8595 = vmatprep.subr.bf16.mxu0 0
    %8596 = vmatpush1.bf16.msra.mxu0 %v8572
    %8597 = vmatprep.subr.bf16.mxu0 0
    %8598 = vmatpush1.bf16.msra.mxu0 0
    %8599 = vmatprep.subr.bf16.mxu0 0
    %8600 = vmatpush1.bf16.msra.mxu0 0
    %8601 = vmatprep.subr.bf16.mxu0 0
    %8602 = vmatpush1.bf16.msra.mxu0 0
    %8603 = vmatprep.subr.bf16.mxu0 0
    %8604 = vmatpush1.bf16.msra.mxu0 0
    %8605 = vmatprep.subr.bf16.mxu0 0
    %8606 = vmatpush1.bf16.msra.mxu0 0
    %8607 = vmatprep.subr.bf16.mxu0 0
    %8608 = vmatpush1.bf16.msra.mxu0 0
    %8609 = vmatprep.subr.bf16.mxu0 0
    %8610 = vmatpush1.bf16.msra.mxu0 0
    %8611 = vmatprep.subr.bf16.mxu0 0
    %8612 = vmatpush1.bf16.msra.mxu0 0
    %8613 = vmatprep.subr.bf16.mxu0 0
    %8614 = vmatpush1.bf16.msra.mxu0 0
    %8615 = vmatprep.subr.bf16.mxu0 0
    %8616 = vmatpush1.bf16.msra.mxu0 0
    %8617 = vmatprep.subr.bf16.mxu0 0
    %8618 = vmatpush1.bf16.msra.mxu0 0
    %8619 = vmatprep.subr.bf16.mxu0 0
    %8620 = vmatpush1.bf16.msra.mxu0 0
    %8621 = vmatprep.mubr.bf16.mxu0 0
    %8622 = vmatmul.mubr.bf16.gmra.mrb[0].mxu0 %v8578
    %v8623 = vpop.f32.mrb[0].mxu0
    %v8624 = vadd.f32 %v8551, %v8623
    %v8625 = vpop.f32.mrb[0].mxu0
    %v8626 = vpop.f32.mrb[0].mxu0
    %v8627 = vadd.f32 %v8551, %v8626
    %v8628 = vpop.f32.mrb[0].mxu0
    %8629 = vmatprep.mubr.bf16.mxu0 0
    %8630 = vmatmul.mubr.bf16.gmra.mrb[0].mxu0 %v8581
    %v8631 = vpop.f32.mrb[0].mxu0
    %v8632 = vadd.f32 %v8551, %v8631
    %v8633 = vpop.f32.mrb[0].mxu0
    %v8634 = vpop.f32.mrb[0].mxu0
    %v8635 = vadd.f32 %v8551, %v8634
    %v8636 = vpop.f32.mrb[0].mxu0
    %8637 = vmatprep.mubr.bf16.mxu0 0
    %8638 = vmatmul.mubr.bf16.gmra.mrb[0].mxu0 %v8584
    %v8639 = vpop.f32.mrb[0].mxu0
    %v8640 = vadd.f32 %v8551, %v8639
    %v8641 = vpop.f32.mrb[0].mxu0
    %v8642 = vpop.f32.mrb[0].mxu0
    %v8643 = vadd.f32 %v8551, %v8642
    %v8644 = vpop.f32.mrb[0].mxu0
    %8645 = vmatprep.mubr.bf16.mxu0 0
    %8646 = vmatmul.mubr.bf16.gmra.mrb[0].mxu0 %v8587
    %v8647 = vpop.f32.mrb[0].mxu0
    %v8648 = vadd.f32 %v8551, %v8647
    %v8649 = vpop.f32.mrb[0].mxu0
    %v8650 = vpop.f32.mrb[0].mxu0
    %v8651 = vadd.f32 %v8551, %v8650
    %v8652 = vpop.f32.mrb[0].mxu0
    %8653 = vdwg.mxu0
    %v8654 = vpack.c.bf16 %v8627, %v8624
    %v8655 = vpack.c.bf16 %v8635, %v8632
    %v8656 = vpack.c.bf16 %v8643, %v8640
    %v8657 = vpack.c.bf16 %v8651, %v8648
    %v8658 = vld [vmem:[#allocation14] sm:$0xf]
    %v8659 = vld [vmem:[#allocation14 + $0x4] sm:$0xf]
    %v8660 = vld [vmem:[#allocation14 + $0x8] sm:$0xf]
    %v8661 = vld [vmem:[#allocation14 + $0xc] sm:$0xf]
    %v8662 = vld [vmem:[#allocation14 + $0x10] sm:$0xf]
    %v8663 = vld [vmem:[#allocation14 + $0x14] sm:$0xf]
    %v8664 = vld [vmem:[#allocation14 + $0x18] sm:$0xf]
    %v8665 = vld [vmem:[#allocation14 + $0x1c] sm:$0xf]
    %v8666 = vld [vmem:[%s12] sm:$0x1]
    %v8668 = vlaneseq
    %v8669 = vshrl.u32 %v8668, 7
    %v8670 = vsub.s32 0, %v8669
    %v8671 = vrot.slane %v8666, %v8670
    %v8681 = vunpack.c.l.b16 %v8658
    %v8682 = vunpack.c.l.b16 %v8659
    %v8683 = vunpack.c.l.b16 %v8660
    %v8684 = vunpack.c.l.b16 %v8661
    %v8685 = vunpack.c.l.b16 %v8662
    %v8686 = vunpack.c.l.b16 %v8663
    %v8687 = vunpack.c.l.b16 %v8664
    %v8688 = vunpack.c.l.b16 %v8665
    %v8689 = vpack.c.b16 %v8682, %v8681
    %v8690 = vpack.c.b16 %v8684, %v8683
    %v8691 = vpack.c.b16 %v8686, %v8685
    %v8692 = vpack.c.b16 %v8688, %v8687
    %v8698 = vsel %vm221, %v8654, 0
    %v8701 = vsel %vm221, %v8655, 0
    %v8704 = vsel %vm221, %v8656, 0
    %v8707 = vsel %vm221, %v8657, 0
    %8709 = vmatprep.subr.bf16.mxu0 0
    %8710 = vmatpush1.bf16.msra.mxu0 %v8689
    %8711 = vmatprep.subr.bf16.mxu0 0
    %8712 = vmatpush1.bf16.msra.mxu0 %v8690
    %8713 = vmatprep.subr.bf16.mxu0 0
    %8714 = vmatpush1.bf16.msra.mxu0 %v8691
    %8715 = vmatprep.subr.bf16.mxu0 0
    %8716 = vmatpush1.bf16.msra.mxu0 %v8692
    %8717 = vmatprep.subr.bf16.mxu0 0
    %8718 = vmatpush1.bf16.msra.mxu0 0
    %8719 = vmatprep.subr.bf16.mxu0 0
    %8720 = vmatpush1.bf16.msra.mxu0 0
    %8721 = vmatprep.subr.bf16.mxu0 0
    %8722 = vmatpush1.bf16.msra.mxu0 0
    %8723 = vmatprep.subr.bf16.mxu0 0
    %8724 = vmatpush1.bf16.msra.mxu0 0
    %8725 = vmatprep.subr.bf16.mxu0 0
    %8726 = vmatpush1.bf16.msra.mxu0 0
    %8727 = vmatprep.subr.bf16.mxu0 0
    %8728 = vmatpush1.bf16.msra.mxu0 0
    %8729 = vmatprep.subr.bf16.mxu0 0
    %8730 = vmatpush1.bf16.msra.mxu0 0
    %8731 = vmatprep.subr.bf16.mxu0 0
    %8732 = vmatpush1.bf16.msra.mxu0 0
    %8733 = vmatprep.subr.bf16.mxu0 0
    %8734 = vmatpush1.bf16.msra.mxu0 0
    %8735 = vmatprep.subr.bf16.mxu0 0
    %8736 = vmatpush1.bf16.msra.mxu0 0
    %8737 = vmatprep.subr.bf16.mxu0 0
    %8738 = vmatpush1.bf16.msra.mxu0 0
    %8739 = vmatprep.subr.bf16.mxu0 0
    %8740 = vmatpush1.bf16.msra.mxu0 0
    %8741 = vmatprep.mubr.bf16.mxu0 0
    %8742 = vmatmul.mubr.bf16.gmra.mrb[0].mxu0 %v8698
    %v8743 = vpop.f32.mrb[0].mxu0
    %v8744 = vadd.f32 %v8671, %v8743
    %v8745 = vpop.f32.mrb[0].mxu0
    %v8746 = vpop.f32.mrb[0].mxu0
    %v8747 = vadd.f32 %v8671, %v8746
    %v8748 = vpop.f32.mrb[0].mxu0
    %8749 = vmatprep.mubr.bf16.mxu0 0
    %8750 = vmatmul.mubr.bf16.gmra.mrb[0].mxu0 %v8701
    %v8751 = vpop.f32.mrb[0].mxu0
    %v8752 = vadd.f32 %v8671, %v8751
    %v8753 = vpop.f32.mrb[0].mxu0
    %v8754 = vpop.f32.mrb[0].mxu0
    %v8755 = vadd.f32 %v8671, %v8754
    %v8756 = vpop.f32.mrb[0].mxu0
    %8757 = vmatprep.mubr.bf16.mxu0 0
    %8758 = vmatmul.mubr.bf16.gmra.mrb[0].mxu0 %v8704
    %v8759 = vpop.f32.mrb[0].mxu0
    %v8760 = vadd.f32 %v8671, %v8759
    %v8761 = vpop.f32.mrb[0].mxu0
    %v8762 = vpop.f32.mrb[0].mxu0
    %v8763 = vadd.f32 %v8671, %v8762
    %v8764 = vpop.f32.mrb[0].mxu0
    %8765 = vmatprep.mubr.bf16.mxu0 0
    %8766 = vmatmul.mubr.bf16.gmra.mrb[0].mxu0 %v8707
    %v8767 = vpop.f32.mrb[0].mxu0
    %v8768 = vadd.f32 %v8671, %v8767
    %v8769 = vpop.f32.mrb[0].mxu0
    %v8770 = vpop.f32.mrb[0].mxu0
    %v8771 = vadd.f32 %v8671, %v8770
    %v8772 = vpop.f32.mrb[0].mxu0
    %8773 = vdwg.mxu0
    %v8774 = vtanh.pop %v8744
    %v8775 = vtanh.pop %v8747
    %v8776 = vtanh.pop %v8752
    %v8777 = vtanh.pop %v8755
    %v8778 = vtanh.pop %v8760
    %v8779 = vtanh.pop %v8763
    %v8780 = vtanh.pop %v8768
    %v8781 = vtanh.pop %v8771
    %v8782 = vld [vmem:[%s13] sm:$0x1]
    %v8784 = vlaneseq
    %v8785 = vshrl.u32 %v8784, 7
    %v8786 = vsub.s32 0, %v8785
    %v8787 = vrot.slane %v8782, %v8786
    %v8789 = vmul.f32 %v8774, %v8787
    %v8790 = vmul.f32 %v8775, %v8787
    %v8791 = vmul.f32 %v8776, %v8787
    %v8792 = vmul.f32 %v8777, %v8787
    %v8793 = vmul.f32 %v8778, %v8787
    %v8794 = vmul.f32 %v8779, %v8787
    %v8795 = vmul.f32 %v8780, %v8787
    %v8796 = vmul.f32 %v8781, %v8787
    %8797 = vadd.xlane.f32.xlu0 %v8789
    %v8798 = vpop.xlane.xlu0 %8797
    %8799 = vadd.xlane.f32.xlu0 %v8790
    %v8800 = vpop.xlane.xlu0 %8799
    %8801 = vadd.xlane.f32.xlu0 %v8791
    %v8802 = vpop.xlane.xlu0 %8801
    %8803 = vadd.xlane.f32.xlu0 %v8792
    %v8804 = vpop.xlane.xlu0 %8803
    %8805 = vadd.xlane.f32.xlu0 %v8793
    %v8806 = vpop.xlane.xlu0 %8805
    %8807 = vadd.xlane.f32.xlu0 %v8794
    %v8808 = vpop.xlane.xlu0 %8807
    %8809 = vadd.xlane.f32.xlu0 %v8795
    %v8810 = vpop.xlane.xlu0 %8809
    %8811 = vadd.xlane.f32.xlu0 %v8796
    %v8812 = vpop.xlane.xlu0 %8811
    %v8813 = vrot.slane %v8798, 4
    %v8814 = vmax.f32 %v8798, %v8813
    %v8815 = vrot.slane %v8814, 2
    %v8816 = vmax.f32 %v8814, %v8815
    %v8817 = vrot.slane %v8816, 1
    %v8818 = vmax.f32 %v8816, %v8817
    %v8819 = vrot.slane %v8800, 4
    %v8820 = vmax.f32 %v8800, %v8819
    %v8821 = vrot.slane %v8820, 2
    %v8822 = vmax.f32 %v8820, %v8821
    %v8823 = vrot.slane %v8822, 1
    %v8824 = vmax.f32 %v8822, %v8823
    %v8825 = vrot.slane %v8802, 4
    %v8826 = vmax.f32 %v8802, %v8825
    %v8827 = vrot.slane %v8826, 2
    %v8828 = vmax.f32 %v8826, %v8827
    %v8829 = vrot.slane %v8828, 1
    %v8830 = vmax.f32 %v8828, %v8829
    %v8831 = vrot.slane %v8804, 4
    %v8832 = vmax.f32 %v8804, %v8831
    %v8833 = vrot.slane %v8832, 2
    %v8834 = vmax.f32 %v8832, %v8833
    %v8835 = vrot.slane %v8834, 1
    %v8836 = vmax.f32 %v8834, %v8835
    %v8837 = vrot.slane %v8806, 4
    %v8838 = vmax.f32 %v8806, %v8837
    %v8839 = vrot.slane %v8838, 2
    %v8840 = vmax.f32 %v8838, %v8839
    %v8841 = vrot.slane %v8840, 1
    %v8842 = vmax.f32 %v8840, %v8841
    %v8843 = vrot.slane %v8808, 4
    %v8844 = vmax.f32 %v8808, %v8843
    %v8845 = vrot.slane %v8844, 2
    %v8846 = vmax.f32 %v8844, %v8845
    %v8847 = vrot.slane %v8846, 1
    %v8848 = vmax.f32 %v8846, %v8847
    %v8849 = vrot.slane %v8810, 4
    %v8850 = vmax.f32 %v8810, %v8849
    %v8851 = vrot.slane %v8850, 2
    %v8852 = vmax.f32 %v8850, %v8851
    %v8853 = vrot.slane %v8852, 1
    %v8854 = vmax.f32 %v8852, %v8853
    %v8855 = vrot.slane %v8812, 4
    %v8856 = vmax.f32 %v8812, %v8855
    %v8857 = vrot.slane %v8856, 2
    %v8858 = vmax.f32 %v8856, %v8857
    %v8859 = vrot.slane %v8858, 1
    %v8860 = vmax.f32 %v8858, %v8859
    %v8861 = vsub.f32 %v8798, %v8818
    %v8862 = vsub.f32 %v8800, %v8824
    %v8863 = vsub.f32 %v8802, %v8830
    %v8864 = vsub.f32 %v8804, %v8836
    %v8865 = vsub.f32 %v8806, %v8842
    %v8866 = vsub.f32 %v8808, %v8848
    %v8867 = vsub.f32 %v8810, %v8854
    %v8868 = vsub.f32 %v8812, %v8860
    %v8869 = vmul.f32 %v8861, 1.442695
    %v8870 = vpow.pop %v8869
    %v8871 = vmul.f32 %v8862, 1.442695
    %v8872 = vpow.pop %v8871
    %v8873 = vmul.f32 %v8863, 1.442695
    %v8874 = vpow.pop %v8873
    %v8875 = vmul.f32 %v8864, 1.442695
    %v8876 = vpow.pop %v8875
    %v8877 = vmul.f32 %v8865, 1.442695
    %v8878 = vpow.pop %v8877
    %v8879 = vmul.f32 %v8866, 1.442695
    %v8880 = vpow.pop %v8879
    %v8881 = vmul.f32 %v8867, 1.442695
    %v8882 = vpow.pop %v8881
    %v8883 = vmul.f32 %v8868, 1.442695
    %v8884 = vpow.pop %v8883
    %v8885 = vrot.slane %v8870, 4
    %v8886 = vadd.f32 %v8870, %v8885
    %v8887 = vrot.slane %v8886, 2
    %v8888 = vadd.f32 %v8886, %v8887
    %v8889 = vrot.slane %v8888, 1
    %v8890 = vadd.f32 %v8888, %v8889
    %v8891 = vrot.slane %v8872, 4
    %v8892 = vadd.f32 %v8872, %v8891
    %v8893 = vrot.slane %v8892, 2
    %v8894 = vadd.f32 %v8892, %v8893
    %v8895 = vrot.slane %v8894, 1
    %v8896 = vadd.f32 %v8894, %v8895
    %v8897 = vrot.slane %v8874, 4
    %v8898 = vadd.f32 %v8874, %v8897
    %v8899 = vrot.slane %v8898, 2
    %v8900 = vadd.f32 %v8898, %v8899
    %v8901 = vrot.slane %v8900, 1
    %v8902 = vadd.f32 %v8900, %v8901
    %v8903 = vrot.slane %v8876, 4
    %v8904 = vadd.f32 %v8876, %v8903
    %v8905 = vrot.slane %v8904, 2
    %v8906 = vadd.f32 %v8904, %v8905
    %v8907 = vrot.slane %v8906, 1
    %v8908 = vadd.f32 %v8906, %v8907
    %v8909 = vrot.slane %v8878, 4
    %v8910 = vadd.f32 %v8878, %v8909
    %v8911 = vrot.slane %v8910, 2
    %v8912 = vadd.f32 %v8910, %v8911
    %v8913 = vrot.slane %v8912, 1
    %v8914 = vadd.f32 %v8912, %v8913
    %v8915 = vrot.slane %v8880, 4
    %v8916 = vadd.f32 %v8880, %v8915
    %v8917 = vrot.slane %v8916, 2
    %v8918 = vadd.f32 %v8916, %v8917
    %v8919 = vrot.slane %v8918, 1
    %v8920 = vadd.f32 %v8918, %v8919
    %v8921 = vrot.slane %v8882, 4
    %v8922 = vadd.f32 %v8882, %v8921
    %v8923 = vrot.slane %v8922, 2
    %v8924 = vadd.f32 %v8922, %v8923
    %v8925 = vrot.slane %v8924, 1
    %v8926 = vadd.f32 %v8924, %v8925
    %v8927 = vrot.slane %v8884, 4
    %v8928 = vadd.f32 %v8884, %v8927
    %v8929 = vrot.slane %v8928, 2
    %v8930 = vadd.f32 %v8928, %v8929
    %v8931 = vrot.slane %v8930, 1
    %v8932 = vadd.f32 %v8930, %v8931
    %v8933 = vrcp.pop %v8890
    %v8934 = vrcp.pop %v8896
    %v8935 = vrcp.pop %v8902
    %v8936 = vrcp.pop %v8908
    %v8937 = vrcp.pop %v8914
    %v8938 = vrcp.pop %v8920
    %v8939 = vrcp.pop %v8926
    %v8940 = vrcp.pop %v8932
    %v8941 = vmul.f32 %v8870, %v8933
    %v8942 = vmul.f32 %v8872, %v8934
    %v8943 = vmul.f32 %v8874, %v8935
    %v8944 = vmul.f32 %v8876, %v8936
    %v8945 = vmul.f32 %v8878, %v8937
    %v8946 = vmul.f32 %v8880, %v8938
    %v8947 = vmul.f32 %v8882, %v8939
    %v8948 = vmul.f32 %v8884, %v8940
    %v8949 = vmul.f32 %v8941, %v8624
    %v8950 = vmul.f32 %v8942, %v8627
    %v8951 = vmul.f32 %v8943, %v8632
    %v8952 = vmul.f32 %v8944, %v8635
    %v8953 = vmul.f32 %v8945, %v8640
    %v8954 = vmul.f32 %v8946, %v8643
    %v8955 = vmul.f32 %v8947, %v8648
    %v8956 = vmul.f32 %v8948, %v8651
    %v8957 = vsel %vm221, %v8949, 0.0
    %v8958 = vrot.slane %v8957, 4
    %v8959 = vadd.f32 %v8957, %v8958
    %v8960 = vrot.slane %v8959, 2
    %v8961 = vadd.f32 %v8959, %v8960
    %v8962 = vrot.slane %v8961, 1
    %v8963 = vadd.f32 %v8961, %v8962
    %v8964 = vsel %vm221, %v8950, 0.0
    %v8965 = vrot.slane %v8964, 4
    %v8966 = vadd.f32 %v8964, %v8965
    %v8967 = vrot.slane %v8966, 2
    %v8968 = vadd.f32 %v8966, %v8967
    %v8969 = vrot.slane %v8968, 1
    %v8970 = vadd.f32 %v8968, %v8969
    %v8971 = vsel %vm221, %v8951, 0.0
    %v8972 = vrot.slane %v8971, 4
    %v8973 = vadd.f32 %v8971, %v8972
    %v8974 = vrot.slane %v8973, 2
    %v8975 = vadd.f32 %v8973, %v8974
    %v8976 = vrot.slane %v8975, 1
    %v8977 = vadd.f32 %v8975, %v8976
    %v8978 = vsel %vm221, %v8952, 0.0
    %v8979 = vrot.slane %v8978, 4
    %v8980 = vadd.f32 %v8978, %v8979
    %v8981 = vrot.slane %v8980, 2
    %v8982 = vadd.f32 %v8980, %v8981
    %v8983 = vrot.slane %v8982, 1
    %v8984 = vadd.f32 %v8982, %v8983
    %v8985 = vsel %vm221, %v8953, 0.0
    %v8986 = vrot.slane %v8985, 4
    %v8987 = vadd.f32 %v8985, %v8986
    %v8988 = vrot.slane %v8987, 2
    %v8989 = vadd.f32 %v8987, %v8988
    %v8990 = vrot.slane %v8989, 1
    %v8991 = vadd.f32 %v8989, %v8990
    %v8992 = vsel %vm221, %v8954, 0.0
    %v8993 = vrot.slane %v8992, 4
    %v8994 = vadd.f32 %v8992, %v8993
    %v8995 = vrot.slane %v8994, 2
    %v8996 = vadd.f32 %v8994, %v8995
    %v8997 = vrot.slane %v8996, 1
    %v8998 = vadd.f32 %v8996, %v8997
    %v8999 = vsel %vm221, %v8955, 0.0
    %v9000 = vrot.slane %v8999, 4
    %v9001 = vadd.f32 %v8999, %v9000
    %v9002 = vrot.slane %v9001, 2
    %v9003 = vadd.f32 %v9001, %v9002
    %v9004 = vrot.slane %v9003, 1
    %v9005 = vadd.f32 %v9003, %v9004
    %v9006 = vsel %vm221, %v8956, 0.0
    %v9007 = vrot.slane %v9006, 4
    %v9008 = vadd.f32 %v9006, %v9007
    %v9009 = vrot.slane %v9008, 2
    %v9010 = vadd.f32 %v9008, %v9009
    %v9011 = vrot.slane %v9010, 1
    %v9012 = vadd.f32 %v9010, %v9011
    %vm9021 = vcmask 1041409
    %v9022 = vsel %vm9021, %v8970, %v8963
    %vm9023 = vcmask 1042434
    %v9024 = vsel %vm9023, %v8977, %v9022
    %vm9025 = vcmask 1043459
    %v9026 = vsel %vm9025, %v8984, %v9024
    %vm9027 = vcmask 1044484
    %v9028 = vsel %vm9027, %v8991, %v9026
    %vm9029 = vcmask 1045509
    %v9030 = vsel %vm9029, %v8998, %v9028
    %vm9031 = vcmask 1046534
    %v9032 = vsel %vm9031, %v9005, %v9030
    %vm9033 = vcmask 1047559
    %v9034 = vsel %vm9033, %v9012, %v9032
    %9036 = vst.msk [vmem:[#allocation16] sm:$0xff] %vm221, %v9034
    // Predicated region
    $region90: #{tpu_custom_call.1} parent=1 // pred_check
      _
    $region91: #{tpu_custom_call.1} parent=1 // pred_check_branch
      %9038 = sbr.rel (0) target = $region93
    $region92: #{tpu_custom_call.1} parent=1 // pred_region
      %s9040 = ssub.s32 128, 128
      %9041 = vsyncadd [#allocation4], %s9040
      %s9043 = sshll.u32 [#allocation16], 4
      %s9044 = int_to_ptr.vmem [resolvable:$true] %s9043
      %9046 = dma.vmem_to_hbm [thread:$0]  %s9044, 128, %s14, [#allocation4]
    $region93: #{tpu_custom_call.1} parent=1 // pred_fallthru
      _
    // Predicated region
    $region94: #{tpu_custom_call.1} parent=1 // pred_check
      _
    $region95: #{tpu_custom_call.1} parent=1 // pred_check_branch
      %9048 = sbr.rel (0) target = $region97
    $region96: #{tpu_custom_call.1} parent=1 // pred_region
      %9049 = dma.done [#allocation4], 128
    $region97: #{tpu_custom_call.1} parent=1 // pred_fallthru
      _
    %9050 = vsyncpa [#allocation3], 1
    %9051 = vsyncpa [#allocation6], 1
    %9052 = vsyncpa [#allocation9], 1
    %9053 = vsyncpa [#allocation12], 1
    %9054 = vsyncpa [#allocation15], 1
    %9055 = vsyncpa [#allocation4], 1

</llo_original>
